<compile_context>
chip_gen: v7x
topology: tpu7x:2x2x1
jax: 0.10.0
libtpu: 0.0.40
codegen_flags: <defaults>
</compile_context>

<pallas_src>
import functools

import jax
import jax.numpy as jnp
from jax.experimental import pallas as pl
from jax.experimental.pallas import tpu as pltpu

_VMEM_LIMIT = 32 * 1024 * 1024  # fits the default scoped VMEM on v5e/v6e/v7x


def _round_up(x, m):
    return (x + m - 1) // m * m


# ---------------------------------------------------------------------------
# Fused matmul:  act(x @ w + shift)   (bf16 MXU matmul, f32 accumulation)
# ---------------------------------------------------------------------------
def _fused_mm_kernel(x_ref, w_ref, s_ref, o_ref, *, apply_relu):
    acc = jnp.dot(x_ref[...], w_ref[...], preferred_element_type=jnp.float32)
    y = acc + s_ref[...]
    if apply_relu:
        y = jnp.maximum(y, 0.0)
    o_ref[...] = y.astype(o_ref.dtype)


def fused_matmul(x, w, shift, *, apply_relu):
    """x: (M, K), w: (K, N) bf16 (BN/bias folded into shift), shift: (1, N) f32.
    Tiled over M ("parallel") so the x tiles are pipelined; w/shift stay resident."""
    M, K = x.shape
    K2, N = w.shape
    assert K == K2
    x = x.astype(jnp.bfloat16)
    w = w.astype(jnp.bfloat16)
    shift = shift.reshape(1, N).astype(jnp.float32)

    tile_m = 256 if M >= 256 else _round_up(M, 8)
    Mp = _round_up(M, tile_m)
    if Mp != M:
        x = jnp.pad(x, ((0, Mp - M), (0, 0)))  # pads at most tile_m-1 rows

    cost = pl.CostEstimate(
        flops=2 * Mp * K * N,
        transcendentals=0,
        bytes_accessed=Mp * K * 2 + K * N * 2 + N * 4 + Mp * N * 4,
    )
    out = pl.pallas_call(
        functools.partial(_fused_mm_kernel, apply_relu=apply_relu),
        out_shape=jax.ShapeDtypeStruct((Mp, N), jnp.float32),
        grid=(Mp // tile_m,),
        in_specs=[
            pl.BlockSpec((tile_m, K), lambda i: (i, 0)),
            pl.BlockSpec((K, N), lambda i: (0, 0)),   # resident weight
            pl.BlockSpec((1, N), lambda i: (0, 0)),   # resident shift
        ],
        out_specs=pl.BlockSpec((tile_m, N), lambda i: (i, 0)),
        compiler_params=pltpu.CompilerParams(
            dimension_semantics=("parallel",),
            vmem_limit_bytes=_VMEM_LIMIT,
        ),
        cost_estimate=cost,
    )(x, w, shift)
    return out[:M]


# ---------------------------------------------------------------------------
# Direct 3x3x3 conv (pad=1) + folded BN + ReLU, NDHWC, no HBM im2col.
# ---------------------------------------------------------------------------
def _conv3x3x3_kernel(x0_ref, x1_ref, x2_ref, w_ref, s_ref, o_ref, col_ref):
    # xk_ref: (1, 1, Hp, Wp, Cin) bf16  -- padded depth rows d, d+1, d+2
    # w_ref : (27*Cin, Cout) bf16 (BN-folded);  s_ref: (1, Cout) f32
    # o_ref : (1, 1, H*W, Cout) f32
    # col_ref: VMEM scratch (H*W, 27*Cin) bf16 -- per-block im2col (never touches HBM)
    _, _, Hp, Wp, Cin = x0_ref.shape
    H, W = Hp - 2, Wp - 2
    # Gather the 3x3x3 window: rows = output (h, w), columns = (kd, kh, kw, cin).
    for kd, x_r in enumerate((x0_ref, x1_ref, x2_ref)):
        for kh in range(3):
            for kw in range(3):
                t = (kd * 3 + kh) * 3 + kw
                for h in range(H):
                    col_ref[h * W:(h + 1) * W, t * Cin:(t + 1) * Cin] = (
                        x_r[0, 0, h + kh, kw:kw + W, :])
    acc = jnp.dot(col_ref[...], w_ref[...], preferred_element_type=jnp.float32)
    y = acc + s_ref[...]
    o_ref[0, 0] = jnp.maximum(y, 0.0).astype(o_ref.dtype)


def conv3x3x3_bn_relu(x, w, shift):
    """'same' 3x3x3 conv + folded BN + ReLU on an NDHWC activation (D,H,W arbitrary)."""
    B, D, H, W, Cin = x.shape
    Cout = w.shape[1]
    assert w.shape[0] == 27 * Cin
    xp = jnp.pad(x, ((0, 0), (1, 1), (1, 1), (1, 1), (0, 0))).astype(jnp.bfloat16)
    Hp, Wp = H + 2, W + 2
    w = w.astype(jnp.bfloat16)
    shift = shift.reshape(1, Cout).astype(jnp.float32)

    cost = pl.CostEstimate(
        flops=2 * B * D * H * W * 27 * Cin * Cout,
        transcendentals=0,
        bytes_accessed=3 * xp.size * 2 + w.size * 2 + Cout * 4 + B * D * H * W * Cout * 4,
    )
    out = pl.pallas_call(
        _conv3x3x3_kernel,
        out_shape=jax.ShapeDtypeStruct((B, D, H * W, Cout), jnp.float32),
        grid=(B, D),
        in_specs=[
            # three streams over the same padded activation: padded D rows d, d+1, d+2
            pl.BlockSpec((1, 1, Hp, Wp, Cin), lambda b, d: (b, d, 0, 0, 0)),
            pl.BlockSpec((1, 1, Hp, Wp, Cin), lambda b, d: (b, d + 1, 0, 0, 0)),
            pl.BlockSpec((1, 1, Hp, Wp, Cin), lambda b, d: (b, d + 2, 0, 0, 0)),
            pl.BlockSpec((27 * Cin, Cout), lambda b, d: (0, 0)),   # resident weight
            pl.BlockSpec((1, Cout), lambda b, d: (0, 0)),          # resident shift
        ],
        out_specs=pl.BlockSpec((1, 1, H * W, Cout), lambda b, d: (b, d, 0, 0)),
        scratch_shapes=[pltpu.VMEM((H * W, 27 * Cin), jnp.bfloat16)],
        compiler_params=pltpu.CompilerParams(
            dimension_semantics=("parallel", "parallel"),
            vmem_limit_bytes=_VMEM_LIMIT,
        ),
        cost_estimate=cost,
    )(xp, xp, xp, w, shift)
    return out.reshape(B, D, H, W, Cout)


# ---------------------------------------------------------------------------
# MaxPool3d(2,2,2) stride 2 on NDHWC.  The window regrouping is a *free* row-major
# reshape (no HBM transpose): (B,D,H,W,C) -> (B*D2, 2*H2, 2*W2, 2*C), where
# axis1 = (dz, h2), axis2 = (hz, w2), axis3 = (wz, c).
# ---------------------------------------------------------------------------
def _maxpool_kernel(x_ref, o_ref):
    _, H2, W2, C = o_ref.shape
    x = x_ref[0]                                     # (2*H2, 2*W2, 2*C)
    m = jnp.maximum(x[:H2], x[H2:])                  # pool over the depth pair
    m = jnp.maximum(m[:, :W2], m[:, W2:])            # pool over the height pair
    o_ref[0] = jnp.maximum(m[..., :C], m[..., C:])   # pool over the width pair


def maxpool3d_2x2x2(x):
    B, D, H, W, C = x.shape
    D2, H2, W2 = D // 2, H // 2, W // 2
    xr = x.reshape(B * D2, 2 * H2, 2 * W2, 2 * C)    # free (bitcast) reshape
    out = pl.pallas_call(
        _maxpool_kernel,
        out_shape=jax.ShapeDtypeStruct((B * D2, H2, W2, C), x.dtype),
        grid=(B * D2,),
        in_specs=[pl.BlockSpec((1, 2 * H2, 2 * W2, 2 * C), lambda i: (i, 0, 0, 0))],
        out_specs=pl.BlockSpec((1, H2, W2, C), lambda i: (i, 0, 0, 0)),
        compiler_params=pltpu.CompilerParams(
            dimension_semantics=("parallel",),
            vmem_limit_bytes=_VMEM_LIMIT,
        ),
    )(xr)
    return out.reshape(B, D2, H2, W2, C)


# ---------------------------------------------------------------------------
# im2col (only used for conv1, Cin=1, where the patch matrix is tiny)
# ---------------------------------------------------------------------------
def _im2col_3d(x):
    B, D, H, W, C = x.shape
    xp = jnp.pad(x, ((0, 0), (1, 1), (1, 1), (1, 1), (0, 0)))
    taps = []
    for kd in range(3):
        for kh in range(3):
            for kw in range(3):
                taps.append(xp[:, kd:kd + D, kh:kh + H, kw:kw + W, :])
    patches = jnp.stack(taps, axis=-2)               # (B, D, H, W, 27, C)
    return patches.reshape(B * D * H * W, 27 * C)


# ---------------------------------------------------------------------------
# Parameters (deterministic, in-script; BN folded, bf16, fc1 rows permuted)
# ---------------------------------------------------------------------------
def init_params(key, num_classes, max_time_steps):
    keys = jax.random.split(key, 5)
    eps = 1e-5

    def conv_block(k, cin, cout):
        std = 1.0 / jnp.sqrt(cin * 27.0)
        # PyTorch Conv3d weight (Cout, Cin, kD, kH, kW) -> matmul matrix (27*Cin, Cout)
        w = jax.random.normal(k, (cout, cin, 3, 3, 3), jnp.float32) * std
        b = jax.random.normal(jax.random.fold_in(k, 1), (cout,), jnp.float32) * std
        # BatchNorm3d eval mode: gamma=1, beta=0, running_mean=0, running_var=1
        gamma = jnp.ones((cout,), jnp.float32)
        beta = jnp.zeros((cout,), jnp.float32)
        mean = jnp.zeros((cout,), jnp.float32)
        var = jnp.ones((cout,), jnp.float32)
        scale = gamma / jnp.sqrt(var + eps)
        shift = beta - mean * scale
        w_mat = jnp.transpose(w, (2, 3, 4, 1, 0)).reshape(27 * cin, cout)
        # fold BN scale into the weights and (conv bias, BN shift) into one shift vector
        w_folded = (w_mat * scale[None, :]).astype(jnp.bfloat16)
        s_folded = (b * scale + shift).reshape(1, cout).astype(jnp.float32)
        return dict(w=w_folded, s=s_folded)

    def linear(k, din, dout, row_perm=None):
        std = 1.0 / jnp.sqrt(float(din))
        w = jax.random.normal(k, (din, dout), jnp.float32) * std
        b = jax.random.normal(jax.random.fold_in(k, 1), (dout,), jnp.float32) * std
        if row_perm is not None:
            w = w[row_perm]   # NCDHW flatten order -> NDHWC flatten order
        return dict(w=w.astype(jnp.bfloat16), s=b.reshape(1, dout).astype(jnp.float32))

    d3, h3, w3, c3 = max_time_steps // 8, 1, 1, 128
    fc1_in = c3 * d3 * h3 * w3
    # fc1 rows are defined in PyTorch's NCDHW flatten order; we feed NDHWC-flattened
    # features, so permute rows once at init (removes the runtime transpose).
    perm = jnp.transpose(jnp.arange(fc1_in).reshape(c3, d3, h3, w3), (1, 2, 3, 0)).reshape(-1)
    return {
        "conv1": conv_block(keys[0], 1, 32),
        "conv2": conv_block(keys[1], 32, 64),
        "conv3": conv_block(keys[2], 64, 128),
        "fc1": linear(keys[3], fc1_in, 256, row_perm=perm),
        "fc2": linear(keys[4], 256, num_classes),
    }


# ---------------------------------------------------------------------------
# Forward pass (matches Conv3DModel.forward, eval mode)
# ---------------------------------------------------------------------------
def conv3d_model_forward(params, x_ncdhw):
    # NCDHW -> NDHWC (free: C == 1)
    x = jnp.transpose(x_ncdhw, (0, 2, 3, 4, 1)).astype(jnp.float32)

    # conv1 (Cin=1): im2col + tiled fused matmul (per-tap K=1 is too small for the
    # direct-conv MXU path; the Cin=1 patch matrix is tiny).
    B, D, H, W, _ = x.shape
    patches = _im2col_3d(x).astype(jnp.bfloat16)
    y = fused_matmul(patches, params["conv1"]["w"], params["conv1"]["s"], apply_relu=True)
    x = maxpool3d_2x2x2(y.reshape(B, D, H, W, -1))

    # conv2 / conv3: direct Pallas conv (im2col lives only in VMEM scratch)
    for name in ("conv2", "conv3"):
        p = params[name]
        y = conv3x3x3_bn_relu(x, p["w"], p["s"])
        x = maxpool3d_2x2x2(y)

    B = x.shape[0]
    flat = x.reshape(B, -1)           # NDHWC flatten (fc1 rows were permuted at init)
    h = fused_matmul(flat, params["fc1"]["w"], params["fc1"]["s"], apply_relu=True)
    # TODO(synk): Dropout(0.5) is identity in eval mode; a training port needs a PRNG mask.
    out = fused_matmul(h, params["fc2"]["w"], params["fc2"]["s"], apply_relu=False)
    return out


if __name__ == "__main__":
    num_classes = 5
    max_time_steps = 8   # T; H = W = 8 so three 2x pools reduce spatial to 1x1 (as fc1 expects)

    key = jax.random.PRNGKey(0)
    pkey, xkey = jax.random.split(key)
    params = init_params(pkey, num_classes, max_time_steps)

    x = jax.random.normal(xkey, (2, 1, max_time_steps, 8, 8), jnp.float32)  # NCDHW

    fwd = jax.jit(conv3d_model_forward)
    out = jax.block_until_ready(fwd(params, x))
    assert out.shape == (2, num_classes), out.shape
    assert out.dtype == jnp.float32
    print("KERNEL_OK")
</pallas_src>

<mosaic_0001>
module attributes {stable_mosaic.version = 11 : i64} {
  func.func @_fused_mm_kernel(%arg0: i32, %arg1: memref<256x27xbf16, #tpu.memory_space<vmem>>, %arg2: memref<27x32xbf16, #tpu.memory_space<vmem>>, %arg3: memref<1x32xf32, #tpu.memory_space<vmem>>, %arg4: memref<256x32xf32, #tpu.memory_space<vmem>>) attributes {dimension_semantics = [#tpu.dimension_semantics<parallel>], iteration_bounds = array<i64: 4>, scalar_prefetch = 0 : i64, scratch_operands = 0 : i64, tpu.core_type = #tpu.core_type<tc>, window_params = [{transform_indices = @transform_0, window_bounds = array<i64: 256, 27>}, {pipeline_mode = #tpu.pipeline_mode<synchronous>, transform_indices = @transform_1, window_bounds = array<i64: 27, 32>}, {pipeline_mode = #tpu.pipeline_mode<synchronous>, transform_indices = @transform_2, window_bounds = array<i64: 1, 32>}, {transform_indices = @transform_3, window_bounds = array<i64: 256, 32>}]} {
    %c0 = arith.constant 0 : index
    %c0_0 = arith.constant 0 : index
    %0 = vector.load %arg1[%c0, %c0_0] : memref<256x27xbf16, #tpu.memory_space<vmem>>, vector<256x27xbf16>
    %c0_1 = arith.constant 0 : index
    %c0_2 = arith.constant 0 : index
    %1 = vector.load %arg2[%c0_1, %c0_2] : memref<27x32xbf16, #tpu.memory_space<vmem>>, vector<27x32xbf16>
    %cst = arith.constant dense<0.000000e+00> : vector<256x32xf32>
    %2 = tpu.matmul %0, %1, %cst {dimension_numbers = #tpu.dot_dimension_numbers<[1], [0], [0], [1], [0, 0, 1, 1], [], []>} : vector<256x27xbf16>, vector<27x32xbf16>, vector<256x32xf32> -> vector<256x32xf32>
    %c0_3 = arith.constant 0 : index
    %c0_4 = arith.constant 0 : index
    %3 = vector.load %arg3[%c0_3, %c0_4] : memref<1x32xf32, #tpu.memory_space<vmem>>, vector<1x32xf32>
    %4 = vector.broadcast %3 : vector<1x32xf32> to vector<256x32xf32>
    %5 = arith.addf %2, %4 : vector<256x32xf32>
    %cst_5 = arith.constant 0.000000e+00 : f32
    %6 = vector.broadcast %cst_5 : f32 to vector<256x32xf32>
    %7 = arith.maximumf %5, %6 : vector<256x32xf32>
    %c0_6 = arith.constant 0 : index
    %c0_7 = arith.constant 0 : index
    %8 = vector.load %arg4[%c0_6, %c0_7] : memref<256x32xf32, #tpu.memory_space<vmem>>, vector<256x32xf32>
    tpu.vector_store %arg4[%c0_6, %c0_7], %7 {strides = array<i32>} : memref<256x32xf32, #tpu.memory_space<vmem>>, vector<256x32xf32>,
    return
  }
  func.func @transform_0(%arg0: i32) -> (i32, i32) {
    %c0_i32 = arith.constant 0 : i32
    %c0_i32_0 = arith.constant 0 : i32
    return %arg0, %c0_i32 : i32, i32
  }
  func.func @transform_1(%arg0: i32) -> (i32, i32) {
    %c0_i32 = arith.constant 0 : i32
    %c0_i32_0 = arith.constant 0 : i32
    %c0_i32_1 = arith.constant 0 : i32
    return %c0_i32, %c0_i32_0 : i32, i32
  }
  func.func @transform_2(%arg0: i32) -> (i32, i32) {
    %c0_i32 = arith.constant 0 : i32
    %c0_i32_0 = arith.constant 0 : i32
    %c0_i32_1 = arith.constant 0 : i32
    return %c0_i32, %c0_i32_0 : i32, i32
  }
  func.func @transform_3(%arg0: i32) -> (i32, i32) {
    %c0_i32 = arith.constant 0 : i32
    %c0_i32_0 = arith.constant 0 : i32
    return %arg0, %c0_i32 : i32, i32
  }
}

module attributes {stable_mosaic.version = 11 : i64} {
  func.func @_maxpool_kernel(%arg0: i32, %arg1: memref<1x8x8x64xf32, #tpu.memory_space<vmem>>, %arg2: memref<1x4x4x32xf32, #tpu.memory_space<vmem>>) attributes {dimension_semantics = [#tpu.dimension_semantics<parallel>], iteration_bounds = array<i64: 8>, scalar_prefetch = 0 : i64, scratch_operands = 0 : i64, tpu.core_type = #tpu.core_type<tc>, window_params = [{transform_indices = @transform_0, window_bounds = array<i64: 1, 8, 8, 64>}, {transform_indices = @transform_1, window_bounds = array<i64: 1, 4, 4, 32>}]} {
    %c0 = arith.constant 0 : index
    %c0_0 = arith.constant 0 : index
    %c0_1 = arith.constant 0 : index
    %c0_2 = arith.constant 0 : index
    %0 = vector.load %arg1[%c0, %c0_0, %c0_1, %c0_2] : memref<1x8x8x64xf32, #tpu.memory_space<vmem>>, vector<1x8x8x64xf32>
    %1 = vector.shape_cast %0 : vector<1x8x8x64xf32> to vector<8x8x64xf32>
    %2 = vector.extract_strided_slice %1 {offsets = [0, 0, 0], sizes = [4, 8, 64], strides = [1, 1, 1]} : vector<8x8x64xf32> to vector<4x8x64xf32>
    %3 = vector.extract_strided_slice %1 {offsets = [4, 0, 0], sizes = [4, 8, 64], strides = [1, 1, 1]} : vector<8x8x64xf32> to vector<4x8x64xf32>
    %4 = arith.maximumf %2, %3 : vector<4x8x64xf32>
    %5 = vector.extract_strided_slice %4 {offsets = [0, 0, 0], sizes = [4, 4, 64], strides = [1, 1, 1]} : vector<4x8x64xf32> to vector<4x4x64xf32>
    %6 = vector.extract_strided_slice %4 {offsets = [0, 4, 0], sizes = [4, 4, 64], strides = [1, 1, 1]} : vector<4x8x64xf32> to vector<4x4x64xf32>
    %7 = arith.maximumf %5, %6 : vector<4x4x64xf32>
    %8 = vector.extract_strided_slice %7 {offsets = [0, 0, 0], sizes = [4, 4, 32], strides = [1, 1, 1]} : vector<4x4x64xf32> to vector<4x4x32xf32>
    %9 = vector.extract_strided_slice %7 {offsets = [0, 0, 32], sizes = [4, 4, 32], strides = [1, 1, 1]} : vector<4x4x64xf32> to vector<4x4x32xf32>
    %10 = arith.maximumf %8, %9 : vector<4x4x32xf32>
    %c0_3 = arith.constant 0 : index
    %c0_4 = arith.constant 0 : index
    %c0_5 = arith.constant 0 : index
    %c0_6 = arith.constant 0 : index
    %11 = vector.load %arg2[%c0_3, %c0_4, %c0_5, %c0_6] : memref<1x4x4x32xf32, #tpu.memory_space<vmem>>, vector<1x4x4x32xf32>
    %12 = vector.shape_cast %11 : vector<1x4x4x32xf32> to vector<4x4x32xf32>
    %13 = vector.shape_cast %10 : vector<4x4x32xf32> to vector<1x4x4x32xf32>
    tpu.vector_store %arg2[%c0_3, %c0_4, %c0_5, %c0_6], %13 {strides = array<i32>} : memref<1x4x4x32xf32, #tpu.memory_space<vmem>>, vector<1x4x4x32xf32>,
    return
  }
  func.func @transform_0(%arg0: i32) -> (i32, i32, i32, i32) {
    %c0_i32 = arith.constant 0 : i32
    %c0_i32_0 = arith.constant 0 : i32
    %c0_i32_1 = arith.constant 0 : i32
    %c0_i32_2 = arith.constant 0 : i32
    return %arg0, %c0_i32, %c0_i32_0, %c0_i32_1 : i32, i32, i32, i32
  }
  func.func @transform_1(%arg0: i32) -> (i32, i32, i32, i32) {
    %c0_i32 = arith.constant 0 : i32
    %c0_i32_0 = arith.constant 0 : i32
    %c0_i32_1 = arith.constant 0 : i32
    %c0_i32_2 = arith.constant 0 : i32
    return %arg0, %c0_i32, %c0_i32_0, %c0_i32_1 : i32, i32, i32, i32
  }
}

module attributes {stable_mosaic.version = 11 : i64} {
  func.func @_maxpool_kernel(%arg0: i32, %arg1: memref<1x4x4x128xf32, #tpu.memory_space<vmem>>, %arg2: memref<1x2x2x64xf32, #tpu.memory_space<vmem>>) attributes {dimension_semantics = [#tpu.dimension_semantics<parallel>], iteration_bounds = array<i64: 4>, scalar_prefetch = 0 : i64, scratch_operands = 0 : i64, tpu.core_type = #tpu.core_type<tc>, window_params = [{transform_indices = @transform_0, window_bounds = array<i64: 1, 4, 4, 128>}, {transform_indices = @transform_1, window_bounds = array<i64: 1, 2, 2, 64>}]} {
    %c0 = arith.constant 0 : index
    %c0_0 = arith.constant 0 : index
    %c0_1 = arith.constant 0 : index
    %c0_2 = arith.constant 0 : index
    %0 = vector.load %arg1[%c0, %c0_0, %c0_1, %c0_2] : memref<1x4x4x128xf32, #tpu.memory_space<vmem>>, vector<1x4x4x128xf32>
    %1 = vector.shape_cast %0 : vector<1x4x4x128xf32> to vector<4x4x128xf32>
    %2 = vector.extract_strided_slice %1 {offsets = [0, 0, 0], sizes = [2, 4, 128], strides = [1, 1, 1]} : vector<4x4x128xf32> to vector<2x4x128xf32>
    %3 = vector.extract_strided_slice %1 {offsets = [2, 0, 0], sizes = [2, 4, 128], strides = [1, 1, 1]} : vector<4x4x128xf32> to vector<2x4x128xf32>
    %4 = arith.maximumf %2, %3 : vector<2x4x128xf32>
    %5 = vector.extract_strided_slice %4 {offsets = [0, 0, 0], sizes = [2, 2, 128], strides = [1, 1, 1]} : vector<2x4x128xf32> to vector<2x2x128xf32>
    %6 = vector.extract_strided_slice %4 {offsets = [0, 2, 0], sizes = [2, 2, 128], strides = [1, 1, 1]} : vector<2x4x128xf32> to vector<2x2x128xf32>
    %7 = arith.maximumf %5, %6 : vector<2x2x128xf32>
    %8 = vector.extract_strided_slice %7 {offsets = [0, 0, 0], sizes = [2, 2, 64], strides = [1, 1, 1]} : vector<2x2x128xf32> to vector<2x2x64xf32>
    %9 = vector.extract_strided_slice %7 {offsets = [0, 0, 64], sizes = [2, 2, 64], strides = [1, 1, 1]} : vector<2x2x128xf32> to vector<2x2x64xf32>
    %10 = arith.maximumf %8, %9 : vector<2x2x64xf32>
    %c0_3 = arith.constant 0 : index
    %c0_4 = arith.constant 0 : index
    %c0_5 = arith.constant 0 : index
    %c0_6 = arith.constant 0 : index
    %11 = vector.load %arg2[%c0_3, %c0_4, %c0_5, %c0_6] : memref<1x2x2x64xf32, #tpu.memory_space<vmem>>, vector<1x2x2x64xf32>
    %12 = vector.shape_cast %11 : vector<1x2x2x64xf32> to vector<2x2x64xf32>
    %13 = vector.shape_cast %10 : vector<2x2x64xf32> to vector<1x2x2x64xf32>
    tpu.vector_store %arg2[%c0_3, %c0_4, %c0_5, %c0_6], %13 {strides = array<i32>} : memref<1x2x2x64xf32, #tpu.memory_space<vmem>>, vector<1x2x2x64xf32>,
    return
  }
  func.func @transform_0(%arg0: i32) -> (i32, i32, i32, i32) {
    %c0_i32 = arith.constant 0 : i32
    %c0_i32_0 = arith.constant 0 : i32
    %c0_i32_1 = arith.constant 0 : i32
    %c0_i32_2 = arith.constant 0 : i32
    return %arg0, %c0_i32, %c0_i32_0, %c0_i32_1 : i32, i32, i32, i32
  }
  func.func @transform_1(%arg0: i32) -> (i32, i32, i32, i32) {
    %c0_i32 = arith.constant 0 : i32
    %c0_i32_0 = arith.constant 0 : i32
    %c0_i32_1 = arith.constant 0 : i32
    %c0_i32_2 = arith.constant 0 : i32
    return %arg0, %c0_i32, %c0_i32_0, %c0_i32_1 : i32, i32, i32, i32
  }
}

module attributes {stable_mosaic.version = 11 : i64} {
  func.func @_conv3x3x3_kernel(%arg0: i32, %arg1: i32, %arg2: memref<1x1x6x6x32xbf16, #tpu.memory_space<vmem>>, %arg3: memref<1x1x6x6x32xbf16, #tpu.memory_space<vmem>>, %arg4: memref<1x1x6x6x32xbf16, #tpu.memory_space<vmem>>, %arg5: memref<864x64xbf16, #tpu.memory_space<vmem>>, %arg6: memref<1x64xf32, #tpu.memory_space<vmem>>, %arg7: memref<1x1x16x64xf32, #tpu.memory_space<vmem>>, %arg8: memref<16x864xbf16, #tpu.memory_space<vmem>>) attributes {dimension_semantics = [#tpu.dimension_semantics<parallel>, #tpu.dimension_semantics<parallel>], iteration_bounds = array<i64: 2, 4>, scalar_prefetch = 0 : i64, scratch_operands = 1 : i64, tpu.core_type = #tpu.core_type<tc>, window_params = [{transform_indices = @transform_0, window_bounds = array<i64: 1, 1, 6, 6, 32>}, {transform_indices = @transform_1, window_bounds = array<i64: 1, 1, 6, 6, 32>}, {transform_indices = @transform_2, window_bounds = array<i64: 1, 1, 6, 6, 32>}, {pipeline_mode = #tpu.pipeline_mode<synchronous>, transform_indices = @transform_3, window_bounds = array<i64: 864, 64>}, {pipeline_mode = #tpu.pipeline_mode<synchronous>, transform_indices = @transform_4, window_bounds = array<i64: 1, 64>}, {transform_indices = @transform_5, window_bounds = array<i64: 1, 1, 16, 64>}]} {
    %c0 = arith.constant 0 : index
    %c0_0 = arith.constant 0 : index
    %c0_1 = arith.constant 0 : index
    %c0_2 = arith.constant 0 : index
    %c0_3 = arith.constant 0 : index
    %0 = vector.load %arg2[%c0, %c0_0, %c0_1, %c0_2, %c0_3] : memref<1x1x6x6x32xbf16, #tpu.memory_space<vmem>>, vector<1x1x1x4x32xbf16>
    %1 = vector.shape_cast %0 : vector<1x1x1x4x32xbf16> to vector<4x32xbf16>
    %c0_4 = arith.constant 0 : index
    %c0_5 = arith.constant 0 : index
    %2 = vector.load %arg8[%c0_4, %c0_5] : memref<16x864xbf16, #tpu.memory_space<vmem>>, vector<4x32xbf16>
    tpu.vector_store %arg8[%c0_4, %c0_5], %1 {strides = array<i32>} : memref<16x864xbf16, #tpu.memory_space<vmem>>, vector<4x32xbf16>,
    %c0_6 = arith.constant 0 : index
    %c0_7 = arith.constant 0 : index
    %c1 = arith.constant 1 : index
    %c0_8 = arith.constant 0 : index
    %c0_9 = arith.constant 0 : index
    %3 = vector.load %arg2[%c0_6, %c0_7, %c1, %c0_8, %c0_9] : memref<1x1x6x6x32xbf16, #tpu.memory_space<vmem>>, vector<1x1x1x4x32xbf16>
    %4 = vector.shape_cast %3 : vector<1x1x1x4x32xbf16> to vector<4x32xbf16>
    %c4 = arith.constant 4 : index
    %c0_10 = arith.constant 0 : index
    %5 = vector.load %arg8[%c4, %c0_10] : memref<16x864xbf16, #tpu.memory_space<vmem>>, vector<4x32xbf16>
    tpu.vector_store %arg8[%c4, %c0_10], %4 {strides = array<i32>} : memref<16x864xbf16, #tpu.memory_space<vmem>>, vector<4x32xbf16>,
    %c0_11 = arith.constant 0 : index
    %c0_12 = arith.constant 0 : index
    %c2 = arith.constant 2 : index
    %c0_13 = arith.constant 0 : index
    %c0_14 = arith.constant 0 : index
    %6 = vector.load %arg2[%c0_11, %c0_12, %c2, %c0_13, %c0_14] : memref<1x1x6x6x32xbf16, #tpu.memory_space<vmem>>, vector<1x1x1x4x32xbf16>
    %7 = vector.shape_cast %6 : vector<1x1x1x4x32xbf16> to vector<4x32xbf16>
    %c8 = arith.constant 8 : index
    %c0_15 = arith.constant 0 : index
    %8 = vector.load %arg8[%c8, %c0_15] : memref<16x864xbf16, #tpu.memory_space<vmem>>, vector<4x32xbf16>
    tpu.vector_store %arg8[%c8, %c0_15], %7 {strides = array<i32>} : memref<16x864xbf16, #tpu.memory_space<vmem>>, vector<4x32xbf16>,
    %c0_16 = arith.constant 0 : index
    %c0_17 = arith.constant 0 : index
    %c3 = arith.constant 3 : index
    %c0_18 = arith.constant 0 : index
    %c0_19 = arith.constant 0 : index
    %9 = vector.load %arg2[%c0_16, %c0_17, %c3, %c0_18, %c0_19] : memref<1x1x6x6x32xbf16, #tpu.memory_space<vmem>>, vector<1x1x1x4x32xbf16>
    %10 = vector.shape_cast %9 : vector<1x1x1x4x32xbf16> to vector<4x32xbf16>
    %c12 = arith.constant 12 : index
    %c0_20 = arith.constant 0 : index
    %11 = vector.load %arg8[%c12, %c0_20] : memref<16x864xbf16, #tpu.memory_space<vmem>>, vector<4x32xbf16>
    tpu.vector_store %arg8[%c12, %c0_20], %10 {strides = array<i32>} : memref<16x864xbf16, #tpu.memory_space<vmem>>, vector<4x32xbf16>,
    %c0_21 = arith.constant 0 : index
    %c0_22 = arith.constant 0 : index
    %c0_23 = arith.constant 0 : index
    %c1_24 = arith.constant 1 : index
    %c0_25 = arith.constant 0 : index
    %12 = vector.load %arg2[%c0_21, %c0_22, %c0_23, %c1_24, %c0_25] : memref<1x1x6x6x32xbf16, #tpu.memory_space<vmem>>, vector<1x1x1x4x32xbf16>
    %13 = vector.shape_cast %12 : vector<1x1x1x4x32xbf16> to vector<4x32xbf16>
    %c0_26 = arith.constant 0 : index
    %c32 = arith.constant 32 : index
    %14 = vector.load %arg8[%c0_26, %c32] : memref<16x864xbf16, #tpu.memory_space<vmem>>, vector<4x32xbf16>
    tpu.vector_store %arg8[%c0_26, %c32], %13 {strides = array<i32>} : memref<16x864xbf16, #tpu.memory_space<vmem>>, vector<4x32xbf16>,
    %c0_27 = arith.constant 0 : index
    %c0_28 = arith.constant 0 : index
    %c1_29 = arith.constant 1 : index
    %c1_30 = arith.constant 1 : index
    %c0_31 = arith.constant 0 : index
    %15 = vector.load %arg2[%c0_27, %c0_28, %c1_29, %c1_30, %c0_31] : memref<1x1x6x6x32xbf16, #tpu.memory_space<vmem>>, vector<1x1x1x4x32xbf16>
    %16 = vector.shape_cast %15 : vector<1x1x1x4x32xbf16> to vector<4x32xbf16>
    %c4_32 = arith.constant 4 : index
    %c32_33 = arith.constant 32 : index
    %17 = vector.load %arg8[%c4_32, %c32_33] : memref<16x864xbf16, #tpu.memory_space<vmem>>, vector<4x32xbf16>
    tpu.vector_store %arg8[%c4_32, %c32_33], %16 {strides = array<i32>} : memref<16x864xbf16, #tpu.memory_space<vmem>>, vector<4x32xbf16>,
    %c0_34 = arith.constant 0 : index
    %c0_35 = arith.constant 0 : index
    %c2_36 = arith.constant 2 : index
    %c1_37 = arith.constant 1 : index
    %c0_38 = arith.constant 0 : index
    %18 = vector.load %arg2[%c0_34, %c0_35, %c2_36, %c1_37, %c0_38] : memref<1x1x6x6x32xbf16, #tpu.memory_space<vmem>>, vector<1x1x1x4x32xbf16>
    %19 = vector.shape_cast %18 : vector<1x1x1x4x32xbf16> to vector<4x32xbf16>
    %c8_39 = arith.constant 8 : index
    %c32_40 = arith.constant 32 : index
    %20 = vector.load %arg8[%c8_39, %c32_40] : memref<16x864xbf16, #tpu.memory_space<vmem>>, vector<4x32xbf16>
    tpu.vector_store %arg8[%c8_39, %c32_40], %19 {strides = array<i32>} : memref<16x864xbf16, #tpu.memory_space<vmem>>, vector<4x32xbf16>,
    %c0_41 = arith.constant 0 : index
    %c0_42 = arith.constant 0 : index
    %c3_43 = arith.constant 3 : index
    %c1_44 = arith.constant 1 : index
    %c0_45 = arith.constant 0 : index
    %21 = vector.load %arg2[%c0_41, %c0_42, %c3_43, %c1_44, %c0_45] : memref<1x1x6x6x32xbf16, #tpu.memory_space<vmem>>, vector<1x1x1x4x32xbf16>
    %22 = vector.shape_cast %21 : vector<1x1x1x4x32xbf16> to vector<4x32xbf16>
    %c12_46 = arith.constant 12 : index
    %c32_47 = arith.constant 32 : index
    %23 = vector.load %arg8[%c12_46, %c32_47] : memref<16x864xbf16, #tpu.memory_space<vmem>>, vector<4x32xbf16>
    tpu.vector_store %arg8[%c12_46, %c32_47], %22 {strides = array<i32>} : memref<16x864xbf16, #tpu.memory_space<vmem>>, vector<4x32xbf16>,
    %c0_48 = arith.constant 0 : index
    %c0_49 = arith.constant 0 : index
    %c0_50 = arith.constant 0 : index
    %c2_51 = arith.constant 2 : index
    %c0_52 = arith.constant 0 : index
    %24 = vector.load %arg2[%c0_48, %c0_49, %c0_50, %c2_51, %c0_52] : memref<1x1x6x6x32xbf16, #tpu.memory_space<vmem>>, vector<1x1x1x4x32xbf16>
    %25 = vector.shape_cast %24 : vector<1x1x1x4x32xbf16> to vector<4x32xbf16>
    %c0_53 = arith.constant 0 : index
    %c64 = arith.constant 64 : index
    %26 = vector.load %arg8[%c0_53, %c64] : memref<16x864xbf16, #tpu.memory_space<vmem>>, vector<4x32xbf16>
    tpu.vector_store %arg8[%c0_53, %c64], %25 {strides = array<i32>} : memref<16x864xbf16, #tpu.memory_space<vmem>>, vector<4x32xbf16>,
    %c0_54 = arith.constant 0 : index
    %c0_55 = arith.constant 0 : index
    %c1_56 = arith.constant 1 : index
    %c2_57 = arith.constant 2 : index
    %c0_58 = arith.constant 0 : index
    %27 = vector.load %arg2[%c0_54, %c0_55, %c1_56, %c2_57, %c0_58] : memref<1x1x6x6x32xbf16, #tpu.memory_space<vmem>>, vector<1x1x1x4x32xbf16>
    %28 = vector.shape_cast %27 : vector<1x1x1x4x32xbf16> to vector<4x32xbf16>
    %c4_59 = arith.constant 4 : index
    %c64_60 = arith.constant 64 : index
    %29 = vector.load %arg8[%c4_59, %c64_60] : memref<16x864xbf16, #tpu.memory_space<vmem>>, vector<4x32xbf16>
    tpu.vector_store %arg8[%c4_59, %c64_60], %28 {strides = array<i32>} : memref<16x864xbf16, #tpu.memory_space<vmem>>, vector<4x32xbf16>,
    %c0_61 = arith.constant 0 : index
    %c0_62 = arith.constant 0 : index
    %c2_63 = arith.constant 2 : index
    %c2_64 = arith.constant 2 : index
    %c0_65 = arith.constant 0 : index
    %30 = vector.load %arg2[%c0_61, %c0_62, %c2_63, %c2_64, %c0_65] : memref<1x1x6x6x32xbf16, #tpu.memory_space<vmem>>, vector<1x1x1x4x32xbf16>
    %31 = vector.shape_cast %30 : vector<1x1x1x4x32xbf16> to vector<4x32xbf16>
    %c8_66 = arith.constant 8 : index
    %c64_67 = arith.constant 64 : index
    %32 = vector.load %arg8[%c8_66, %c64_67] : memref<16x864xbf16, #tpu.memory_space<vmem>>, vector<4x32xbf16>
    tpu.vector_store %arg8[%c8_66, %c64_67], %31 {strides = array<i32>} : memref<16x864xbf16, #tpu.memory_space<vmem>>, vector<4x32xbf16>,
    %c0_68 = arith.constant 0 : index
    %c0_69 = arith.constant 0 : index
    %c3_70 = arith.constant 3 : index
    %c2_71 = arith.constant 2 : index
    %c0_72 = arith.constant 0 : index
    %33 = vector.load %arg2[%c0_68, %c0_69, %c3_70, %c2_71, %c0_72] : memref<1x1x6x6x32xbf16, #tpu.memory_space<vmem>>, vector<1x1x1x4x32xbf16>
    %34 = vector.shape_cast %33 : vector<1x1x1x4x32xbf16> to vector<4x32xbf16>
    %c12_73 = arith.constant 12 : index
    %c64_74 = arith.constant 64 : index
    %35 = vector.load %arg8[%c12_73, %c64_74] : memref<16x864xbf16, #tpu.memory_space<vmem>>, vector<4x32xbf16>
    tpu.vector_store %arg8[%c12_73, %c64_74], %34 {strides = array<i32>} : memref<16x864xbf16, #tpu.memory_space<vmem>>, vector<4x32xbf16>,
    %c0_75 = arith.constant 0 : index
    %c0_76 = arith.constant 0 : index
    %c1_77 = arith.constant 1 : index
    %c0_78 = arith.constant 0 : index
    %c0_79 = arith.constant 0 : index
    %36 = vector.load %arg2[%c0_75, %c0_76, %c1_77, %c0_78, %c0_79] : memref<1x1x6x6x32xbf16, #tpu.memory_space<vmem>>, vector<1x1x1x4x32xbf16>
    %37 = vector.shape_cast %36 : vector<1x1x1x4x32xbf16> to vector<4x32xbf16>
    %c0_80 = arith.constant 0 : index
    %c96 = arith.constant 96 : index
    %38 = vector.load %arg8[%c0_80, %c96] : memref<16x864xbf16, #tpu.memory_space<vmem>>, vector<4x32xbf16>
    tpu.vector_store %arg8[%c0_80, %c96], %37 {strides = array<i32>} : memref<16x864xbf16, #tpu.memory_space<vmem>>, vector<4x32xbf16>,
    %c0_81 = arith.constant 0 : index
    %c0_82 = arith.constant 0 : index
    %c2_83 = arith.constant 2 : index
    %c0_84 = arith.constant 0 : index
    %c0_85 = arith.constant 0 : index
    %39 = vector.load %arg2[%c0_81, %c0_82, %c2_83, %c0_84, %c0_85] : memref<1x1x6x6x32xbf16, #tpu.memory_space<vmem>>, vector<1x1x1x4x32xbf16>
    %40 = vector.shape_cast %39 : vector<1x1x1x4x32xbf16> to vector<4x32xbf16>
    %c4_86 = arith.constant 4 : index
    %c96_87 = arith.constant 96 : index
    %41 = vector.load %arg8[%c4_86, %c96_87] : memref<16x864xbf16, #tpu.memory_space<vmem>>, vector<4x32xbf16>
    tpu.vector_store %arg8[%c4_86, %c96_87], %40 {strides = array<i32>} : memref<16x864xbf16, #tpu.memory_space<vmem>>, vector<4x32xbf16>,
    %c0_88 = arith.constant 0 : index
    %c0_89 = arith.constant 0 : index
    %c3_90 = arith.constant 3 : index
    %c0_91 = arith.constant 0 : index
    %c0_92 = arith.constant 0 : index
    %42 = vector.load %arg2[%c0_88, %c0_89, %c3_90, %c0_91, %c0_92] : memref<1x1x6x6x32xbf16, #tpu.memory_space<vmem>>, vector<1x1x1x4x32xbf16>
    %43 = vector.shape_cast %42 : vector<1x1x1x4x32xbf16> to vector<4x32xbf16>
    %c8_93 = arith.constant 8 : index
    %c96_94 = arith.constant 96 : index
    %44 = vector.load %arg8[%c8_93, %c96_94] : memref<16x864xbf16, #tpu.memory_space<vmem>>, vector<4x32xbf16>
    tpu.vector_store %arg8[%c8_93, %c96_94], %43 {strides = array<i32>} : memref<16x864xbf16, #tpu.memory_space<vmem>>, vector<4x32xbf16>,
    %c0_95 = arith.constant 0 : index
    %c0_96 = arith.constant 0 : index
    %c4_97 = arith.constant 4 : index
    %c0_98 = arith.constant 0 : index
    %c0_99 = arith.constant 0 : index
    %45 = vector.load %arg2[%c0_95, %c0_96, %c4_97, %c0_98, %c0_99] : memref<1x1x6x6x32xbf16, #tpu.memory_space<vmem>>, vector<1x1x1x4x32xbf16>
    %46 = vector.shape_cast %45 : vector<1x1x1x4x32xbf16> to vector<4x32xbf16>
    %c12_100 = arith.constant 12 : index
    %c96_101 = arith.constant 96 : index
    %47 = vector.load %arg8[%c12_100, %c96_101] : memref<16x864xbf16, #tpu.memory_space<vmem>>, vector<4x32xbf16>
    tpu.vector_store %arg8[%c12_100, %c96_101], %46 {strides = array<i32>} : memref<16x864xbf16, #tpu.memory_space<vmem>>, vector<4x32xbf16>,
    %c0_102 = arith.constant 0 : index
    %c0_103 = arith.constant 0 : index
    %c1_104 = arith.constant 1 : index
    %c1_105 = arith.constant 1 : index
    %c0_106 = arith.constant 0 : index
    %48 = vector.load %arg2[%c0_102, %c0_103, %c1_104, %c1_105, %c0_106] : memref<1x1x6x6x32xbf16, #tpu.memory_space<vmem>>, vector<1x1x1x4x32xbf16>
    %49 = vector.shape_cast %48 : vector<1x1x1x4x32xbf16> to vector<4x32xbf16>
    %c0_107 = arith.constant 0 : index
    %c128 = arith.constant 128 : index
    %50 = vector.load %arg8[%c0_107, %c128] : memref<16x864xbf16, #tpu.memory_space<vmem>>, vector<4x32xbf16>
    tpu.vector_store %arg8[%c0_107, %c128], %49 {strides = array<i32>} : memref<16x864xbf16, #tpu.memory_space<vmem>>, vector<4x32xbf16>,
    %c0_108 = arith.constant 0 : index
    %c0_109 = arith.constant 0 : index
    %c2_110 = arith.constant 2 : index
    %c1_111 = arith.constant 1 : index
    %c0_112 = arith.constant 0 : index
    %51 = vector.load %arg2[%c0_108, %c0_109, %c2_110, %c1_111, %c0_112] : memref<1x1x6x6x32xbf16, #tpu.memory_space<vmem>>, vector<1x1x1x4x32xbf16>
    %52 = vector.shape_cast %51 : vector<1x1x1x4x32xbf16> to vector<4x32xbf16>
    %c4_113 = arith.constant 4 : index
    %c128_114 = arith.constant 128 : index
    %53 = vector.load %arg8[%c4_113, %c128_114] : memref<16x864xbf16, #tpu.memory_space<vmem>>, vector<4x32xbf16>
    tpu.vector_store %arg8[%c4_113, %c128_114], %52 {strides = array<i32>} : memref<16x864xbf16, #tpu.memory_space<vmem>>, vector<4x32xbf16>,
    %c0_115 = arith.constant 0 : index
    %c0_116 = arith.constant 0 : index
    %c3_117 = arith.constant 3 : index
    %c1_118 = arith.constant 1 : index
    %c0_119 = arith.constant 0 : index
    %54 = vector.load %arg2[%c0_115, %c0_116, %c3_117, %c1_118, %c0_119] : memref<1x1x6x6x32xbf16, #tpu.memory_space<vmem>>, vector<1x1x1x4x32xbf16>
    %55 = vector.shape_cast %54 : vector<1x1x1x4x32xbf16> to vector<4x32xbf16>
    %c8_120 = arith.constant 8 : index
    %c128_121 = arith.constant 128 : index
    %56 = vector.load %arg8[%c8_120, %c128_121] : memref<16x864xbf16, #tpu.memory_space<vmem>>, vector<4x32xbf16>
    tpu.vector_store %arg8[%c8_120, %c128_121], %55 {strides = array<i32>} : memref<16x864xbf16, #tpu.memory_space<vmem>>, vector<4x32xbf16>,
    %c0_122 = arith.constant 0 : index
    %c0_123 = arith.constant 0 : index
    %c4_124 = arith.constant 4 : index
    %c1_125 = arith.constant 1 : index
    %c0_126 = arith.constant 0 : index
    %57 = vector.load %arg2[%c0_122, %c0_123, %c4_124, %c1_125, %c0_126] : memref<1x1x6x6x32xbf16, #tpu.memory_space<vmem>>, vector<1x1x1x4x32xbf16>
    %58 = vector.shape_cast %57 : vector<1x1x1x4x32xbf16> to vector<4x32xbf16>
    %c12_127 = arith.constant 12 : index
    %c128_128 = arith.constant 128 : index
    %59 = vector.load %arg8[%c12_127, %c128_128] : memref<16x864xbf16, #tpu.memory_space<vmem>>, vector<4x32xbf16>
    tpu.vector_store %arg8[%c12_127, %c128_128], %58 {strides = array<i32>} : memref<16x864xbf16, #tpu.memory_space<vmem>>, vector<4x32xbf16>,
    %c0_129 = arith.constant 0 : index
    %c0_130 = arith.constant 0 : index
    %c1_131 = arith.constant 1 : index
    %c2_132 = arith.constant 2 : index
    %c0_133 = arith.constant 0 : index
    %60 = vector.load %arg2[%c0_129, %c0_130, %c1_131, %c2_132, %c0_133] : memref<1x1x6x6x32xbf16, #tpu.memory_space<vmem>>, vector<1x1x1x4x32xbf16>
    %61 = vector.shape_cast %60 : vector<1x1x1x4x32xbf16> to vector<4x32xbf16>
    %c0_134 = arith.constant 0 : index
    %c160 = arith.constant 160 : index
    %62 = vector.load %arg8[%c0_134, %c160] : memref<16x864xbf16, #tpu.memory_space<vmem>>, vector<4x32xbf16>
    tpu.vector_store %arg8[%c0_134, %c160], %61 {strides = array<i32>} : memref<16x864xbf16, #tpu.memory_space<vmem>>, vector<4x32xbf16>,
    %c0_135 = arith.constant 0 : index
    %c0_136 = arith.constant 0 : index
    %c2_137 = arith.constant 2 : index
    %c2_138 = arith.constant 2 : index
    %c0_139 = arith.constant 0 : index
    %63 = vector.load %arg2[%c0_135, %c0_136, %c2_137, %c2_138, %c0_139] : memref<1x1x6x6x32xbf16, #tpu.memory_space<vmem>>, vector<1x1x1x4x32xbf16>
    %64 = vector.shape_cast %63 : vector<1x1x1x4x32xbf16> to vector<4x32xbf16>
    %c4_140 = arith.constant 4 : index
    %c160_141 = arith.constant 160 : index
    %65 = vector.load %arg8[%c4_140, %c160_141] : memref<16x864xbf16, #tpu.memory_space<vmem>>, vector<4x32xbf16>
    tpu.vector_store %arg8[%c4_140, %c160_141], %64 {strides = array<i32>} : memref<16x864xbf16, #tpu.memory_space<vmem>>, vector<4x32xbf16>,
    %c0_142 = arith.constant 0 : index
    %c0_143 = arith.constant 0 : index
    %c3_144 = arith.constant 3 : index
    %c2_145 = arith.constant 2 : index
    %c0_146 = arith.constant 0 : index
    %66 = vector.load %arg2[%c0_142, %c0_143, %c3_144, %c2_145, %c0_146] : memref<1x1x6x6x32xbf16, #tpu.memory_space<vmem>>, vector<1x1x1x4x32xbf16>
    %67 = vector.shape_cast %66 : vector<1x1x1x4x32xbf16> to vector<4x32xbf16>
    %c8_147 = arith.constant 8 : index
    %c160_148 = arith.constant 160 : index
    %68 = vector.load %arg8[%c8_147, %c160_148] : memref<16x864xbf16, #tpu.memory_space<vmem>>, vector<4x32xbf16>
    tpu.vector_store %arg8[%c8_147, %c160_148], %67 {strides = array<i32>} : memref<16x864xbf16, #tpu.memory_space<vmem>>, vector<4x32xbf16>,
    %c0_149 = arith.constant 0 : index
    %c0_150 = arith.constant 0 : index
    %c4_151 = arith.constant 4 : index
    %c2_152 = arith.constant 2 : index
    %c0_153 = arith.constant 0 : index
    %69 = vector.load %arg2[%c0_149, %c0_150, %c4_151, %c2_152, %c0_153] : memref<1x1x6x6x32xbf16, #tpu.memory_space<vmem>>, vector<1x1x1x4x32xbf16>
    %70 = vector.shape_cast %69 : vector<1x1x1x4x32xbf16> to vector<4x32xbf16>
    %c12_154 = arith.constant 12 : index
    %c160_155 = arith.constant 160 : index
    %71 = vector.load %arg8[%c12_154, %c160_155] : memref<16x864xbf16, #tpu.memory_space<vmem>>, vector<4x32xbf16>
    tpu.vector_store %arg8[%c12_154, %c160_155], %70 {strides = array<i32>} : memref<16x864xbf16, #tpu.memory_space<vmem>>, vector<4x32xbf16>,
    %c0_156 = arith.constant 0 : index
    %c0_157 = arith.constant 0 : index
    %c2_158 = arith.constant 2 : index
    %c0_159 = arith.constant 0 : index
    %c0_160 = arith.constant 0 : index
    %72 = vector.load %arg2[%c0_156, %c0_157, %c2_158, %c0_159, %c0_160] : memref<1x1x6x6x32xbf16, #tpu.memory_space<vmem>>, vector<1x1x1x4x32xbf16>
    %73 = vector.shape_cast %72 : vector<1x1x1x4x32xbf16> to vector<4x32xbf16>
    %c0_161 = arith.constant 0 : index
    %c192 = arith.constant 192 : index
    %74 = vector.load %arg8[%c0_161, %c192] : memref<16x864xbf16, #tpu.memory_space<vmem>>, vector<4x32xbf16>
    tpu.vector_store %arg8[%c0_161, %c192], %73 {strides = array<i32>} : memref<16x864xbf16, #tpu.memory_space<vmem>>, vector<4x32xbf16>,
    %c0_162 = arith.constant 0 : index
    %c0_163 = arith.constant 0 : index
    %c3_164 = arith.constant 3 : index
    %c0_165 = arith.constant 0 : index
    %c0_166 = arith.constant 0 : index
    %75 = vector.load %arg2[%c0_162, %c0_163, %c3_164, %c0_165, %c0_166] : memref<1x1x6x6x32xbf16, #tpu.memory_space<vmem>>, vector<1x1x1x4x32xbf16>
    %76 = vector.shape_cast %75 : vector<1x1x1x4x32xbf16> to vector<4x32xbf16>
    %c4_167 = arith.constant 4 : index
    %c192_168 = arith.constant 192 : index
    %77 = vector.load %arg8[%c4_167, %c192_168] : memref<16x864xbf16, #tpu.memory_space<vmem>>, vector<4x32xbf16>
    tpu.vector_store %arg8[%c4_167, %c192_168], %76 {strides = array<i32>} : memref<16x864xbf16, #tpu.memory_space<vmem>>, vector<4x32xbf16>,
    %c0_169 = arith.constant 0 : index
    %c0_170 = arith.constant 0 : index
    %c4_171 = arith.constant 4 : index
    %c0_172 = arith.constant 0 : index
    %c0_173 = arith.constant 0 : index
    %78 = vector.load %arg2[%c0_169, %c0_170, %c4_171, %c0_172, %c0_173] : memref<1x1x6x6x32xbf16, #tpu.memory_space<vmem>>, vector<1x1x1x4x32xbf16>
    %79 = vector.shape_cast %78 : vector<1x1x1x4x32xbf16> to vector<4x32xbf16>
    %c8_174 = arith.constant 8 : index
    %c192_175 = arith.constant 192 : index
    %80 = vector.load %arg8[%c8_174, %c192_175] : memref<16x864xbf16, #tpu.memory_space<vmem>>, vector<4x32xbf16>
    tpu.vector_store %arg8[%c8_174, %c192_175], %79 {strides = array<i32>} : memref<16x864xbf16, #tpu.memory_space<vmem>>, vector<4x32xbf16>,
    %c0_176 = arith.constant 0 : index
    %c0_177 = arith.constant 0 : index
    %c5 = arith.constant 5 : index
    %c0_178 = arith.constant 0 : index
    %c0_179 = arith.constant 0 : index
    %81 = vector.load %arg2[%c0_176, %c0_177, %c5, %c0_178, %c0_179] : memref<1x1x6x6x32xbf16, #tpu.memory_space<vmem>>, vector<1x1x1x4x32xbf16>
    %82 = vector.shape_cast %81 : vector<1x1x1x4x32xbf16> to vector<4x32xbf16>
    %c12_180 = arith.constant 12 : index
    %c192_181 = arith.constant 192 : index
    %83 = vector.load %arg8[%c12_180, %c192_181] : memref<16x864xbf16, #tpu.memory_space<vmem>>, vector<4x32xbf16>
    tpu.vector_store %arg8[%c12_180, %c192_181], %82 {strides = array<i32>} : memref<16x864xbf16, #tpu.memory_space<vmem>>, vector<4x32xbf16>,
    %c0_182 = arith.constant 0 : index
    %c0_183 = arith.constant 0 : index
    %c2_184 = arith.constant 2 : index
    %c1_185 = arith.constant 1 : index
    %c0_186 = arith.constant 0 : index
    %84 = vector.load %arg2[%c0_182, %c0_183, %c2_184, %c1_185, %c0_186] : memref<1x1x6x6x32xbf16, #tpu.memory_space<vmem>>, vector<1x1x1x4x32xbf16>
    %85 = vector.shape_cast %84 : vector<1x1x1x4x32xbf16> to vector<4x32xbf16>
    %c0_187 = arith.constant 0 : index
    %c224 = arith.constant 224 : index
    %86 = vector.load %arg8[%c0_187, %c224] : memref<16x864xbf16, #tpu.memory_space<vmem>>, vector<4x32xbf16>
    tpu.vector_store %arg8[%c0_187, %c224], %85 {strides = array<i32>} : memref<16x864xbf16, #tpu.memory_space<vmem>>, vector<4x32xbf16>,
    %c0_188 = arith.constant 0 : index
    %c0_189 = arith.constant 0 : index
    %c3_190 = arith.constant 3 : index
    %c1_191 = arith.constant 1 : index
    %c0_192 = arith.constant 0 : index
    %87 = vector.load %arg2[%c0_188, %c0_189, %c3_190, %c1_191, %c0_192] : memref<1x1x6x6x32xbf16, #tpu.memory_space<vmem>>, vector<1x1x1x4x32xbf16>
    %88 = vector.shape_cast %87 : vector<1x1x1x4x32xbf16> to vector<4x32xbf16>
    %c4_193 = arith.constant 4 : index
    %c224_194 = arith.constant 224 : index
    %89 = vector.load %arg8[%c4_193, %c224_194] : memref<16x864xbf16, #tpu.memory_space<vmem>>, vector<4x32xbf16>
    tpu.vector_store %arg8[%c4_193, %c224_194], %88 {strides = array<i32>} : memref<16x864xbf16, #tpu.memory_space<vmem>>, vector<4x32xbf16>,
    %c0_195 = arith.constant 0 : index
    %c0_196 = arith.constant 0 : index
    %c4_197 = arith.constant 4 : index
    %c1_198 = arith.constant 1 : index
    %c0_199 = arith.constant 0 : index
    %90 = vector.load %arg2[%c0_195, %c0_196, %c4_197, %c1_198, %c0_199] : memref<1x1x6x6x32xbf16, #tpu.memory_space<vmem>>, vector<1x1x1x4x32xbf16>
    %91 = vector.shape_cast %90 : vector<1x1x1x4x32xbf16> to vector<4x32xbf16>
    %c8_200 = arith.constant 8 : index
    %c224_201 = arith.constant 224 : index
    %92 = vector.load %arg8[%c8_200, %c224_201] : memref<16x864xbf16, #tpu.memory_space<vmem>>, vector<4x32xbf16>
    tpu.vector_store %arg8[%c8_200, %c224_201], %91 {strides = array<i32>} : memref<16x864xbf16, #tpu.memory_space<vmem>>, vector<4x32xbf16>,
    %c0_202 = arith.constant 0 : index
    %c0_203 = arith.constant 0 : index
    %c5_204 = arith.constant 5 : index
    %c1_205 = arith.constant 1 : index
    %c0_206 = arith.constant 0 : index
    %93 = vector.load %arg2[%c0_202, %c0_203, %c5_204, %c1_205, %c0_206] : memref<1x1x6x6x32xbf16, #tpu.memory_space<vmem>>, vector<1x1x1x4x32xbf16>
    %94 = vector.shape_cast %93 : vector<1x1x1x4x32xbf16> to vector<4x32xbf16>
    %c12_207 = arith.constant 12 : index
    %c224_208 = arith.constant 224 : index
    %95 = vector.load %arg8[%c12_207, %c224_208] : memref<16x864xbf16, #tpu.memory_space<vmem>>, vector<4x32xbf16>
    tpu.vector_store %arg8[%c12_207, %c224_208], %94 {strides = array<i32>} : memref<16x864xbf16, #tpu.memory_space<vmem>>, vector<4x32xbf16>,
    %c0_209 = arith.constant 0 : index
    %c0_210 = arith.constant 0 : index
    %c2_211 = arith.constant 2 : index
    %c2_212 = arith.constant 2 : index
    %c0_213 = arith.constant 0 : index
    %96 = vector.load %arg2[%c0_209, %c0_210, %c2_211, %c2_212, %c0_213] : memref<1x1x6x6x32xbf16, #tpu.memory_space<vmem>>, vector<1x1x1x4x32xbf16>
    %97 = vector.shape_cast %96 : vector<1x1x1x4x32xbf16> to vector<4x32xbf16>
    %c0_214 = arith.constant 0 : index
    %c256 = arith.constant 256 : index
    %98 = vector.load %arg8[%c0_214, %c256] : memref<16x864xbf16, #tpu.memory_space<vmem>>, vector<4x32xbf16>
    tpu.vector_store %arg8[%c0_214, %c256], %97 {strides = array<i32>} : memref<16x864xbf16, #tpu.memory_space<vmem>>, vector<4x32xbf16>,
    %c0_215 = arith.constant 0 : index
    %c0_216 = arith.constant 0 : index
    %c3_217 = arith.constant 3 : index
    %c2_218 = arith.constant 2 : index
    %c0_219 = arith.constant 0 : index
    %99 = vector.load %arg2[%c0_215, %c0_216, %c3_217, %c2_218, %c0_219] : memref<1x1x6x6x32xbf16, #tpu.memory_space<vmem>>, vector<1x1x1x4x32xbf16>
    %100 = vector.shape_cast %99 : vector<1x1x1x4x32xbf16> to vector<4x32xbf16>
    %c4_220 = arith.constant 4 : index
    %c256_221 = arith.constant 256 : index
    %101 = vector.load %arg8[%c4_220, %c256_221] : memref<16x864xbf16, #tpu.memory_space<vmem>>, vector<4x32xbf16>
    tpu.vector_store %arg8[%c4_220, %c256_221], %100 {strides = array<i32>} : memref<16x864xbf16, #tpu.memory_space<vmem>>, vector<4x32xbf16>,
    %c0_222 = arith.constant 0 : index
    %c0_223 = arith.constant 0 : index
    %c4_224 = arith.constant 4 : index
    %c2_225 = arith.constant 2 : index
    %c0_226 = arith.constant 0 : index
    %102 = vector.load %arg2[%c0_222, %c0_223, %c4_224, %c2_225, %c0_226] : memref<1x1x6x6x32xbf16, #tpu.memory_space<vmem>>, vector<1x1x1x4x32xbf16>
    %103 = vector.shape_cast %102 : vector<1x1x1x4x32xbf16> to vector<4x32xbf16>
    %c8_227 = arith.constant 8 : index
    %c256_228 = arith.constant 256 : index
    %104 = vector.load %arg8[%c8_227, %c256_228] : memref<16x864xbf16, #tpu.memory_space<vmem>>, vector<4x32xbf16>
    tpu.vector_store %arg8[%c8_227, %c256_228], %103 {strides = array<i32>} : memref<16x864xbf16, #tpu.memory_space<vmem>>, vector<4x32xbf16>,
    %c0_229 = arith.constant 0 : index
    %c0_230 = arith.constant 0 : index
    %c5_231 = arith.constant 5 : index
    %c2_232 = arith.constant 2 : index
    %c0_233 = arith.constant 0 : index
    %105 = vector.load %arg2[%c0_229, %c0_230, %c5_231, %c2_232, %c0_233] : memref<1x1x6x6x32xbf16, #tpu.memory_space<vmem>>, vector<1x1x1x4x32xbf16>
    %106 = vector.shape_cast %105 : vector<1x1x1x4x32xbf16> to vector<4x32xbf16>
    %c12_234 = arith.constant 12 : index
    %c256_235 = arith.constant 256 : index
    %107 = vector.load %arg8[%c12_234, %c256_235] : memref<16x864xbf16, #tpu.memory_space<vmem>>, vector<4x32xbf16>
    tpu.vector_store %arg8[%c12_234, %c256_235], %106 {strides = array<i32>} : memref<16x864xbf16, #tpu.memory_space<vmem>>, vector<4x32xbf16>,
    %c0_236 = arith.constant 0 : index
    %c0_237 = arith.constant 0 : index
    %c0_238 = arith.constant 0 : index
    %c0_239 = arith.constant 0 : index
    %c0_240 = arith.constant 0 : index
    %108 = vector.load %arg3[%c0_236, %c0_237, %c0_238, %c0_239, %c0_240] : memref<1x1x6x6x32xbf16, #tpu.memory_space<vmem>>, vector<1x1x1x4x32xbf16>
    %109 = vector.shape_cast %108 : vector<1x1x1x4x32xbf16> to vector<4x32xbf16>
    %c0_241 = arith.constant 0 : index
    %c288 = arith.constant 288 : index
    %110 = vector.load %arg8[%c0_241, %c288] : memref<16x864xbf16, #tpu.memory_space<vmem>>, vector<4x32xbf16>
    tpu.vector_store %arg8[%c0_241, %c288], %109 {strides = array<i32>} : memref<16x864xbf16, #tpu.memory_space<vmem>>, vector<4x32xbf16>,
    %c0_242 = arith.constant 0 : index
    %c0_243 = arith.constant 0 : index
    %c1_244 = arith.constant 1 : index
    %c0_245 = arith.constant 0 : index
    %c0_246 = arith.constant 0 : index
    %111 = vector.load %arg3[%c0_242, %c0_243, %c1_244, %c0_245, %c0_246] : memref<1x1x6x6x32xbf16, #tpu.memory_space<vmem>>, vector<1x1x1x4x32xbf16>
    %112 = vector.shape_cast %111 : vector<1x1x1x4x32xbf16> to vector<4x32xbf16>
    %c4_247 = arith.constant 4 : index
    %c288_248 = arith.constant 288 : index
    %113 = vector.load %arg8[%c4_247, %c288_248] : memref<16x864xbf16, #tpu.memory_space<vmem>>, vector<4x32xbf16>
    tpu.vector_store %arg8[%c4_247, %c288_248], %112 {strides = array<i32>} : memref<16x864xbf16, #tpu.memory_space<vmem>>, vector<4x32xbf16>,
    %c0_249 = arith.constant 0 : index
    %c0_250 = arith.constant 0 : index
    %c2_251 = arith.constant 2 : index
    %c0_252 = arith.constant 0 : index
    %c0_253 = arith.constant 0 : index
    %114 = vector.load %arg3[%c0_249, %c0_250, %c2_251, %c0_252, %c0_253] : memref<1x1x6x6x32xbf16, #tpu.memory_space<vmem>>, vector<1x1x1x4x32xbf16>
    %115 = vector.shape_cast %114 : vector<1x1x1x4x32xbf16> to vector<4x32xbf16>
    %c8_254 = arith.constant 8 : index
    %c288_255 = arith.constant 288 : index
    %116 = vector.load %arg8[%c8_254, %c288_255] : memref<16x864xbf16, #tpu.memory_space<vmem>>, vector<4x32xbf16>
    tpu.vector_store %arg8[%c8_254, %c288_255], %115 {strides = array<i32>} : memref<16x864xbf16, #tpu.memory_space<vmem>>, vector<4x32xbf16>,
    %c0_256 = arith.constant 0 : index
    %c0_257 = arith.constant 0 : index
    %c3_258 = arith.constant 3 : index
    %c0_259 = arith.constant 0 : index
    %c0_260 = arith.constant 0 : index
    %117 = vector.load %arg3[%c0_256, %c0_257, %c3_258, %c0_259, %c0_260] : memref<1x1x6x6x32xbf16, #tpu.memory_space<vmem>>, vector<1x1x1x4x32xbf16>
    %118 = vector.shape_cast %117 : vector<1x1x1x4x32xbf16> to vector<4x32xbf16>
    %c12_261 = arith.constant 12 : index
    %c288_262 = arith.constant 288 : index
    %119 = vector.load %arg8[%c12_261, %c288_262] : memref<16x864xbf16, #tpu.memory_space<vmem>>, vector<4x32xbf16>
    tpu.vector_store %arg8[%c12_261, %c288_262], %118 {strides = array<i32>} : memref<16x864xbf16, #tpu.memory_space<vmem>>, vector<4x32xbf16>,
    %c0_263 = arith.constant 0 : index
    %c0_264 = arith.constant 0 : index
    %c0_265 = arith.constant 0 : index
    %c1_266 = arith.constant 1 : index
    %c0_267 = arith.constant 0 : index
    %120 = vector.load %arg3[%c0_263, %c0_264, %c0_265, %c1_266, %c0_267] : memref<1x1x6x6x32xbf16, #tpu.memory_space<vmem>>, vector<1x1x1x4x32xbf16>
    %121 = vector.shape_cast %120 : vector<1x1x1x4x32xbf16> to vector<4x32xbf16>
    %c0_268 = arith.constant 0 : index
    %c320 = arith.constant 320 : index
    %122 = vector.load %arg8[%c0_268, %c320] : memref<16x864xbf16, #tpu.memory_space<vmem>>, vector<4x32xbf16>
    tpu.vector_store %arg8[%c0_268, %c320], %121 {strides = array<i32>} : memref<16x864xbf16, #tpu.memory_space<vmem>>, vector<4x32xbf16>,
    %c0_269 = arith.constant 0 : index
    %c0_270 = arith.constant 0 : index
    %c1_271 = arith.constant 1 : index
    %c1_272 = arith.constant 1 : index
    %c0_273 = arith.constant 0 : index
    %123 = vector.load %arg3[%c0_269, %c0_270, %c1_271, %c1_272, %c0_273] : memref<1x1x6x6x32xbf16, #tpu.memory_space<vmem>>, vector<1x1x1x4x32xbf16>
    %124 = vector.shape_cast %123 : vector<1x1x1x4x32xbf16> to vector<4x32xbf16>
    %c4_274 = arith.constant 4 : index
    %c320_275 = arith.constant 320 : index
    %125 = vector.load %arg8[%c4_274, %c320_275] : memref<16x864xbf16, #tpu.memory_space<vmem>>, vector<4x32xbf16>
    tpu.vector_store %arg8[%c4_274, %c320_275], %124 {strides = array<i32>} : memref<16x864xbf16, #tpu.memory_space<vmem>>, vector<4x32xbf16>,
    %c0_276 = arith.constant 0 : index
    %c0_277 = arith.constant 0 : index
    %c2_278 = arith.constant 2 : index
    %c1_279 = arith.constant 1 : index
    %c0_280 = arith.constant 0 : index
    %126 = vector.load %arg3[%c0_276, %c0_277, %c2_278, %c1_279, %c0_280] : memref<1x1x6x6x32xbf16, #tpu.memory_space<vmem>>, vector<1x1x1x4x32xbf16>
    %127 = vector.shape_cast %126 : vector<1x1x1x4x32xbf16> to vector<4x32xbf16>
    %c8_281 = arith.constant 8 : index
    %c320_282 = arith.constant 320 : index
    %128 = vector.load %arg8[%c8_281, %c320_282] : memref<16x864xbf16, #tpu.memory_space<vmem>>, vector<4x32xbf16>
    tpu.vector_store %arg8[%c8_281, %c320_282], %127 {strides = array<i32>} : memref<16x864xbf16, #tpu.memory_space<vmem>>, vector<4x32xbf16>,
    %c0_283 = arith.constant 0 : index
    %c0_284 = arith.constant 0 : index
    %c3_285 = arith.constant 3 : index
    %c1_286 = arith.constant 1 : index
    %c0_287 = arith.constant 0 : index
    %129 = vector.load %arg3[%c0_283, %c0_284, %c3_285, %c1_286, %c0_287] : memref<1x1x6x6x32xbf16, #tpu.memory_space<vmem>>, vector<1x1x1x4x32xbf16>
    %130 = vector.shape_cast %129 : vector<1x1x1x4x32xbf16> to vector<4x32xbf16>
    %c12_288 = arith.constant 12 : index
    %c320_289 = arith.constant 320 : index
    %131 = vector.load %arg8[%c12_288, %c320_289] : memref<16x864xbf16, #tpu.memory_space<vmem>>, vector<4x32xbf16>
    tpu.vector_store %arg8[%c12_288, %c320_289], %130 {strides = array<i32>} : memref<16x864xbf16, #tpu.memory_space<vmem>>, vector<4x32xbf16>,
    %c0_290 = arith.constant 0 : index
    %c0_291 = arith.constant 0 : index
    %c0_292 = arith.constant 0 : index
    %c2_293 = arith.constant 2 : index
    %c0_294 = arith.constant 0 : index
    %132 = vector.load %arg3[%c0_290, %c0_291, %c0_292, %c2_293, %c0_294] : memref<1x1x6x6x32xbf16, #tpu.memory_space<vmem>>, vector<1x1x1x4x32xbf16>
    %133 = vector.shape_cast %132 : vector<1x1x1x4x32xbf16> to vector<4x32xbf16>
    %c0_295 = arith.constant 0 : index
    %c352 = arith.constant 352 : index
    %134 = vector.load %arg8[%c0_295, %c352] : memref<16x864xbf16, #tpu.memory_space<vmem>>, vector<4x32xbf16>
    tpu.vector_store %arg8[%c0_295, %c352], %133 {strides = array<i32>} : memref<16x864xbf16, #tpu.memory_space<vmem>>, vector<4x32xbf16>,
    %c0_296 = arith.constant 0 : index
    %c0_297 = arith.constant 0 : index
    %c1_298 = arith.constant 1 : index
    %c2_299 = arith.constant 2 : index
    %c0_300 = arith.constant 0 : index
    %135 = vector.load %arg3[%c0_296, %c0_297, %c1_298, %c2_299, %c0_300] : memref<1x1x6x6x32xbf16, #tpu.memory_space<vmem>>, vector<1x1x1x4x32xbf16>
    %136 = vector.shape_cast %135 : vector<1x1x1x4x32xbf16> to vector<4x32xbf16>
    %c4_301 = arith.constant 4 : index
    %c352_302 = arith.constant 352 : index
    %137 = vector.load %arg8[%c4_301, %c352_302] : memref<16x864xbf16, #tpu.memory_space<vmem>>, vector<4x32xbf16>
    tpu.vector_store %arg8[%c4_301, %c352_302], %136 {strides = array<i32>} : memref<16x864xbf16, #tpu.memory_space<vmem>>, vector<4x32xbf16>,
    %c0_303 = arith.constant 0 : index
    %c0_304 = arith.constant 0 : index
    %c2_305 = arith.constant 2 : index
    %c2_306 = arith.constant 2 : index
    %c0_307 = arith.constant 0 : index
    %138 = vector.load %arg3[%c0_303, %c0_304, %c2_305, %c2_306, %c0_307] : memref<1x1x6x6x32xbf16, #tpu.memory_space<vmem>>, vector<1x1x1x4x32xbf16>
    %139 = vector.shape_cast %138 : vector<1x1x1x4x32xbf16> to vector<4x32xbf16>
    %c8_308 = arith.constant 8 : index
    %c352_309 = arith.constant 352 : index
    %140 = vector.load %arg8[%c8_308, %c352_309] : memref<16x864xbf16, #tpu.memory_space<vmem>>, vector<4x32xbf16>
    tpu.vector_store %arg8[%c8_308, %c352_309], %139 {strides = array<i32>} : memref<16x864xbf16, #tpu.memory_space<vmem>>, vector<4x32xbf16>,
    %c0_310 = arith.constant 0 : index
    %c0_311 = arith.constant 0 : index
    %c3_312 = arith.constant 3 : index
    %c2_313 = arith.constant 2 : index
    %c0_314 = arith.constant 0 : index
    %141 = vector.load %arg3[%c0_310, %c0_311, %c3_312, %c2_313, %c0_314] : memref<1x1x6x6x32xbf16, #tpu.memory_space<vmem>>, vector<1x1x1x4x32xbf16>
    %142 = vector.shape_cast %141 : vector<1x1x1x4x32xbf16> to vector<4x32xbf16>
    %c12_315 = arith.constant 12 : index
    %c352_316 = arith.constant 352 : index
    %143 = vector.load %arg8[%c12_315, %c352_316] : memref<16x864xbf16, #tpu.memory_space<vmem>>, vector<4x32xbf16>
    tpu.vector_store %arg8[%c12_315, %c352_316], %142 {strides = array<i32>} : memref<16x864xbf16, #tpu.memory_space<vmem>>, vector<4x32xbf16>,
    %c0_317 = arith.constant 0 : index
    %c0_318 = arith.constant 0 : index
    %c1_319 = arith.constant 1 : index
    %c0_320 = arith.constant 0 : index
    %c0_321 = arith.constant 0 : index
    %144 = vector.load %arg3[%c0_317, %c0_318, %c1_319, %c0_320, %c0_321] : memref<1x1x6x6x32xbf16, #tpu.memory_space<vmem>>, vector<1x1x1x4x32xbf16>
    %145 = vector.shape_cast %144 : vector<1x1x1x4x32xbf16> to vector<4x32xbf16>
    %c0_322 = arith.constant 0 : index
    %c384 = arith.constant 384 : index
    %146 = vector.load %arg8[%c0_322, %c384] : memref<16x864xbf16, #tpu.memory_space<vmem>>, vector<4x32xbf16>
    tpu.vector_store %arg8[%c0_322, %c384], %145 {strides = array<i32>} : memref<16x864xbf16, #tpu.memory_space<vmem>>, vector<4x32xbf16>,
    %c0_323 = arith.constant 0 : index
    %c0_324 = arith.constant 0 : index
    %c2_325 = arith.constant 2 : index
    %c0_326 = arith.constant 0 : index
    %c0_327 = arith.constant 0 : index
    %147 = vector.load %arg3[%c0_323, %c0_324, %c2_325, %c0_326, %c0_327] : memref<1x1x6x6x32xbf16, #tpu.memory_space<vmem>>, vector<1x1x1x4x32xbf16>
    %148 = vector.shape_cast %147 : vector<1x1x1x4x32xbf16> to vector<4x32xbf16>
    %c4_328 = arith.constant 4 : index
    %c384_329 = arith.constant 384 : index
    %149 = vector.load %arg8[%c4_328, %c384_329] : memref<16x864xbf16, #tpu.memory_space<vmem>>, vector<4x32xbf16>
    tpu.vector_store %arg8[%c4_328, %c384_329], %148 {strides = array<i32>} : memref<16x864xbf16, #tpu.memory_space<vmem>>, vector<4x32xbf16>,
    %c0_330 = arith.constant 0 : index
    %c0_331 = arith.constant 0 : index
    %c3_332 = arith.constant 3 : index
    %c0_333 = arith.constant 0 : index
    %c0_334 = arith.constant 0 : index
    %150 = vector.load %arg3[%c0_330, %c0_331, %c3_332, %c0_333, %c0_334] : memref<1x1x6x6x32xbf16, #tpu.memory_space<vmem>>, vector<1x1x1x4x32xbf16>
    %151 = vector.shape_cast %150 : vector<1x1x1x4x32xbf16> to vector<4x32xbf16>
    %c8_335 = arith.constant 8 : index
    %c384_336 = arith.constant 384 : index
    %152 = vector.load %arg8[%c8_335, %c384_336] : memref<16x864xbf16, #tpu.memory_space<vmem>>, vector<4x32xbf16>
    tpu.vector_store %arg8[%c8_335, %c384_336], %151 {strides = array<i32>} : memref<16x864xbf16, #tpu.memory_space<vmem>>, vector<4x32xbf16>,
    %c0_337 = arith.constant 0 : index
    %c0_338 = arith.constant 0 : index
    %c4_339 = arith.constant 4 : index
    %c0_340 = arith.constant 0 : index
    %c0_341 = arith.constant 0 : index
    %153 = vector.load %arg3[%c0_337, %c0_338, %c4_339, %c0_340, %c0_341] : memref<1x1x6x6x32xbf16, #tpu.memory_space<vmem>>, vector<1x1x1x4x32xbf16>
    %154 = vector.shape_cast %153 : vector<1x1x1x4x32xbf16> to vector<4x32xbf16>
    %c12_342 = arith.constant 12 : index
    %c384_343 = arith.constant 384 : index
    %155 = vector.load %arg8[%c12_342, %c384_343] : memref<16x864xbf16, #tpu.memory_space<vmem>>, vector<4x32xbf16>
    tpu.vector_store %arg8[%c12_342, %c384_343], %154 {strides = array<i32>} : memref<16x864xbf16, #tpu.memory_space<vmem>>, vector<4x32xbf16>,
    %c0_344 = arith.constant 0 : index
    %c0_345 = arith.constant 0 : index
    %c1_346 = arith.constant 1 : index
    %c1_347 = arith.constant 1 : index
    %c0_348 = arith.constant 0 : index
    %156 = vector.load %arg3[%c0_344, %c0_345, %c1_346, %c1_347, %c0_348] : memref<1x1x6x6x32xbf16, #tpu.memory_space<vmem>>, vector<1x1x1x4x32xbf16>
    %157 = vector.shape_cast %156 : vector<1x1x1x4x32xbf16> to vector<4x32xbf16>
    %c0_349 = arith.constant 0 : index
    %c416 = arith.constant 416 : index
    %158 = vector.load %arg8[%c0_349, %c416] : memref<16x864xbf16, #tpu.memory_space<vmem>>, vector<4x32xbf16>
    tpu.vector_store %arg8[%c0_349, %c416], %157 {strides = array<i32>} : memref<16x864xbf16, #tpu.memory_space<vmem>>, vector<4x32xbf16>,
    %c0_350 = arith.constant 0 : index
    %c0_351 = arith.constant 0 : index
    %c2_352 = arith.constant 2 : index
    %c1_353 = arith.constant 1 : index
    %c0_354 = arith.constant 0 : index
    %159 = vector.load %arg3[%c0_350, %c0_351, %c2_352, %c1_353, %c0_354] : memref<1x1x6x6x32xbf16, #tpu.memory_space<vmem>>, vector<1x1x1x4x32xbf16>
    %160 = vector.shape_cast %159 : vector<1x1x1x4x32xbf16> to vector<4x32xbf16>
    %c4_355 = arith.constant 4 : index
    %c416_356 = arith.constant 416 : index
    %161 = vector.load %arg8[%c4_355, %c416_356] : memref<16x864xbf16, #tpu.memory_space<vmem>>, vector<4x32xbf16>
    tpu.vector_store %arg8[%c4_355, %c416_356], %160 {strides = array<i32>} : memref<16x864xbf16, #tpu.memory_space<vmem>>, vector<4x32xbf16>,
    %c0_357 = arith.constant 0 : index
    %c0_358 = arith.constant 0 : index
    %c3_359 = arith.constant 3 : index
    %c1_360 = arith.constant 1 : index
    %c0_361 = arith.constant 0 : index
    %162 = vector.load %arg3[%c0_357, %c0_358, %c3_359, %c1_360, %c0_361] : memref<1x1x6x6x32xbf16, #tpu.memory_space<vmem>>, vector<1x1x1x4x32xbf16>
    %163 = vector.shape_cast %162 : vector<1x1x1x4x32xbf16> to vector<4x32xbf16>
    %c8_362 = arith.constant 8 : index
    %c416_363 = arith.constant 416 : index
    %164 = vector.load %arg8[%c8_362, %c416_363] : memref<16x864xbf16, #tpu.memory_space<vmem>>, vector<4x32xbf16>
    tpu.vector_store %arg8[%c8_362, %c416_363], %163 {strides = array<i32>} : memref<16x864xbf16, #tpu.memory_space<vmem>>, vector<4x32xbf16>,
    %c0_364 = arith.constant 0 : index
    %c0_365 = arith.constant 0 : index
    %c4_366 = arith.constant 4 : index
    %c1_367 = arith.constant 1 : index
    %c0_368 = arith.constant 0 : index
    %165 = vector.load %arg3[%c0_364, %c0_365, %c4_366, %c1_367, %c0_368] : memref<1x1x6x6x32xbf16, #tpu.memory_space<vmem>>, vector<1x1x1x4x32xbf16>
    %166 = vector.shape_cast %165 : vector<1x1x1x4x32xbf16> to vector<4x32xbf16>
    %c12_369 = arith.constant 12 : index
    %c416_370 = arith.constant 416 : index
    %167 = vector.load %arg8[%c12_369, %c416_370] : memref<16x864xbf16, #tpu.memory_space<vmem>>, vector<4x32xbf16>
    tpu.vector_store %arg8[%c12_369, %c416_370], %166 {strides = array<i32>} : memref<16x864xbf16, #tpu.memory_space<vmem>>, vector<4x32xbf16>,
    %c0_371 = arith.constant 0 : index
    %c0_372 = arith.constant 0 : index
    %c1_373 = arith.constant 1 : index
    %c2_374 = arith.constant 2 : index
    %c0_375 = arith.constant 0 : index
    %168 = vector.load %arg3[%c0_371, %c0_372, %c1_373, %c2_374, %c0_375] : memref<1x1x6x6x32xbf16, #tpu.memory_space<vmem>>, vector<1x1x1x4x32xbf16>
    %169 = vector.shape_cast %168 : vector<1x1x1x4x32xbf16> to vector<4x32xbf16>
    %c0_376 = arith.constant 0 : index
    %c448 = arith.constant 448 : index
    %170 = vector.load %arg8[%c0_376, %c448] : memref<16x864xbf16, #tpu.memory_space<vmem>>, vector<4x32xbf16>
    tpu.vector_store %arg8[%c0_376, %c448], %169 {strides = array<i32>} : memref<16x864xbf16, #tpu.memory_space<vmem>>, vector<4x32xbf16>,
    %c0_377 = arith.constant 0 : index
    %c0_378 = arith.constant 0 : index
    %c2_379 = arith.constant 2 : index
    %c2_380 = arith.constant 2 : index
    %c0_381 = arith.constant 0 : index
    %171 = vector.load %arg3[%c0_377, %c0_378, %c2_379, %c2_380, %c0_381] : memref<1x1x6x6x32xbf16, #tpu.memory_space<vmem>>, vector<1x1x1x4x32xbf16>
    %172 = vector.shape_cast %171 : vector<1x1x1x4x32xbf16> to vector<4x32xbf16>
    %c4_382 = arith.constant 4 : index
    %c448_383 = arith.constant 448 : index
    %173 = vector.load %arg8[%c4_382, %c448_383] : memref<16x864xbf16, #tpu.memory_space<vmem>>, vector<4x32xbf16>
    tpu.vector_store %arg8[%c4_382, %c448_383], %172 {strides = array<i32>} : memref<16x864xbf16, #tpu.memory_space<vmem>>, vector<4x32xbf16>,
    %c0_384 = arith.constant 0 : index
    %c0_385 = arith.constant 0 : index
    %c3_386 = arith.constant 3 : index
    %c2_387 = arith.constant 2 : index
    %c0_388 = arith.constant 0 : index
    %174 = vector.load %arg3[%c0_384, %c0_385, %c3_386, %c2_387, %c0_388] : memref<1x1x6x6x32xbf16, #tpu.memory_space<vmem>>, vector<1x1x1x4x32xbf16>
    %175 = vector.shape_cast %174 : vector<1x1x1x4x32xbf16> to vector<4x32xbf16>
    %c8_389 = arith.constant 8 : index
    %c448_390 = arith.constant 448 : index
    %176 = vector.load %arg8[%c8_389, %c448_390] : memref<16x864xbf16, #tpu.memory_space<vmem>>, vector<4x32xbf16>
    tpu.vector_store %arg8[%c8_389, %c448_390], %175 {strides = array<i32>} : memref<16x864xbf16, #tpu.memory_space<vmem>>, vector<4x32xbf16>,
    %c0_391 = arith.constant 0 : index
    %c0_392 = arith.constant 0 : index
    %c4_393 = arith.constant 4 : index
    %c2_394 = arith.constant 2 : index
    %c0_395 = arith.constant 0 : index
    %177 = vector.load %arg3[%c0_391, %c0_392, %c4_393, %c2_394, %c0_395] : memref<1x1x6x6x32xbf16, #tpu.memory_space<vmem>>, vector<1x1x1x4x32xbf16>
    %178 = vector.shape_cast %177 : vector<1x1x1x4x32xbf16> to vector<4x32xbf16>
    %c12_396 = arith.constant 12 : index
    %c448_397 = arith.constant 448 : index
    %179 = vector.load %arg8[%c12_396, %c448_397] : memref<16x864xbf16, #tpu.memory_space<vmem>>, vector<4x32xbf16>
    tpu.vector_store %arg8[%c12_396, %c448_397], %178 {strides = array<i32>} : memref<16x864xbf16, #tpu.memory_space<vmem>>, vector<4x32xbf16>,
    %c0_398 = arith.constant 0 : index
    %c0_399 = arith.constant 0 : index
    %c2_400 = arith.constant 2 : index
    %c0_401 = arith.constant 0 : index
    %c0_402 = arith.constant 0 : index
    %180 = vector.load %arg3[%c0_398, %c0_399, %c2_400, %c0_401, %c0_402] : memref<1x1x6x6x32xbf16, #tpu.memory_space<vmem>>, vector<1x1x1x4x32xbf16>
    %181 = vector.shape_cast %180 : vector<1x1x1x4x32xbf16> to vector<4x32xbf16>
    %c0_403 = arith.constant 0 : index
    %c480 = arith.constant 480 : index
    %182 = vector.load %arg8[%c0_403, %c480] : memref<16x864xbf16, #tpu.memory_space<vmem>>, vector<4x32xbf16>
    tpu.vector_store %arg8[%c0_403, %c480], %181 {strides = array<i32>} : memref<16x864xbf16, #tpu.memory_space<vmem>>, vector<4x32xbf16>,
    %c0_404 = arith.constant 0 : index
    %c0_405 = arith.constant 0 : index
    %c3_406 = arith.constant 3 : index
    %c0_407 = arith.constant 0 : index
    %c0_408 = arith.constant 0 : index
    %183 = vector.load %arg3[%c0_404, %c0_405, %c3_406, %c0_407, %c0_408] : memref<1x1x6x6x32xbf16, #tpu.memory_space<vmem>>, vector<1x1x1x4x32xbf16>
    %184 = vector.shape_cast %183 : vector<1x1x1x4x32xbf16> to vector<4x32xbf16>
    %c4_409 = arith.constant 4 : index
    %c480_410 = arith.constant 480 : index
    %185 = vector.load %arg8[%c4_409, %c480_410] : memref<16x864xbf16, #tpu.memory_space<vmem>>, vector<4x32xbf16>
    tpu.vector_store %arg8[%c4_409, %c480_410], %184 {strides = array<i32>} : memref<16x864xbf16, #tpu.memory_space<vmem>>, vector<4x32xbf16>,
    %c0_411 = arith.constant 0 : index
    %c0_412 = arith.constant 0 : index
    %c4_413 = arith.constant 4 : index
    %c0_414 = arith.constant 0 : index
    %c0_415 = arith.constant 0 : index
    %186 = vector.load %arg3[%c0_411, %c0_412, %c4_413, %c0_414, %c0_415] : memref<1x1x6x6x32xbf16, #tpu.memory_space<vmem>>, vector<1x1x1x4x32xbf16>
    %187 = vector.shape_cast %186 : vector<1x1x1x4x32xbf16> to vector<4x32xbf16>
    %c8_416 = arith.constant 8 : index
    %c480_417 = arith.constant 480 : index
    %188 = vector.load %arg8[%c8_416, %c480_417] : memref<16x864xbf16, #tpu.memory_space<vmem>>, vector<4x32xbf16>
    tpu.vector_store %arg8[%c8_416, %c480_417], %187 {strides = array<i32>} : memref<16x864xbf16, #tpu.memory_space<vmem>>, vector<4x32xbf16>,
    %c0_418 = arith.constant 0 : index
    %c0_419 = arith.constant 0 : index
    %c5_420 = arith.constant 5 : index
    %c0_421 = arith.constant 0 : index
    %c0_422 = arith.constant 0 : index
    %189 = vector.load %arg3[%c0_418, %c0_419, %c5_420, %c0_421, %c0_422] : memref<1x1x6x6x32xbf16, #tpu.memory_space<vmem>>, vector<1x1x1x4x32xbf16>
    %190 = vector.shape_cast %189 : vector<1x1x1x4x32xbf16> to vector<4x32xbf16>
    %c12_423 = arith.constant 12 : index
    %c480_424 = arith.constant 480 : index
    %191 = vector.load %arg8[%c12_423, %c480_424] : memref<16x864xbf16, #tpu.memory_space<vmem>>, vector<4x32xbf16>
    tpu.vector_store %arg8[%c12_423, %c480_424], %190 {strides = array<i32>} : memref<16x864xbf16, #tpu.memory_space<vmem>>, vector<4x32xbf16>,
    %c0_425 = arith.constant 0 : index
    %c0_426 = arith.constant 0 : index
    %c2_427 = arith.constant 2 : index
    %c1_428 = arith.constant 1 : index
    %c0_429 = arith.constant 0 : index
    %192 = vector.load %arg3[%c0_425, %c0_426, %c2_427, %c1_428, %c0_429] : memref<1x1x6x6x32xbf16, #tpu.memory_space<vmem>>, vector<1x1x1x4x32xbf16>
    %193 = vector.shape_cast %192 : vector<1x1x1x4x32xbf16> to vector<4x32xbf16>
    %c0_430 = arith.constant 0 : index
    %c512 = arith.constant 512 : index
    %194 = vector.load %arg8[%c0_430, %c512] : memref<16x864xbf16, #tpu.memory_space<vmem>>, vector<4x32xbf16>
    tpu.vector_store %arg8[%c0_430, %c512], %193 {strides = array<i32>} : memref<16x864xbf16, #tpu.memory_space<vmem>>, vector<4x32xbf16>,
    %c0_431 = arith.constant 0 : index
    %c0_432 = arith.constant 0 : index
    %c3_433 = arith.constant 3 : index
    %c1_434 = arith.constant 1 : index
    %c0_435 = arith.constant 0 : index
    %195 = vector.load %arg3[%c0_431, %c0_432, %c3_433, %c1_434, %c0_435] : memref<1x1x6x6x32xbf16, #tpu.memory_space<vmem>>, vector<1x1x1x4x32xbf16>
    %196 = vector.shape_cast %195 : vector<1x1x1x4x32xbf16> to vector<4x32xbf16>
    %c4_436 = arith.constant 4 : index
    %c512_437 = arith.constant 512 : index
    %197 = vector.load %arg8[%c4_436, %c512_437] : memref<16x864xbf16, #tpu.memory_space<vmem>>, vector<4x32xbf16>
    tpu.vector_store %arg8[%c4_436, %c512_437], %196 {strides = array<i32>} : memref<16x864xbf16, #tpu.memory_space<vmem>>, vector<4x32xbf16>,
    %c0_438 = arith.constant 0 : index
    %c0_439 = arith.constant 0 : index
    %c4_440 = arith.constant 4 : index
    %c1_441 = arith.constant 1 : index
    %c0_442 = arith.constant 0 : index
    %198 = vector.load %arg3[%c0_438, %c0_439, %c4_440, %c1_441, %c0_442] : memref<1x1x6x6x32xbf16, #tpu.memory_space<vmem>>, vector<1x1x1x4x32xbf16>
    %199 = vector.shape_cast %198 : vector<1x1x1x4x32xbf16> to vector<4x32xbf16>
    %c8_443 = arith.constant 8 : index
    %c512_444 = arith.constant 512 : index
    %200 = vector.load %arg8[%c8_443, %c512_444] : memref<16x864xbf16, #tpu.memory_space<vmem>>, vector<4x32xbf16>
    tpu.vector_store %arg8[%c8_443, %c512_444], %199 {strides = array<i32>} : memref<16x864xbf16, #tpu.memory_space<vmem>>, vector<4x32xbf16>,
    %c0_445 = arith.constant 0 : index
    %c0_446 = arith.constant 0 : index
    %c5_447 = arith.constant 5 : index
    %c1_448 = arith.constant 1 : index
    %c0_449 = arith.constant 0 : index
    %201 = vector.load %arg3[%c0_445, %c0_446, %c5_447, %c1_448, %c0_449] : memref<1x1x6x6x32xbf16, #tpu.memory_space<vmem>>, vector<1x1x1x4x32xbf16>
    %202 = vector.shape_cast %201 : vector<1x1x1x4x32xbf16> to vector<4x32xbf16>
    %c12_450 = arith.constant 12 : index
    %c512_451 = arith.constant 512 : index
    %203 = vector.load %arg8[%c12_450, %c512_451] : memref<16x864xbf16, #tpu.memory_space<vmem>>, vector<4x32xbf16>
    tpu.vector_store %arg8[%c12_450, %c512_451], %202 {strides = array<i32>} : memref<16x864xbf16, #tpu.memory_space<vmem>>, vector<4x32xbf16>,
    %c0_452 = arith.constant 0 : index
    %c0_453 = arith.constant 0 : index
    %c2_454 = arith.constant 2 : index
    %c2_455 = arith.constant 2 : index
    %c0_456 = arith.constant 0 : index
    %204 = vector.load %arg3[%c0_452, %c0_453, %c2_454, %c2_455, %c0_456] : memref<1x1x6x6x32xbf16, #tpu.memory_space<vmem>>, vector<1x1x1x4x32xbf16>
    %205 = vector.shape_cast %204 : vector<1x1x1x4x32xbf16> to vector<4x32xbf16>
    %c0_457 = arith.constant 0 : index
    %c544 = arith.constant 544 : index
    %206 = vector.load %arg8[%c0_457, %c544] : memref<16x864xbf16, #tpu.memory_space<vmem>>, vector<4x32xbf16>
    tpu.vector_store %arg8[%c0_457, %c544], %205 {strides = array<i32>} : memref<16x864xbf16, #tpu.memory_space<vmem>>, vector<4x32xbf16>,
    %c0_458 = arith.constant 0 : index
    %c0_459 = arith.constant 0 : index
    %c3_460 = arith.constant 3 : index
    %c2_461 = arith.constant 2 : index
    %c0_462 = arith.constant 0 : index
    %207 = vector.load %arg3[%c0_458, %c0_459, %c3_460, %c2_461, %c0_462] : memref<1x1x6x6x32xbf16, #tpu.memory_space<vmem>>, vector<1x1x1x4x32xbf16>
    %208 = vector.shape_cast %207 : vector<1x1x1x4x32xbf16> to vector<4x32xbf16>
    %c4_463 = arith.constant 4 : index
    %c544_464 = arith.constant 544 : index
    %209 = vector.load %arg8[%c4_463, %c544_464] : memref<16x864xbf16, #tpu.memory_space<vmem>>, vector<4x32xbf16>
    tpu.vector_store %arg8[%c4_463, %c544_464], %208 {strides = array<i32>} : memref<16x864xbf16, #tpu.memory_space<vmem>>, vector<4x32xbf16>,
    %c0_465 = arith.constant 0 : index
    %c0_466 = arith.constant 0 : index
    %c4_467 = arith.constant 4 : index
    %c2_468 = arith.constant 2 : index
    %c0_469 = arith.constant 0 : index
    %210 = vector.load %arg3[%c0_465, %c0_466, %c4_467, %c2_468, %c0_469] : memref<1x1x6x6x32xbf16, #tpu.memory_space<vmem>>, vector<1x1x1x4x32xbf16>
    %211 = vector.shape_cast %210 : vector<1x1x1x4x32xbf16> to vector<4x32xbf16>
    %c8_470 = arith.constant 8 : index
    %c544_471 = arith.constant 544 : index
    %212 = vector.load %arg8[%c8_470, %c544_471] : memref<16x864xbf16, #tpu.memory_space<vmem>>, vector<4x32xbf16>
    tpu.vector_store %arg8[%c8_470, %c544_471], %211 {strides = array<i32>} : memref<16x864xbf16, #tpu.memory_space<vmem>>, vector<4x32xbf16>,
    %c0_472 = arith.constant 0 : index
    %c0_473 = arith.constant 0 : index
    %c5_474 = arith.constant 5 : index
    %c2_475 = arith.constant 2 : index
    %c0_476 = arith.constant 0 : index
    %213 = vector.load %arg3[%c0_472, %c0_473, %c5_474, %c2_475, %c0_476] : memref<1x1x6x6x32xbf16, #tpu.memory_space<vmem>>, vector<1x1x1x4x32xbf16>
    %214 = vector.shape_cast %213 : vector<1x1x1x4x32xbf16> to vector<4x32xbf16>
    %c12_477 = arith.constant 12 : index
    %c544_478 = arith.constant 544 : index
    %215 = vector.load %arg8[%c12_477, %c544_478] : memref<16x864xbf16, #tpu.memory_space<vmem>>, vector<4x32xbf16>
    tpu.vector_store %arg8[%c12_477, %c544_478], %214 {strides = array<i32>} : memref<16x864xbf16, #tpu.memory_space<vmem>>, vector<4x32xbf16>,
    %c0_479 = arith.constant 0 : index
    %c0_480 = arith.constant 0 : index
    %c0_481 = arith.constant 0 : index
    %c0_482 = arith.constant 0 : index
    %c0_483 = arith.constant 0 : index
    %216 = vector.load %arg4[%c0_479, %c0_480, %c0_481, %c0_482, %c0_483] : memref<1x1x6x6x32xbf16, #tpu.memory_space<vmem>>, vector<1x1x1x4x32xbf16>
    %217 = vector.shape_cast %216 : vector<1x1x1x4x32xbf16> to vector<4x32xbf16>
    %c0_484 = arith.constant 0 : index
    %c576 = arith.constant 576 : index
    %218 = vector.load %arg8[%c0_484, %c576] : memref<16x864xbf16, #tpu.memory_space<vmem>>, vector<4x32xbf16>
    tpu.vector_store %arg8[%c0_484, %c576], %217 {strides = array<i32>} : memref<16x864xbf16, #tpu.memory_space<vmem>>, vector<4x32xbf16>,
    %c0_485 = arith.constant 0 : index
    %c0_486 = arith.constant 0 : index
    %c1_487 = arith.constant 1 : index
    %c0_488 = arith.constant 0 : index
    %c0_489 = arith.constant 0 : index
    %219 = vector.load %arg4[%c0_485, %c0_486, %c1_487, %c0_488, %c0_489] : memref<1x1x6x6x32xbf16, #tpu.memory_space<vmem>>, vector<1x1x1x4x32xbf16>
    %220 = vector.shape_cast %219 : vector<1x1x1x4x32xbf16> to vector<4x32xbf16>
    %c4_490 = arith.constant 4 : index
    %c576_491 = arith.constant 576 : index
    %221 = vector.load %arg8[%c4_490, %c576_491] : memref<16x864xbf16, #tpu.memory_space<vmem>>, vector<4x32xbf16>
    tpu.vector_store %arg8[%c4_490, %c576_491], %220 {strides = array<i32>} : memref<16x864xbf16, #tpu.memory_space<vmem>>, vector<4x32xbf16>,
    %c0_492 = arith.constant 0 : index
    %c0_493 = arith.constant 0 : index
    %c2_494 = arith.constant 2 : index
    %c0_495 = arith.constant 0 : index
    %c0_496 = arith.constant 0 : index
    %222 = vector.load %arg4[%c0_492, %c0_493, %c2_494, %c0_495, %c0_496] : memref<1x1x6x6x32xbf16, #tpu.memory_space<vmem>>, vector<1x1x1x4x32xbf16>
    %223 = vector.shape_cast %222 : vector<1x1x1x4x32xbf16> to vector<4x32xbf16>
    %c8_497 = arith.constant 8 : index
    %c576_498 = arith.constant 576 : index
    %224 = vector.load %arg8[%c8_497, %c576_498] : memref<16x864xbf16, #tpu.memory_space<vmem>>, vector<4x32xbf16>
    tpu.vector_store %arg8[%c8_497, %c576_498], %223 {strides = array<i32>} : memref<16x864xbf16, #tpu.memory_space<vmem>>, vector<4x32xbf16>,
    %c0_499 = arith.constant 0 : index
    %c0_500 = arith.constant 0 : index
    %c3_501 = arith.constant 3 : index
    %c0_502 = arith.constant 0 : index
    %c0_503 = arith.constant 0 : index
    %225 = vector.load %arg4[%c0_499, %c0_500, %c3_501, %c0_502, %c0_503] : memref<1x1x6x6x32xbf16, #tpu.memory_space<vmem>>, vector<1x1x1x4x32xbf16>
    %226 = vector.shape_cast %225 : vector<1x1x1x4x32xbf16> to vector<4x32xbf16>
    %c12_504 = arith.constant 12 : index
    %c576_505 = arith.constant 576 : index
    %227 = vector.load %arg8[%c12_504, %c576_505] : memref<16x864xbf16, #tpu.memory_space<vmem>>, vector<4x32xbf16>
    tpu.vector_store %arg8[%c12_504, %c576_505], %226 {strides = array<i32>} : memref<16x864xbf16, #tpu.memory_space<vmem>>, vector<4x32xbf16>,
    %c0_506 = arith.constant 0 : index
    %c0_507 = arith.constant 0 : index
    %c0_508 = arith.constant 0 : index
    %c1_509 = arith.constant 1 : index
    %c0_510 = arith.constant 0 : index
    %228 = vector.load %arg4[%c0_506, %c0_507, %c0_508, %c1_509, %c0_510] : memref<1x1x6x6x32xbf16, #tpu.memory_space<vmem>>, vector<1x1x1x4x32xbf16>
    %229 = vector.shape_cast %228 : vector<1x1x1x4x32xbf16> to vector<4x32xbf16>
    %c0_511 = arith.constant 0 : index
    %c608 = arith.constant 608 : index
    %230 = vector.load %arg8[%c0_511, %c608] : memref<16x864xbf16, #tpu.memory_space<vmem>>, vector<4x32xbf16>
    tpu.vector_store %arg8[%c0_511, %c608], %229 {strides = array<i32>} : memref<16x864xbf16, #tpu.memory_space<vmem>>, vector<4x32xbf16>,
    %c0_512 = arith.constant 0 : index
    %c0_513 = arith.constant 0 : index
    %c1_514 = arith.constant 1 : index
    %c1_515 = arith.constant 1 : index
    %c0_516 = arith.constant 0 : index
    %231 = vector.load %arg4[%c0_512, %c0_513, %c1_514, %c1_515, %c0_516] : memref<1x1x6x6x32xbf16, #tpu.memory_space<vmem>>, vector<1x1x1x4x32xbf16>
    %232 = vector.shape_cast %231 : vector<1x1x1x4x32xbf16> to vector<4x32xbf16>
    %c4_517 = arith.constant 4 : index
    %c608_518 = arith.constant 608 : index
    %233 = vector.load %arg8[%c4_517, %c608_518] : memref<16x864xbf16, #tpu.memory_space<vmem>>, vector<4x32xbf16>
    tpu.vector_store %arg8[%c4_517, %c608_518], %232 {strides = array<i32>} : memref<16x864xbf16, #tpu.memory_space<vmem>>, vector<4x32xbf16>,
    %c0_519 = arith.constant 0 : index
    %c0_520 = arith.constant 0 : index
    %c2_521 = arith.constant 2 : index
    %c1_522 = arith.constant 1 : index
    %c0_523 = arith.constant 0 : index
    %234 = vector.load %arg4[%c0_519, %c0_520, %c2_521, %c1_522, %c0_523] : memref<1x1x6x6x32xbf16, #tpu.memory_space<vmem>>, vector<1x1x1x4x32xbf16>
    %235 = vector.shape_cast %234 : vector<1x1x1x4x32xbf16> to vector<4x32xbf16>
    %c8_524 = arith.constant 8 : index
    %c608_525 = arith.constant 608 : index
    %236 = vector.load %arg8[%c8_524, %c608_525] : memref<16x864xbf16, #tpu.memory_space<vmem>>, vector<4x32xbf16>
    tpu.vector_store %arg8[%c8_524, %c608_525], %235 {strides = array<i32>} : memref<16x864xbf16, #tpu.memory_space<vmem>>, vector<4x32xbf16>,
    %c0_526 = arith.constant 0 : index
    %c0_527 = arith.constant 0 : index
    %c3_528 = arith.constant 3 : index
    %c1_529 = arith.constant 1 : index
    %c0_530 = arith.constant 0 : index
    %237 = vector.load %arg4[%c0_526, %c0_527, %c3_528, %c1_529, %c0_530] : memref<1x1x6x6x32xbf16, #tpu.memory_space<vmem>>, vector<1x1x1x4x32xbf16>
    %238 = vector.shape_cast %237 : vector<1x1x1x4x32xbf16> to vector<4x32xbf16>
    %c12_531 = arith.constant 12 : index
    %c608_532 = arith.constant 608 : index
    %239 = vector.load %arg8[%c12_531, %c608_532] : memref<16x864xbf16, #tpu.memory_space<vmem>>, vector<4x32xbf16>
    tpu.vector_store %arg8[%c12_531, %c608_532], %238 {strides = array<i32>} : memref<16x864xbf16, #tpu.memory_space<vmem>>, vector<4x32xbf16>,
    %c0_533 = arith.constant 0 : index
    %c0_534 = arith.constant 0 : index
    %c0_535 = arith.constant 0 : index
    %c2_536 = arith.constant 2 : index
    %c0_537 = arith.constant 0 : index
    %240 = vector.load %arg4[%c0_533, %c0_534, %c0_535, %c2_536, %c0_537] : memref<1x1x6x6x32xbf16, #tpu.memory_space<vmem>>, vector<1x1x1x4x32xbf16>
    %241 = vector.shape_cast %240 : vector<1x1x1x4x32xbf16> to vector<4x32xbf16>
    %c0_538 = arith.constant 0 : index
    %c640 = arith.constant 640 : index
    %242 = vector.load %arg8[%c0_538, %c640] : memref<16x864xbf16, #tpu.memory_space<vmem>>, vector<4x32xbf16>
    tpu.vector_store %arg8[%c0_538, %c640], %241 {strides = array<i32>} : memref<16x864xbf16, #tpu.memory_space<vmem>>, vector<4x32xbf16>,
    %c0_539 = arith.constant 0 : index
    %c0_540 = arith.constant 0 : index
    %c1_541 = arith.constant 1 : index
    %c2_542 = arith.constant 2 : index
    %c0_543 = arith.constant 0 : index
    %243 = vector.load %arg4[%c0_539, %c0_540, %c1_541, %c2_542, %c0_543] : memref<1x1x6x6x32xbf16, #tpu.memory_space<vmem>>, vector<1x1x1x4x32xbf16>
    %244 = vector.shape_cast %243 : vector<1x1x1x4x32xbf16> to vector<4x32xbf16>
    %c4_544 = arith.constant 4 : index
    %c640_545 = arith.constant 640 : index
    %245 = vector.load %arg8[%c4_544, %c640_545] : memref<16x864xbf16, #tpu.memory_space<vmem>>, vector<4x32xbf16>
    tpu.vector_store %arg8[%c4_544, %c640_545], %244 {strides = array<i32>} : memref<16x864xbf16, #tpu.memory_space<vmem>>, vector<4x32xbf16>,
    %c0_546 = arith.constant 0 : index
    %c0_547 = arith.constant 0 : index
    %c2_548 = arith.constant 2 : index
    %c2_549 = arith.constant 2 : index
    %c0_550 = arith.constant 0 : index
    %246 = vector.load %arg4[%c0_546, %c0_547, %c2_548, %c2_549, %c0_550] : memref<1x1x6x6x32xbf16, #tpu.memory_space<vmem>>, vector<1x1x1x4x32xbf16>
    %247 = vector.shape_cast %246 : vector<1x1x1x4x32xbf16> to vector<4x32xbf16>
    %c8_551 = arith.constant 8 : index
    %c640_552 = arith.constant 640 : index
    %248 = vector.load %arg8[%c8_551, %c640_552] : memref<16x864xbf16, #tpu.memory_space<vmem>>, vector<4x32xbf16>
    tpu.vector_store %arg8[%c8_551, %c640_552], %247 {strides = array<i32>} : memref<16x864xbf16, #tpu.memory_space<vmem>>, vector<4x32xbf16>,
    %c0_553 = arith.constant 0 : index
    %c0_554 = arith.constant 0 : index
    %c3_555 = arith.constant 3 : index
    %c2_556 = arith.constant 2 : index
    %c0_557 = arith.constant 0 : index
    %249 = vector.load %arg4[%c0_553, %c0_554, %c3_555, %c2_556, %c0_557] : memref<1x1x6x6x32xbf16, #tpu.memory_space<vmem>>, vector<1x1x1x4x32xbf16>
    %250 = vector.shape_cast %249 : vector<1x1x1x4x32xbf16> to vector<4x32xbf16>
    %c12_558 = arith.constant 12 : index
    %c640_559 = arith.constant 640 : index
    %251 = vector.load %arg8[%c12_558, %c640_559] : memref<16x864xbf16, #tpu.memory_space<vmem>>, vector<4x32xbf16>
    tpu.vector_store %arg8[%c12_558, %c640_559], %250 {strides = array<i32>} : memref<16x864xbf16, #tpu.memory_space<vmem>>, vector<4x32xbf16>,
    %c0_560 = arith.constant 0 : index
    %c0_561 = arith.constant 0 : index
    %c1_562 = arith.constant 1 : index
    %c0_563 = arith.constant 0 : index
    %c0_564 = arith.constant 0 : index
    %252 = vector.load %arg4[%c0_560, %c0_561, %c1_562, %c0_563, %c0_564] : memref<1x1x6x6x32xbf16, #tpu.memory_space<vmem>>, vector<1x1x1x4x32xbf16>
    %253 = vector.shape_cast %252 : vector<1x1x1x4x32xbf16> to vector<4x32xbf16>
    %c0_565 = arith.constant 0 : index
    %c672 = arith.constant 672 : index
    %254 = vector.load %arg8[%c0_565, %c672] : memref<16x864xbf16, #tpu.memory_space<vmem>>, vector<4x32xbf16>
    tpu.vector_store %arg8[%c0_565, %c672], %253 {strides = array<i32>} : memref<16x864xbf16, #tpu.memory_space<vmem>>, vector<4x32xbf16>,
    %c0_566 = arith.constant 0 : index
    %c0_567 = arith.constant 0 : index
    %c2_568 = arith.constant 2 : index
    %c0_569 = arith.constant 0 : index
    %c0_570 = arith.constant 0 : index
    %255 = vector.load %arg4[%c0_566, %c0_567, %c2_568, %c0_569, %c0_570] : memref<1x1x6x6x32xbf16, #tpu.memory_space<vmem>>, vector<1x1x1x4x32xbf16>
    %256 = vector.shape_cast %255 : vector<1x1x1x4x32xbf16> to vector<4x32xbf16>
    %c4_571 = arith.constant 4 : index
    %c672_572 = arith.constant 672 : index
    %257 = vector.load %arg8[%c4_571, %c672_572] : memref<16x864xbf16, #tpu.memory_space<vmem>>, vector<4x32xbf16>
    tpu.vector_store %arg8[%c4_571, %c672_572], %256 {strides = array<i32>} : memref<16x864xbf16, #tpu.memory_space<vmem>>, vector<4x32xbf16>,
    %c0_573 = arith.constant 0 : index
    %c0_574 = arith.constant 0 : index
    %c3_575 = arith.constant 3 : index
    %c0_576 = arith.constant 0 : index
    %c0_577 = arith.constant 0 : index
    %258 = vector.load %arg4[%c0_573, %c0_574, %c3_575, %c0_576, %c0_577] : memref<1x1x6x6x32xbf16, #tpu.memory_space<vmem>>, vector<1x1x1x4x32xbf16>
    %259 = vector.shape_cast %258 : vector<1x1x1x4x32xbf16> to vector<4x32xbf16>
    %c8_578 = arith.constant 8 : index
    %c672_579 = arith.constant 672 : index
    %260 = vector.load %arg8[%c8_578, %c672_579] : memref<16x864xbf16, #tpu.memory_space<vmem>>, vector<4x32xbf16>
    tpu.vector_store %arg8[%c8_578, %c672_579], %259 {strides = array<i32>} : memref<16x864xbf16, #tpu.memory_space<vmem>>, vector<4x32xbf16>,
    %c0_580 = arith.constant 0 : index
    %c0_581 = arith.constant 0 : index
    %c4_582 = arith.constant 4 : index
    %c0_583 = arith.constant 0 : index
    %c0_584 = arith.constant 0 : index
    %261 = vector.load %arg4[%c0_580, %c0_581, %c4_582, %c0_583, %c0_584] : memref<1x1x6x6x32xbf16, #tpu.memory_space<vmem>>, vector<1x1x1x4x32xbf16>
    %262 = vector.shape_cast %261 : vector<1x1x1x4x32xbf16> to vector<4x32xbf16>
    %c12_585 = arith.constant 12 : index
    %c672_586 = arith.constant 672 : index
    %263 = vector.load %arg8[%c12_585, %c672_586] : memref<16x864xbf16, #tpu.memory_space<vmem>>, vector<4x32xbf16>
    tpu.vector_store %arg8[%c12_585, %c672_586], %262 {strides = array<i32>} : memref<16x864xbf16, #tpu.memory_space<vmem>>, vector<4x32xbf16>,
    %c0_587 = arith.constant 0 : index
    %c0_588 = arith.constant 0 : index
    %c1_589 = arith.constant 1 : index
    %c1_590 = arith.constant 1 : index
    %c0_591 = arith.constant 0 : index
    %264 = vector.load %arg4[%c0_587, %c0_588, %c1_589, %c1_590, %c0_591] : memref<1x1x6x6x32xbf16, #tpu.memory_space<vmem>>, vector<1x1x1x4x32xbf16>
    %265 = vector.shape_cast %264 : vector<1x1x1x4x32xbf16> to vector<4x32xbf16>
    %c0_592 = arith.constant 0 : index
    %c704 = arith.constant 704 : index
    %266 = vector.load %arg8[%c0_592, %c704] : memref<16x864xbf16, #tpu.memory_space<vmem>>, vector<4x32xbf16>
    tpu.vector_store %arg8[%c0_592, %c704], %265 {strides = array<i32>} : memref<16x864xbf16, #tpu.memory_space<vmem>>, vector<4x32xbf16>,
    %c0_593 = arith.constant 0 : index
    %c0_594 = arith.constant 0 : index
    %c2_595 = arith.constant 2 : index
    %c1_596 = arith.constant 1 : index
    %c0_597 = arith.constant 0 : index
    %267 = vector.load %arg4[%c0_593, %c0_594, %c2_595, %c1_596, %c0_597] : memref<1x1x6x6x32xbf16, #tpu.memory_space<vmem>>, vector<1x1x1x4x32xbf16>
    %268 = vector.shape_cast %267 : vector<1x1x1x4x32xbf16> to vector<4x32xbf16>
    %c4_598 = arith.constant 4 : index
    %c704_599 = arith.constant 704 : index
    %269 = vector.load %arg8[%c4_598, %c704_599] : memref<16x864xbf16, #tpu.memory_space<vmem>>, vector<4x32xbf16>
    tpu.vector_store %arg8[%c4_598, %c704_599], %268 {strides = array<i32>} : memref<16x864xbf16, #tpu.memory_space<vmem>>, vector<4x32xbf16>,
    %c0_600 = arith.constant 0 : index
    %c0_601 = arith.constant 0 : index
    %c3_602 = arith.constant 3 : index
    %c1_603 = arith.constant 1 : index
    %c0_604 = arith.constant 0 : index
    %270 = vector.load %arg4[%c0_600, %c0_601, %c3_602, %c1_603, %c0_604] : memref<1x1x6x6x32xbf16, #tpu.memory_space<vmem>>, vector<1x1x1x4x32xbf16>
    %271 = vector.shape_cast %270 : vector<1x1x1x4x32xbf16> to vector<4x32xbf16>
    %c8_605 = arith.constant 8 : index
    %c704_606 = arith.constant 704 : index
    %272 = vector.load %arg8[%c8_605, %c704_606] : memref<16x864xbf16, #tpu.memory_space<vmem>>, vector<4x32xbf16>
    tpu.vector_store %arg8[%c8_605, %c704_606], %271 {strides = array<i32>} : memref<16x864xbf16, #tpu.memory_space<vmem>>, vector<4x32xbf16>,
    %c0_607 = arith.constant 0 : index
    %c0_608 = arith.constant 0 : index
    %c4_609 = arith.constant 4 : index
    %c1_610 = arith.constant 1 : index
    %c0_611 = arith.constant 0 : index
    %273 = vector.load %arg4[%c0_607, %c0_608, %c4_609, %c1_610, %c0_611] : memref<1x1x6x6x32xbf16, #tpu.memory_space<vmem>>, vector<1x1x1x4x32xbf16>
    %274 = vector.shape_cast %273 : vector<1x1x1x4x32xbf16> to vector<4x32xbf16>
    %c12_612 = arith.constant 12 : index
    %c704_613 = arith.constant 704 : index
    %275 = vector.load %arg8[%c12_612, %c704_613] : memref<16x864xbf16, #tpu.memory_space<vmem>>, vector<4x32xbf16>
    tpu.vector_store %arg8[%c12_612, %c704_613], %274 {strides = array<i32>} : memref<16x864xbf16, #tpu.memory_space<vmem>>, vector<4x32xbf16>,
    %c0_614 = arith.constant 0 : index
    %c0_615 = arith.constant 0 : index
    %c1_616 = arith.constant 1 : index
    %c2_617 = arith.constant 2 : index
    %c0_618 = arith.constant 0 : index
    %276 = vector.load %arg4[%c0_614, %c0_615, %c1_616, %c2_617, %c0_618] : memref<1x1x6x6x32xbf16, #tpu.memory_space<vmem>>, vector<1x1x1x4x32xbf16>
    %277 = vector.shape_cast %276 : vector<1x1x1x4x32xbf16> to vector<4x32xbf16>
    %c0_619 = arith.constant 0 : index
    %c736 = arith.constant 736 : index
    %278 = vector.load %arg8[%c0_619, %c736] : memref<16x864xbf16, #tpu.memory_space<vmem>>, vector<4x32xbf16>
    tpu.vector_store %arg8[%c0_619, %c736], %277 {strides = array<i32>} : memref<16x864xbf16, #tpu.memory_space<vmem>>, vector<4x32xbf16>,
    %c0_620 = arith.constant 0 : index
    %c0_621 = arith.constant 0 : index
    %c2_622 = arith.constant 2 : index
    %c2_623 = arith.constant 2 : index
    %c0_624 = arith.constant 0 : index
    %279 = vector.load %arg4[%c0_620, %c0_621, %c2_622, %c2_623, %c0_624] : memref<1x1x6x6x32xbf16, #tpu.memory_space<vmem>>, vector<1x1x1x4x32xbf16>
    %280 = vector.shape_cast %279 : vector<1x1x1x4x32xbf16> to vector<4x32xbf16>
    %c4_625 = arith.constant 4 : index
    %c736_626 = arith.constant 736 : index
    %281 = vector.load %arg8[%c4_625, %c736_626] : memref<16x864xbf16, #tpu.memory_space<vmem>>, vector<4x32xbf16>
    tpu.vector_store %arg8[%c4_625, %c736_626], %280 {strides = array<i32>} : memref<16x864xbf16, #tpu.memory_space<vmem>>, vector<4x32xbf16>,
    %c0_627 = arith.constant 0 : index
    %c0_628 = arith.constant 0 : index
    %c3_629 = arith.constant 3 : index
    %c2_630 = arith.constant 2 : index
    %c0_631 = arith.constant 0 : index
    %282 = vector.load %arg4[%c0_627, %c0_628, %c3_629, %c2_630, %c0_631] : memref<1x1x6x6x32xbf16, #tpu.memory_space<vmem>>, vector<1x1x1x4x32xbf16>
    %283 = vector.shape_cast %282 : vector<1x1x1x4x32xbf16> to vector<4x32xbf16>
    %c8_632 = arith.constant 8 : index
    %c736_633 = arith.constant 736 : index
    %284 = vector.load %arg8[%c8_632, %c736_633] : memref<16x864xbf16, #tpu.memory_space<vmem>>, vector<4x32xbf16>
    tpu.vector_store %arg8[%c8_632, %c736_633], %283 {strides = array<i32>} : memref<16x864xbf16, #tpu.memory_space<vmem>>, vector<4x32xbf16>,
    %c0_634 = arith.constant 0 : index
    %c0_635 = arith.constant 0 : index
    %c4_636 = arith.constant 4 : index
    %c2_637 = arith.constant 2 : index
    %c0_638 = arith.constant 0 : index
    %285 = vector.load %arg4[%c0_634, %c0_635, %c4_636, %c2_637, %c0_638] : memref<1x1x6x6x32xbf16, #tpu.memory_space<vmem>>, vector<1x1x1x4x32xbf16>
    %286 = vector.shape_cast %285 : vector<1x1x1x4x32xbf16> to vector<4x32xbf16>
    %c12_639 = arith.constant 12 : index
    %c736_640 = arith.constant 736 : index
    %287 = vector.load %arg8[%c12_639, %c736_640] : memref<16x864xbf16, #tpu.memory_space<vmem>>, vector<4x32xbf16>
    tpu.vector_store %arg8[%c12_639, %c736_640], %286 {strides = array<i32>} : memref<16x864xbf16, #tpu.memory_space<vmem>>, vector<4x32xbf16>,
    %c0_641 = arith.constant 0 : index
    %c0_642 = arith.constant 0 : index
    %c2_643 = arith.constant 2 : index
    %c0_644 = arith.constant 0 : index
    %c0_645 = arith.constant 0 : index
    %288 = vector.load %arg4[%c0_641, %c0_642, %c2_643, %c0_644, %c0_645] : memref<1x1x6x6x32xbf16, #tpu.memory_space<vmem>>, vector<1x1x1x4x32xbf16>
    %289 = vector.shape_cast %288 : vector<1x1x1x4x32xbf16> to vector<4x32xbf16>
    %c0_646 = arith.constant 0 : index
    %c768 = arith.constant 768 : index
    %290 = vector.load %arg8[%c0_646, %c768] : memref<16x864xbf16, #tpu.memory_space<vmem>>, vector<4x32xbf16>
    tpu.vector_store %arg8[%c0_646, %c768], %289 {strides = array<i32>} : memref<16x864xbf16, #tpu.memory_space<vmem>>, vector<4x32xbf16>,
    %c0_647 = arith.constant 0 : index
    %c0_648 = arith.constant 0 : index
    %c3_649 = arith.constant 3 : index
    %c0_650 = arith.constant 0 : index
    %c0_651 = arith.constant 0 : index
    %291 = vector.load %arg4[%c0_647, %c0_648, %c3_649, %c0_650, %c0_651] : memref<1x1x6x6x32xbf16, #tpu.memory_space<vmem>>, vector<1x1x1x4x32xbf16>
    %292 = vector.shape_cast %291 : vector<1x1x1x4x32xbf16> to vector<4x32xbf16>
    %c4_652 = arith.constant 4 : index
    %c768_653 = arith.constant 768 : index
    %293 = vector.load %arg8[%c4_652, %c768_653] : memref<16x864xbf16, #tpu.memory_space<vmem>>, vector<4x32xbf16>
    tpu.vector_store %arg8[%c4_652, %c768_653], %292 {strides = array<i32>} : memref<16x864xbf16, #tpu.memory_space<vmem>>, vector<4x32xbf16>,
    %c0_654 = arith.constant 0 : index
    %c0_655 = arith.constant 0 : index
    %c4_656 = arith.constant 4 : index
    %c0_657 = arith.constant 0 : index
    %c0_658 = arith.constant 0 : index
    %294 = vector.load %arg4[%c0_654, %c0_655, %c4_656, %c0_657, %c0_658] : memref<1x1x6x6x32xbf16, #tpu.memory_space<vmem>>, vector<1x1x1x4x32xbf16>
    %295 = vector.shape_cast %294 : vector<1x1x1x4x32xbf16> to vector<4x32xbf16>
    %c8_659 = arith.constant 8 : index
    %c768_660 = arith.constant 768 : index
    %296 = vector.load %arg8[%c8_659, %c768_660] : memref<16x864xbf16, #tpu.memory_space<vmem>>, vector<4x32xbf16>
    tpu.vector_store %arg8[%c8_659, %c768_660], %295 {strides = array<i32>} : memref<16x864xbf16, #tpu.memory_space<vmem>>, vector<4x32xbf16>,
    %c0_661 = arith.constant 0 : index
    %c0_662 = arith.constant 0 : index
    %c5_663 = arith.constant 5 : index
    %c0_664 = arith.constant 0 : index
    %c0_665 = arith.constant 0 : index
    %297 = vector.load %arg4[%c0_661, %c0_662, %c5_663, %c0_664, %c0_665] : memref<1x1x6x6x32xbf16, #tpu.memory_space<vmem>>, vector<1x1x1x4x32xbf16>
    %298 = vector.shape_cast %297 : vector<1x1x1x4x32xbf16> to vector<4x32xbf16>
    %c12_666 = arith.constant 12 : index
    %c768_667 = arith.constant 768 : index
    %299 = vector.load %arg8[%c12_666, %c768_667] : memref<16x864xbf16, #tpu.memory_space<vmem>>, vector<4x32xbf16>
    tpu.vector_store %arg8[%c12_666, %c768_667], %298 {strides = array<i32>} : memref<16x864xbf16, #tpu.memory_space<vmem>>, vector<4x32xbf16>,
    %c0_668 = arith.constant 0 : index
    %c0_669 = arith.constant 0 : index
    %c2_670 = arith.constant 2 : index
    %c1_671 = arith.constant 1 : index
    %c0_672 = arith.constant 0 : index
    %300 = vector.load %arg4[%c0_668, %c0_669, %c2_670, %c1_671, %c0_672] : memref<1x1x6x6x32xbf16, #tpu.memory_space<vmem>>, vector<1x1x1x4x32xbf16>
    %301 = vector.shape_cast %300 : vector<1x1x1x4x32xbf16> to vector<4x32xbf16>
    %c0_673 = arith.constant 0 : index
    %c800 = arith.constant 800 : index
    %302 = vector.load %arg8[%c0_673, %c800] : memref<16x864xbf16, #tpu.memory_space<vmem>>, vector<4x32xbf16>
    tpu.vector_store %arg8[%c0_673, %c800], %301 {strides = array<i32>} : memref<16x864xbf16, #tpu.memory_space<vmem>>, vector<4x32xbf16>,
    %c0_674 = arith.constant 0 : index
    %c0_675 = arith.constant 0 : index
    %c3_676 = arith.constant 3 : index
    %c1_677 = arith.constant 1 : index
    %c0_678 = arith.constant 0 : index
    %303 = vector.load %arg4[%c0_674, %c0_675, %c3_676, %c1_677, %c0_678] : memref<1x1x6x6x32xbf16, #tpu.memory_space<vmem>>, vector<1x1x1x4x32xbf16>
    %304 = vector.shape_cast %303 : vector<1x1x1x4x32xbf16> to vector<4x32xbf16>
    %c4_679 = arith.constant 4 : index
    %c800_680 = arith.constant 800 : index
    %305 = vector.load %arg8[%c4_679, %c800_680] : memref<16x864xbf16, #tpu.memory_space<vmem>>, vector<4x32xbf16>
    tpu.vector_store %arg8[%c4_679, %c800_680], %304 {strides = array<i32>} : memref<16x864xbf16, #tpu.memory_space<vmem>>, vector<4x32xbf16>,
    %c0_681 = arith.constant 0 : index
    %c0_682 = arith.constant 0 : index
    %c4_683 = arith.constant 4 : index
    %c1_684 = arith.constant 1 : index
    %c0_685 = arith.constant 0 : index
    %306 = vector.load %arg4[%c0_681, %c0_682, %c4_683, %c1_684, %c0_685] : memref<1x1x6x6x32xbf16, #tpu.memory_space<vmem>>, vector<1x1x1x4x32xbf16>
    %307 = vector.shape_cast %306 : vector<1x1x1x4x32xbf16> to vector<4x32xbf16>
    %c8_686 = arith.constant 8 : index
    %c800_687 = arith.constant 800 : index
    %308 = vector.load %arg8[%c8_686, %c800_687] : memref<16x864xbf16, #tpu.memory_space<vmem>>, vector<4x32xbf16>
    tpu.vector_store %arg8[%c8_686, %c800_687], %307 {strides = array<i32>} : memref<16x864xbf16, #tpu.memory_space<vmem>>, vector<4x32xbf16>,
    %c0_688 = arith.constant 0 : index
    %c0_689 = arith.constant 0 : index
    %c5_690 = arith.constant 5 : index
    %c1_691 = arith.constant 1 : index
    %c0_692 = arith.constant 0 : index
    %309 = vector.load %arg4[%c0_688, %c0_689, %c5_690, %c1_691, %c0_692] : memref<1x1x6x6x32xbf16, #tpu.memory_space<vmem>>, vector<1x1x1x4x32xbf16>
    %310 = vector.shape_cast %309 : vector<1x1x1x4x32xbf16> to vector<4x32xbf16>
    %c12_693 = arith.constant 12 : index
    %c800_694 = arith.constant 800 : index
    %311 = vector.load %arg8[%c12_693, %c800_694] : memref<16x864xbf16, #tpu.memory_space<vmem>>, vector<4x32xbf16>
    tpu.vector_store %arg8[%c12_693, %c800_694], %310 {strides = array<i32>} : memref<16x864xbf16, #tpu.memory_space<vmem>>, vector<4x32xbf16>,
    %c0_695 = arith.constant 0 : index
    %c0_696 = arith.constant 0 : index
    %c2_697 = arith.constant 2 : index
    %c2_698 = arith.constant 2 : index
    %c0_699 = arith.constant 0 : index
    %312 = vector.load %arg4[%c0_695, %c0_696, %c2_697, %c2_698, %c0_699] : memref<1x1x6x6x32xbf16, #tpu.memory_space<vmem>>, vector<1x1x1x4x32xbf16>
    %313 = vector.shape_cast %312 : vector<1x1x1x4x32xbf16> to vector<4x32xbf16>
    %c0_700 = arith.constant 0 : index
    %c832 = arith.constant 832 : index
    %314 = vector.load %arg8[%c0_700, %c832] : memref<16x864xbf16, #tpu.memory_space<vmem>>, vector<4x32xbf16>
    tpu.vector_store %arg8[%c0_700, %c832], %313 {strides = array<i32>} : memref<16x864xbf16, #tpu.memory_space<vmem>>, vector<4x32xbf16>,
    %c0_701 = arith.constant 0 : index
    %c0_702 = arith.constant 0 : index
    %c3_703 = arith.constant 3 : index
    %c2_704 = arith.constant 2 : index
    %c0_705 = arith.constant 0 : index
    %315 = vector.load %arg4[%c0_701, %c0_702, %c3_703, %c2_704, %c0_705] : memref<1x1x6x6x32xbf16, #tpu.memory_space<vmem>>, vector<1x1x1x4x32xbf16>
    %316 = vector.shape_cast %315 : vector<1x1x1x4x32xbf16> to vector<4x32xbf16>
    %c4_706 = arith.constant 4 : index
    %c832_707 = arith.constant 832 : index
    %317 = vector.load %arg8[%c4_706, %c832_707] : memref<16x864xbf16, #tpu.memory_space<vmem>>, vector<4x32xbf16>
    tpu.vector_store %arg8[%c4_706, %c832_707], %316 {strides = array<i32>} : memref<16x864xbf16, #tpu.memory_space<vmem>>, vector<4x32xbf16>,
    %c0_708 = arith.constant 0 : index
    %c0_709 = arith.constant 0 : index
    %c4_710 = arith.constant 4 : index
    %c2_711 = arith.constant 2 : index
    %c0_712 = arith.constant 0 : index
    %318 = vector.load %arg4[%c0_708, %c0_709, %c4_710, %c2_711, %c0_712] : memref<1x1x6x6x32xbf16, #tpu.memory_space<vmem>>, vector<1x1x1x4x32xbf16>
    %319 = vector.shape_cast %318 : vector<1x1x1x4x32xbf16> to vector<4x32xbf16>
    %c8_713 = arith.constant 8 : index
    %c832_714 = arith.constant 832 : index
    %320 = vector.load %arg8[%c8_713, %c832_714] : memref<16x864xbf16, #tpu.memory_space<vmem>>, vector<4x32xbf16>
    tpu.vector_store %arg8[%c8_713, %c832_714], %319 {strides = array<i32>} : memref<16x864xbf16, #tpu.memory_space<vmem>>, vector<4x32xbf16>,
    %c0_715 = arith.constant 0 : index
    %c0_716 = arith.constant 0 : index
    %c5_717 = arith.constant 5 : index
    %c2_718 = arith.constant 2 : index
    %c0_719 = arith.constant 0 : index
    %321 = vector.load %arg4[%c0_715, %c0_716, %c5_717, %c2_718, %c0_719] : memref<1x1x6x6x32xbf16, #tpu.memory_space<vmem>>, vector<1x1x1x4x32xbf16>
    %322 = vector.shape_cast %321 : vector<1x1x1x4x32xbf16> to vector<4x32xbf16>
    %c12_720 = arith.constant 12 : index
    %c832_721 = arith.constant 832 : index
    %323 = vector.load %arg8[%c12_720, %c832_721] : memref<16x864xbf16, #tpu.memory_space<vmem>>, vector<4x32xbf16>
    tpu.vector_store %arg8[%c12_720, %c832_721], %322 {strides = array<i32>} : memref<16x864xbf16, #tpu.memory_space<vmem>>, vector<4x32xbf16>,
    %c0_722 = arith.constant 0 : index
    %c0_723 = arith.constant 0 : index
    %324 = vector.load %arg8[%c0_722, %c0_723] : memref<16x864xbf16, #tpu.memory_space<vmem>>, vector<16x864xbf16>
    %c0_724 = arith.constant 0 : index
    %c0_725 = arith.constant 0 : index
    %325 = vector.load %arg5[%c0_724, %c0_725] : memref<864x64xbf16, #tpu.memory_space<vmem>>, vector<864x64xbf16>
    %cst = arith.constant dense<0.000000e+00> : vector<16x64xf32>
    %326 = tpu.matmul %324, %325, %cst {dimension_numbers = #tpu.dot_dimension_numbers<[1], [0], [0], [1], [0, 0, 1, 1], [], []>} : vector<16x864xbf16>, vector<864x64xbf16>, vector<16x64xf32> -> vector<16x64xf32>
    %c0_726 = arith.constant 0 : index
    %c0_727 = arith.constant 0 : index
    %327 = vector.load %arg6[%c0_726, %c0_727] : memref<1x64xf32, #tpu.memory_space<vmem>>, vector<1x64xf32>
    %328 = vector.broadcast %327 : vector<1x64xf32> to vector<16x64xf32>
    %329 = arith.addf %326, %328 : vector<16x64xf32>
    %cst_728 = arith.constant 0.000000e+00 : f32
    %330 = vector.broadcast %cst_728 : f32 to vector<16x64xf32>
    %331 = arith.maximumf %329, %330 : vector<16x64xf32>
    %c0_729 = arith.constant 0 : index
    %c0_730 = arith.constant 0 : index
    %c0_731 = arith.constant 0 : index
    %c0_732 = arith.constant 0 : index
    %332 = vector.load %arg7[%c0_729, %c0_730, %c0_731, %c0_732] : memref<1x1x16x64xf32, #tpu.memory_space<vmem>>, vector<1x1x16x64xf32>
    %333 = vector.shape_cast %332 : vector<1x1x16x64xf32> to vector<16x64xf32>
    %334 = vector.shape_cast %331 : vector<16x64xf32> to vector<1x1x16x64xf32>
    tpu.vector_store %arg7[%c0_729, %c0_730, %c0_731, %c0_732], %334 {strides = array<i32>} : memref<1x1x16x64xf32, #tpu.memory_space<vmem>>, vector<1x1x16x64xf32>,
    return
  }
  func.func @transform_0(%arg0: i32, %arg1: i32) -> (i32, i32, i32, i32, i32) {
    %c0_i32 = arith.constant 0 : i32
    %c0_i32_0 = arith.constant 0 : i32
    %c0_i32_1 = arith.constant 0 : i32
    %c0_i32_2 = arith.constant 0 : i32
    return %arg0, %arg1, %c0_i32, %c0_i32_0, %c0_i32_1 : i32, i32, i32, i32, i32
  }
  func.func @transform_1(%arg0: i32, %arg1: i32) -> (i32, i32, i32, i32, i32) {
    %c1_i32 = arith.constant 1 : i32
    %0 = arith.addi %arg1, %c1_i32 : i32
    %c0_i32 = arith.constant 0 : i32
    %c0_i32_0 = arith.constant 0 : i32
    %c0_i32_1 = arith.constant 0 : i32
    %c0_i32_2 = arith.constant 0 : i32
    return %arg0, %0, %c0_i32, %c0_i32_0, %c0_i32_1 : i32, i32, i32, i32, i32
  }
  func.func @transform_2(%arg0: i32, %arg1: i32) -> (i32, i32, i32, i32, i32) {
    %c2_i32 = arith.constant 2 : i32
    %0 = arith.addi %arg1, %c2_i32 : i32
    %c0_i32 = arith.constant 0 : i32
    %c0_i32_0 = arith.constant 0 : i32
    %c0_i32_1 = arith.constant 0 : i32
    %c0_i32_2 = arith.constant 0 : i32
    return %arg0, %0, %c0_i32, %c0_i32_0, %c0_i32_1 : i32, i32, i32, i32, i32
  }
  func.func @transform_3(%arg0: i32, %arg1: i32) -> (i32, i32) {
    %c0_i32 = arith.constant 0 : i32
    %c0_i32_0 = arith.constant 0 : i32
    %c0_i32_1 = arith.constant 0 : i32
    return %c0_i32, %c0_i32_0 : i32, i32
  }
  func.func @transform_4(%arg0: i32, %arg1: i32) -> (i32, i32) {
    %c0_i32 = arith.constant 0 : i32
    %c0_i32_0 = arith.constant 0 : i32
    %c0_i32_1 = arith.constant 0 : i32
    return %c0_i32, %c0_i32_0 : i32, i32
  }
  func.func @transform_5(%arg0: i32, %arg1: i32) -> (i32, i32, i32, i32) {
    %c0_i32 = arith.constant 0 : i32
    %c0_i32_0 = arith.constant 0 : i32
    %c0_i32_1 = arith.constant 0 : i32
    return %arg0, %arg1, %c0_i32, %c0_i32_0 : i32, i32, i32, i32
  }
}

module attributes {stable_mosaic.version = 11 : i64} {
  func.func @_maxpool_kernel(%arg0: i32, %arg1: memref<1x2x2x256xf32, #tpu.memory_space<vmem>>, %arg2: memref<1x1x1x128xf32, #tpu.memory_space<vmem>>) attributes {dimension_semantics = [#tpu.dimension_semantics<parallel>], iteration_bounds = array<i64: 2>, scalar_prefetch = 0 : i64, scratch_operands = 0 : i64, tpu.core_type = #tpu.core_type<tc>, window_params = [{transform_indices = @transform_0, window_bounds = array<i64: 1, 2, 2, 256>}, {transform_indices = @transform_1, window_bounds = array<i64: 1, 1, 1, 128>}]} {
    %c0 = arith.constant 0 : index
    %c0_0 = arith.constant 0 : index
    %c0_1 = arith.constant 0 : index
    %c0_2 = arith.constant 0 : index
    %0 = vector.load %arg1[%c0, %c0_0, %c0_1, %c0_2] : memref<1x2x2x256xf32, #tpu.memory_space<vmem>>, vector<1x2x2x256xf32>
    %1 = vector.shape_cast %0 : vector<1x2x2x256xf32> to vector<2x2x256xf32>
    %2 = vector.extract_strided_slice %1 {offsets = [0, 0, 0], sizes = [1, 2, 256], strides = [1, 1, 1]} : vector<2x2x256xf32> to vector<1x2x256xf32>
    %3 = vector.extract_strided_slice %1 {offsets = [1, 0, 0], sizes = [1, 2, 256], strides = [1, 1, 1]} : vector<2x2x256xf32> to vector<1x2x256xf32>
    %4 = arith.maximumf %2, %3 : vector<1x2x256xf32>
    %5 = vector.extract_strided_slice %4 {offsets = [0, 0, 0], sizes = [1, 1, 256], strides = [1, 1, 1]} : vector<1x2x256xf32> to vector<1x1x256xf32>
    %6 = vector.extract_strided_slice %4 {offsets = [0, 1, 0], sizes = [1, 1, 256], strides = [1, 1, 1]} : vector<1x2x256xf32> to vector<1x1x256xf32>
    %7 = arith.maximumf %5, %6 : vector<1x1x256xf32>
    %8 = vector.extract_strided_slice %7 {offsets = [0, 0, 0], sizes = [1, 1, 128], strides = [1, 1, 1]} : vector<1x1x256xf32> to vector<1x1x128xf32>
    %9 = vector.extract_strided_slice %7 {offsets = [0, 0, 128], sizes = [1, 1, 128], strides = [1, 1, 1]} : vector<1x1x256xf32> to vector<1x1x128xf32>
    %10 = arith.maximumf %8, %9 : vector<1x1x128xf32>
    %c0_3 = arith.constant 0 : index
    %c0_4 = arith.constant 0 : index
    %c0_5 = arith.constant 0 : index
    %c0_6 = arith.constant 0 : index
    %11 = vector.load %arg2[%c0_3, %c0_4, %c0_5, %c0_6] : memref<1x1x1x128xf32, #tpu.memory_space<vmem>>, vector<1x1x1x128xf32>
    %12 = vector.shape_cast %11 : vector<1x1x1x128xf32> to vector<1x1x128xf32>
    %13 = vector.shape_cast %10 : vector<1x1x128xf32> to vector<1x1x1x128xf32>
    tpu.vector_store %arg2[%c0_3, %c0_4, %c0_5, %c0_6], %13 {strides = array<i32>} : memref<1x1x1x128xf32, #tpu.memory_space<vmem>>, vector<1x1x1x128xf32>,
    return
  }
  func.func @transform_0(%arg0: i32) -> (i32, i32, i32, i32) {
    %c0_i32 = arith.constant 0 : i32
    %c0_i32_0 = arith.constant 0 : i32
    %c0_i32_1 = arith.constant 0 : i32
    %c0_i32_2 = arith.constant 0 : i32
    return %arg0, %c0_i32, %c0_i32_0, %c0_i32_1 : i32, i32, i32, i32
  }
  func.func @transform_1(%arg0: i32) -> (i32, i32, i32, i32) {
    %c0_i32 = arith.constant 0 : i32
    %c0_i32_0 = arith.constant 0 : i32
    %c0_i32_1 = arith.constant 0 : i32
    %c0_i32_2 = arith.constant 0 : i32
    return %arg0, %c0_i32, %c0_i32_0, %c0_i32_1 : i32, i32, i32, i32
  }
}

module attributes {stable_mosaic.version = 11 : i64} {
  func.func @_conv3x3x3_kernel(%arg0: i32, %arg1: i32, %arg2: memref<1x1x4x4x64xbf16, #tpu.memory_space<vmem>>, %arg3: memref<1x1x4x4x64xbf16, #tpu.memory_space<vmem>>, %arg4: memref<1x1x4x4x64xbf16, #tpu.memory_space<vmem>>, %arg5: memref<1728x128xbf16, #tpu.memory_space<vmem>>, %arg6: memref<1x128xf32, #tpu.memory_space<vmem>>, %arg7: memref<1x1x4x128xf32, #tpu.memory_space<vmem>>, %arg8: memref<4x1728xbf16, #tpu.memory_space<vmem>>) attributes {dimension_semantics = [#tpu.dimension_semantics<parallel>, #tpu.dimension_semantics<parallel>], iteration_bounds = array<i64: 2, 2>, scalar_prefetch = 0 : i64, scratch_operands = 1 : i64, tpu.core_type = #tpu.core_type<tc>, window_params = [{transform_indices = @transform_0, window_bounds = array<i64: 1, 1, 4, 4, 64>}, {transform_indices = @transform_1, window_bounds = array<i64: 1, 1, 4, 4, 64>}, {transform_indices = @transform_2, window_bounds = array<i64: 1, 1, 4, 4, 64>}, {pipeline_mode = #tpu.pipeline_mode<synchronous>, transform_indices = @transform_3, window_bounds = array<i64: 1728, 128>}, {pipeline_mode = #tpu.pipeline_mode<synchronous>, transform_indices = @transform_4, window_bounds = array<i64: 1, 128>}, {transform_indices = @transform_5, window_bounds = array<i64: 1, 1, 4, 128>}]} {
    %c0 = arith.constant 0 : index
    %c0_0 = arith.constant 0 : index
    %c0_1 = arith.constant 0 : index
    %c0_2 = arith.constant 0 : index
    %c0_3 = arith.constant 0 : index
    %0 = vector.load %arg2[%c0, %c0_0, %c0_1, %c0_2, %c0_3] : memref<1x1x4x4x64xbf16, #tpu.memory_space<vmem>>, vector<1x1x1x2x64xbf16>
    %1 = vector.shape_cast %0 : vector<1x1x1x2x64xbf16> to vector<2x64xbf16>
    %c0_4 = arith.constant 0 : index
    %c0_5 = arith.constant 0 : index
    %2 = vector.load %arg8[%c0_4, %c0_5] : memref<4x1728xbf16, #tpu.memory_space<vmem>>, vector<2x64xbf16>
    tpu.vector_store %arg8[%c0_4, %c0_5], %1 {strides = array<i32>} : memref<4x1728xbf16, #tpu.memory_space<vmem>>, vector<2x64xbf16>,
    %c0_6 = arith.constant 0 : index
    %c0_7 = arith.constant 0 : index
    %c1 = arith.constant 1 : index
    %c0_8 = arith.constant 0 : index
    %c0_9 = arith.constant 0 : index
    %3 = vector.load %arg2[%c0_6, %c0_7, %c1, %c0_8, %c0_9] : memref<1x1x4x4x64xbf16, #tpu.memory_space<vmem>>, vector<1x1x1x2x64xbf16>
    %4 = vector.shape_cast %3 : vector<1x1x1x2x64xbf16> to vector<2x64xbf16>
    %c2 = arith.constant 2 : index
    %c0_10 = arith.constant 0 : index
    %5 = vector.load %arg8[%c2, %c0_10] : memref<4x1728xbf16, #tpu.memory_space<vmem>>, vector<2x64xbf16>
    tpu.vector_store %arg8[%c2, %c0_10], %4 {strides = array<i32>} : memref<4x1728xbf16, #tpu.memory_space<vmem>>, vector<2x64xbf16>,
    %c0_11 = arith.constant 0 : index
    %c0_12 = arith.constant 0 : index
    %c0_13 = arith.constant 0 : index
    %c1_14 = arith.constant 1 : index
    %c0_15 = arith.constant 0 : index
    %6 = vector.load %arg2[%c0_11, %c0_12, %c0_13, %c1_14, %c0_15] : memref<1x1x4x4x64xbf16, #tpu.memory_space<vmem>>, vector<1x1x1x2x64xbf16>
    %7 = vector.shape_cast %6 : vector<1x1x1x2x64xbf16> to vector<2x64xbf16>
    %c0_16 = arith.constant 0 : index
    %c64 = arith.constant 64 : index
    %8 = vector.load %arg8[%c0_16, %c64] : memref<4x1728xbf16, #tpu.memory_space<vmem>>, vector<2x64xbf16>
    tpu.vector_store %arg8[%c0_16, %c64], %7 {strides = array<i32>} : memref<4x1728xbf16, #tpu.memory_space<vmem>>, vector<2x64xbf16>,
    %c0_17 = arith.constant 0 : index
    %c0_18 = arith.constant 0 : index
    %c1_19 = arith.constant 1 : index
    %c1_20 = arith.constant 1 : index
    %c0_21 = arith.constant 0 : index
    %9 = vector.load %arg2[%c0_17, %c0_18, %c1_19, %c1_20, %c0_21] : memref<1x1x4x4x64xbf16, #tpu.memory_space<vmem>>, vector<1x1x1x2x64xbf16>
    %10 = vector.shape_cast %9 : vector<1x1x1x2x64xbf16> to vector<2x64xbf16>
    %c2_22 = arith.constant 2 : index
    %c64_23 = arith.constant 64 : index
    %11 = vector.load %arg8[%c2_22, %c64_23] : memref<4x1728xbf16, #tpu.memory_space<vmem>>, vector<2x64xbf16>
    tpu.vector_store %arg8[%c2_22, %c64_23], %10 {strides = array<i32>} : memref<4x1728xbf16, #tpu.memory_space<vmem>>, vector<2x64xbf16>,
    %c0_24 = arith.constant 0 : index
    %c0_25 = arith.constant 0 : index
    %c0_26 = arith.constant 0 : index
    %c2_27 = arith.constant 2 : index
    %c0_28 = arith.constant 0 : index
    %12 = vector.load %arg2[%c0_24, %c0_25, %c0_26, %c2_27, %c0_28] : memref<1x1x4x4x64xbf16, #tpu.memory_space<vmem>>, vector<1x1x1x2x64xbf16>
    %13 = vector.shape_cast %12 : vector<1x1x1x2x64xbf16> to vector<2x64xbf16>
    %c0_29 = arith.constant 0 : index
    %c128 = arith.constant 128 : index
    %14 = vector.load %arg8[%c0_29, %c128] : memref<4x1728xbf16, #tpu.memory_space<vmem>>, vector<2x64xbf16>
    tpu.vector_store %arg8[%c0_29, %c128], %13 {strides = array<i32>} : memref<4x1728xbf16, #tpu.memory_space<vmem>>, vector<2x64xbf16>,
    %c0_30 = arith.constant 0 : index
    %c0_31 = arith.constant 0 : index
    %c1_32 = arith.constant 1 : index
    %c2_33 = arith.constant 2 : index
    %c0_34 = arith.constant 0 : index
    %15 = vector.load %arg2[%c0_30, %c0_31, %c1_32, %c2_33, %c0_34] : memref<1x1x4x4x64xbf16, #tpu.memory_space<vmem>>, vector<1x1x1x2x64xbf16>
    %16 = vector.shape_cast %15 : vector<1x1x1x2x64xbf16> to vector<2x64xbf16>
    %c2_35 = arith.constant 2 : index
    %c128_36 = arith.constant 128 : index
    %17 = vector.load %arg8[%c2_35, %c128_36] : memref<4x1728xbf16, #tpu.memory_space<vmem>>, vector<2x64xbf16>
    tpu.vector_store %arg8[%c2_35, %c128_36], %16 {strides = array<i32>} : memref<4x1728xbf16, #tpu.memory_space<vmem>>, vector<2x64xbf16>,
    %c0_37 = arith.constant 0 : index
    %c0_38 = arith.constant 0 : index
    %c1_39 = arith.constant 1 : index
    %c0_40 = arith.constant 0 : index
    %c0_41 = arith.constant 0 : index
    %18 = vector.load %arg2[%c0_37, %c0_38, %c1_39, %c0_40, %c0_41] : memref<1x1x4x4x64xbf16, #tpu.memory_space<vmem>>, vector<1x1x1x2x64xbf16>
    %19 = vector.shape_cast %18 : vector<1x1x1x2x64xbf16> to vector<2x64xbf16>
    %c0_42 = arith.constant 0 : index
    %c192 = arith.constant 192 : index
    %20 = vector.load %arg8[%c0_42, %c192] : memref<4x1728xbf16, #tpu.memory_space<vmem>>, vector<2x64xbf16>
    tpu.vector_store %arg8[%c0_42, %c192], %19 {strides = array<i32>} : memref<4x1728xbf16, #tpu.memory_space<vmem>>, vector<2x64xbf16>,
    %c0_43 = arith.constant 0 : index
    %c0_44 = arith.constant 0 : index
    %c2_45 = arith.constant 2 : index
    %c0_46 = arith.constant 0 : index
    %c0_47 = arith.constant 0 : index
    %21 = vector.load %arg2[%c0_43, %c0_44, %c2_45, %c0_46, %c0_47] : memref<1x1x4x4x64xbf16, #tpu.memory_space<vmem>>, vector<1x1x1x2x64xbf16>
    %22 = vector.shape_cast %21 : vector<1x1x1x2x64xbf16> to vector<2x64xbf16>
    %c2_48 = arith.constant 2 : index
    %c192_49 = arith.constant 192 : index
    %23 = vector.load %arg8[%c2_48, %c192_49] : memref<4x1728xbf16, #tpu.memory_space<vmem>>, vector<2x64xbf16>
    tpu.vector_store %arg8[%c2_48, %c192_49], %22 {strides = array<i32>} : memref<4x1728xbf16, #tpu.memory_space<vmem>>, vector<2x64xbf16>,
    %c0_50 = arith.constant 0 : index
    %c0_51 = arith.constant 0 : index
    %c1_52 = arith.constant 1 : index
    %c1_53 = arith.constant 1 : index
    %c0_54 = arith.constant 0 : index
    %24 = vector.load %arg2[%c0_50, %c0_51, %c1_52, %c1_53, %c0_54] : memref<1x1x4x4x64xbf16, #tpu.memory_space<vmem>>, vector<1x1x1x2x64xbf16>
    %25 = vector.shape_cast %24 : vector<1x1x1x2x64xbf16> to vector<2x64xbf16>
    %c0_55 = arith.constant 0 : index
    %c256 = arith.constant 256 : index
    %26 = vector.load %arg8[%c0_55, %c256] : memref<4x1728xbf16, #tpu.memory_space<vmem>>, vector<2x64xbf16>
    tpu.vector_store %arg8[%c0_55, %c256], %25 {strides = array<i32>} : memref<4x1728xbf16, #tpu.memory_space<vmem>>, vector<2x64xbf16>,
    %c0_56 = arith.constant 0 : index
    %c0_57 = arith.constant 0 : index
    %c2_58 = arith.constant 2 : index
    %c1_59 = arith.constant 1 : index
    %c0_60 = arith.constant 0 : index
    %27 = vector.load %arg2[%c0_56, %c0_57, %c2_58, %c1_59, %c0_60] : memref<1x1x4x4x64xbf16, #tpu.memory_space<vmem>>, vector<1x1x1x2x64xbf16>
    %28 = vector.shape_cast %27 : vector<1x1x1x2x64xbf16> to vector<2x64xbf16>
    %c2_61 = arith.constant 2 : index
    %c256_62 = arith.constant 256 : index
    %29 = vector.load %arg8[%c2_61, %c256_62] : memref<4x1728xbf16, #tpu.memory_space<vmem>>, vector<2x64xbf16>
    tpu.vector_store %arg8[%c2_61, %c256_62], %28 {strides = array<i32>} : memref<4x1728xbf16, #tpu.memory_space<vmem>>, vector<2x64xbf16>,
    %c0_63 = arith.constant 0 : index
    %c0_64 = arith.constant 0 : index
    %c1_65 = arith.constant 1 : index
    %c2_66 = arith.constant 2 : index
    %c0_67 = arith.constant 0 : index
    %30 = vector.load %arg2[%c0_63, %c0_64, %c1_65, %c2_66, %c0_67] : memref<1x1x4x4x64xbf16, #tpu.memory_space<vmem>>, vector<1x1x1x2x64xbf16>
    %31 = vector.shape_cast %30 : vector<1x1x1x2x64xbf16> to vector<2x64xbf16>
    %c0_68 = arith.constant 0 : index
    %c320 = arith.constant 320 : index
    %32 = vector.load %arg8[%c0_68, %c320] : memref<4x1728xbf16, #tpu.memory_space<vmem>>, vector<2x64xbf16>
    tpu.vector_store %arg8[%c0_68, %c320], %31 {strides = array<i32>} : memref<4x1728xbf16, #tpu.memory_space<vmem>>, vector<2x64xbf16>,
    %c0_69 = arith.constant 0 : index
    %c0_70 = arith.constant 0 : index
    %c2_71 = arith.constant 2 : index
    %c2_72 = arith.constant 2 : index
    %c0_73 = arith.constant 0 : index
    %33 = vector.load %arg2[%c0_69, %c0_70, %c2_71, %c2_72, %c0_73] : memref<1x1x4x4x64xbf16, #tpu.memory_space<vmem>>, vector<1x1x1x2x64xbf16>
    %34 = vector.shape_cast %33 : vector<1x1x1x2x64xbf16> to vector<2x64xbf16>
    %c2_74 = arith.constant 2 : index
    %c320_75 = arith.constant 320 : index
    %35 = vector.load %arg8[%c2_74, %c320_75] : memref<4x1728xbf16, #tpu.memory_space<vmem>>, vector<2x64xbf16>
    tpu.vector_store %arg8[%c2_74, %c320_75], %34 {strides = array<i32>} : memref<4x1728xbf16, #tpu.memory_space<vmem>>, vector<2x64xbf16>,
    %c0_76 = arith.constant 0 : index
    %c0_77 = arith.constant 0 : index
    %c2_78 = arith.constant 2 : index
    %c0_79 = arith.constant 0 : index
    %c0_80 = arith.constant 0 : index
    %36 = vector.load %arg2[%c0_76, %c0_77, %c2_78, %c0_79, %c0_80] : memref<1x1x4x4x64xbf16, #tpu.memory_space<vmem>>, vector<1x1x1x2x64xbf16>
    %37 = vector.shape_cast %36 : vector<1x1x1x2x64xbf16> to vector<2x64xbf16>
    %c0_81 = arith.constant 0 : index
    %c384 = arith.constant 384 : index
    %38 = vector.load %arg8[%c0_81, %c384] : memref<4x1728xbf16, #tpu.memory_space<vmem>>, vector<2x64xbf16>
    tpu.vector_store %arg8[%c0_81, %c384], %37 {strides = array<i32>} : memref<4x1728xbf16, #tpu.memory_space<vmem>>, vector<2x64xbf16>,
    %c0_82 = arith.constant 0 : index
    %c0_83 = arith.constant 0 : index
    %c3 = arith.constant 3 : index
    %c0_84 = arith.constant 0 : index
    %c0_85 = arith.constant 0 : index
    %39 = vector.load %arg2[%c0_82, %c0_83, %c3, %c0_84, %c0_85] : memref<1x1x4x4x64xbf16, #tpu.memory_space<vmem>>, vector<1x1x1x2x64xbf16>
    %40 = vector.shape_cast %39 : vector<1x1x1x2x64xbf16> to vector<2x64xbf16>
    %c2_86 = arith.constant 2 : index
    %c384_87 = arith.constant 384 : index
    %41 = vector.load %arg8[%c2_86, %c384_87] : memref<4x1728xbf16, #tpu.memory_space<vmem>>, vector<2x64xbf16>
    tpu.vector_store %arg8[%c2_86, %c384_87], %40 {strides = array<i32>} : memref<4x1728xbf16, #tpu.memory_space<vmem>>, vector<2x64xbf16>,
    %c0_88 = arith.constant 0 : index
    %c0_89 = arith.constant 0 : index
    %c2_90 = arith.constant 2 : index
    %c1_91 = arith.constant 1 : index
    %c0_92 = arith.constant 0 : index
    %42 = vector.load %arg2[%c0_88, %c0_89, %c2_90, %c1_91, %c0_92] : memref<1x1x4x4x64xbf16, #tpu.memory_space<vmem>>, vector<1x1x1x2x64xbf16>
    %43 = vector.shape_cast %42 : vector<1x1x1x2x64xbf16> to vector<2x64xbf16>
    %c0_93 = arith.constant 0 : index
    %c448 = arith.constant 448 : index
    %44 = vector.load %arg8[%c0_93, %c448] : memref<4x1728xbf16, #tpu.memory_space<vmem>>, vector<2x64xbf16>
    tpu.vector_store %arg8[%c0_93, %c448], %43 {strides = array<i32>} : memref<4x1728xbf16, #tpu.memory_space<vmem>>, vector<2x64xbf16>,
    %c0_94 = arith.constant 0 : index
    %c0_95 = arith.constant 0 : index
    %c3_96 = arith.constant 3 : index
    %c1_97 = arith.constant 1 : index
    %c0_98 = arith.constant 0 : index
    %45 = vector.load %arg2[%c0_94, %c0_95, %c3_96, %c1_97, %c0_98] : memref<1x1x4x4x64xbf16, #tpu.memory_space<vmem>>, vector<1x1x1x2x64xbf16>
    %46 = vector.shape_cast %45 : vector<1x1x1x2x64xbf16> to vector<2x64xbf16>
    %c2_99 = arith.constant 2 : index
    %c448_100 = arith.constant 448 : index
    %47 = vector.load %arg8[%c2_99, %c448_100] : memref<4x1728xbf16, #tpu.memory_space<vmem>>, vector<2x64xbf16>
    tpu.vector_store %arg8[%c2_99, %c448_100], %46 {strides = array<i32>} : memref<4x1728xbf16, #tpu.memory_space<vmem>>, vector<2x64xbf16>,
    %c0_101 = arith.constant 0 : index
    %c0_102 = arith.constant 0 : index
    %c2_103 = arith.constant 2 : index
    %c2_104 = arith.constant 2 : index
    %c0_105 = arith.constant 0 : index
    %48 = vector.load %arg2[%c0_101, %c0_102, %c2_103, %c2_104, %c0_105] : memref<1x1x4x4x64xbf16, #tpu.memory_space<vmem>>, vector<1x1x1x2x64xbf16>
    %49 = vector.shape_cast %48 : vector<1x1x1x2x64xbf16> to vector<2x64xbf16>
    %c0_106 = arith.constant 0 : index
    %c512 = arith.constant 512 : index
    %50 = vector.load %arg8[%c0_106, %c512] : memref<4x1728xbf16, #tpu.memory_space<vmem>>, vector<2x64xbf16>
    tpu.vector_store %arg8[%c0_106, %c512], %49 {strides = array<i32>} : memref<4x1728xbf16, #tpu.memory_space<vmem>>, vector<2x64xbf16>,
    %c0_107 = arith.constant 0 : index
    %c0_108 = arith.constant 0 : index
    %c3_109 = arith.constant 3 : index
    %c2_110 = arith.constant 2 : index
    %c0_111 = arith.constant 0 : index
    %51 = vector.load %arg2[%c0_107, %c0_108, %c3_109, %c2_110, %c0_111] : memref<1x1x4x4x64xbf16, #tpu.memory_space<vmem>>, vector<1x1x1x2x64xbf16>
    %52 = vector.shape_cast %51 : vector<1x1x1x2x64xbf16> to vector<2x64xbf16>
    %c2_112 = arith.constant 2 : index
    %c512_113 = arith.constant 512 : index
    %53 = vector.load %arg8[%c2_112, %c512_113] : memref<4x1728xbf16, #tpu.memory_space<vmem>>, vector<2x64xbf16>
    tpu.vector_store %arg8[%c2_112, %c512_113], %52 {strides = array<i32>} : memref<4x1728xbf16, #tpu.memory_space<vmem>>, vector<2x64xbf16>,
    %c0_114 = arith.constant 0 : index
    %c0_115 = arith.constant 0 : index
    %c0_116 = arith.constant 0 : index
    %c0_117 = arith.constant 0 : index
    %c0_118 = arith.constant 0 : index
    %54 = vector.load %arg3[%c0_114, %c0_115, %c0_116, %c0_117, %c0_118] : memref<1x1x4x4x64xbf16, #tpu.memory_space<vmem>>, vector<1x1x1x2x64xbf16>
    %55 = vector.shape_cast %54 : vector<1x1x1x2x64xbf16> to vector<2x64xbf16>
    %c0_119 = arith.constant 0 : index
    %c576 = arith.constant 576 : index
    %56 = vector.load %arg8[%c0_119, %c576] : memref<4x1728xbf16, #tpu.memory_space<vmem>>, vector<2x64xbf16>
    tpu.vector_store %arg8[%c0_119, %c576], %55 {strides = array<i32>} : memref<4x1728xbf16, #tpu.memory_space<vmem>>, vector<2x64xbf16>,
    %c0_120 = arith.constant 0 : index
    %c0_121 = arith.constant 0 : index
    %c1_122 = arith.constant 1 : index
    %c0_123 = arith.constant 0 : index
    %c0_124 = arith.constant 0 : index
    %57 = vector.load %arg3[%c0_120, %c0_121, %c1_122, %c0_123, %c0_124] : memref<1x1x4x4x64xbf16, #tpu.memory_space<vmem>>, vector<1x1x1x2x64xbf16>
    %58 = vector.shape_cast %57 : vector<1x1x1x2x64xbf16> to vector<2x64xbf16>
    %c2_125 = arith.constant 2 : index
    %c576_126 = arith.constant 576 : index
    %59 = vector.load %arg8[%c2_125, %c576_126] : memref<4x1728xbf16, #tpu.memory_space<vmem>>, vector<2x64xbf16>
    tpu.vector_store %arg8[%c2_125, %c576_126], %58 {strides = array<i32>} : memref<4x1728xbf16, #tpu.memory_space<vmem>>, vector<2x64xbf16>,
    %c0_127 = arith.constant 0 : index
    %c0_128 = arith.constant 0 : index
    %c0_129 = arith.constant 0 : index
    %c1_130 = arith.constant 1 : index
    %c0_131 = arith.constant 0 : index
    %60 = vector.load %arg3[%c0_127, %c0_128, %c0_129, %c1_130, %c0_131] : memref<1x1x4x4x64xbf16, #tpu.memory_space<vmem>>, vector<1x1x1x2x64xbf16>
    %61 = vector.shape_cast %60 : vector<1x1x1x2x64xbf16> to vector<2x64xbf16>
    %c0_132 = arith.constant 0 : index
    %c640 = arith.constant 640 : index
    %62 = vector.load %arg8[%c0_132, %c640] : memref<4x1728xbf16, #tpu.memory_space<vmem>>, vector<2x64xbf16>
    tpu.vector_store %arg8[%c0_132, %c640], %61 {strides = array<i32>} : memref<4x1728xbf16, #tpu.memory_space<vmem>>, vector<2x64xbf16>,
    %c0_133 = arith.constant 0 : index
    %c0_134 = arith.constant 0 : index
    %c1_135 = arith.constant 1 : index
    %c1_136 = arith.constant 1 : index
    %c0_137 = arith.constant 0 : index
    %63 = vector.load %arg3[%c0_133, %c0_134, %c1_135, %c1_136, %c0_137] : memref<1x1x4x4x64xbf16, #tpu.memory_space<vmem>>, vector<1x1x1x2x64xbf16>
    %64 = vector.shape_cast %63 : vector<1x1x1x2x64xbf16> to vector<2x64xbf16>
    %c2_138 = arith.constant 2 : index
    %c640_139 = arith.constant 640 : index
    %65 = vector.load %arg8[%c2_138, %c640_139] : memref<4x1728xbf16, #tpu.memory_space<vmem>>, vector<2x64xbf16>
    tpu.vector_store %arg8[%c2_138, %c640_139], %64 {strides = array<i32>} : memref<4x1728xbf16, #tpu.memory_space<vmem>>, vector<2x64xbf16>,
    %c0_140 = arith.constant 0 : index
    %c0_141 = arith.constant 0 : index
    %c0_142 = arith.constant 0 : index
    %c2_143 = arith.constant 2 : index
    %c0_144 = arith.constant 0 : index
    %66 = vector.load %arg3[%c0_140, %c0_141, %c0_142, %c2_143, %c0_144] : memref<1x1x4x4x64xbf16, #tpu.memory_space<vmem>>, vector<1x1x1x2x64xbf16>
    %67 = vector.shape_cast %66 : vector<1x1x1x2x64xbf16> to vector<2x64xbf16>
    %c0_145 = arith.constant 0 : index
    %c704 = arith.constant 704 : index
    %68 = vector.load %arg8[%c0_145, %c704] : memref<4x1728xbf16, #tpu.memory_space<vmem>>, vector<2x64xbf16>
    tpu.vector_store %arg8[%c0_145, %c704], %67 {strides = array<i32>} : memref<4x1728xbf16, #tpu.memory_space<vmem>>, vector<2x64xbf16>,
    %c0_146 = arith.constant 0 : index
    %c0_147 = arith.constant 0 : index
    %c1_148 = arith.constant 1 : index
    %c2_149 = arith.constant 2 : index
    %c0_150 = arith.constant 0 : index
    %69 = vector.load %arg3[%c0_146, %c0_147, %c1_148, %c2_149, %c0_150] : memref<1x1x4x4x64xbf16, #tpu.memory_space<vmem>>, vector<1x1x1x2x64xbf16>
    %70 = vector.shape_cast %69 : vector<1x1x1x2x64xbf16> to vector<2x64xbf16>
    %c2_151 = arith.constant 2 : index
    %c704_152 = arith.constant 704 : index
    %71 = vector.load %arg8[%c2_151, %c704_152] : memref<4x1728xbf16, #tpu.memory_space<vmem>>, vector<2x64xbf16>
    tpu.vector_store %arg8[%c2_151, %c704_152], %70 {strides = array<i32>} : memref<4x1728xbf16, #tpu.memory_space<vmem>>, vector<2x64xbf16>,
    %c0_153 = arith.constant 0 : index
    %c0_154 = arith.constant 0 : index
    %c1_155 = arith.constant 1 : index
    %c0_156 = arith.constant 0 : index
    %c0_157 = arith.constant 0 : index
    %72 = vector.load %arg3[%c0_153, %c0_154, %c1_155, %c0_156, %c0_157] : memref<1x1x4x4x64xbf16, #tpu.memory_space<vmem>>, vector<1x1x1x2x64xbf16>
    %73 = vector.shape_cast %72 : vector<1x1x1x2x64xbf16> to vector<2x64xbf16>
    %c0_158 = arith.constant 0 : index
    %c768 = arith.constant 768 : index
    %74 = vector.load %arg8[%c0_158, %c768] : memref<4x1728xbf16, #tpu.memory_space<vmem>>, vector<2x64xbf16>
    tpu.vector_store %arg8[%c0_158, %c768], %73 {strides = array<i32>} : memref<4x1728xbf16, #tpu.memory_space<vmem>>, vector<2x64xbf16>,
    %c0_159 = arith.constant 0 : index
    %c0_160 = arith.constant 0 : index
    %c2_161 = arith.constant 2 : index
    %c0_162 = arith.constant 0 : index
    %c0_163 = arith.constant 0 : index
    %75 = vector.load %arg3[%c0_159, %c0_160, %c2_161, %c0_162, %c0_163] : memref<1x1x4x4x64xbf16, #tpu.memory_space<vmem>>, vector<1x1x1x2x64xbf16>
    %76 = vector.shape_cast %75 : vector<1x1x1x2x64xbf16> to vector<2x64xbf16>
    %c2_164 = arith.constant 2 : index
    %c768_165 = arith.constant 768 : index
    %77 = vector.load %arg8[%c2_164, %c768_165] : memref<4x1728xbf16, #tpu.memory_space<vmem>>, vector<2x64xbf16>
    tpu.vector_store %arg8[%c2_164, %c768_165], %76 {strides = array<i32>} : memref<4x1728xbf16, #tpu.memory_space<vmem>>, vector<2x64xbf16>,
    %c0_166 = arith.constant 0 : index
    %c0_167 = arith.constant 0 : index
    %c1_168 = arith.constant 1 : index
    %c1_169 = arith.constant 1 : index
    %c0_170 = arith.constant 0 : index
    %78 = vector.load %arg3[%c0_166, %c0_167, %c1_168, %c1_169, %c0_170] : memref<1x1x4x4x64xbf16, #tpu.memory_space<vmem>>, vector<1x1x1x2x64xbf16>
    %79 = vector.shape_cast %78 : vector<1x1x1x2x64xbf16> to vector<2x64xbf16>
    %c0_171 = arith.constant 0 : index
    %c832 = arith.constant 832 : index
    %80 = vector.load %arg8[%c0_171, %c832] : memref<4x1728xbf16, #tpu.memory_space<vmem>>, vector<2x64xbf16>
    tpu.vector_store %arg8[%c0_171, %c832], %79 {strides = array<i32>} : memref<4x1728xbf16, #tpu.memory_space<vmem>>, vector<2x64xbf16>,
    %c0_172 = arith.constant 0 : index
    %c0_173 = arith.constant 0 : index
    %c2_174 = arith.constant 2 : index
    %c1_175 = arith.constant 1 : index
    %c0_176 = arith.constant 0 : index
    %81 = vector.load %arg3[%c0_172, %c0_173, %c2_174, %c1_175, %c0_176] : memref<1x1x4x4x64xbf16, #tpu.memory_space<vmem>>, vector<1x1x1x2x64xbf16>
    %82 = vector.shape_cast %81 : vector<1x1x1x2x64xbf16> to vector<2x64xbf16>
    %c2_177 = arith.constant 2 : index
    %c832_178 = arith.constant 832 : index
    %83 = vector.load %arg8[%c2_177, %c832_178] : memref<4x1728xbf16, #tpu.memory_space<vmem>>, vector<2x64xbf16>
    tpu.vector_store %arg8[%c2_177, %c832_178], %82 {strides = array<i32>} : memref<4x1728xbf16, #tpu.memory_space<vmem>>, vector<2x64xbf16>,
    %c0_179 = arith.constant 0 : index
    %c0_180 = arith.constant 0 : index
    %c1_181 = arith.constant 1 : index
    %c2_182 = arith.constant 2 : index
    %c0_183 = arith.constant 0 : index
    %84 = vector.load %arg3[%c0_179, %c0_180, %c1_181, %c2_182, %c0_183] : memref<1x1x4x4x64xbf16, #tpu.memory_space<vmem>>, vector<1x1x1x2x64xbf16>
    %85 = vector.shape_cast %84 : vector<1x1x1x2x64xbf16> to vector<2x64xbf16>
    %c0_184 = arith.constant 0 : index
    %c896 = arith.constant 896 : index
    %86 = vector.load %arg8[%c0_184, %c896] : memref<4x1728xbf16, #tpu.memory_space<vmem>>, vector<2x64xbf16>
    tpu.vector_store %arg8[%c0_184, %c896], %85 {strides = array<i32>} : memref<4x1728xbf16, #tpu.memory_space<vmem>>, vector<2x64xbf16>,
    %c0_185 = arith.constant 0 : index
    %c0_186 = arith.constant 0 : index
    %c2_187 = arith.constant 2 : index
    %c2_188 = arith.constant 2 : index
    %c0_189 = arith.constant 0 : index
    %87 = vector.load %arg3[%c0_185, %c0_186, %c2_187, %c2_188, %c0_189] : memref<1x1x4x4x64xbf16, #tpu.memory_space<vmem>>, vector<1x1x1x2x64xbf16>
    %88 = vector.shape_cast %87 : vector<1x1x1x2x64xbf16> to vector<2x64xbf16>
    %c2_190 = arith.constant 2 : index
    %c896_191 = arith.constant 896 : index
    %89 = vector.load %arg8[%c2_190, %c896_191] : memref<4x1728xbf16, #tpu.memory_space<vmem>>, vector<2x64xbf16>
    tpu.vector_store %arg8[%c2_190, %c896_191], %88 {strides = array<i32>} : memref<4x1728xbf16, #tpu.memory_space<vmem>>, vector<2x64xbf16>,
    %c0_192 = arith.constant 0 : index
    %c0_193 = arith.constant 0 : index
    %c2_194 = arith.constant 2 : index
    %c0_195 = arith.constant 0 : index
    %c0_196 = arith.constant 0 : index
    %90 = vector.load %arg3[%c0_192, %c0_193, %c2_194, %c0_195, %c0_196] : memref<1x1x4x4x64xbf16, #tpu.memory_space<vmem>>, vector<1x1x1x2x64xbf16>
    %91 = vector.shape_cast %90 : vector<1x1x1x2x64xbf16> to vector<2x64xbf16>
    %c0_197 = arith.constant 0 : index
    %c960 = arith.constant 960 : index
    %92 = vector.load %arg8[%c0_197, %c960] : memref<4x1728xbf16, #tpu.memory_space<vmem>>, vector<2x64xbf16>
    tpu.vector_store %arg8[%c0_197, %c960], %91 {strides = array<i32>} : memref<4x1728xbf16, #tpu.memory_space<vmem>>, vector<2x64xbf16>,
    %c0_198 = arith.constant 0 : index
    %c0_199 = arith.constant 0 : index
    %c3_200 = arith.constant 3 : index
    %c0_201 = arith.constant 0 : index
    %c0_202 = arith.constant 0 : index
    %93 = vector.load %arg3[%c0_198, %c0_199, %c3_200, %c0_201, %c0_202] : memref<1x1x4x4x64xbf16, #tpu.memory_space<vmem>>, vector<1x1x1x2x64xbf16>
    %94 = vector.shape_cast %93 : vector<1x1x1x2x64xbf16> to vector<2x64xbf16>
    %c2_203 = arith.constant 2 : index
    %c960_204 = arith.constant 960 : index
    %95 = vector.load %arg8[%c2_203, %c960_204] : memref<4x1728xbf16, #tpu.memory_space<vmem>>, vector<2x64xbf16>
    tpu.vector_store %arg8[%c2_203, %c960_204], %94 {strides = array<i32>} : memref<4x1728xbf16, #tpu.memory_space<vmem>>, vector<2x64xbf16>,
    %c0_205 = arith.constant 0 : index
    %c0_206 = arith.constant 0 : index
    %c2_207 = arith.constant 2 : index
    %c1_208 = arith.constant 1 : index
    %c0_209 = arith.constant 0 : index
    %96 = vector.load %arg3[%c0_205, %c0_206, %c2_207, %c1_208, %c0_209] : memref<1x1x4x4x64xbf16, #tpu.memory_space<vmem>>, vector<1x1x1x2x64xbf16>
    %97 = vector.shape_cast %96 : vector<1x1x1x2x64xbf16> to vector<2x64xbf16>
    %c0_210 = arith.constant 0 : index
    %c1024 = arith.constant 1024 : index
    %98 = vector.load %arg8[%c0_210, %c1024] : memref<4x1728xbf16, #tpu.memory_space<vmem>>, vector<2x64xbf16>
    tpu.vector_store %arg8[%c0_210, %c1024], %97 {strides = array<i32>} : memref<4x1728xbf16, #tpu.memory_space<vmem>>, vector<2x64xbf16>,
    %c0_211 = arith.constant 0 : index
    %c0_212 = arith.constant 0 : index
    %c3_213 = arith.constant 3 : index
    %c1_214 = arith.constant 1 : index
    %c0_215 = arith.constant 0 : index
    %99 = vector.load %arg3[%c0_211, %c0_212, %c3_213, %c1_214, %c0_215] : memref<1x1x4x4x64xbf16, #tpu.memory_space<vmem>>, vector<1x1x1x2x64xbf16>
    %100 = vector.shape_cast %99 : vector<1x1x1x2x64xbf16> to vector<2x64xbf16>
    %c2_216 = arith.constant 2 : index
    %c1024_217 = arith.constant 1024 : index
    %101 = vector.load %arg8[%c2_216, %c1024_217] : memref<4x1728xbf16, #tpu.memory_space<vmem>>, vector<2x64xbf16>
    tpu.vector_store %arg8[%c2_216, %c1024_217], %100 {strides = array<i32>} : memref<4x1728xbf16, #tpu.memory_space<vmem>>, vector<2x64xbf16>,
    %c0_218 = arith.constant 0 : index
    %c0_219 = arith.constant 0 : index
    %c2_220 = arith.constant 2 : index
    %c2_221 = arith.constant 2 : index
    %c0_222 = arith.constant 0 : index
    %102 = vector.load %arg3[%c0_218, %c0_219, %c2_220, %c2_221, %c0_222] : memref<1x1x4x4x64xbf16, #tpu.memory_space<vmem>>, vector<1x1x1x2x64xbf16>
    %103 = vector.shape_cast %102 : vector<1x1x1x2x64xbf16> to vector<2x64xbf16>
    %c0_223 = arith.constant 0 : index
    %c1088 = arith.constant 1088 : index
    %104 = vector.load %arg8[%c0_223, %c1088] : memref<4x1728xbf16, #tpu.memory_space<vmem>>, vector<2x64xbf16>
    tpu.vector_store %arg8[%c0_223, %c1088], %103 {strides = array<i32>} : memref<4x1728xbf16, #tpu.memory_space<vmem>>, vector<2x64xbf16>,
    %c0_224 = arith.constant 0 : index
    %c0_225 = arith.constant 0 : index
    %c3_226 = arith.constant 3 : index
    %c2_227 = arith.constant 2 : index
    %c0_228 = arith.constant 0 : index
    %105 = vector.load %arg3[%c0_224, %c0_225, %c3_226, %c2_227, %c0_228] : memref<1x1x4x4x64xbf16, #tpu.memory_space<vmem>>, vector<1x1x1x2x64xbf16>
    %106 = vector.shape_cast %105 : vector<1x1x1x2x64xbf16> to vector<2x64xbf16>
    %c2_229 = arith.constant 2 : index
    %c1088_230 = arith.constant 1088 : index
    %107 = vector.load %arg8[%c2_229, %c1088_230] : memref<4x1728xbf16, #tpu.memory_space<vmem>>, vector<2x64xbf16>
    tpu.vector_store %arg8[%c2_229, %c1088_230], %106 {strides = array<i32>} : memref<4x1728xbf16, #tpu.memory_space<vmem>>, vector<2x64xbf16>,
    %c0_231 = arith.constant 0 : index
    %c0_232 = arith.constant 0 : index
    %c0_233 = arith.constant 0 : index
    %c0_234 = arith.constant 0 : index
    %c0_235 = arith.constant 0 : index
    %108 = vector.load %arg4[%c0_231, %c0_232, %c0_233, %c0_234, %c0_235] : memref<1x1x4x4x64xbf16, #tpu.memory_space<vmem>>, vector<1x1x1x2x64xbf16>
    %109 = vector.shape_cast %108 : vector<1x1x1x2x64xbf16> to vector<2x64xbf16>
    %c0_236 = arith.constant 0 : index
    %c1152 = arith.constant 1152 : index
    %110 = vector.load %arg8[%c0_236, %c1152] : memref<4x1728xbf16, #tpu.memory_space<vmem>>, vector<2x64xbf16>
    tpu.vector_store %arg8[%c0_236, %c1152], %109 {strides = array<i32>} : memref<4x1728xbf16, #tpu.memory_space<vmem>>, vector<2x64xbf16>,
    %c0_237 = arith.constant 0 : index
    %c0_238 = arith.constant 0 : index
    %c1_239 = arith.constant 1 : index
    %c0_240 = arith.constant 0 : index
    %c0_241 = arith.constant 0 : index
    %111 = vector.load %arg4[%c0_237, %c0_238, %c1_239, %c0_240, %c0_241] : memref<1x1x4x4x64xbf16, #tpu.memory_space<vmem>>, vector<1x1x1x2x64xbf16>
    %112 = vector.shape_cast %111 : vector<1x1x1x2x64xbf16> to vector<2x64xbf16>
    %c2_242 = arith.constant 2 : index
    %c1152_243 = arith.constant 1152 : index
    %113 = vector.load %arg8[%c2_242, %c1152_243] : memref<4x1728xbf16, #tpu.memory_space<vmem>>, vector<2x64xbf16>
    tpu.vector_store %arg8[%c2_242, %c1152_243], %112 {strides = array<i32>} : memref<4x1728xbf16, #tpu.memory_space<vmem>>, vector<2x64xbf16>,
    %c0_244 = arith.constant 0 : index
    %c0_245 = arith.constant 0 : index
    %c0_246 = arith.constant 0 : index
    %c1_247 = arith.constant 1 : index
    %c0_248 = arith.constant 0 : index
    %114 = vector.load %arg4[%c0_244, %c0_245, %c0_246, %c1_247, %c0_248] : memref<1x1x4x4x64xbf16, #tpu.memory_space<vmem>>, vector<1x1x1x2x64xbf16>
    %115 = vector.shape_cast %114 : vector<1x1x1x2x64xbf16> to vector<2x64xbf16>
    %c0_249 = arith.constant 0 : index
    %c1216 = arith.constant 1216 : index
    %116 = vector.load %arg8[%c0_249, %c1216] : memref<4x1728xbf16, #tpu.memory_space<vmem>>, vector<2x64xbf16>
    tpu.vector_store %arg8[%c0_249, %c1216], %115 {strides = array<i32>} : memref<4x1728xbf16, #tpu.memory_space<vmem>>, vector<2x64xbf16>,
    %c0_250 = arith.constant 0 : index
    %c0_251 = arith.constant 0 : index
    %c1_252 = arith.constant 1 : index
    %c1_253 = arith.constant 1 : index
    %c0_254 = arith.constant 0 : index
    %117 = vector.load %arg4[%c0_250, %c0_251, %c1_252, %c1_253, %c0_254] : memref<1x1x4x4x64xbf16, #tpu.memory_space<vmem>>, vector<1x1x1x2x64xbf16>
    %118 = vector.shape_cast %117 : vector<1x1x1x2x64xbf16> to vector<2x64xbf16>
    %c2_255 = arith.constant 2 : index
    %c1216_256 = arith.constant 1216 : index
    %119 = vector.load %arg8[%c2_255, %c1216_256] : memref<4x1728xbf16, #tpu.memory_space<vmem>>, vector<2x64xbf16>
    tpu.vector_store %arg8[%c2_255, %c1216_256], %118 {strides = array<i32>} : memref<4x1728xbf16, #tpu.memory_space<vmem>>, vector<2x64xbf16>,
    %c0_257 = arith.constant 0 : index
    %c0_258 = arith.constant 0 : index
    %c0_259 = arith.constant 0 : index
    %c2_260 = arith.constant 2 : index
    %c0_261 = arith.constant 0 : index
    %120 = vector.load %arg4[%c0_257, %c0_258, %c0_259, %c2_260, %c0_261] : memref<1x1x4x4x64xbf16, #tpu.memory_space<vmem>>, vector<1x1x1x2x64xbf16>
    %121 = vector.shape_cast %120 : vector<1x1x1x2x64xbf16> to vector<2x64xbf16>
    %c0_262 = arith.constant 0 : index
    %c1280 = arith.constant 1280 : index
    %122 = vector.load %arg8[%c0_262, %c1280] : memref<4x1728xbf16, #tpu.memory_space<vmem>>, vector<2x64xbf16>
    tpu.vector_store %arg8[%c0_262, %c1280], %121 {strides = array<i32>} : memref<4x1728xbf16, #tpu.memory_space<vmem>>, vector<2x64xbf16>,
    %c0_263 = arith.constant 0 : index
    %c0_264 = arith.constant 0 : index
    %c1_265 = arith.constant 1 : index
    %c2_266 = arith.constant 2 : index
    %c0_267 = arith.constant 0 : index
    %123 = vector.load %arg4[%c0_263, %c0_264, %c1_265, %c2_266, %c0_267] : memref<1x1x4x4x64xbf16, #tpu.memory_space<vmem>>, vector<1x1x1x2x64xbf16>
    %124 = vector.shape_cast %123 : vector<1x1x1x2x64xbf16> to vector<2x64xbf16>
    %c2_268 = arith.constant 2 : index
    %c1280_269 = arith.constant 1280 : index
    %125 = vector.load %arg8[%c2_268, %c1280_269] : memref<4x1728xbf16, #tpu.memory_space<vmem>>, vector<2x64xbf16>
    tpu.vector_store %arg8[%c2_268, %c1280_269], %124 {strides = array<i32>} : memref<4x1728xbf16, #tpu.memory_space<vmem>>, vector<2x64xbf16>,
    %c0_270 = arith.constant 0 : index
    %c0_271 = arith.constant 0 : index
    %c1_272 = arith.constant 1 : index
    %c0_273 = arith.constant 0 : index
    %c0_274 = arith.constant 0 : index
    %126 = vector.load %arg4[%c0_270, %c0_271, %c1_272, %c0_273, %c0_274] : memref<1x1x4x4x64xbf16, #tpu.memory_space<vmem>>, vector<1x1x1x2x64xbf16>
    %127 = vector.shape_cast %126 : vector<1x1x1x2x64xbf16> to vector<2x64xbf16>
    %c0_275 = arith.constant 0 : index
    %c1344 = arith.constant 1344 : index
    %128 = vector.load %arg8[%c0_275, %c1344] : memref<4x1728xbf16, #tpu.memory_space<vmem>>, vector<2x64xbf16>
    tpu.vector_store %arg8[%c0_275, %c1344], %127 {strides = array<i32>} : memref<4x1728xbf16, #tpu.memory_space<vmem>>, vector<2x64xbf16>,
    %c0_276 = arith.constant 0 : index
    %c0_277 = arith.constant 0 : index
    %c2_278 = arith.constant 2 : index
    %c0_279 = arith.constant 0 : index
    %c0_280 = arith.constant 0 : index
    %129 = vector.load %arg4[%c0_276, %c0_277, %c2_278, %c0_279, %c0_280] : memref<1x1x4x4x64xbf16, #tpu.memory_space<vmem>>, vector<1x1x1x2x64xbf16>
    %130 = vector.shape_cast %129 : vector<1x1x1x2x64xbf16> to vector<2x64xbf16>
    %c2_281 = arith.constant 2 : index
    %c1344_282 = arith.constant 1344 : index
    %131 = vector.load %arg8[%c2_281, %c1344_282] : memref<4x1728xbf16, #tpu.memory_space<vmem>>, vector<2x64xbf16>
    tpu.vector_store %arg8[%c2_281, %c1344_282], %130 {strides = array<i32>} : memref<4x1728xbf16, #tpu.memory_space<vmem>>, vector<2x64xbf16>,
    %c0_283 = arith.constant 0 : index
    %c0_284 = arith.constant 0 : index
    %c1_285 = arith.constant 1 : index
    %c1_286 = arith.constant 1 : index
    %c0_287 = arith.constant 0 : index
    %132 = vector.load %arg4[%c0_283, %c0_284, %c1_285, %c1_286, %c0_287] : memref<1x1x4x4x64xbf16, #tpu.memory_space<vmem>>, vector<1x1x1x2x64xbf16>
    %133 = vector.shape_cast %132 : vector<1x1x1x2x64xbf16> to vector<2x64xbf16>
    %c0_288 = arith.constant 0 : index
    %c1408 = arith.constant 1408 : index
    %134 = vector.load %arg8[%c0_288, %c1408] : memref<4x1728xbf16, #tpu.memory_space<vmem>>, vector<2x64xbf16>
    tpu.vector_store %arg8[%c0_288, %c1408], %133 {strides = array<i32>} : memref<4x1728xbf16, #tpu.memory_space<vmem>>, vector<2x64xbf16>,
    %c0_289 = arith.constant 0 : index
    %c0_290 = arith.constant 0 : index
    %c2_291 = arith.constant 2 : index
    %c1_292 = arith.constant 1 : index
    %c0_293 = arith.constant 0 : index
    %135 = vector.load %arg4[%c0_289, %c0_290, %c2_291, %c1_292, %c0_293] : memref<1x1x4x4x64xbf16, #tpu.memory_space<vmem>>, vector<1x1x1x2x64xbf16>
    %136 = vector.shape_cast %135 : vector<1x1x1x2x64xbf16> to vector<2x64xbf16>
    %c2_294 = arith.constant 2 : index
    %c1408_295 = arith.constant 1408 : index
    %137 = vector.load %arg8[%c2_294, %c1408_295] : memref<4x1728xbf16, #tpu.memory_space<vmem>>, vector<2x64xbf16>
    tpu.vector_store %arg8[%c2_294, %c1408_295], %136 {strides = array<i32>} : memref<4x1728xbf16, #tpu.memory_space<vmem>>, vector<2x64xbf16>,
    %c0_296 = arith.constant 0 : index
    %c0_297 = arith.constant 0 : index
    %c1_298 = arith.constant 1 : index
    %c2_299 = arith.constant 2 : index
    %c0_300 = arith.constant 0 : index
    %138 = vector.load %arg4[%c0_296, %c0_297, %c1_298, %c2_299, %c0_300] : memref<1x1x4x4x64xbf16, #tpu.memory_space<vmem>>, vector<1x1x1x2x64xbf16>
    %139 = vector.shape_cast %138 : vector<1x1x1x2x64xbf16> to vector<2x64xbf16>
    %c0_301 = arith.constant 0 : index
    %c1472 = arith.constant 1472 : index
    %140 = vector.load %arg8[%c0_301, %c1472] : memref<4x1728xbf16, #tpu.memory_space<vmem>>, vector<2x64xbf16>
    tpu.vector_store %arg8[%c0_301, %c1472], %139 {strides = array<i32>} : memref<4x1728xbf16, #tpu.memory_space<vmem>>, vector<2x64xbf16>,
    %c0_302 = arith.constant 0 : index
    %c0_303 = arith.constant 0 : index
    %c2_304 = arith.constant 2 : index
    %c2_305 = arith.constant 2 : index
    %c0_306 = arith.constant 0 : index
    %141 = vector.load %arg4[%c0_302, %c0_303, %c2_304, %c2_305, %c0_306] : memref<1x1x4x4x64xbf16, #tpu.memory_space<vmem>>, vector<1x1x1x2x64xbf16>
    %142 = vector.shape_cast %141 : vector<1x1x1x2x64xbf16> to vector<2x64xbf16>
    %c2_307 = arith.constant 2 : index
    %c1472_308 = arith.constant 1472 : index
    %143 = vector.load %arg8[%c2_307, %c1472_308] : memref<4x1728xbf16, #tpu.memory_space<vmem>>, vector<2x64xbf16>
    tpu.vector_store %arg8[%c2_307, %c1472_308], %142 {strides = array<i32>} : memref<4x1728xbf16, #tpu.memory_space<vmem>>, vector<2x64xbf16>,
    %c0_309 = arith.constant 0 : index
    %c0_310 = arith.constant 0 : index
    %c2_311 = arith.constant 2 : index
    %c0_312 = arith.constant 0 : index
    %c0_313 = arith.constant 0 : index
    %144 = vector.load %arg4[%c0_309, %c0_310, %c2_311, %c0_312, %c0_313] : memref<1x1x4x4x64xbf16, #tpu.memory_space<vmem>>, vector<1x1x1x2x64xbf16>
    %145 = vector.shape_cast %144 : vector<1x1x1x2x64xbf16> to vector<2x64xbf16>
    %c0_314 = arith.constant 0 : index
    %c1536 = arith.constant 1536 : index
    %146 = vector.load %arg8[%c0_314, %c1536] : memref<4x1728xbf16, #tpu.memory_space<vmem>>, vector<2x64xbf16>
    tpu.vector_store %arg8[%c0_314, %c1536], %145 {strides = array<i32>} : memref<4x1728xbf16, #tpu.memory_space<vmem>>, vector<2x64xbf16>,
    %c0_315 = arith.constant 0 : index
    %c0_316 = arith.constant 0 : index
    %c3_317 = arith.constant 3 : index
    %c0_318 = arith.constant 0 : index
    %c0_319 = arith.constant 0 : index
    %147 = vector.load %arg4[%c0_315, %c0_316, %c3_317, %c0_318, %c0_319] : memref<1x1x4x4x64xbf16, #tpu.memory_space<vmem>>, vector<1x1x1x2x64xbf16>
    %148 = vector.shape_cast %147 : vector<1x1x1x2x64xbf16> to vector<2x64xbf16>
    %c2_320 = arith.constant 2 : index
    %c1536_321 = arith.constant 1536 : index
    %149 = vector.load %arg8[%c2_320, %c1536_321] : memref<4x1728xbf16, #tpu.memory_space<vmem>>, vector<2x64xbf16>
    tpu.vector_store %arg8[%c2_320, %c1536_321], %148 {strides = array<i32>} : memref<4x1728xbf16, #tpu.memory_space<vmem>>, vector<2x64xbf16>,
    %c0_322 = arith.constant 0 : index
    %c0_323 = arith.constant 0 : index
    %c2_324 = arith.constant 2 : index
    %c1_325 = arith.constant 1 : index
    %c0_326 = arith.constant 0 : index
    %150 = vector.load %arg4[%c0_322, %c0_323, %c2_324, %c1_325, %c0_326] : memref<1x1x4x4x64xbf16, #tpu.memory_space<vmem>>, vector<1x1x1x2x64xbf16>
    %151 = vector.shape_cast %150 : vector<1x1x1x2x64xbf16> to vector<2x64xbf16>
    %c0_327 = arith.constant 0 : index
    %c1600 = arith.constant 1600 : index
    %152 = vector.load %arg8[%c0_327, %c1600] : memref<4x1728xbf16, #tpu.memory_space<vmem>>, vector<2x64xbf16>
    tpu.vector_store %arg8[%c0_327, %c1600], %151 {strides = array<i32>} : memref<4x1728xbf16, #tpu.memory_space<vmem>>, vector<2x64xbf16>,
    %c0_328 = arith.constant 0 : index
    %c0_329 = arith.constant 0 : index
    %c3_330 = arith.constant 3 : index
    %c1_331 = arith.constant 1 : index
    %c0_332 = arith.constant 0 : index
    %153 = vector.load %arg4[%c0_328, %c0_329, %c3_330, %c1_331, %c0_332] : memref<1x1x4x4x64xbf16, #tpu.memory_space<vmem>>, vector<1x1x1x2x64xbf16>
    %154 = vector.shape_cast %153 : vector<1x1x1x2x64xbf16> to vector<2x64xbf16>
    %c2_333 = arith.constant 2 : index
    %c1600_334 = arith.constant 1600 : index
    %155 = vector.load %arg8[%c2_333, %c1600_334] : memref<4x1728xbf16, #tpu.memory_space<vmem>>, vector<2x64xbf16>
    tpu.vector_store %arg8[%c2_333, %c1600_334], %154 {strides = array<i32>} : memref<4x1728xbf16, #tpu.memory_space<vmem>>, vector<2x64xbf16>,
    %c0_335 = arith.constant 0 : index
    %c0_336 = arith.constant 0 : index
    %c2_337 = arith.constant 2 : index
    %c2_338 = arith.constant 2 : index
    %c0_339 = arith.constant 0 : index
    %156 = vector.load %arg4[%c0_335, %c0_336, %c2_337, %c2_338, %c0_339] : memref<1x1x4x4x64xbf16, #tpu.memory_space<vmem>>, vector<1x1x1x2x64xbf16>
    %157 = vector.shape_cast %156 : vector<1x1x1x2x64xbf16> to vector<2x64xbf16>
    %c0_340 = arith.constant 0 : index
    %c1664 = arith.constant 1664 : index
    %158 = vector.load %arg8[%c0_340, %c1664] : memref<4x1728xbf16, #tpu.memory_space<vmem>>, vector<2x64xbf16>
    tpu.vector_store %arg8[%c0_340, %c1664], %157 {strides = array<i32>} : memref<4x1728xbf16, #tpu.memory_space<vmem>>, vector<2x64xbf16>,
    %c0_341 = arith.constant 0 : index
    %c0_342 = arith.constant 0 : index
    %c3_343 = arith.constant 3 : index
    %c2_344 = arith.constant 2 : index
    %c0_345 = arith.constant 0 : index
    %159 = vector.load %arg4[%c0_341, %c0_342, %c3_343, %c2_344, %c0_345] : memref<1x1x4x4x64xbf16, #tpu.memory_space<vmem>>, vector<1x1x1x2x64xbf16>
    %160 = vector.shape_cast %159 : vector<1x1x1x2x64xbf16> to vector<2x64xbf16>
    %c2_346 = arith.constant 2 : index
    %c1664_347 = arith.constant 1664 : index
    %161 = vector.load %arg8[%c2_346, %c1664_347] : memref<4x1728xbf16, #tpu.memory_space<vmem>>, vector<2x64xbf16>
    tpu.vector_store %arg8[%c2_346, %c1664_347], %160 {strides = array<i32>} : memref<4x1728xbf16, #tpu.memory_space<vmem>>, vector<2x64xbf16>,
    %c0_348 = arith.constant 0 : index
    %c0_349 = arith.constant 0 : index
    %162 = vector.load %arg8[%c0_348, %c0_349] : memref<4x1728xbf16, #tpu.memory_space<vmem>>, vector<4x1728xbf16>
    %c0_350 = arith.constant 0 : index
    %c0_351 = arith.constant 0 : index
    %163 = vector.load %arg5[%c0_350, %c0_351] : memref<1728x128xbf16, #tpu.memory_space<vmem>>, vector<1728x128xbf16>
    %cst = arith.constant dense<0.000000e+00> : vector<4x128xf32>
    %164 = tpu.matmul %162, %163, %cst {dimension_numbers = #tpu.dot_dimension_numbers<[1], [0], [0], [1], [0, 0, 1, 1], [], []>} : vector<4x1728xbf16>, vector<1728x128xbf16>, vector<4x128xf32> -> vector<4x128xf32>
    %c0_352 = arith.constant 0 : index
    %c0_353 = arith.constant 0 : index
    %165 = vector.load %arg6[%c0_352, %c0_353] : memref<1x128xf32, #tpu.memory_space<vmem>>, vector<1x128xf32>
    %166 = vector.broadcast %165 : vector<1x128xf32> to vector<4x128xf32>
    %167 = arith.addf %164, %166 : vector<4x128xf32>
    %cst_354 = arith.constant 0.000000e+00 : f32
    %168 = vector.broadcast %cst_354 : f32 to vector<4x128xf32>
    %169 = arith.maximumf %167, %168 : vector<4x128xf32>
    %c0_355 = arith.constant 0 : index
    %c0_356 = arith.constant 0 : index
    %c0_357 = arith.constant 0 : index
    %c0_358 = arith.constant 0 : index
    %170 = vector.load %arg7[%c0_355, %c0_356, %c0_357, %c0_358] : memref<1x1x4x128xf32, #tpu.memory_space<vmem>>, vector<1x1x4x128xf32>
    %171 = vector.shape_cast %170 : vector<1x1x4x128xf32> to vector<4x128xf32>
    %172 = vector.shape_cast %169 : vector<4x128xf32> to vector<1x1x4x128xf32>
    tpu.vector_store %arg7[%c0_355, %c0_356, %c0_357, %c0_358], %172 {strides = array<i32>} : memref<1x1x4x128xf32, #tpu.memory_space<vmem>>, vector<1x1x4x128xf32>,
    return
  }
  func.func @transform_0(%arg0: i32, %arg1: i32) -> (i32, i32, i32, i32, i32) {
    %c0_i32 = arith.constant 0 : i32
    %c0_i32_0 = arith.constant 0 : i32
    %c0_i32_1 = arith.constant 0 : i32
    %c0_i32_2 = arith.constant 0 : i32
    return %arg0, %arg1, %c0_i32, %c0_i32_0, %c0_i32_1 : i32, i32, i32, i32, i32
  }
  func.func @transform_1(%arg0: i32, %arg1: i32) -> (i32, i32, i32, i32, i32) {
    %c1_i32 = arith.constant 1 : i32
    %0 = arith.addi %arg1, %c1_i32 : i32
    %c0_i32 = arith.constant 0 : i32
    %c0_i32_0 = arith.constant 0 : i32
    %c0_i32_1 = arith.constant 0 : i32
    %c0_i32_2 = arith.constant 0 : i32
    return %arg0, %0, %c0_i32, %c0_i32_0, %c0_i32_1 : i32, i32, i32, i32, i32
  }
  func.func @transform_2(%arg0: i32, %arg1: i32) -> (i32, i32, i32, i32, i32) {
    %c2_i32 = arith.constant 2 : i32
    %0 = arith.addi %arg1, %c2_i32 : i32
    %c0_i32 = arith.constant 0 : i32
    %c0_i32_0 = arith.constant 0 : i32
    %c0_i32_1 = arith.constant 0 : i32
    %c0_i32_2 = arith.constant 0 : i32
    return %arg0, %0, %c0_i32, %c0_i32_0, %c0_i32_1 : i32, i32, i32, i32, i32
  }
  func.func @transform_3(%arg0: i32, %arg1: i32) -> (i32, i32) {
    %c0_i32 = arith.constant 0 : i32
    %c0_i32_0 = arith.constant 0 : i32
    %c0_i32_1 = arith.constant 0 : i32
    return %c0_i32, %c0_i32_0 : i32, i32
  }
  func.func @transform_4(%arg0: i32, %arg1: i32) -> (i32, i32) {
    %c0_i32 = arith.constant 0 : i32
    %c0_i32_0 = arith.constant 0 : i32
    %c0_i32_1 = arith.constant 0 : i32
    return %c0_i32, %c0_i32_0 : i32, i32
  }
  func.func @transform_5(%arg0: i32, %arg1: i32) -> (i32, i32, i32, i32) {
    %c0_i32 = arith.constant 0 : i32
    %c0_i32_0 = arith.constant 0 : i32
    %c0_i32_1 = arith.constant 0 : i32
    return %arg0, %arg1, %c0_i32, %c0_i32_0 : i32, i32, i32, i32
  }
}

module attributes {stable_mosaic.version = 11 : i64} {
  func.func @_fused_mm_kernel(%arg0: i32, %arg1: memref<8x128xbf16, #tpu.memory_space<vmem>>, %arg2: memref<128x256xbf16, #tpu.memory_space<vmem>>, %arg3: memref<1x256xf32, #tpu.memory_space<vmem>>, %arg4: memref<8x256xf32, #tpu.memory_space<vmem>>) attributes {dimension_semantics = [#tpu.dimension_semantics<parallel>], iteration_bounds = array<i64: 1>, scalar_prefetch = 0 : i64, scratch_operands = 0 : i64, tpu.core_type = #tpu.core_type<tc>, window_params = [{transform_indices = @transform_0, window_bounds = array<i64: 8, 128>}, {pipeline_mode = #tpu.pipeline_mode<synchronous>, transform_indices = @transform_1, window_bounds = array<i64: 128, 256>}, {pipeline_mode = #tpu.pipeline_mode<synchronous>, transform_indices = @transform_2, window_bounds = array<i64: 1, 256>}, {transform_indices = @transform_3, window_bounds = array<i64: 8, 256>}]} {
    %c0 = arith.constant 0 : index
    %c0_0 = arith.constant 0 : index
    %0 = vector.load %arg1[%c0, %c0_0] : memref<8x128xbf16, #tpu.memory_space<vmem>>, vector<8x128xbf16>
    %c0_1 = arith.constant 0 : index
    %c0_2 = arith.constant 0 : index
    %1 = vector.load %arg2[%c0_1, %c0_2] : memref<128x256xbf16, #tpu.memory_space<vmem>>, vector<128x256xbf16>
    %cst = arith.constant dense<0.000000e+00> : vector<8x256xf32>
    %2 = tpu.matmul %0, %1, %cst {dimension_numbers = #tpu.dot_dimension_numbers<[1], [0], [0], [1], [0, 0, 1, 1], [], []>} : vector<8x128xbf16>, vector<128x256xbf16>, vector<8x256xf32> -> vector<8x256xf32>
    %c0_3 = arith.constant 0 : index
    %c0_4 = arith.constant 0 : index
    %3 = vector.load %arg3[%c0_3, %c0_4] : memref<1x256xf32, #tpu.memory_space<vmem>>, vector<1x256xf32>
    %4 = vector.broadcast %3 : vector<1x256xf32> to vector<8x256xf32>
    %5 = arith.addf %2, %4 : vector<8x256xf32>
    %cst_5 = arith.constant 0.000000e+00 : f32
    %6 = vector.broadcast %cst_5 : f32 to vector<8x256xf32>
    %7 = arith.maximumf %5, %6 : vector<8x256xf32>
    %c0_6 = arith.constant 0 : index
    %c0_7 = arith.constant 0 : index
    %8 = vector.load %arg4[%c0_6, %c0_7] : memref<8x256xf32, #tpu.memory_space<vmem>>, vector<8x256xf32>
    tpu.vector_store %arg4[%c0_6, %c0_7], %7 {strides = array<i32>} : memref<8x256xf32, #tpu.memory_space<vmem>>, vector<8x256xf32>,
    return
  }
  func.func @transform_0(%arg0: i32) -> (i32, i32) {
    %c0_i32 = arith.constant 0 : i32
    %c0_i32_0 = arith.constant 0 : i32
    return %arg0, %c0_i32 : i32, i32
  }
  func.func @transform_1(%arg0: i32) -> (i32, i32) {
    %c0_i32 = arith.constant 0 : i32
    %c0_i32_0 = arith.constant 0 : i32
    %c0_i32_1 = arith.constant 0 : i32
    return %c0_i32, %c0_i32_0 : i32, i32
  }
  func.func @transform_2(%arg0: i32) -> (i32, i32) {
    %c0_i32 = arith.constant 0 : i32
    %c0_i32_0 = arith.constant 0 : i32
    %c0_i32_1 = arith.constant 0 : i32
    return %c0_i32, %c0_i32_0 : i32, i32
  }
  func.func @transform_3(%arg0: i32) -> (i32, i32) {
    %c0_i32 = arith.constant 0 : i32
    %c0_i32_0 = arith.constant 0 : i32
    return %arg0, %c0_i32 : i32, i32
  }
}

module attributes {stable_mosaic.version = 11 : i64} {
  func.func @_fused_mm_kernel(%arg0: i32, %arg1: memref<8x256xbf16, #tpu.memory_space<vmem>>, %arg2: memref<256x5xbf16, #tpu.memory_space<vmem>>, %arg3: memref<1x5xf32, #tpu.memory_space<vmem>>, %arg4: memref<8x5xf32, #tpu.memory_space<vmem>>) attributes {dimension_semantics = [#tpu.dimension_semantics<parallel>], iteration_bounds = array<i64: 1>, scalar_prefetch = 0 : i64, scratch_operands = 0 : i64, tpu.core_type = #tpu.core_type<tc>, window_params = [{transform_indices = @transform_0, window_bounds = array<i64: 8, 256>}, {pipeline_mode = #tpu.pipeline_mode<synchronous>, transform_indices = @transform_1, window_bounds = array<i64: 256, 5>}, {pipeline_mode = #tpu.pipeline_mode<synchronous>, transform_indices = @transform_2, window_bounds = array<i64: 1, 5>}, {transform_indices = @transform_3, window_bounds = array<i64: 8, 5>}]} {
    %c0 = arith.constant 0 : index
    %c0_0 = arith.constant 0 : index
    %0 = vector.load %arg1[%c0, %c0_0] : memref<8x256xbf16, #tpu.memory_space<vmem>>, vector<8x256xbf16>
    %c0_1 = arith.constant 0 : index
    %c0_2 = arith.constant 0 : index
    %1 = vector.load %arg2[%c0_1, %c0_2] : memref<256x5xbf16, #tpu.memory_space<vmem>>, vector<256x5xbf16>
    %cst = arith.constant dense<0.000000e+00> : vector<8x5xf32>
    %2 = tpu.matmul %0, %1, %cst {dimension_numbers = #tpu.dot_dimension_numbers<[1], [0], [0], [1], [0, 0, 1, 1], [], []>} : vector<8x256xbf16>, vector<256x5xbf16>, vector<8x5xf32> -> vector<8x5xf32>
    %c0_3 = arith.constant 0 : index
    %c0_4 = arith.constant 0 : index
    %3 = vector.load %arg3[%c0_3, %c0_4] : memref<1x5xf32, #tpu.memory_space<vmem>>, vector<1x5xf32>
    %4 = vector.broadcast %3 : vector<1x5xf32> to vector<8x5xf32>
    %5 = arith.addf %2, %4 : vector<8x5xf32>
    %c0_5 = arith.constant 0 : index
    %c0_6 = arith.constant 0 : index
    %6 = vector.load %arg4[%c0_5, %c0_6] : memref<8x5xf32, #tpu.memory_space<vmem>>, vector<8x5xf32>
    tpu.vector_store %arg4[%c0_5, %c0_6], %5 {strides = array<i32>} : memref<8x5xf32, #tpu.memory_space<vmem>>, vector<8x5xf32>,
    return
  }
  func.func @transform_0(%arg0: i32) -> (i32, i32) {
    %c0_i32 = arith.constant 0 : i32
    %c0_i32_0 = arith.constant 0 : i32
    return %arg0, %c0_i32 : i32, i32
  }
  func.func @transform_1(%arg0: i32) -> (i32, i32) {
    %c0_i32 = arith.constant 0 : i32
    %c0_i32_0 = arith.constant 0 : i32
    %c0_i32_1 = arith.constant 0 : i32
    return %c0_i32, %c0_i32_0 : i32, i32
  }
  func.func @transform_2(%arg0: i32) -> (i32, i32) {
    %c0_i32 = arith.constant 0 : i32
    %c0_i32_0 = arith.constant 0 : i32
    %c0_i32_1 = arith.constant 0 : i32
    return %c0_i32, %c0_i32_0 : i32, i32
  }
  func.func @transform_3(%arg0: i32) -> (i32, i32) {
    %c0_i32 = arith.constant 0 : i32
    %c0_i32_0 = arith.constant 0 : i32
    return %arg0, %c0_i32 : i32, i32
  }
}

</mosaic_0001>

<llo_original>
// kernel: conv3d_model_forward.9
$region0: #{conv3d_model_forward.9}
  #allocation0 [shape = 'u32[]', space=smem, size = 0x4, offset = 0x4, fixed_abs, tag = 'smem constant byte address 0x4 - core index']
  #allocation1 [shape = 'u32[144,128]{1,0:T(1,128)}', space=vmem, size = 0x12000, scoped, tag = 'internal scratch']
  %s0 = inlined_call_operand.vmem [shape: f32[8,8,8,64], index: 0, kind: input, shape index: {}]
  %s1 = inlined_call_operand.vmem [shape: f32[8,4,4,32], index: 1, kind: output, shape index: {}]
  %s2 = sld [smem:[#allocation0]]
  $region37: #{conv3d_model_forward.9} parent=0
    _
  %s4 = ssub.s32 1, %s2
  %s5 = scalar_select 0, %s4, %s2
  loop: start=0, step=1, limit=10
  $region2: #{conv3d_model_forward.9} parent=0 // loop_pre_header
    _
  $region3: #{conv3d_model_forward.9} parent=0 // loop_header
    %s7 = sphi 0, %s11
    %p8 = scmp.ge.s32.totalorder %s7, 10
    %s17 = sphi 0, %s19
    %s20 = sphi 0, %s17
    %s21 = sphi 0, %s20
    %s37 = sphi 0, %s21
    %s43 = sphi 0, %s45
    %s46 = sphi 0, %s43
    %s47 = sphi 0, %s46
    %s63 = sphi 0, %s47
  $region4: #{conv3d_model_forward.9} parent=0 // loop_header_branch
    %10 = sbr.rel (%p8) target = $region8
  $region5: #{conv3d_model_forward.9} parent=0 // loop_body
    %s12 = ssub.s32 %s7, 1
    %s13 = ssub.s32 %s7, 2
    %s14 = sadd.s32 %s7, 1
    %s15 = ssub.s32 %s7, %s14
    %p16 = scmp.eq.s32.totalorder %s15, 0
    %s18 = sadd.s32 %s17, 1
    %s19 = scalar_select %p16, %s17, %s18
    %p22 = pneg %p16
    %p23 = scmp.eq.s32.totalorder %s7, 7
    %p24 = por %p22, %p23
    %p25 = scmp.ne.s32.totalorder %s17, %s20
    %p26 = scmp.eq.s32.totalorder %s7, 0
    %p27 = por %p25, %p26
    %p28 = scmp.ne.s32.totalorder %s17, %s20
    %p29 = scmp.eq.s32.totalorder %s12, 7
    %p30 = por %p28, %p29
    %p31 = scmp.ne.s32.totalorder %s20, %s21
    %p32 = scmp.eq.s32.totalorder %s12, 0
    %p33 = por %p31, %p32
    %p34 = scmp.ne.s32.totalorder %s20, %s21
    %p35 = scmp.eq.s32.totalorder %s13, 7
    %p36 = por %p34, %p35
    %p38 = scmp.ne.s32.totalorder %s21, %s37
    %p39 = scmp.eq.s32.totalorder %s13, 0
    %p40 = por %p38, %p39
    %s41 = ssub.s32 %s7, %s14
    %p42 = scmp.eq.s32.totalorder %s41, 0
    %s44 = sadd.s32 %s43, 1
    %s45 = scalar_select %p42, %s43, %s44
    %p48 = pneg %p42
    %p49 = scmp.eq.s32.totalorder %s7, 7
    %p50 = por %p48, %p49
    %p51 = scmp.ne.s32.totalorder %s43, %s46
    %p52 = scmp.eq.s32.totalorder %s7, 0
    %p53 = por %p51, %p52
    %p54 = scmp.ne.s32.totalorder %s43, %s46
    %p55 = scmp.eq.s32.totalorder %s12, 7
    %p56 = por %p54, %p55
    %p57 = scmp.ne.s32.totalorder %s46, %s47
    %p58 = scmp.eq.s32.totalorder %s12, 0
    %p59 = por %p57, %p58
    %p60 = scmp.ne.s32.totalorder %s46, %s47
    %p61 = scmp.eq.s32.totalorder %s13, 7
    %p62 = por %p60, %p61
    %p64 = scmp.ne.s32.totalorder %s47, %s63
    %p65 = scmp.eq.s32.totalorder %s13, 0
    %p66 = por %p64, %p65
    %p67 = scmp.le.s32.totalorder 1, %s7
    %p68 = scmp.lt.s32.totalorder %s7, 9
    %p69 = pnand %p67, %p68
    %p70 = pneg %p69
    // Predicated region
    $region9: #{conv3d_model_forward.9} parent=5 // pred_check
      _
    $region10: #{conv3d_model_forward.9} parent=5 // pred_check_branch
      %72 = sbr.rel (%p69) target = $region12
    $region11: #{conv3d_model_forward.9} parent=5 // pred_region
      %s73 = ssub.s32 %s7, 1
    $region12: #{conv3d_model_forward.9} parent=5 // pred_fallthru
      _
    %p74 = scmp.lt.s32.totalorder %s7, 8
    // Predicated region
    $region13: #{conv3d_model_forward.9} parent=5 // pred_check
      %p75 = pneg %p74
    $region14: #{conv3d_model_forward.9} parent=5 // pred_check_branch
      %77 = sbr.rel (%p75) target = $region16
    $region15: #{conv3d_model_forward.9} parent=5 // pred_region
      // Predicated region
      $region17: #{conv3d_model_forward.9} parent=15 // pred_check
        %p78 = pneg %p27
      $region18: #{conv3d_model_forward.9} parent=15 // pred_check_branch
        %80 = sbr.rel (%p78) target = $region20
      $region19: #{conv3d_model_forward.9} parent=15 // pred_region
        %p81 = scmp.lt.s32.totalorder %s7, 7
        %s82 = scalar_select %p81, %s7, 7
        %s83 = smul.addr %s82, 8
        %s84 = smul.addr %s83, 8
        %s85 = scalar_lea.vmem %s0, %s84
      $region20: #{conv3d_model_forward.9} parent=15 // pred_fallthru
        _
    $region16: #{conv3d_model_forward.9} parent=5 // pred_fallthru
      _
    %p86 = scmp.le.s32.totalorder 1, %s7
    %p87 = scmp.lt.s32.totalorder %s7, 9
    %p88 = pnand %p86, %p87
    %p89 = pneg %p88
    // Predicated region
    $region21: #{conv3d_model_forward.9} parent=5 // pred_check
      _
    $region22: #{conv3d_model_forward.9} parent=5 // pred_check_branch
      %91 = sbr.rel (%p88) target = $region24
    $region23: #{conv3d_model_forward.9} parent=5 // pred_region
      %s92 = ssub.s32 %s7, 1
      %p93 = scmp.lt.s32.totalorder %s12, 7
      %s94 = scalar_select %p93, %s12, 7
      %s95 = smul.addr %s94, 8
      %s96 = smul.addr %s95, 8
      %s97 = scalar_lea.vmem %s0, %s96
      %p98 = pneg %p33
      %p99 = pneg %p30
      %p100 = pneg %p59
      %p101 = pneg %p56
      %p102 = scmp.lt.s32.totalorder %s12, 7
      %s103 = scalar_select %p102, %s12, 7
      %s104 = smul.addr %s103, 4
      %s105 = smul.addr %s104, 4
      %s106 = scalar_lea.vmem %s1, %s105
      %p107 = scmp.lt.s32.totalorder %s12, 7
      %s108 = scalar_select %p107, %s12, 7
      %s109 = smul.addr %s108, 8
      %s110 = smul.addr %s109, 8
      %s111 = scalar_lea.vmem %s0, %s110
      %p112 = scmp.lt.s32.totalorder %s12, 7
      %s113 = scalar_select %p112, %s12, 7
      %s114 = smul.addr %s113, 4
      %s115 = smul.addr %s114, 4
      %s116 = scalar_lea.vmem %s1, %s115
      %v117 = vld [vmem:[%s111] sm:$0xff]
      %v118 = vld [vmem:[%s111 + $0x8] sm:$0xff]
      %v119 = vld [vmem:[%s111 + $0x10] sm:$0xff]
      %v120 = vld [vmem:[%s111 + $0x18] sm:$0xff]
      %v121 = vld [vmem:[%s111 + $0x20] sm:$0xff]
      %v122 = vld [vmem:[%s111 + $0x28] sm:$0xff]
      %v123 = vld [vmem:[%s111 + $0x30] sm:$0xff]
      %v124 = vld [vmem:[%s111 + $0x38] sm:$0xff]
      %v125 = vmax.f32 %v117, %v121
      %v126 = vmax.f32 %v118, %v122
      %v127 = vmax.f32 %v119, %v123
      %v128 = vmax.f32 %v120, %v124
      %v133 = vrot.slane %v125, 4
      %v134 = vrot.slane %v126, 4
      %v135 = vrot.slane %v127, 4
      %v136 = vrot.slane %v128, 4
      %v141 = vmax.f32 %v125, %v133
      %v142 = vmax.f32 %v126, %v134
      %v143 = vmax.f32 %v127, %v135
      %v144 = vmax.f32 %v128, %v136
      %149 = vrot.lane.b32.xlu0 %v141, 96
      %v150 = vpop.permute.xlu0 %149
      %151 = vrot.lane.b32.xlu0 %v142, 96
      %v152 = vpop.permute.xlu0 %151
      %153 = vrot.lane.b32.xlu0 %v143, 96
      %v154 = vpop.permute.xlu0 %153
      %155 = vrot.lane.b32.xlu0 %v144, 96
      %v156 = vpop.permute.xlu0 %155
      %v161 = vmax.f32 %v141, %v150
      %v162 = vmax.f32 %v142, %v152
      %v163 = vmax.f32 %v143, %v154
      %v164 = vmax.f32 %v144, %v156
      %vm165 = vcmask 257024
      %166 = vst.msk [vmem:[%s116] sm:$0xf] %vm165, %v161
      %167 = vst.msk [vmem:[%s116 + $0x4] sm:$0xf] %vm165, %v162
      %168 = vst.msk [vmem:[%s116 + $0x8] sm:$0xf] %vm165, %v163
      %169 = vst.msk [vmem:[%s116 + $0xc] sm:$0xf] %vm165, %v164
      %p170 = scmp.lt.s32.totalorder %s12, 7
      %s171 = scalar_select %p170, %s12, 7
      %s172 = smul.addr %s171, 4
      %s173 = smul.addr %s172, 4
      %s174 = scalar_lea.vmem %s1, %s173
      // Predicated region
      $region25: #{conv3d_model_forward.9} parent=23 // pred_check
        %p175 = pneg %p56
      $region26: #{conv3d_model_forward.9} parent=23 // pred_check_branch
        %177 = sbr.rel (%p175) target = $region28
      $region27: #{conv3d_model_forward.9} parent=23 // pred_region
        _
      $region28: #{conv3d_model_forward.9} parent=23 // pred_fallthru
        _
    $region24: #{conv3d_model_forward.9} parent=5 // pred_fallthru
      _
    %p178 = scmp.le.s32.totalorder 2, %s7
    // Predicated region
    $region29: #{conv3d_model_forward.9} parent=5 // pred_check
      %p179 = pneg %p178
    $region30: #{conv3d_model_forward.9} parent=5 // pred_check_branch
      %181 = sbr.rel (%p179) target = $region32
    $region31: #{conv3d_model_forward.9} parent=5 // pred_region
      %s182 = ssub.s32 %s7, 2
      // Predicated region
      $region33: #{conv3d_model_forward.9} parent=31 // pred_check
        %p183 = pneg %p62
      $region34: #{conv3d_model_forward.9} parent=31 // pred_check_branch
        %185 = sbr.rel (%p183) target = $region36
      $region35: #{conv3d_model_forward.9} parent=31 // pred_region
        %p186 = scmp.lt.s32.totalorder %s13, 7
        %s187 = scalar_select %p186, %s13, 7
        %s188 = smul.addr %s187, 4
        %s189 = smul.addr %s188, 4
        %s190 = scalar_lea.vmem %s1, %s189
      $region36: #{conv3d_model_forward.9} parent=31 // pred_fallthru
        _
    $region32: #{conv3d_model_forward.9} parent=5 // pred_fallthru
      _
  $region6: #{conv3d_model_forward.9} parent=0 // loop_footer
    %s11 = sadd.s32 1, %s7
  $region7: #{conv3d_model_forward.9} parent=0 // loop_footer_branch
    %6 = sbr.rel target = $region3
  $region8: #{conv3d_model_forward.9} parent=0 // loop_exit
    _

// kernel: conv3d_model_forward.8
$region0: #{conv3d_model_forward.8}
  #allocation0 [shape = 'u32[]', space=smem, size = 0x4, offset = 0x4, fixed_abs, tag = 'smem constant byte address 0x4 - core index']
  #allocation1 [shape = 'u32[144,128]{1,0:T(1,128)}', space=vmem, size = 0x12000, scoped, tag = 'internal scratch']
  %s0 = inlined_call_operand.vmem [shape: bf16[1024,27], index: 0, kind: input, shape index: {}]
  %s1 = inlined_call_operand.vmem [shape: bf16[27,32], index: 1, kind: input, shape index: {}]
  %s2 = inlined_call_operand.vmem [shape: f32[1,32], index: 2, kind: input, shape index: {}]
  %s3 = inlined_call_operand.vmem [shape: f32[1024,32], index: 3, kind: output, shape index: {}]
  %s4 = sld [smem:[#allocation0]]
  $region45: #{conv3d_model_forward.8} parent=0
    _
  %s6 = ssub.s32 1, %s4
  %s7 = scalar_select 0, %s6, %s4
  loop: start=0, step=1, limit=6
  $region2: #{conv3d_model_forward.8} parent=0 // loop_pre_header
    _
  $region3: #{conv3d_model_forward.8} parent=0 // loop_header
    %s9 = sphi 0, %s13
    %p10 = scmp.ge.s32.totalorder %s9, 6
    %s19 = sphi 0, %s21
    %s22 = sphi 0, %s19
    %s23 = sphi 0, %s22
    %s39 = sphi 0, %s23
    %s43 = sphi 0, %s43
    %s45 = sphi 0, %s43
    %s46 = sphi 0, %s45
    %s60 = sphi 0, %s46
    %s64 = sphi 0, %s64
    %s66 = sphi 0, %s64
    %s67 = sphi 0, %s66
    %s81 = sphi 0, %s67
    %s87 = sphi 0, %s89
    %s90 = sphi 0, %s87
    %s91 = sphi 0, %s90
    %s107 = sphi 0, %s91
  $region4: #{conv3d_model_forward.8} parent=0 // loop_header_branch
    %12 = sbr.rel (%p10) target = $region8
  $region5: #{conv3d_model_forward.8} parent=0 // loop_body
    %s14 = ssub.s32 %s9, 1
    %s15 = ssub.s32 %s9, 2
    %s16 = sadd.s32 %s9, 1
    %s17 = ssub.s32 %s9, %s16
    %p18 = scmp.eq.s32.totalorder %s17, 0
    %s20 = sadd.s32 %s19, 1
    %s21 = scalar_select %p18, %s19, %s20
    %p24 = pneg %p18
    %p25 = scmp.eq.s32.totalorder %s9, 3
    %p26 = por %p24, %p25
    %p27 = scmp.ne.s32.totalorder %s19, %s22
    %p28 = scmp.eq.s32.totalorder %s9, 0
    %p29 = por %p27, %p28
    %p30 = scmp.ne.s32.totalorder %s19, %s22
    %p31 = scmp.eq.s32.totalorder %s14, 3
    %p32 = por %p30, %p31
    %p33 = scmp.ne.s32.totalorder %s22, %s23
    %p34 = scmp.eq.s32.totalorder %s14, 0
    %p35 = por %p33, %p34
    %p36 = scmp.ne.s32.totalorder %s22, %s23
    %p37 = scmp.eq.s32.totalorder %s15, 3
    %p38 = por %p36, %p37
    %p40 = scmp.ne.s32.totalorder %s23, %s39
    %p41 = scmp.eq.s32.totalorder %s15, 0
    %p42 = por %p40, %p41
    %s44 = sadd.s32 %s43, 1
    %p47 = scmp.eq.s32.totalorder %s9, 3
    %p48 = scmp.ne.s32.totalorder %s43, %s45
    %p49 = scmp.eq.s32.totalorder %s9, 0
    %p50 = por %p48, %p49
    %p51 = scmp.ne.s32.totalorder %s43, %s45
    %p52 = scmp.eq.s32.totalorder %s14, 3
    %p53 = por %p51, %p52
    %p54 = scmp.ne.s32.totalorder %s45, %s46
    %p55 = scmp.eq.s32.totalorder %s14, 0
    %p56 = por %p54, %p55
    %p57 = scmp.ne.s32.totalorder %s45, %s46
    %p58 = scmp.eq.s32.totalorder %s15, 3
    %p59 = por %p57, %p58
    %p61 = scmp.ne.s32.totalorder %s46, %s60
    %p62 = scmp.eq.s32.totalorder %s15, 0
    %p63 = por %p61, %p62
    %s65 = sadd.s32 %s64, 1
    %p68 = scmp.eq.s32.totalorder %s9, 3
    %p69 = scmp.ne.s32.totalorder %s64, %s66
    %p70 = scmp.eq.s32.totalorder %s9, 0
    %p71 = por %p69, %p70
    %p72 = scmp.ne.s32.totalorder %s64, %s66
    %p73 = scmp.eq.s32.totalorder %s14, 3
    %p74 = por %p72, %p73
    %p75 = scmp.ne.s32.totalorder %s66, %s67
    %p76 = scmp.eq.s32.totalorder %s14, 0
    %p77 = por %p75, %p76
    %p78 = scmp.ne.s32.totalorder %s66, %s67
    %p79 = scmp.eq.s32.totalorder %s15, 3
    %p80 = por %p78, %p79
    %p82 = scmp.ne.s32.totalorder %s67, %s81
    %p83 = scmp.eq.s32.totalorder %s15, 0
    %p84 = por %p82, %p83
    %s85 = ssub.s32 %s9, %s16
    %p86 = scmp.eq.s32.totalorder %s85, 0
    %s88 = sadd.s32 %s87, 1
    %s89 = scalar_select %p86, %s87, %s88
    %p92 = pneg %p86
    %p93 = scmp.eq.s32.totalorder %s9, 3
    %p94 = por %p92, %p93
    %p95 = scmp.ne.s32.totalorder %s87, %s90
    %p96 = scmp.eq.s32.totalorder %s9, 0
    %p97 = por %p95, %p96
    %p98 = scmp.ne.s32.totalorder %s87, %s90
    %p99 = scmp.eq.s32.totalorder %s14, 3
    %p100 = por %p98, %p99
    %p101 = scmp.ne.s32.totalorder %s90, %s91
    %p102 = scmp.eq.s32.totalorder %s14, 0
    %p103 = por %p101, %p102
    %p104 = scmp.ne.s32.totalorder %s90, %s91
    %p105 = scmp.eq.s32.totalorder %s15, 3
    %p106 = por %p104, %p105
    %p108 = scmp.ne.s32.totalorder %s91, %s107
    %p109 = scmp.eq.s32.totalorder %s15, 0
    %p110 = por %p108, %p109
    %p111 = scmp.le.s32.totalorder 1, %s9
    %p112 = scmp.lt.s32.totalorder %s9, 5
    %p113 = pnand %p111, %p112
    %p114 = pneg %p113
    // Predicated region
    $region9: #{conv3d_model_forward.8} parent=5 // pred_check
      _
    $region10: #{conv3d_model_forward.8} parent=5 // pred_check_branch
      %116 = sbr.rel (%p113) target = $region12
    $region11: #{conv3d_model_forward.8} parent=5 // pred_region
      %s117 = ssub.s32 %s9, 1
      // Predicated region
      $region13: #{conv3d_model_forward.8} parent=11 // pred_check
        %p118 = pneg %p56
      $region14: #{conv3d_model_forward.8} parent=11 // pred_check_branch
        %120 = sbr.rel (%p118) target = $region16
      $region15: #{conv3d_model_forward.8} parent=11 // pred_region
        _
      $region16: #{conv3d_model_forward.8} parent=11 // pred_fallthru
        _
      // Predicated region
      $region17: #{conv3d_model_forward.8} parent=11 // pred_check
        %p121 = pneg %p77
      $region18: #{conv3d_model_forward.8} parent=11 // pred_check_branch
        %123 = sbr.rel (%p121) target = $region20
      $region19: #{conv3d_model_forward.8} parent=11 // pred_region
        _
      $region20: #{conv3d_model_forward.8} parent=11 // pred_fallthru
        _
    $region12: #{conv3d_model_forward.8} parent=5 // pred_fallthru
      _
    %p124 = scmp.lt.s32.totalorder %s9, 4
    // Predicated region
    $region21: #{conv3d_model_forward.8} parent=5 // pred_check
      %p125 = pneg %p124
    $region22: #{conv3d_model_forward.8} parent=5 // pred_check_branch
      %127 = sbr.rel (%p125) target = $region24
    $region23: #{conv3d_model_forward.8} parent=5 // pred_region
      // Predicated region
      $region25: #{conv3d_model_forward.8} parent=23 // pred_check
        %p128 = pneg %p29
      $region26: #{conv3d_model_forward.8} parent=23 // pred_check_branch
        %130 = sbr.rel (%p128) target = $region28
      $region27: #{conv3d_model_forward.8} parent=23 // pred_region
        %s131 = smul.u32 32, %s9
        %p132 = scmp.lt.s32.totalorder %s131, 127
        %s133 = scalar_select %p132, %s131, 127
        %s134 = smul.addr %s133, 4
        %s135 = scalar_lea.vmem %s0, %s134
        %s136 = smul.u32 32, %s9
      $region28: #{conv3d_model_forward.8} parent=23 // pred_fallthru
        _
    $region24: #{conv3d_model_forward.8} parent=5 // pred_fallthru
      _
    %p137 = scmp.le.s32.totalorder 1, %s9
    %p138 = scmp.lt.s32.totalorder %s9, 5
    %p139 = pnand %p137, %p138
    %p140 = pneg %p139
    // Predicated region
    $region29: #{conv3d_model_forward.8} parent=5 // pred_check
      _
    $region30: #{conv3d_model_forward.8} parent=5 // pred_check_branch
      %142 = sbr.rel (%p139) target = $region32
    $region31: #{conv3d_model_forward.8} parent=5 // pred_region
      %s143 = ssub.s32 %s9, 1
      %s144 = smul.u32 32, %s14
      %p145 = scmp.lt.s32.totalorder %s144, 127
      %s146 = scalar_select %p145, %s144, 127
      %s147 = smul.addr %s146, 4
      %s148 = scalar_lea.vmem %s0, %s147
      %p149 = pneg %p35
      %p150 = pneg %p32
      %p151 = pneg %p56
      %p152 = pneg %p53
      %p153 = pneg %p77
      %p154 = pneg %p74
      %p155 = pneg %p103
      %p156 = pneg %p100
      %s157 = smul.u32 32, %s14
      %p158 = scmp.lt.s32.totalorder %s157, 127
      %s159 = scalar_select %p158, %s157, 127
      %s160 = smul.addr %s159, 8
      %s161 = scalar_lea.vmem %s3, %s160
      %s162 = smul.u32 32, %s14
      %p163 = scmp.lt.s32.totalorder %s162, 127
      %s164 = scalar_select %p163, %s162, 127
      %s165 = smul.addr %s164, 4
      %s166 = scalar_lea.vmem %s0, %s165
      %s167 = smul.u32 32, %s14
      %s168 = smul.u32 32, %s14
      %p169 = scmp.lt.s32.totalorder %s168, 127
      %s170 = scalar_select %p169, %s168, 127
      %s171 = smul.addr %s170, 8
      %s172 = scalar_lea.vmem %s3, %s171
      %s173 = smul.u32 32, %s14
      %v175 = vld [vmem:[%s166] sm:$0xf]
      %v176 = vld [vmem:[%s166 + $0x4] sm:$0xf]
      %v177 = vld [vmem:[%s166 + $0x8] sm:$0xf]
      %v178 = vld [vmem:[%s166 + $0xc] sm:$0xf]
      %v179 = vld [vmem:[%s166 + $0x10] sm:$0xf]
      %v180 = vld [vmem:[%s166 + $0x14] sm:$0xf]
      %v181 = vld [vmem:[%s166 + $0x18] sm:$0xf]
      %v182 = vld [vmem:[%s166 + $0x1c] sm:$0xf]
      %v183 = vld [vmem:[%s166 + $0x20] sm:$0xf]
      %v184 = vld [vmem:[%s166 + $0x24] sm:$0xf]
      %v185 = vld [vmem:[%s166 + $0x28] sm:$0xf]
      %v186 = vld [vmem:[%s166 + $0x2c] sm:$0xf]
      %v187 = vld [vmem:[%s166 + $0x30] sm:$0xf]
      %v188 = vld [vmem:[%s166 + $0x34] sm:$0xf]
      %v189 = vld [vmem:[%s166 + $0x38] sm:$0xf]
      %v190 = vld [vmem:[%s166 + $0x3c] sm:$0xf]
      %v191 = vld [vmem:[%s166 + $0x40] sm:$0xf]
      %v192 = vld [vmem:[%s166 + $0x44] sm:$0xf]
      %v193 = vld [vmem:[%s166 + $0x48] sm:$0xf]
      %v194 = vld [vmem:[%s166 + $0x4c] sm:$0xf]
      %v195 = vld [vmem:[%s166 + $0x50] sm:$0xf]
      %v196 = vld [vmem:[%s166 + $0x54] sm:$0xf]
      %v197 = vld [vmem:[%s166 + $0x58] sm:$0xf]
      %v198 = vld [vmem:[%s166 + $0x5c] sm:$0xf]
      %v199 = vld [vmem:[%s166 + $0x60] sm:$0xf]
      %v200 = vld [vmem:[%s166 + $0x64] sm:$0xf]
      %v201 = vld [vmem:[%s166 + $0x68] sm:$0xf]
      %v202 = vld [vmem:[%s166 + $0x6c] sm:$0xf]
      %v203 = vld [vmem:[%s166 + $0x70] sm:$0xf]
      %v204 = vld [vmem:[%s166 + $0x74] sm:$0xf]
      %v205 = vld [vmem:[%s166 + $0x78] sm:$0xf]
      %v206 = vld [vmem:[%s166 + $0x7c] sm:$0xf]
      %v207 = vld [vmem:[%s1] sm:$0xf]
      %v208 = vld [vmem:[%s1 + $0x4] sm:$0xf]
      %v209 = vld [vmem:[%s1 + $0x8] sm:$0xf]
      %v210 = vld [vmem:[%s1 + $0xc] sm:$0x3]
      %v211 = vld [vmem:[%s2] sm:$0x1]
      %v213 = vlaneseq
      %v214 = vshrl.u32 %v213, 7
      %v215 = vsub.s32 0, %v214
      %v216 = vrot.slane %v211, %v215
      %v250 = vunpack.c.l.b16 %v175
      %v251 = vunpack.c.l.b16 %v176
      %v252 = vunpack.c.l.b16 %v177
      %v253 = vunpack.c.l.b16 %v178
      %v254 = vunpack.c.l.b16 %v179
      %v255 = vunpack.c.l.b16 %v180
      %v256 = vunpack.c.l.b16 %v181
      %v257 = vunpack.c.l.b16 %v182
      %v258 = vunpack.c.l.b16 %v183
      %v259 = vunpack.c.l.b16 %v184
      %v260 = vunpack.c.l.b16 %v185
      %v261 = vunpack.c.l.b16 %v186
      %v262 = vunpack.c.l.b16 %v187
      %v263 = vunpack.c.l.b16 %v188
      %v264 = vunpack.c.l.b16 %v189
      %v265 = vunpack.c.l.b16 %v190
      %v266 = vunpack.c.l.b16 %v191
      %v267 = vunpack.c.l.b16 %v192
      %v268 = vunpack.c.l.b16 %v193
      %v269 = vunpack.c.l.b16 %v194
      %v270 = vunpack.c.l.b16 %v195
      %v271 = vunpack.c.l.b16 %v196
      %v272 = vunpack.c.l.b16 %v197
      %v273 = vunpack.c.l.b16 %v198
      %v274 = vunpack.c.l.b16 %v199
      %v275 = vunpack.c.l.b16 %v200
      %v276 = vunpack.c.l.b16 %v201
      %v277 = vunpack.c.l.b16 %v202
      %v278 = vunpack.c.l.b16 %v203
      %v279 = vunpack.c.l.b16 %v204
      %v280 = vunpack.c.l.b16 %v205
      %v281 = vunpack.c.l.b16 %v206
      %v282 = vpack.c.b16 %v251, %v250
      %v283 = vpack.c.b16 %v253, %v252
      %v284 = vpack.c.b16 %v255, %v254
      %v285 = vpack.c.b16 %v257, %v256
      %v286 = vpack.c.b16 %v259, %v258
      %v287 = vpack.c.b16 %v261, %v260
      %v288 = vpack.c.b16 %v263, %v262
      %v289 = vpack.c.b16 %v265, %v264
      %v290 = vpack.c.b16 %v267, %v266
      %v291 = vpack.c.b16 %v269, %v268
      %v292 = vpack.c.b16 %v271, %v270
      %v293 = vpack.c.b16 %v273, %v272
      %v294 = vpack.c.b16 %v275, %v274
      %v295 = vpack.c.b16 %v277, %v276
      %v296 = vpack.c.b16 %v279, %v278
      %v297 = vpack.c.b16 %v281, %v280
      %v302 = vunpack.c.l.b16 %v207
      %v303 = vunpack.c.l.b16 %v208
      %v304 = vunpack.c.l.b16 %v209
      %v305 = vunpack.c.l.b16 %v210
      %v306 = vpack.c.b16 %v303, %v302
      %v307 = vpack.c.b16 %v305, %v304
      %vm309 = vcmask 220160
      %v311 = vsel %vm309, %v282, 0
      %v314 = vsel %vm309, %v283, 0
      %v317 = vsel %vm309, %v284, 0
      %v320 = vsel %vm309, %v285, 0
      %v323 = vsel %vm309, %v286, 0
      %v326 = vsel %vm309, %v287, 0
      %v329 = vsel %vm309, %v288, 0
      %v332 = vsel %vm309, %v289, 0
      %v335 = vsel %vm309, %v290, 0
      %v338 = vsel %vm309, %v291, 0
      %v341 = vsel %vm309, %v292, 0
      %v344 = vsel %vm309, %v293, 0
      %v347 = vsel %vm309, %v294, 0
      %v350 = vsel %vm309, %v295, 0
      %v353 = vsel %vm309, %v296, 0
      %v356 = vsel %vm309, %v297, 0
      %vm358 = vcmask 1044480
      %vm359 = vcmask 1045504
      %v360 = vsel %vm358, 4294967295, 65535
      %v361 = vsel %vm359, %v360, 0
      %v363 = vand.u32 %v307, %v361
      %365 = vmatprep.subr.bf16.mxu0 0
      %366 = vmatpush1.bf16.msra.mxu0 %v306
      %367 = vmatprep.subr.bf16.mxu0 0
      %368 = vmatpush1.bf16.msra.mxu0 %v363
      %369 = vmatprep.subr.bf16.mxu0 0
      %370 = vmatpush1.bf16.msra.mxu0 0
      %371 = vmatprep.subr.bf16.mxu0 0
      %372 = vmatpush1.bf16.msra.mxu0 0
      %373 = vmatprep.subr.bf16.mxu0 0
      %374 = vmatpush1.bf16.msra.mxu0 0
      %375 = vmatprep.subr.bf16.mxu0 0
      %376 = vmatpush1.bf16.msra.mxu0 0
      %377 = vmatprep.subr.bf16.mxu0 0
      %378 = vmatpush1.bf16.msra.mxu0 0
      %379 = vmatprep.subr.bf16.mxu0 0
      %380 = vmatpush1.bf16.msra.mxu0 0
      %381 = vmatprep.subr.bf16.mxu0 0
      %382 = vmatpush1.bf16.msra.mxu0 0
      %383 = vmatprep.subr.bf16.mxu0 0
      %384 = vmatpush1.bf16.msra.mxu0 0
      %385 = vmatprep.subr.bf16.mxu0 0
      %386 = vmatpush1.bf16.msra.mxu0 0
      %387 = vmatprep.subr.bf16.mxu0 0
      %388 = vmatpush1.bf16.msra.mxu0 0
      %389 = vmatprep.subr.bf16.mxu0 0
      %390 = vmatpush1.bf16.msra.mxu0 0
      %391 = vmatprep.subr.bf16.mxu0 0
      %392 = vmatpush1.bf16.msra.mxu0 0
      %393 = vmatprep.subr.bf16.mxu0 0
      %394 = vmatpush1.bf16.msra.mxu0 0
      %395 = vmatprep.subr.bf16.mxu0 0
      %396 = vmatpush1.bf16.msra.mxu0 0
      %397 = vmatprep.mubr.bf16.mxu0 0
      %398 = vmatmul.mubr.bf16.gmra.mrb[0].mxu0 %v311
      %v399 = vpop.f32.mrb[0].mxu0
      %v400 = vadd.f32 %v216, %v399
      %v401 = vpop.f32.mrb[0].mxu0
      %v402 = vpop.f32.mrb[0].mxu0
      %v403 = vadd.f32 %v216, %v402
      %v404 = vpop.f32.mrb[0].mxu0
      %405 = vmatprep.mubr.bf16.mxu0 0
      %406 = vmatmul.mubr.bf16.gmra.mrb[0].mxu0 %v314
      %v407 = vpop.f32.mrb[0].mxu0
      %v408 = vadd.f32 %v216, %v407
      %v409 = vpop.f32.mrb[0].mxu0
      %v410 = vpop.f32.mrb[0].mxu0
      %v411 = vadd.f32 %v216, %v410
      %v412 = vpop.f32.mrb[0].mxu0
      %413 = vmatprep.mubr.bf16.mxu0 0
      %414 = vmatmul.mubr.bf16.gmra.mrb[0].mxu0 %v317
      %v415 = vpop.f32.mrb[0].mxu0
      %v416 = vadd.f32 %v216, %v415
      %v417 = vpop.f32.mrb[0].mxu0
      %v418 = vpop.f32.mrb[0].mxu0
      %v419 = vadd.f32 %v216, %v418
      %v420 = vpop.f32.mrb[0].mxu0
      %421 = vmatprep.mubr.bf16.mxu0 0
      %422 = vmatmul.mubr.bf16.gmra.mrb[0].mxu0 %v320
      %v423 = vpop.f32.mrb[0].mxu0
      %v424 = vadd.f32 %v216, %v423
      %v425 = vpop.f32.mrb[0].mxu0
      %v426 = vpop.f32.mrb[0].mxu0
      %v427 = vadd.f32 %v216, %v426
      %v428 = vpop.f32.mrb[0].mxu0
      %429 = vmatprep.mubr.bf16.mxu0 0
      %430 = vmatmul.mubr.bf16.gmra.mrb[0].mxu0 %v323
      %v431 = vpop.f32.mrb[0].mxu0
      %v432 = vadd.f32 %v216, %v431
      %v433 = vpop.f32.mrb[0].mxu0
      %v434 = vpop.f32.mrb[0].mxu0
      %v435 = vadd.f32 %v216, %v434
      %v436 = vpop.f32.mrb[0].mxu0
      %437 = vmatprep.mubr.bf16.mxu0 0
      %438 = vmatmul.mubr.bf16.gmra.mrb[0].mxu0 %v326
      %v439 = vpop.f32.mrb[0].mxu0
      %v440 = vadd.f32 %v216, %v439
      %v441 = vpop.f32.mrb[0].mxu0
      %v442 = vpop.f32.mrb[0].mxu0
      %v443 = vadd.f32 %v216, %v442
      %v444 = vpop.f32.mrb[0].mxu0
      %445 = vmatprep.mubr.bf16.mxu0 0
      %446 = vmatmul.mubr.bf16.gmra.mrb[0].mxu0 %v329
      %v447 = vpop.f32.mrb[0].mxu0
      %v448 = vadd.f32 %v216, %v447
      %v449 = vpop.f32.mrb[0].mxu0
      %v450 = vpop.f32.mrb[0].mxu0
      %v451 = vadd.f32 %v216, %v450
      %v452 = vpop.f32.mrb[0].mxu0
      %453 = vmatprep.mubr.bf16.mxu0 0
      %454 = vmatmul.mubr.bf16.gmra.mrb[0].mxu0 %v332
      %v455 = vpop.f32.mrb[0].mxu0
      %v456 = vadd.f32 %v216, %v455
      %v457 = vpop.f32.mrb[0].mxu0
      %v458 = vpop.f32.mrb[0].mxu0
      %v459 = vadd.f32 %v216, %v458
      %v460 = vpop.f32.mrb[0].mxu0
      %461 = vmatprep.mubr.bf16.mxu0 0
      %462 = vmatmul.mubr.bf16.gmra.mrb[0].mxu0 %v335
      %v463 = vpop.f32.mrb[0].mxu0
      %v464 = vadd.f32 %v216, %v463
      %v465 = vpop.f32.mrb[0].mxu0
      %v466 = vpop.f32.mrb[0].mxu0
      %v467 = vadd.f32 %v216, %v466
      %v468 = vpop.f32.mrb[0].mxu0
      %469 = vmatprep.mubr.bf16.mxu0 0
      %470 = vmatmul.mubr.bf16.gmra.mrb[0].mxu0 %v338
      %v471 = vpop.f32.mrb[0].mxu0
      %v472 = vadd.f32 %v216, %v471
      %v473 = vpop.f32.mrb[0].mxu0
      %v474 = vpop.f32.mrb[0].mxu0
      %v475 = vadd.f32 %v216, %v474
      %v476 = vpop.f32.mrb[0].mxu0
      %477 = vmatprep.mubr.bf16.mxu0 0
      %478 = vmatmul.mubr.bf16.gmra.mrb[0].mxu0 %v341
      %v479 = vpop.f32.mrb[0].mxu0
      %v480 = vadd.f32 %v216, %v479
      %v481 = vpop.f32.mrb[0].mxu0
      %v482 = vpop.f32.mrb[0].mxu0
      %v483 = vadd.f32 %v216, %v482
      %v484 = vpop.f32.mrb[0].mxu0
      %485 = vmatprep.mubr.bf16.mxu0 0
      %486 = vmatmul.mubr.bf16.gmra.mrb[0].mxu0 %v344
      %v487 = vpop.f32.mrb[0].mxu0
      %v488 = vadd.f32 %v216, %v487
      %v489 = vpop.f32.mrb[0].mxu0
      %v490 = vpop.f32.mrb[0].mxu0
      %v491 = vadd.f32 %v216, %v490
      %v492 = vpop.f32.mrb[0].mxu0
      %493 = vmatprep.mubr.bf16.mxu0 0
      %494 = vmatmul.mubr.bf16.gmra.mrb[0].mxu0 %v347
      %v495 = vpop.f32.mrb[0].mxu0
      %v496 = vadd.f32 %v216, %v495
      %v497 = vpop.f32.mrb[0].mxu0
      %v498 = vpop.f32.mrb[0].mxu0
      %v499 = vadd.f32 %v216, %v498
      %v500 = vpop.f32.mrb[0].mxu0
      %501 = vmatprep.mubr.bf16.mxu0 0
      %502 = vmatmul.mubr.bf16.gmra.mrb[0].mxu0 %v350
      %v503 = vpop.f32.mrb[0].mxu0
      %v504 = vadd.f32 %v216, %v503
      %v505 = vpop.f32.mrb[0].mxu0
      %v506 = vpop.f32.mrb[0].mxu0
      %v507 = vadd.f32 %v216, %v506
      %v508 = vpop.f32.mrb[0].mxu0
      %509 = vmatprep.mubr.bf16.mxu0 0
      %510 = vmatmul.mubr.bf16.gmra.mrb[0].mxu0 %v353
      %v511 = vpop.f32.mrb[0].mxu0
      %v512 = vadd.f32 %v216, %v511
      %v513 = vpop.f32.mrb[0].mxu0
      %v514 = vpop.f32.mrb[0].mxu0
      %v515 = vadd.f32 %v216, %v514
      %v516 = vpop.f32.mrb[0].mxu0
      %517 = vmatprep.mubr.bf16.mxu0 0
      %518 = vmatmul.mubr.bf16.gmra.mrb[0].mxu0 %v356
      %v519 = vpop.f32.mrb[0].mxu0
      %v520 = vadd.f32 %v216, %v519
      %v521 = vpop.f32.mrb[0].mxu0
      %v522 = vpop.f32.mrb[0].mxu0
      %v523 = vadd.f32 %v216, %v522
      %v524 = vpop.f32.mrb[0].mxu0
      %525 = vdwg.mxu0
      %v526 = vmax.f32 %v400, 0.0
      %v527 = vmax.f32 %v403, 0.0
      %v528 = vmax.f32 %v408, 0.0
      %v529 = vmax.f32 %v411, 0.0
      %v530 = vmax.f32 %v416, 0.0
      %v531 = vmax.f32 %v419, 0.0
      %v532 = vmax.f32 %v424, 0.0
      %v533 = vmax.f32 %v427, 0.0
      %v534 = vmax.f32 %v432, 0.0
      %v535 = vmax.f32 %v435, 0.0
      %v536 = vmax.f32 %v440, 0.0
      %v537 = vmax.f32 %v443, 0.0
      %v538 = vmax.f32 %v448, 0.0
      %v539 = vmax.f32 %v451, 0.0
      %v540 = vmax.f32 %v456, 0.0
      %v541 = vmax.f32 %v459, 0.0
      %v542 = vmax.f32 %v464, 0.0
      %v543 = vmax.f32 %v467, 0.0
      %v544 = vmax.f32 %v472, 0.0
      %v545 = vmax.f32 %v475, 0.0
      %v546 = vmax.f32 %v480, 0.0
      %v547 = vmax.f32 %v483, 0.0
      %v548 = vmax.f32 %v488, 0.0
      %v549 = vmax.f32 %v491, 0.0
      %v550 = vmax.f32 %v496, 0.0
      %v551 = vmax.f32 %v499, 0.0
      %v552 = vmax.f32 %v504, 0.0
      %v553 = vmax.f32 %v507, 0.0
      %v554 = vmax.f32 %v512, 0.0
      %v555 = vmax.f32 %v515, 0.0
      %v556 = vmax.f32 %v520, 0.0
      %v557 = vmax.f32 %v523, 0.0
      %vm558 = vcmask 261120
      %559 = vst.msk [vmem:[%s172] sm:$0xff] %vm558, %v526
      %560 = vst.msk [vmem:[%s172 + $0x8] sm:$0xff] %vm558, %v527
      %561 = vst.msk [vmem:[%s172 + $0x10] sm:$0xff] %vm558, %v528
      %562 = vst.msk [vmem:[%s172 + $0x18] sm:$0xff] %vm558, %v529
      %563 = vst.msk [vmem:[%s172 + $0x20] sm:$0xff] %vm558, %v530
      %564 = vst.msk [vmem:[%s172 + $0x28] sm:$0xff] %vm558, %v531
      %565 = vst.msk [vmem:[%s172 + $0x30] sm:$0xff] %vm558, %v532
      %566 = vst.msk [vmem:[%s172 + $0x38] sm:$0xff] %vm558, %v533
      %567 = vst.msk [vmem:[%s172 + $0x40] sm:$0xff] %vm558, %v534
      %568 = vst.msk [vmem:[%s172 + $0x48] sm:$0xff] %vm558, %v535
      %569 = vst.msk [vmem:[%s172 + $0x50] sm:$0xff] %vm558, %v536
      %570 = vst.msk [vmem:[%s172 + $0x58] sm:$0xff] %vm558, %v537
      %571 = vst.msk [vmem:[%s172 + $0x60] sm:$0xff] %vm558, %v538
      %572 = vst.msk [vmem:[%s172 + $0x68] sm:$0xff] %vm558, %v539
      %573 = vst.msk [vmem:[%s172 + $0x70] sm:$0xff] %vm558, %v540
      %574 = vst.msk [vmem:[%s172 + $0x78] sm:$0xff] %vm558, %v541
      %575 = vst.msk [vmem:[%s172 + $0x80] sm:$0xff] %vm558, %v542
      %576 = vst.msk [vmem:[%s172 + $0x88] sm:$0xff] %vm558, %v543
      %577 = vst.msk [vmem:[%s172 + $0x90] sm:$0xff] %vm558, %v544
      %578 = vst.msk [vmem:[%s172 + $0x98] sm:$0xff] %vm558, %v545
      %579 = vst.msk [vmem:[%s172 + $0xa0] sm:$0xff] %vm558, %v546
      %580 = vst.msk [vmem:[%s172 + $0xa8] sm:$0xff] %vm558, %v547
      %581 = vst.msk [vmem:[%s172 + $0xb0] sm:$0xff] %vm558, %v548
      %582 = vst.msk [vmem:[%s172 + $0xb8] sm:$0xff] %vm558, %v549
      %583 = vst.msk [vmem:[%s172 + $0xc0] sm:$0xff] %vm558, %v550
      %584 = vst.msk [vmem:[%s172 + $0xc8] sm:$0xff] %vm558, %v551
      %585 = vst.msk [vmem:[%s172 + $0xd0] sm:$0xff] %vm558, %v552
      %586 = vst.msk [vmem:[%s172 + $0xd8] sm:$0xff] %vm558, %v553
      %587 = vst.msk [vmem:[%s172 + $0xe0] sm:$0xff] %vm558, %v554
      %588 = vst.msk [vmem:[%s172 + $0xe8] sm:$0xff] %vm558, %v555
      %589 = vst.msk [vmem:[%s172 + $0xf0] sm:$0xff] %vm558, %v556
      %590 = vst.msk [vmem:[%s172 + $0xf8] sm:$0xff] %vm558, %v557
      %s591 = smul.u32 32, %s14
      %p592 = scmp.lt.s32.totalorder %s591, 127
      %s593 = scalar_select %p592, %s591, 127
      %s594 = smul.addr %s593, 8
      %s595 = scalar_lea.vmem %s3, %s594
      // Predicated region
      $region33: #{conv3d_model_forward.8} parent=31 // pred_check
        %p596 = pneg %p100
      $region34: #{conv3d_model_forward.8} parent=31 // pred_check_branch
        %598 = sbr.rel (%p596) target = $region36
      $region35: #{conv3d_model_forward.8} parent=31 // pred_region
        %s599 = smul.u32 32, %s14
      $region36: #{conv3d_model_forward.8} parent=31 // pred_fallthru
        _
    $region32: #{conv3d_model_forward.8} parent=5 // pred_fallthru
      _
    %p600 = scmp.le.s32.totalorder 2, %s9
    // Predicated region
    $region37: #{conv3d_model_forward.8} parent=5 // pred_check
      %p601 = pneg %p600
    $region38: #{conv3d_model_forward.8} parent=5 // pred_check_branch
      %603 = sbr.rel (%p601) target = $region40
    $region39: #{conv3d_model_forward.8} parent=5 // pred_region
      %s604 = ssub.s32 %s9, 2
      // Predicated region
      $region41: #{conv3d_model_forward.8} parent=39 // pred_check
        %p605 = pneg %p106
      $region42: #{conv3d_model_forward.8} parent=39 // pred_check_branch
        %607 = sbr.rel (%p605) target = $region44
      $region43: #{conv3d_model_forward.8} parent=39 // pred_region
        %s608 = smul.u32 32, %s15
        %p609 = scmp.lt.s32.totalorder %s608, 127
        %s610 = scalar_select %p609, %s608, 127
        %s611 = smul.addr %s610, 8
        %s612 = scalar_lea.vmem %s3, %s611
      $region44: #{conv3d_model_forward.8} parent=39 // pred_fallthru
        _
    $region40: #{conv3d_model_forward.8} parent=5 // pred_fallthru
      _
  $region6: #{conv3d_model_forward.8} parent=0 // loop_footer
    %s13 = sadd.s32 1, %s9
  $region7: #{conv3d_model_forward.8} parent=0 // loop_footer_branch
    %8 = sbr.rel target = $region3
  $region8: #{conv3d_model_forward.8} parent=0 // loop_exit
    _

// kernel: conv3d_model_forward.11
$region0: #{conv3d_model_forward.11}
  #allocation0 [shape = 'u32[]', space=smem, size = 0x4, offset = 0x4, fixed_abs, tag = 'smem constant byte address 0x4 - core index']
  #allocation1 [shape = 'u32[144,128]{1,0:T(1,128)}', space=vmem, size = 0x12000, scoped, tag = 'internal scratch']
  %s0 = inlined_call_operand.vmem [shape: f32[4,4,4,128], index: 0, kind: input, shape index: {}]
  %s1 = inlined_call_operand.vmem [shape: f32[4,2,2,64], index: 1, kind: output, shape index: {}]
  %s2 = sld [smem:[#allocation0]]
  $region37: #{conv3d_model_forward.11} parent=0
    _
  %s4 = ssub.s32 1, %s2
  %s5 = scalar_select 0, %s4, %s2
  loop: start=0, step=1, limit=6
  $region2: #{conv3d_model_forward.11} parent=0 // loop_pre_header
    _
  $region3: #{conv3d_model_forward.11} parent=0 // loop_header
    %s7 = sphi 0, %s11
    %p8 = scmp.ge.s32.totalorder %s7, 6
    %s17 = sphi 0, %s19
    %s20 = sphi 0, %s17
    %s21 = sphi 0, %s20
    %s37 = sphi 0, %s21
    %s43 = sphi 0, %s45
    %s46 = sphi 0, %s43
    %s47 = sphi 0, %s46
    %s63 = sphi 0, %s47
  $region4: #{conv3d_model_forward.11} parent=0 // loop_header_branch
    %10 = sbr.rel (%p8) target = $region8
  $region5: #{conv3d_model_forward.11} parent=0 // loop_body
    %s12 = ssub.s32 %s7, 1
    %s13 = ssub.s32 %s7, 2
    %s14 = sadd.s32 %s7, 1
    %s15 = ssub.s32 %s7, %s14
    %p16 = scmp.eq.s32.totalorder %s15, 0
    %s18 = sadd.s32 %s17, 1
    %s19 = scalar_select %p16, %s17, %s18
    %p22 = pneg %p16
    %p23 = scmp.eq.s32.totalorder %s7, 3
    %p24 = por %p22, %p23
    %p25 = scmp.ne.s32.totalorder %s17, %s20
    %p26 = scmp.eq.s32.totalorder %s7, 0
    %p27 = por %p25, %p26
    %p28 = scmp.ne.s32.totalorder %s17, %s20
    %p29 = scmp.eq.s32.totalorder %s12, 3
    %p30 = por %p28, %p29
    %p31 = scmp.ne.s32.totalorder %s20, %s21
    %p32 = scmp.eq.s32.totalorder %s12, 0
    %p33 = por %p31, %p32
    %p34 = scmp.ne.s32.totalorder %s20, %s21
    %p35 = scmp.eq.s32.totalorder %s13, 3
    %p36 = por %p34, %p35
    %p38 = scmp.ne.s32.totalorder %s21, %s37
    %p39 = scmp.eq.s32.totalorder %s13, 0
    %p40 = por %p38, %p39
    %s41 = ssub.s32 %s7, %s14
    %p42 = scmp.eq.s32.totalorder %s41, 0
    %s44 = sadd.s32 %s43, 1
    %s45 = scalar_select %p42, %s43, %s44
    %p48 = pneg %p42
    %p49 = scmp.eq.s32.totalorder %s7, 3
    %p50 = por %p48, %p49
    %p51 = scmp.ne.s32.totalorder %s43, %s46
    %p52 = scmp.eq.s32.totalorder %s7, 0
    %p53 = por %p51, %p52
    %p54 = scmp.ne.s32.totalorder %s43, %s46
    %p55 = scmp.eq.s32.totalorder %s12, 3
    %p56 = por %p54, %p55
    %p57 = scmp.ne.s32.totalorder %s46, %s47
    %p58 = scmp.eq.s32.totalorder %s12, 0
    %p59 = por %p57, %p58
    %p60 = scmp.ne.s32.totalorder %s46, %s47
    %p61 = scmp.eq.s32.totalorder %s13, 3
    %p62 = por %p60, %p61
    %p64 = scmp.ne.s32.totalorder %s47, %s63
    %p65 = scmp.eq.s32.totalorder %s13, 0
    %p66 = por %p64, %p65
    %p67 = scmp.le.s32.totalorder 1, %s7
    %p68 = scmp.lt.s32.totalorder %s7, 5
    %p69 = pnand %p67, %p68
    %p70 = pneg %p69
    // Predicated region
    $region9: #{conv3d_model_forward.11} parent=5 // pred_check
      _
    $region10: #{conv3d_model_forward.11} parent=5 // pred_check_branch
      %72 = sbr.rel (%p69) target = $region12
    $region11: #{conv3d_model_forward.11} parent=5 // pred_region
      %s73 = ssub.s32 %s7, 1
    $region12: #{conv3d_model_forward.11} parent=5 // pred_fallthru
      _
    %p74 = scmp.lt.s32.totalorder %s7, 4
    // Predicated region
    $region13: #{conv3d_model_forward.11} parent=5 // pred_check
      %p75 = pneg %p74
    $region14: #{conv3d_model_forward.11} parent=5 // pred_check_branch
      %77 = sbr.rel (%p75) target = $region16
    $region15: #{conv3d_model_forward.11} parent=5 // pred_region
      // Predicated region
      $region17: #{conv3d_model_forward.11} parent=15 // pred_check
        %p78 = pneg %p27
      $region18: #{conv3d_model_forward.11} parent=15 // pred_check_branch
        %80 = sbr.rel (%p78) target = $region20
      $region19: #{conv3d_model_forward.11} parent=15 // pred_region
        %p81 = scmp.lt.s32.totalorder %s7, 3
        %s82 = scalar_select %p81, %s7, 3
        %s83 = smul.addr %s82, 4
        %s84 = smul.addr %s83, 4
        %s85 = scalar_lea.vmem %s0, %s84
      $region20: #{conv3d_model_forward.11} parent=15 // pred_fallthru
        _
    $region16: #{conv3d_model_forward.11} parent=5 // pred_fallthru
      _
    %p86 = scmp.le.s32.totalorder 1, %s7
    %p87 = scmp.lt.s32.totalorder %s7, 5
    %p88 = pnand %p86, %p87
    %p89 = pneg %p88
    // Predicated region
    $region21: #{conv3d_model_forward.11} parent=5 // pred_check
      _
    $region22: #{conv3d_model_forward.11} parent=5 // pred_check_branch
      %91 = sbr.rel (%p88) target = $region24
    $region23: #{conv3d_model_forward.11} parent=5 // pred_region
      %s92 = ssub.s32 %s7, 1
      %p93 = scmp.lt.s32.totalorder %s12, 3
      %s94 = scalar_select %p93, %s12, 3
      %s95 = smul.addr %s94, 4
      %s96 = smul.addr %s95, 4
      %s97 = scalar_lea.vmem %s0, %s96
      %p98 = pneg %p33
      %p99 = pneg %p30
      %p100 = pneg %p59
      %p101 = pneg %p56
      %p102 = scmp.lt.s32.totalorder %s12, 3
      %s103 = scalar_select %p102, %s12, 3
      %s104 = smul.addr %s103, 2
      %s105 = smul.addr %s104, 2
      %s106 = scalar_lea.vmem %s1, %s105
      %p107 = scmp.lt.s32.totalorder %s12, 3
      %s108 = scalar_select %p107, %s12, 3
      %s109 = smul.addr %s108, 4
      %s110 = smul.addr %s109, 4
      %s111 = scalar_lea.vmem %s0, %s110
      %p112 = scmp.lt.s32.totalorder %s12, 3
      %s113 = scalar_select %p112, %s12, 3
      %s114 = smul.addr %s113, 2
      %s115 = smul.addr %s114, 2
      %s116 = scalar_lea.vmem %s1, %s115
      %v117 = vld [vmem:[%s111] sm:$0xf]
      %v118 = vld [vmem:[%s111 + $0x4] sm:$0xf]
      %v119 = vld [vmem:[%s111 + $0x8] sm:$0xf]
      %v120 = vld [vmem:[%s111 + $0xc] sm:$0xf]
      %v121 = vmax.f32 %v117, %v119
      %v122 = vmax.f32 %v118, %v120
      %v125 = vrot.slane %v121, 2
      %v126 = vrot.slane %v122, 2
      %v129 = vmax.f32 %v121, %v125
      %v130 = vmax.f32 %v122, %v126
      %133 = vrot.lane.b32.xlu0 %v129, 64
      %v134 = vpop.permute.xlu0 %133
      %135 = vrot.lane.b32.xlu0 %v130, 64
      %v136 = vpop.permute.xlu0 %135
      %v139 = vmax.f32 %v129, %v134
      %v140 = vmax.f32 %v130, %v136
      %vm141 = vcmask 517120
      %142 = vst.msk [vmem:[%s116] sm:$0x3] %vm141, %v139
      %143 = vst.msk [vmem:[%s116 + $0x2] sm:$0x3] %vm141, %v140
      %p144 = scmp.lt.s32.totalorder %s12, 3
      %s145 = scalar_select %p144, %s12, 3
      %s146 = smul.addr %s145, 2
      %s147 = smul.addr %s146, 2
      %s148 = scalar_lea.vmem %s1, %s147
      // Predicated region
      $region25: #{conv3d_model_forward.11} parent=23 // pred_check
        %p149 = pneg %p56
      $region26: #{conv3d_model_forward.11} parent=23 // pred_check_branch
        %151 = sbr.rel (%p149) target = $region28
      $region27: #{conv3d_model_forward.11} parent=23 // pred_region
        _
      $region28: #{conv3d_model_forward.11} parent=23 // pred_fallthru
        _
    $region24: #{conv3d_model_forward.11} parent=5 // pred_fallthru
      _
    %p152 = scmp.le.s32.totalorder 2, %s7
    // Predicated region
    $region29: #{conv3d_model_forward.11} parent=5 // pred_check
      %p153 = pneg %p152
    $region30: #{conv3d_model_forward.11} parent=5 // pred_check_branch
      %155 = sbr.rel (%p153) target = $region32
    $region31: #{conv3d_model_forward.11} parent=5 // pred_region
      %s156 = ssub.s32 %s7, 2
      // Predicated region
      $region33: #{conv3d_model_forward.11} parent=31 // pred_check
        %p157 = pneg %p62
      $region34: #{conv3d_model_forward.11} parent=31 // pred_check_branch
        %159 = sbr.rel (%p157) target = $region36
      $region35: #{conv3d_model_forward.11} parent=31 // pred_region
        %p160 = scmp.lt.s32.totalorder %s13, 3
        %s161 = scalar_select %p160, %s13, 3
        %s162 = smul.addr %s161, 2
        %s163 = smul.addr %s162, 2
        %s164 = scalar_lea.vmem %s1, %s163
      $region36: #{conv3d_model_forward.11} parent=31 // pred_fallthru
        _
    $region32: #{conv3d_model_forward.11} parent=5 // pred_fallthru
      _
  $region6: #{conv3d_model_forward.11} parent=0 // loop_footer
    %s11 = sadd.s32 1, %s7
  $region7: #{conv3d_model_forward.11} parent=0 // loop_footer_branch
    %6 = sbr.rel target = $region3
  $region8: #{conv3d_model_forward.11} parent=0 // loop_exit
    _

// kernel: conv3d_model_forward.13
$region0: #{conv3d_model_forward.13}
  #allocation0 [shape = 'u32[]', space=smem, size = 0x4, offset = 0x4, fixed_abs, tag = 'smem constant byte address 0x4 - core index']
  #allocation1 [shape = 'u32[144,128]{1,0:T(1,128)}', space=vmem, size = 0x12000, scoped, tag = 'internal scratch']
  %s0 = inlined_call_operand.vmem [shape: f32[2,2,2,256], index: 0, kind: input, shape index: {}]
  %s1 = inlined_call_operand.vmem [shape: f32[2,1,1,128], index: 1, kind: output, shape index: {}]
  %s2 = sld [smem:[#allocation0]]
  $region37: #{conv3d_model_forward.13} parent=0
    _
  %s4 = ssub.s32 1, %s2
  %s5 = scalar_select 0, %s4, %s2
  loop: start=0, step=1, limit=4
  $region2: #{conv3d_model_forward.13} parent=0 // loop_pre_header
    _
  $region3: #{conv3d_model_forward.13} parent=0 // loop_header
    %s7 = sphi 0, %s11
    %p8 = scmp.ge.s32.totalorder %s7, 4
    %s17 = sphi 0, %s19
    %s20 = sphi 0, %s17
    %s21 = sphi 0, %s20
    %s37 = sphi 0, %s21
    %s43 = sphi 0, %s45
    %s46 = sphi 0, %s43
    %s47 = sphi 0, %s46
    %s63 = sphi 0, %s47
  $region4: #{conv3d_model_forward.13} parent=0 // loop_header_branch
    %10 = sbr.rel (%p8) target = $region8
  $region5: #{conv3d_model_forward.13} parent=0 // loop_body
    %s12 = ssub.s32 %s7, 1
    %s13 = ssub.s32 %s7, 2
    %s14 = sadd.s32 %s7, 1
    %s15 = ssub.s32 %s7, %s14
    %p16 = scmp.eq.s32.totalorder %s15, 0
    %s18 = sadd.s32 %s17, 1
    %s19 = scalar_select %p16, %s17, %s18
    %p22 = pneg %p16
    %p23 = scmp.eq.s32.totalorder %s7, 1
    %p24 = por %p22, %p23
    %p25 = scmp.ne.s32.totalorder %s17, %s20
    %p26 = scmp.eq.s32.totalorder %s7, 0
    %p27 = por %p25, %p26
    %p28 = scmp.ne.s32.totalorder %s17, %s20
    %p29 = scmp.eq.s32.totalorder %s12, 1
    %p30 = por %p28, %p29
    %p31 = scmp.ne.s32.totalorder %s20, %s21
    %p32 = scmp.eq.s32.totalorder %s12, 0
    %p33 = por %p31, %p32
    %p34 = scmp.ne.s32.totalorder %s20, %s21
    %p35 = scmp.eq.s32.totalorder %s13, 1
    %p36 = por %p34, %p35
    %p38 = scmp.ne.s32.totalorder %s21, %s37
    %p39 = scmp.eq.s32.totalorder %s13, 0
    %p40 = por %p38, %p39
    %s41 = ssub.s32 %s7, %s14
    %p42 = scmp.eq.s32.totalorder %s41, 0
    %s44 = sadd.s32 %s43, 1
    %s45 = scalar_select %p42, %s43, %s44
    %p48 = pneg %p42
    %p49 = scmp.eq.s32.totalorder %s7, 1
    %p50 = por %p48, %p49
    %p51 = scmp.ne.s32.totalorder %s43, %s46
    %p52 = scmp.eq.s32.totalorder %s7, 0
    %p53 = por %p51, %p52
    %p54 = scmp.ne.s32.totalorder %s43, %s46
    %p55 = scmp.eq.s32.totalorder %s12, 1
    %p56 = por %p54, %p55
    %p57 = scmp.ne.s32.totalorder %s46, %s47
    %p58 = scmp.eq.s32.totalorder %s12, 0
    %p59 = por %p57, %p58
    %p60 = scmp.ne.s32.totalorder %s46, %s47
    %p61 = scmp.eq.s32.totalorder %s13, 1
    %p62 = por %p60, %p61
    %p64 = scmp.ne.s32.totalorder %s47, %s63
    %p65 = scmp.eq.s32.totalorder %s13, 0
    %p66 = por %p64, %p65
    %p67 = scmp.le.s32.totalorder 1, %s7
    %p68 = scmp.lt.s32.totalorder %s7, 3
    %p69 = pnand %p67, %p68
    %p70 = pneg %p69
    // Predicated region
    $region9: #{conv3d_model_forward.13} parent=5 // pred_check
      _
    $region10: #{conv3d_model_forward.13} parent=5 // pred_check_branch
      %72 = sbr.rel (%p69) target = $region12
    $region11: #{conv3d_model_forward.13} parent=5 // pred_region
      %s73 = ssub.s32 %s7, 1
    $region12: #{conv3d_model_forward.13} parent=5 // pred_fallthru
      _
    %p74 = scmp.lt.s32.totalorder %s7, 2
    // Predicated region
    $region13: #{conv3d_model_forward.13} parent=5 // pred_check
      %p75 = pneg %p74
    $region14: #{conv3d_model_forward.13} parent=5 // pred_check_branch
      %77 = sbr.rel (%p75) target = $region16
    $region15: #{conv3d_model_forward.13} parent=5 // pred_region
      // Predicated region
      $region17: #{conv3d_model_forward.13} parent=15 // pred_check
        %p78 = pneg %p27
      $region18: #{conv3d_model_forward.13} parent=15 // pred_check_branch
        %80 = sbr.rel (%p78) target = $region20
      $region19: #{conv3d_model_forward.13} parent=15 // pred_region
        %p81 = scmp.lt.s32.totalorder %s7, 1
        %s82 = scalar_select %p81, %s7, 1
        %s83 = smul.addr %s82, 4
        %s84 = smul.addr %s83, 2
        %s85 = scalar_lea.vmem %s0, %s84
      $region20: #{conv3d_model_forward.13} parent=15 // pred_fallthru
        _
    $region16: #{conv3d_model_forward.13} parent=5 // pred_fallthru
      _
    %p86 = scmp.le.s32.totalorder 1, %s7
    %p87 = scmp.lt.s32.totalorder %s7, 3
    %p88 = pnand %p86, %p87
    %p89 = pneg %p88
    // Predicated region
    $region21: #{conv3d_model_forward.13} parent=5 // pred_check
      _
    $region22: #{conv3d_model_forward.13} parent=5 // pred_check_branch
      %91 = sbr.rel (%p88) target = $region24
    $region23: #{conv3d_model_forward.13} parent=5 // pred_region
      %s92 = ssub.s32 %s7, 1
      %p93 = scmp.lt.s32.totalorder %s12, 1
      %s94 = scalar_select %p93, %s12, 1
      %s95 = smul.addr %s94, 4
      %s96 = smul.addr %s95, 2
      %s97 = scalar_lea.vmem %s0, %s96
      %p98 = pneg %p33
      %p99 = pneg %p30
      %p100 = pneg %p59
      %p101 = pneg %p56
      %p102 = scmp.lt.s32.totalorder %s12, 1
      %s103 = scalar_select %p102, %s12, 1
      %s104 = scalar_lea.vmem %s1, %s103
      %p105 = scmp.lt.s32.totalorder %s12, 1
      %s106 = scalar_select %p105, %s12, 1
      %s107 = smul.addr %s106, 4
      %s108 = smul.addr %s107, 2
      %s109 = scalar_lea.vmem %s0, %s108
      %p110 = scmp.lt.s32.totalorder %s12, 1
      %s111 = scalar_select %p110, %s12, 1
      %s112 = scalar_lea.vmem %s1, %s111
      %v113 = vld [vmem:[%s109] sm:$0xf]
      %v114 = vld [vmem:[%s109 + $0x4] sm:$0xf]
      %v115 = vmax.f32 %v113, %v114
      %v117 = vrot.slane %v115, 7
      %v118 = vrot.slane %v117, 2
      %v120 = vmax.f32 %v115, %v118
      %v122 = vrot.slane %v120, 2
      %v124 = vmax.f32 %v120, %v122
      %125 = vst [vmem:[%s112] sm:$0x1] %v124
      %p126 = scmp.lt.s32.totalorder %s12, 1
      %s127 = scalar_select %p126, %s12, 1
      %s128 = scalar_lea.vmem %s1, %s127
      // Predicated region
      $region25: #{conv3d_model_forward.13} parent=23 // pred_check
        %p129 = pneg %p56
      $region26: #{conv3d_model_forward.13} parent=23 // pred_check_branch
        %131 = sbr.rel (%p129) target = $region28
      $region27: #{conv3d_model_forward.13} parent=23 // pred_region
        _
      $region28: #{conv3d_model_forward.13} parent=23 // pred_fallthru
        _
    $region24: #{conv3d_model_forward.13} parent=5 // pred_fallthru
      _
    %p132 = scmp.le.s32.totalorder 2, %s7
    // Predicated region
    $region29: #{conv3d_model_forward.13} parent=5 // pred_check
      %p133 = pneg %p132
    $region30: #{conv3d_model_forward.13} parent=5 // pred_check_branch
      %135 = sbr.rel (%p133) target = $region32
    $region31: #{conv3d_model_forward.13} parent=5 // pred_region
      %s136 = ssub.s32 %s7, 2
      // Predicated region
      $region33: #{conv3d_model_forward.13} parent=31 // pred_check
        %p137 = pneg %p62
      $region34: #{conv3d_model_forward.13} parent=31 // pred_check_branch
        %139 = sbr.rel (%p137) target = $region36
      $region35: #{conv3d_model_forward.13} parent=31 // pred_region
        %p140 = scmp.lt.s32.totalorder %s13, 1
        %s141 = scalar_select %p140, %s13, 1
        %s142 = scalar_lea.vmem %s1, %s141
      $region36: #{conv3d_model_forward.13} parent=31 // pred_fallthru
        _
    $region32: #{conv3d_model_forward.13} parent=5 // pred_fallthru
      _
  $region6: #{conv3d_model_forward.13} parent=0 // loop_footer
    %s11 = sadd.s32 1, %s7
  $region7: #{conv3d_model_forward.13} parent=0 // loop_footer_branch
    %6 = sbr.rel target = $region3
  $region8: #{conv3d_model_forward.13} parent=0 // loop_exit
    _

// kernel: conv3d_model_forward.15
$region0: #{conv3d_model_forward.15}
  #allocation0 [shape = 'u32[]', space=smem, size = 0x4, offset = 0x4, fixed_abs, tag = 'smem constant byte address 0x4 - core index']
  #allocation1 [shape = 'u32[144,128]{1,0:T(1,128)}', space=vmem, size = 0x12000, scoped, tag = 'internal scratch']
  %s0 = inlined_call_operand.vmem [shape: bf16[8,256], index: 0, kind: input, shape index: {}]
  %s1 = inlined_call_operand.vmem [shape: bf16[256,5], index: 1, kind: input, shape index: {}]
  %s2 = inlined_call_operand.vmem [shape: f32[1,5], index: 2, kind: input, shape index: {}]
  %s3 = inlined_call_operand.vmem [shape: f32[8,5], index: 3, kind: output, shape index: {}]
  %s4 = sld [smem:[#allocation0]]
  $region22: #{conv3d_model_forward.15} parent=0
    _
  %s6 = ssub.s32 1, %s4
  %s7 = scalar_select 0, %s6, %s4
  // Predicated region
  $region2: #{conv3d_model_forward.15} parent=0 // pred_check
    _
  $region3: #{conv3d_model_forward.15} parent=0 // pred_check_branch
    %9 = sbr.rel (0) target = $region5
  $region4: #{conv3d_model_forward.15} parent=0 // pred_region
    _
  $region5: #{conv3d_model_forward.15} parent=0 // pred_fallthru
    _
  // Predicated region
  $region6: #{conv3d_model_forward.15} parent=0 // pred_check
    _
  $region7: #{conv3d_model_forward.15} parent=0 // pred_check_branch
    %11 = sbr.rel (0) target = $region9
  $region8: #{conv3d_model_forward.15} parent=0 // pred_region
    _
  $region9: #{conv3d_model_forward.15} parent=0 // pred_fallthru
    _
  // Predicated region
  $region10: #{conv3d_model_forward.15} parent=0 // pred_check
    _
  $region11: #{conv3d_model_forward.15} parent=0 // pred_check_branch
    %13 = sbr.rel (0) target = $region13
  $region12: #{conv3d_model_forward.15} parent=0 // pred_region
    _
  $region13: #{conv3d_model_forward.15} parent=0 // pred_fallthru
    _
  %v15 = vld [vmem:[%s0] sm:$0xff]
  %v16 = vld [vmem:[%s1] sm:$0xf]
  %v17 = vld [vmem:[%s1 + $0x4] sm:$0xf]
  %v18 = vld [vmem:[%s1 + $0x8] sm:$0xf]
  %v19 = vld [vmem:[%s1 + $0xc] sm:$0xf]
  %v20 = vld [vmem:[%s1 + $0x10] sm:$0xf]
  %v21 = vld [vmem:[%s1 + $0x14] sm:$0xf]
  %v22 = vld [vmem:[%s1 + $0x18] sm:$0xf]
  %v23 = vld [vmem:[%s1 + $0x1c] sm:$0xf]
  %v24 = vld [vmem:[%s1 + $0x20] sm:$0xf]
  %v25 = vld [vmem:[%s1 + $0x24] sm:$0xf]
  %v26 = vld [vmem:[%s1 + $0x28] sm:$0xf]
  %v27 = vld [vmem:[%s1 + $0x2c] sm:$0xf]
  %v28 = vld [vmem:[%s1 + $0x30] sm:$0xf]
  %v29 = vld [vmem:[%s1 + $0x34] sm:$0xf]
  %v30 = vld [vmem:[%s1 + $0x38] sm:$0xf]
  %v31 = vld [vmem:[%s1 + $0x3c] sm:$0xf]
  %v32 = vld [vmem:[%s1 + $0x40] sm:$0xf]
  %v33 = vld [vmem:[%s1 + $0x44] sm:$0xf]
  %v34 = vld [vmem:[%s1 + $0x48] sm:$0xf]
  %v35 = vld [vmem:[%s1 + $0x4c] sm:$0xf]
  %v36 = vld [vmem:[%s1 + $0x50] sm:$0xf]
  %v37 = vld [vmem:[%s1 + $0x54] sm:$0xf]
  %v38 = vld [vmem:[%s1 + $0x58] sm:$0xf]
  %v39 = vld [vmem:[%s1 + $0x5c] sm:$0xf]
  %v40 = vld [vmem:[%s1 + $0x60] sm:$0xf]
  %v41 = vld [vmem:[%s1 + $0x64] sm:$0xf]
  %v42 = vld [vmem:[%s1 + $0x68] sm:$0xf]
  %v43 = vld [vmem:[%s1 + $0x6c] sm:$0xf]
  %v44 = vld [vmem:[%s1 + $0x70] sm:$0xf]
  %v45 = vld [vmem:[%s1 + $0x74] sm:$0xf]
  %v46 = vld [vmem:[%s1 + $0x78] sm:$0xf]
  %v47 = vld [vmem:[%s1 + $0x7c] sm:$0xf]
  %v48 = vld [vmem:[%s2] sm:$0x1]
  %v50 = vlaneseq
  %v51 = vshrl.u32 %v50, 7
  %v52 = vsub.s32 0, %v51
  %v53 = vrot.slane %v48, %v52
  %v56 = vunpack.c.l.b16 %v15
  %v57 = vunpack.c.h.b16 %v15
  %v58 = vpack.c.b16 %v56, %v56
  %v59 = vpack.c.b16 %v57, %v57
  %v94 = vunpack.c.l.b16 %v16
  %v95 = vunpack.c.l.b16 %v17
  %v96 = vunpack.c.l.b16 %v18
  %v97 = vunpack.c.l.b16 %v19
  %v98 = vunpack.c.l.b16 %v20
  %v99 = vunpack.c.l.b16 %v21
  %v100 = vunpack.c.l.b16 %v22
  %v101 = vunpack.c.l.b16 %v23
  %v102 = vunpack.c.l.b16 %v24
  %v103 = vunpack.c.l.b16 %v25
  %v104 = vunpack.c.l.b16 %v26
  %v105 = vunpack.c.l.b16 %v27
  %v106 = vunpack.c.l.b16 %v28
  %v107 = vunpack.c.l.b16 %v29
  %v108 = vunpack.c.l.b16 %v30
  %v109 = vunpack.c.l.b16 %v31
  %v110 = vunpack.c.l.b16 %v32
  %v111 = vunpack.c.l.b16 %v33
  %v112 = vunpack.c.l.b16 %v34
  %v113 = vunpack.c.l.b16 %v35
  %v114 = vunpack.c.l.b16 %v36
  %v115 = vunpack.c.l.b16 %v37
  %v116 = vunpack.c.l.b16 %v38
  %v117 = vunpack.c.l.b16 %v39
  %v118 = vunpack.c.l.b16 %v40
  %v119 = vunpack.c.l.b16 %v41
  %v120 = vunpack.c.l.b16 %v42
  %v121 = vunpack.c.l.b16 %v43
  %v122 = vunpack.c.l.b16 %v44
  %v123 = vunpack.c.l.b16 %v45
  %v124 = vunpack.c.l.b16 %v46
  %v125 = vunpack.c.l.b16 %v47
  %v126 = vpack.c.b16 %v95, %v94
  %v127 = vpack.c.b16 %v97, %v96
  %v128 = vpack.c.b16 %v99, %v98
  %v129 = vpack.c.b16 %v101, %v100
  %v130 = vpack.c.b16 %v103, %v102
  %v131 = vpack.c.b16 %v105, %v104
  %v132 = vpack.c.b16 %v107, %v106
  %v133 = vpack.c.b16 %v109, %v108
  %v134 = vpack.c.b16 %v111, %v110
  %v135 = vpack.c.b16 %v113, %v112
  %v136 = vpack.c.b16 %v115, %v114
  %v137 = vpack.c.b16 %v117, %v116
  %v138 = vpack.c.b16 %v119, %v118
  %v139 = vpack.c.b16 %v121, %v120
  %v140 = vpack.c.b16 %v123, %v122
  %v141 = vpack.c.b16 %v125, %v124
  %158 = vmatprep.subr.bf16.mxu0 0
  %159 = vmatpush1.bf16.msra.mxu0 %v126
  %160 = vmatprep.subr.bf16.mxu0 0
  %161 = vmatpush1.bf16.msra.mxu0 %v127
  %162 = vmatprep.subr.bf16.mxu0 0
  %163 = vmatpush1.bf16.msra.mxu0 %v128
  %164 = vmatprep.subr.bf16.mxu0 0
  %165 = vmatpush1.bf16.msra.mxu0 %v129
  %166 = vmatprep.subr.bf16.mxu0 0
  %167 = vmatpush1.bf16.msra.mxu0 %v130
  %168 = vmatprep.subr.bf16.mxu0 0
  %169 = vmatpush1.bf16.msra.mxu0 %v131
  %170 = vmatprep.subr.bf16.mxu0 0
  %171 = vmatpush1.bf16.msra.mxu0 %v132
  %172 = vmatprep.subr.bf16.mxu0 0
  %173 = vmatpush1.bf16.msra.mxu0 %v133
  %174 = vmatprep.subr.bf16.mxu0 0
  %175 = vmatpush1.bf16.msra.mxu0 %v134
  %176 = vmatprep.subr.bf16.mxu0 0
  %177 = vmatpush1.bf16.msra.mxu0 %v135
  %178 = vmatprep.subr.bf16.mxu0 0
  %179 = vmatpush1.bf16.msra.mxu0 %v136
  %180 = vmatprep.subr.bf16.mxu0 0
  %181 = vmatpush1.bf16.msra.mxu0 %v137
  %182 = vmatprep.subr.bf16.mxu0 0
  %183 = vmatpush1.bf16.msra.mxu0 %v138
  %184 = vmatprep.subr.bf16.mxu0 0
  %185 = vmatpush1.bf16.msra.mxu0 %v139
  %186 = vmatprep.subr.bf16.mxu0 0
  %187 = vmatpush1.bf16.msra.mxu0 %v140
  %188 = vmatprep.subr.bf16.mxu0 0
  %189 = vmatpush1.bf16.msra.mxu0 %v141
  %190 = vmatprep.mubr.bf16.mxu0 %v59
  %191 = vmatmul.mubr.bf16.gmra.mrb[0].mxu0 %v58
  %v192 = vpop.f32.mrb[0].mxu0
  %v193 = vadd.f32 %v53, %v192
  %v194 = vpop.f32.mrb[0].mxu0
  %v195 = vpop.f32.mrb[0].mxu0
  %v196 = vpop.f32.mrb[0].mxu0
  %197 = vdwg.mxu0
  %vm198 = vcmask 39936
  %199 = vst.msk [vmem:[%s3] sm:$0xff] %vm198, %v193
  // Predicated region
  $region14: #{conv3d_model_forward.15} parent=0 // pred_check
    _
  $region15: #{conv3d_model_forward.15} parent=0 // pred_check_branch
    %201 = sbr.rel (0) target = $region17
  $region16: #{conv3d_model_forward.15} parent=0 // pred_region
    _
  $region17: #{conv3d_model_forward.15} parent=0 // pred_fallthru
    _
  // Predicated region
  $region18: #{conv3d_model_forward.15} parent=0 // pred_check
    _
  $region19: #{conv3d_model_forward.15} parent=0 // pred_check_branch
    %203 = sbr.rel (0) target = $region21
  $region20: #{conv3d_model_forward.15} parent=0 // pred_region
    _
  $region21: #{conv3d_model_forward.15} parent=0 // pred_fallthru
    _

// kernel: conv3d_model_forward.14
$region0: #{conv3d_model_forward.14}
  #allocation0 [shape = 'u32[]', space=smem, size = 0x4, offset = 0x4, fixed_abs, tag = 'smem constant byte address 0x4 - core index']
  #allocation1 [shape = 'u32[144,128]{1,0:T(1,128)}', space=vmem, size = 0x12000, scoped, tag = 'internal scratch']
  %s0 = inlined_call_operand.vmem [shape: bf16[8,128], index: 0, kind: input, shape index: {}]
  %s1 = inlined_call_operand.vmem [shape: bf16[128,256], index: 1, kind: input, shape index: {}]
  %s2 = inlined_call_operand.vmem [shape: f32[1,256], index: 2, kind: input, shape index: {}]
  %s3 = inlined_call_operand.vmem [shape: f32[8,256], index: 3, kind: output, shape index: {}]
  %s4 = sld [smem:[#allocation0]]
  $region22: #{conv3d_model_forward.14} parent=0
    _
  %s6 = ssub.s32 1, %s4
  %s7 = scalar_select 0, %s6, %s4
  // Predicated region
  $region2: #{conv3d_model_forward.14} parent=0 // pred_check
    _
  $region3: #{conv3d_model_forward.14} parent=0 // pred_check_branch
    %9 = sbr.rel (0) target = $region5
  $region4: #{conv3d_model_forward.14} parent=0 // pred_region
    _
  $region5: #{conv3d_model_forward.14} parent=0 // pred_fallthru
    _
  // Predicated region
  $region6: #{conv3d_model_forward.14} parent=0 // pred_check
    _
  $region7: #{conv3d_model_forward.14} parent=0 // pred_check_branch
    %11 = sbr.rel (0) target = $region9
  $region8: #{conv3d_model_forward.14} parent=0 // pred_region
    _
  $region9: #{conv3d_model_forward.14} parent=0 // pred_fallthru
    _
  // Predicated region
  $region10: #{conv3d_model_forward.14} parent=0 // pred_check
    _
  $region11: #{conv3d_model_forward.14} parent=0 // pred_check_branch
    %13 = sbr.rel (0) target = $region13
  $region12: #{conv3d_model_forward.14} parent=0 // pred_region
    _
  $region13: #{conv3d_model_forward.14} parent=0 // pred_fallthru
    _
  %v15 = vld [vmem:[%s0] sm:$0xf]
  %v16 = vld [vmem:[%s1] sm:$0xff]
  %v17 = vld [vmem:[%s1 + $0x8] sm:$0xff]
  %v18 = vld [vmem:[%s1 + $0x10] sm:$0xff]
  %v19 = vld [vmem:[%s1 + $0x18] sm:$0xff]
  %v20 = vld [vmem:[%s1 + $0x20] sm:$0xff]
  %v21 = vld [vmem:[%s1 + $0x28] sm:$0xff]
  %v22 = vld [vmem:[%s1 + $0x30] sm:$0xff]
  %v23 = vld [vmem:[%s1 + $0x38] sm:$0xff]
  %v24 = vld [vmem:[%s1 + $0x40] sm:$0xff]
  %v25 = vld [vmem:[%s1 + $0x48] sm:$0xff]
  %v26 = vld [vmem:[%s1 + $0x50] sm:$0xff]
  %v27 = vld [vmem:[%s1 + $0x58] sm:$0xff]
  %v28 = vld [vmem:[%s1 + $0x60] sm:$0xff]
  %v29 = vld [vmem:[%s1 + $0x68] sm:$0xff]
  %v30 = vld [vmem:[%s1 + $0x70] sm:$0xff]
  %v31 = vld [vmem:[%s1 + $0x78] sm:$0xff]
  %v32 = vld [vmem:[%s2] sm:$0x3]
  %v34 = vlaneseq
  %v35 = vshrl.u32 %v34, 7
  %v36 = vsub.s32 0, %v35
  %v37 = vrot.slane %v32, %v36
  %v38 = vlaneseq
  %v39 = vshrl.u32 %v38, 7
  %v40 = vsub.s32 1, %v39
  %v41 = vrot.slane %v32, %v40
  %v60 = vunpack.c.l.b16 %v16
  %v61 = vunpack.c.h.b16 %v16
  %v62 = vunpack.c.l.b16 %v17
  %v63 = vunpack.c.h.b16 %v17
  %v64 = vunpack.c.l.b16 %v18
  %v65 = vunpack.c.h.b16 %v18
  %v66 = vunpack.c.l.b16 %v19
  %v67 = vunpack.c.h.b16 %v19
  %v68 = vunpack.c.l.b16 %v20
  %v69 = vunpack.c.h.b16 %v20
  %v70 = vunpack.c.l.b16 %v21
  %v71 = vunpack.c.h.b16 %v21
  %v72 = vunpack.c.l.b16 %v22
  %v73 = vunpack.c.h.b16 %v22
  %v74 = vunpack.c.l.b16 %v23
  %v75 = vunpack.c.h.b16 %v23
  %v76 = vunpack.c.l.b16 %v24
  %v77 = vunpack.c.h.b16 %v24
  %v78 = vunpack.c.l.b16 %v25
  %v79 = vunpack.c.h.b16 %v25
  %v80 = vunpack.c.l.b16 %v26
  %v81 = vunpack.c.h.b16 %v26
  %v82 = vunpack.c.l.b16 %v27
  %v83 = vunpack.c.h.b16 %v27
  %v84 = vunpack.c.l.b16 %v28
  %v85 = vunpack.c.h.b16 %v28
  %v86 = vunpack.c.l.b16 %v29
  %v87 = vunpack.c.h.b16 %v29
  %v88 = vunpack.c.l.b16 %v30
  %v89 = vunpack.c.h.b16 %v30
  %v90 = vunpack.c.l.b16 %v31
  %v91 = vunpack.c.h.b16 %v31
  %v92 = vpack.c.b16 %v62, %v60
  %v93 = vpack.c.b16 %v63, %v61
  %v94 = vpack.c.b16 %v66, %v64
  %v95 = vpack.c.b16 %v67, %v65
  %v96 = vpack.c.b16 %v70, %v68
  %v97 = vpack.c.b16 %v71, %v69
  %v98 = vpack.c.b16 %v74, %v72
  %v99 = vpack.c.b16 %v75, %v73
  %v100 = vpack.c.b16 %v78, %v76
  %v101 = vpack.c.b16 %v79, %v77
  %v102 = vpack.c.b16 %v82, %v80
  %v103 = vpack.c.b16 %v83, %v81
  %v104 = vpack.c.b16 %v86, %v84
  %v105 = vpack.c.b16 %v87, %v85
  %v106 = vpack.c.b16 %v90, %v88
  %v107 = vpack.c.b16 %v91, %v89
  %124 = vmatprep.subr.bf16.mxu0 %v93
  %125 = vmatpush1.bf16.msra.mxu0 %v92
  %126 = vmatprep.subr.bf16.mxu0 %v95
  %127 = vmatpush1.bf16.msra.mxu0 %v94
  %128 = vmatprep.subr.bf16.mxu0 %v97
  %129 = vmatpush1.bf16.msra.mxu0 %v96
  %130 = vmatprep.subr.bf16.mxu0 %v99
  %131 = vmatpush1.bf16.msra.mxu0 %v98
  %132 = vmatprep.subr.bf16.mxu0 %v101
  %133 = vmatpush1.bf16.msra.mxu0 %v100
  %134 = vmatprep.subr.bf16.mxu0 %v103
  %135 = vmatpush1.bf16.msra.mxu0 %v102
  %136 = vmatprep.subr.bf16.mxu0 %v105
  %137 = vmatpush1.bf16.msra.mxu0 %v104
  %138 = vmatprep.subr.bf16.mxu0 %v107
  %139 = vmatpush1.bf16.msra.mxu0 %v106
  %140 = vmatprep.subr.bf16.mxu0 0
  %141 = vmatpush1.bf16.msra.mxu0 0
  %142 = vmatprep.subr.bf16.mxu0 0
  %143 = vmatpush1.bf16.msra.mxu0 0
  %144 = vmatprep.subr.bf16.mxu0 0
  %145 = vmatpush1.bf16.msra.mxu0 0
  %146 = vmatprep.subr.bf16.mxu0 0
  %147 = vmatpush1.bf16.msra.mxu0 0
  %148 = vmatprep.subr.bf16.mxu0 0
  %149 = vmatpush1.bf16.msra.mxu0 0
  %150 = vmatprep.subr.bf16.mxu0 0
  %151 = vmatpush1.bf16.msra.mxu0 0
  %152 = vmatprep.subr.bf16.mxu0 0
  %153 = vmatpush1.bf16.msra.mxu0 0
  %154 = vmatprep.subr.bf16.mxu0 0
  %155 = vmatpush1.bf16.msra.mxu0 0
  %156 = vmatprep.mubr.bf16.mxu0 0
  %157 = vmatmul.mubr.bf16.gmra.mrb[0].mxu0 %v15
  %v158 = vpop.f32.mrb[0].mxu0
  %v159 = vadd.f32 %v37, %v158
  %v160 = vpop.f32.mrb[0].mxu0
  %v161 = vadd.f32 %v41, %v160
  %v162 = vpop.f32.mrb[0].mxu0
  %v163 = vpop.f32.mrb[0].mxu0
  %164 = vdwg.mxu0
  %v165 = vmax.f32 %v159, 0.0
  %v166 = vmax.f32 %v161, 0.0
  %167 = vst [vmem:[%s3] sm:$0xff] %v165
  %168 = vst [vmem:[%s3 + $0x8] sm:$0xff] %v166
  // Predicated region
  $region14: #{conv3d_model_forward.14} parent=0 // pred_check
    _
  $region15: #{conv3d_model_forward.14} parent=0 // pred_check_branch
    %170 = sbr.rel (0) target = $region17
  $region16: #{conv3d_model_forward.14} parent=0 // pred_region
    _
  $region17: #{conv3d_model_forward.14} parent=0 // pred_fallthru
    _
  // Predicated region
  $region18: #{conv3d_model_forward.14} parent=0 // pred_check
    _
  $region19: #{conv3d_model_forward.14} parent=0 // pred_check_branch
    %172 = sbr.rel (0) target = $region21
  $region20: #{conv3d_model_forward.14} parent=0 // pred_region
    _
  $region21: #{conv3d_model_forward.14} parent=0 // pred_fallthru
    _

// kernel: conv3d_model_forward.12
$region0: #{conv3d_model_forward.12}
  #allocation0 [shape = 'u32[]', space=smem, size = 0x4, offset = 0x4, fixed_abs, tag = 'smem constant byte address 0x4 - core index']
  #allocation1 [shape = 'u32[144,128]{1,0:T(1,128)}', space=vmem, size = 0x12000, scoped, tag = 'internal scratch']
  #allocation2 [shape = 'bf16[4,1728]{1,0:T(4,128)(2,1)}', space=vmem, size = 0x3800, scoped, tag = 'scratch operand']
  %s0 = inlined_call_operand.vmem [shape: bf16[2,4,4,4,64], index: 0, kind: input, shape index: {}, may-alias: {0,1,2}]
  %s1 = inlined_call_operand.vmem [shape: bf16[2,4,4,4,64], index: 1, kind: input, shape index: {}, may-alias: {0,1,2}]
  %s2 = inlined_call_operand.vmem [shape: bf16[2,4,4,4,64], index: 2, kind: input, shape index: {}, may-alias: {0,1,2}]
  %s3 = inlined_call_operand.vmem [shape: bf16[1728,128], index: 3, kind: input, shape index: {}]
  %s4 = inlined_call_operand.vmem [shape: f32[1,128], index: 4, kind: input, shape index: {}]
  %s5 = inlined_call_operand.vmem [shape: f32[2,2,4,128], index: 5, kind: output, shape index: {}]
  %s6 = sld [smem:[#allocation0]]
  $region53: #{conv3d_model_forward.12} parent=0
    _
  %s8 = ssub.s32 1, %s6
  %s9 = scalar_select 0, %s8, %s6
  loop: start=0, step=1, limit=6
  $region2: #{conv3d_model_forward.12} parent=0 // loop_pre_header
    _
  $region3: #{conv3d_model_forward.12} parent=0 // loop_header
    %s11 = sphi 0, %s15
    %p12 = scmp.ge.s32.totalorder %s11, 6
    %s18 = sphi 0, %s30
    %s19 = sphi 0, %s26
    %s20 = sphi 0, %s18
    %s21 = sphi 0, %s19
    %s22 = sphi 0, %s20
    %s23 = sphi 0, %s21
    %s35 = sphi 0, %s37
    %s38 = sphi 0, %s35
    %s39 = sphi 0, %s38
    %s55 = sphi 0, %s39
    %s65 = sphi 0, %s67
    %s68 = sphi 0, %s65
    %s69 = sphi 0, %s68
    %s85 = sphi 0, %s69
    %s95 = sphi 0, %s97
    %s98 = sphi 0, %s95
    %s99 = sphi 0, %s98
    %s115 = sphi 0, %s99
    %s119 = sphi 0, %s119
    %s121 = sphi 0, %s119
    %s122 = sphi 0, %s121
    %s136 = sphi 0, %s122
    %s140 = sphi 0, %s140
    %s142 = sphi 0, %s140
    %s143 = sphi 0, %s142
    %s157 = sphi 0, %s143
    %s165 = sphi 0, %s167
    %s168 = sphi 0, %s165
    %s169 = sphi 0, %s168
    %s185 = sphi 0, %s169
  $region4: #{conv3d_model_forward.12} parent=0 // loop_header_branch
    %14 = sbr.rel (%p12) target = $region8
  $region5: #{conv3d_model_forward.12} parent=0 // loop_body
    %s16 = ssub.s32 %s11, 1
    %s17 = ssub.s32 %s11, 2
    %s24 = sadd.s32 1, %s19
    %p25 = scmp.ge.s32.totalorder %s24, 2
    %s26 = scalar_select %p25, 0, %s24
    %s27 = sadd.s32 1, %s18
    %s28 = scalar_select %p25, %s27, %s18
    %p29 = scmp.ge.s32.totalorder %s28, 2
    %s30 = scalar_select %p29, 0, %s28
    %s31 = ssub.s32 %s18, %s30
    %s32 = ssub.s32 %s19, %s26
    %s33 = sor.u32 %s31, %s32
    %p34 = scmp.eq.s32.totalorder %s33, 0
    %s36 = sadd.s32 %s35, 1
    %s37 = scalar_select %p34, %s35, %s36
    %p40 = pneg %p34
    %p41 = scmp.eq.s32.totalorder %s11, 3
    %p42 = por %p40, %p41
    %p43 = scmp.ne.s32.totalorder %s35, %s38
    %p44 = scmp.eq.s32.totalorder %s11, 0
    %p45 = por %p43, %p44
    %p46 = scmp.ne.s32.totalorder %s35, %s38
    %p47 = scmp.eq.s32.totalorder %s16, 3
    %p48 = por %p46, %p47
    %p49 = scmp.ne.s32.totalorder %s38, %s39
    %p50 = scmp.eq.s32.totalorder %s16, 0
    %p51 = por %p49, %p50
    %p52 = scmp.ne.s32.totalorder %s38, %s39
    %p53 = scmp.eq.s32.totalorder %s17, 3
    %p54 = por %p52, %p53
    %p56 = scmp.ne.s32.totalorder %s39, %s55
    %p57 = scmp.eq.s32.totalorder %s17, 0
    %p58 = por %p56, %p57
    %s59 = sadd.s32 %s19, 1
    %s60 = sadd.s32 %s26, 1
    %s61 = ssub.s32 %s18, %s30
    %s62 = ssub.s32 %s59, %s60
    %s63 = sor.u32 %s61, %s62
    %p64 = scmp.eq.s32.totalorder %s63, 0
    %s66 = sadd.s32 %s65, 1
    %s67 = scalar_select %p64, %s65, %s66
    %p70 = pneg %p64
    %p71 = scmp.eq.s32.totalorder %s11, 3
    %p72 = por %p70, %p71
    %p73 = scmp.ne.s32.totalorder %s65, %s68
    %p74 = scmp.eq.s32.totalorder %s11, 0
    %p75 = por %p73, %p74
    %p76 = scmp.ne.s32.totalorder %s65, %s68
    %p77 = scmp.eq.s32.totalorder %s16, 3
    %p78 = por %p76, %p77
    %p79 = scmp.ne.s32.totalorder %s68, %s69
    %p80 = scmp.eq.s32.totalorder %s16, 0
    %p81 = por %p79, %p80
    %p82 = scmp.ne.s32.totalorder %s68, %s69
    %p83 = scmp.eq.s32.totalorder %s17, 3
    %p84 = por %p82, %p83
    %p86 = scmp.ne.s32.totalorder %s69, %s85
    %p87 = scmp.eq.s32.totalorder %s17, 0
    %p88 = por %p86, %p87
    %s89 = sadd.s32 %s19, 2
    %s90 = sadd.s32 %s26, 2
    %s91 = ssub.s32 %s18, %s30
    %s92 = ssub.s32 %s89, %s90
    %s93 = sor.u32 %s91, %s92
    %p94 = scmp.eq.s32.totalorder %s93, 0
    %s96 = sadd.s32 %s95, 1
    %s97 = scalar_select %p94, %s95, %s96
    %p100 = pneg %p94
    %p101 = scmp.eq.s32.totalorder %s11, 3
    %p102 = por %p100, %p101
    %p103 = scmp.ne.s32.totalorder %s95, %s98
    %p104 = scmp.eq.s32.totalorder %s11, 0
    %p105 = por %p103, %p104
    %p106 = scmp.ne.s32.totalorder %s95, %s98
    %p107 = scmp.eq.s32.totalorder %s16, 3
    %p108 = por %p106, %p107
    %p109 = scmp.ne.s32.totalorder %s98, %s99
    %p110 = scmp.eq.s32.totalorder %s16, 0
    %p111 = por %p109, %p110
    %p112 = scmp.ne.s32.totalorder %s98, %s99
    %p113 = scmp.eq.s32.totalorder %s17, 3
    %p114 = por %p112, %p113
    %p116 = scmp.ne.s32.totalorder %s99, %s115
    %p117 = scmp.eq.s32.totalorder %s17, 0
    %p118 = por %p116, %p117
    %s120 = sadd.s32 %s119, 1
    %p123 = scmp.eq.s32.totalorder %s11, 3
    %p124 = scmp.ne.s32.totalorder %s119, %s121
    %p125 = scmp.eq.s32.totalorder %s11, 0
    %p126 = por %p124, %p125
    %p127 = scmp.ne.s32.totalorder %s119, %s121
    %p128 = scmp.eq.s32.totalorder %s16, 3
    %p129 = por %p127, %p128
    %p130 = scmp.ne.s32.totalorder %s121, %s122
    %p131 = scmp.eq.s32.totalorder %s16, 0
    %p132 = por %p130, %p131
    %p133 = scmp.ne.s32.totalorder %s121, %s122
    %p134 = scmp.eq.s32.totalorder %s17, 3
    %p135 = por %p133, %p134
    %p137 = scmp.ne.s32.totalorder %s122, %s136
    %p138 = scmp.eq.s32.totalorder %s17, 0
    %p139 = por %p137, %p138
    %s141 = sadd.s32 %s140, 1
    %p144 = scmp.eq.s32.totalorder %s11, 3
    %p145 = scmp.ne.s32.totalorder %s140, %s142
    %p146 = scmp.eq.s32.totalorder %s11, 0
    %p147 = por %p145, %p146
    %p148 = scmp.ne.s32.totalorder %s140, %s142
    %p149 = scmp.eq.s32.totalorder %s16, 3
    %p150 = por %p148, %p149
    %p151 = scmp.ne.s32.totalorder %s142, %s143
    %p152 = scmp.eq.s32.totalorder %s16, 0
    %p153 = por %p151, %p152
    %p154 = scmp.ne.s32.totalorder %s142, %s143
    %p155 = scmp.eq.s32.totalorder %s17, 3
    %p156 = por %p154, %p155
    %p158 = scmp.ne.s32.totalorder %s143, %s157
    %p159 = scmp.eq.s32.totalorder %s17, 0
    %p160 = por %p158, %p159
    %s161 = ssub.s32 %s18, %s30
    %s162 = ssub.s32 %s19, %s26
    %s163 = sor.u32 %s161, %s162
    %p164 = scmp.eq.s32.totalorder %s163, 0
    %s166 = sadd.s32 %s165, 1
    %s167 = scalar_select %p164, %s165, %s166
    %p170 = pneg %p164
    %p171 = scmp.eq.s32.totalorder %s11, 3
    %p172 = por %p170, %p171
    %p173 = scmp.ne.s32.totalorder %s165, %s168
    %p174 = scmp.eq.s32.totalorder %s11, 0
    %p175 = por %p173, %p174
    %p176 = scmp.ne.s32.totalorder %s165, %s168
    %p177 = scmp.eq.s32.totalorder %s16, 3
    %p178 = por %p176, %p177
    %p179 = scmp.ne.s32.totalorder %s168, %s169
    %p180 = scmp.eq.s32.totalorder %s16, 0
    %p181 = por %p179, %p180
    %p182 = scmp.ne.s32.totalorder %s168, %s169
    %p183 = scmp.eq.s32.totalorder %s17, 3
    %p184 = por %p182, %p183
    %p186 = scmp.ne.s32.totalorder %s169, %s185
    %p187 = scmp.eq.s32.totalorder %s17, 0
    %p188 = por %p186, %p187
    %p189 = scmp.le.s32.totalorder 1, %s11
    %p190 = scmp.lt.s32.totalorder %s11, 5
    %p191 = pnand %p189, %p190
    %p192 = pneg %p191
    // Predicated region
    $region9: #{conv3d_model_forward.12} parent=5 // pred_check
      _
    $region10: #{conv3d_model_forward.12} parent=5 // pred_check_branch
      %194 = sbr.rel (%p191) target = $region12
    $region11: #{conv3d_model_forward.12} parent=5 // pred_region
      %s195 = ssub.s32 %s11, 1
      // Predicated region
      $region13: #{conv3d_model_forward.12} parent=11 // pred_check
        %p196 = pneg %p132
      $region14: #{conv3d_model_forward.12} parent=11 // pred_check_branch
        %198 = sbr.rel (%p196) target = $region16
      $region15: #{conv3d_model_forward.12} parent=11 // pred_region
        _
      $region16: #{conv3d_model_forward.12} parent=11 // pred_fallthru
        _
      // Predicated region
      $region17: #{conv3d_model_forward.12} parent=11 // pred_check
        %p199 = pneg %p153
      $region18: #{conv3d_model_forward.12} parent=11 // pred_check_branch
        %201 = sbr.rel (%p199) target = $region20
      $region19: #{conv3d_model_forward.12} parent=11 // pred_region
        _
      $region20: #{conv3d_model_forward.12} parent=11 // pred_fallthru
        _
    $region12: #{conv3d_model_forward.12} parent=5 // pred_fallthru
      _
    %p202 = scmp.lt.s32.totalorder %s11, 4
    // Predicated region
    $region21: #{conv3d_model_forward.12} parent=5 // pred_check
      %p203 = pneg %p202
    $region22: #{conv3d_model_forward.12} parent=5 // pred_check_branch
      %205 = sbr.rel (%p203) target = $region24
    $region23: #{conv3d_model_forward.12} parent=5 // pred_region
      // Predicated region
      $region25: #{conv3d_model_forward.12} parent=23 // pred_check
        %p206 = pneg %p45
      $region26: #{conv3d_model_forward.12} parent=23 // pred_check_branch
        %208 = sbr.rel (%p206) target = $region28
      $region27: #{conv3d_model_forward.12} parent=23 // pred_region
        %p209 = scmp.lt.s32.totalorder %s18, 1
        %s210 = scalar_select %p209, %s18, 1
        %p211 = scmp.lt.s32.totalorder %s19, 3
        %s212 = scalar_select %p211, %s19, 3
        %s213 = smul.addr %s212, 4
        %s214 = smul.addr %s210, 16
        %s215 = sadd.s32 %s213, %s214
        %s216 = smul.addr %s215, 2
        %s217 = scalar_lea.vmem %s0, %s216
      $region28: #{conv3d_model_forward.12} parent=23 // pred_fallthru
        _
      // Predicated region
      $region29: #{conv3d_model_forward.12} parent=23 // pred_check
        %p218 = pneg %p75
      $region30: #{conv3d_model_forward.12} parent=23 // pred_check_branch
        %220 = sbr.rel (%p218) target = $region32
      $region31: #{conv3d_model_forward.12} parent=23 // pred_region
        %s221 = sadd.s32 %s19, 1
        %p222 = scmp.lt.s32.totalorder %s18, 1
        %s223 = scalar_select %p222, %s18, 1
        %p224 = scmp.lt.s32.totalorder %s221, 3
        %s225 = scalar_select %p224, %s221, 3
        %s226 = smul.addr %s225, 4
        %s227 = smul.addr %s223, 16
        %s228 = sadd.s32 %s226, %s227
        %s229 = smul.addr %s228, 2
        %s230 = scalar_lea.vmem %s1, %s229
        %s231 = sadd.s32 %s19, 1
      $region32: #{conv3d_model_forward.12} parent=23 // pred_fallthru
        _
      // Predicated region
      $region33: #{conv3d_model_forward.12} parent=23 // pred_check
        %p232 = pneg %p105
      $region34: #{conv3d_model_forward.12} parent=23 // pred_check_branch
        %234 = sbr.rel (%p232) target = $region36
      $region35: #{conv3d_model_forward.12} parent=23 // pred_region
        %s235 = sadd.s32 %s19, 2
        %p236 = scmp.lt.s32.totalorder %s18, 1
        %s237 = scalar_select %p236, %s18, 1
        %p238 = scmp.lt.s32.totalorder %s235, 3
        %s239 = scalar_select %p238, %s235, 3
        %s240 = smul.addr %s239, 4
        %s241 = smul.addr %s237, 16
        %s242 = sadd.s32 %s240, %s241
        %s243 = smul.addr %s242, 2
        %s244 = scalar_lea.vmem %s2, %s243
        %s245 = sadd.s32 %s19, 2
      $region36: #{conv3d_model_forward.12} parent=23 // pred_fallthru
        _
    $region24: #{conv3d_model_forward.12} parent=5 // pred_fallthru
      _
    %p246 = scmp.le.s32.totalorder 1, %s11
    %p247 = scmp.lt.s32.totalorder %s11, 5
    %p248 = pnand %p246, %p247
    %p249 = pneg %p248
    // Predicated region
    $region37: #{conv3d_model_forward.12} parent=5 // pred_check
      _
    $region38: #{conv3d_model_forward.12} parent=5 // pred_check_branch
      %251 = sbr.rel (%p248) target = $region40
    $region39: #{conv3d_model_forward.12} parent=5 // pred_region
      %s252 = ssub.s32 %s11, 1
      %p253 = scmp.lt.s32.totalorder %s20, 1
      %s254 = scalar_select %p253, %s20, 1
      %p255 = scmp.lt.s32.totalorder %s21, 3
      %s256 = scalar_select %p255, %s21, 3
      %s257 = smul.addr %s256, 4
      %s258 = smul.addr %s254, 16
      %s259 = sadd.s32 %s257, %s258
      %s260 = smul.addr %s259, 2
      %s261 = scalar_lea.vmem %s0, %s260
      %p262 = pneg %p51
      %p263 = pneg %p48
      %s264 = sadd.s32 %s21, 1
      %p265 = scmp.lt.s32.totalorder %s20, 1
      %s266 = scalar_select %p265, %s20, 1
      %p267 = scmp.lt.s32.totalorder %s264, 3
      %s268 = scalar_select %p267, %s264, 3
      %s269 = smul.addr %s268, 4
      %s270 = smul.addr %s266, 16
      %s271 = sadd.s32 %s269, %s270
      %s272 = smul.addr %s271, 2
      %s273 = scalar_lea.vmem %s1, %s272
      %p274 = pneg %p81
      %p275 = pneg %p78
      %s276 = sadd.s32 %s21, 2
      %p277 = scmp.lt.s32.totalorder %s20, 1
      %s278 = scalar_select %p277, %s20, 1
      %p279 = scmp.lt.s32.totalorder %s276, 3
      %s280 = scalar_select %p279, %s276, 3
      %s281 = smul.addr %s280, 4
      %s282 = smul.addr %s278, 16
      %s283 = sadd.s32 %s281, %s282
      %s284 = smul.addr %s283, 2
      %s285 = scalar_lea.vmem %s2, %s284
      %p286 = pneg %p111
      %p287 = pneg %p108
      %p288 = pneg %p132
      %p289 = pneg %p129
      %p290 = pneg %p153
      %p291 = pneg %p150
      %p292 = pneg %p181
      %p293 = pneg %p178
      %p294 = scmp.lt.s32.totalorder %s20, 1
      %s295 = scalar_select %p294, %s20, 1
      %p296 = scmp.lt.s32.totalorder %s21, 1
      %s297 = scalar_select %p296, %s21, 1
      %s298 = smul.addr %s295, 2
      %s299 = sadd.s32 %s297, %s298
      %s300 = smul.addr %s299, 4
      %s301 = scalar_lea.vmem %s5, %s300
      %p302 = scmp.lt.s32.totalorder %s20, 1
      %s303 = scalar_select %p302, %s20, 1
      %p304 = scmp.lt.s32.totalorder %s21, 3
      %s305 = scalar_select %p304, %s21, 3
      %s306 = smul.addr %s305, 4
      %s307 = smul.addr %s303, 16
      %s308 = sadd.s32 %s306, %s307
      %s309 = smul.addr %s308, 2
      %s310 = scalar_lea.vmem %s0, %s309
      %s311 = sadd.s32 %s21, 1
      %p312 = scmp.lt.s32.totalorder %s20, 1
      %s313 = scalar_select %p312, %s20, 1
      %p314 = scmp.lt.s32.totalorder %s311, 3
      %s315 = scalar_select %p314, %s311, 3
      %s316 = smul.addr %s315, 4
      %s317 = smul.addr %s313, 16
      %s318 = sadd.s32 %s316, %s317
      %s319 = smul.addr %s318, 2
      %s320 = scalar_lea.vmem %s1, %s319
      %s321 = sadd.s32 %s21, 1
      %s322 = sadd.s32 %s21, 2
      %p323 = scmp.lt.s32.totalorder %s20, 1
      %s324 = scalar_select %p323, %s20, 1
      %p325 = scmp.lt.s32.totalorder %s322, 3
      %s326 = scalar_select %p325, %s322, 3
      %s327 = smul.addr %s326, 4
      %s328 = smul.addr %s324, 16
      %s329 = sadd.s32 %s327, %s328
      %s330 = smul.addr %s329, 2
      %s331 = scalar_lea.vmem %s2, %s330
      %s332 = sadd.s32 %s21, 2
      %p333 = scmp.lt.s32.totalorder %s20, 1
      %s334 = scalar_select %p333, %s20, 1
      %p335 = scmp.lt.s32.totalorder %s21, 1
      %s336 = scalar_select %p335, %s21, 1
      %s337 = smul.addr %s334, 2
      %s338 = sadd.s32 %s336, %s337
      %s339 = smul.addr %s338, 4
      %s340 = scalar_lea.vmem %s5, %s339
      %v342 = vld [vmem:[%s310] sm:$0x1]
      %vm343 = vcmask 516096
      %344 = vst.msk [vmem:[#allocation2] sm:$0x1] %vm343, %v342
      %s345 = scalar_lea.vmem %s310, 2
      %v346 = vld [vmem:[%s345] sm:$0x1]
      %v348 = vrot.slane %v346, 7
      %vm350 = vcmask 517121
      %351 = vst.msk [vmem:[#allocation2] sm:$0x2] %vm350, %v348
      %v352 = vld [vmem:[%s310] sm:$0x3]
      %v354 = vshrl.u32 %v352, 16
      %v356 = vrot.slane %v354, 6
      %v357 = vshll.u32 %v352, 16
      %v359 = vrot.slane %v357, 7
      %v360 = vor.u32 %v356, %v359
      %v361 = vrot.slane %v360, 2
      %362 = vrot.lane.b32.xlu0 %v361, 64
      %v363 = vpop.permute.xlu0 %362
      %vm365 = vcmask 1040896
      %366 = vst.msk [vmem:[#allocation2] sm:$0x1] %vm365, %v363
      %v367 = vld [vmem:[%s345] sm:$0x3]
      %v369 = vshrl.u32 %v367, 16
      %v371 = vrot.slane %v369, 7
      %v372 = vshll.u32 %v367, 16
      %v374 = vor.u32 %v371, %v372
      %375 = vrot.lane.b32.xlu0 %v374, 64
      %v376 = vpop.permute.xlu0 %375
      %vm378 = vcmask 1041921
      %379 = vst.msk [vmem:[#allocation2] sm:$0x2] %vm378, %v376
      %v380 = vld [vmem:[%s310] sm:$0x2]
      %v382 = vrot.slane %v380, 7
      %v383 = vrot.slane %v382, 2
      %385 = vst.msk [vmem:[#allocation2 + $0x2] sm:$0x1] %vm343, %v383
      %v386 = vld [vmem:[%s345] sm:$0x2]
      %387 = vst.msk [vmem:[#allocation2 + $0x2] sm:$0x2] %vm350, %v386
      %v388 = vld [vmem:[%s345] sm:$0x1]
      %390 = vrot.lane.b32.xlu0 %v388, 64
      %v391 = vpop.permute.xlu0 %390
      %393 = vst.msk [vmem:[#allocation2 + $0x2] sm:$0x1] %vm365, %v391
      %s394 = scalar_lea.vmem %s310, 4
      %v395 = vld [vmem:[%s394] sm:$0x1]
      %v397 = vrot.slane %v395, 7
      %398 = vrot.lane.b32.xlu0 %v397, 64
      %v399 = vpop.permute.xlu0 %398
      %401 = vst.msk [vmem:[#allocation2 + $0x2] sm:$0x2] %vm378, %v399
      %v402 = vld [vmem:[%s345] sm:$0x3]
      %v404 = vshrl.u32 %v402, 16
      %v406 = vrot.slane %v404, 6
      %v407 = vshll.u32 %v402, 16
      %v409 = vrot.slane %v407, 7
      %v410 = vor.u32 %v406, %v409
      %v411 = vrot.slane %v410, 2
      %413 = vst.msk [vmem:[#allocation2 + $0x4] sm:$0x1] %vm343, %v411
      %v414 = vld [vmem:[%s394] sm:$0x3]
      %v416 = vshrl.u32 %v414, 16
      %v418 = vrot.slane %v416, 7
      %v419 = vshll.u32 %v414, 16
      %v421 = vor.u32 %v418, %v419
      %423 = vst.msk [vmem:[#allocation2 + $0x4] sm:$0x2] %vm350, %v421
      %v424 = vld [vmem:[%s345] sm:$0x2]
      %v426 = vrot.slane %v424, 7
      %v427 = vrot.slane %v426, 2
      %428 = vrot.lane.b32.xlu0 %v427, 64
      %v429 = vpop.permute.xlu0 %428
      %431 = vst.msk [vmem:[#allocation2 + $0x4] sm:$0x1] %vm365, %v429
      %v432 = vld [vmem:[%s394] sm:$0x2]
      %434 = vrot.lane.b32.xlu0 %v432, 64
      %v435 = vpop.permute.xlu0 %434
      %437 = vst.msk [vmem:[#allocation2 + $0x4] sm:$0x2] %vm378, %v435
      %v438 = vld [vmem:[%s394] sm:$0x1]
      %439 = vst.msk [vmem:[#allocation2 + $0x6] sm:$0x1] %vm343, %v438
      %s440 = scalar_lea.vmem %s310, 6
      %v441 = vld [vmem:[%s440] sm:$0x1]
      %v443 = vrot.slane %v441, 7
      %445 = vst.msk [vmem:[#allocation2 + $0x6] sm:$0x2] %vm350, %v443
      %v446 = vld [vmem:[%s394] sm:$0x3]
      %v448 = vshrl.u32 %v446, 16
      %v450 = vrot.slane %v448, 6
      %v451 = vshll.u32 %v446, 16
      %v453 = vrot.slane %v451, 7
      %v454 = vor.u32 %v450, %v453
      %v455 = vrot.slane %v454, 2
      %456 = vrot.lane.b32.xlu0 %v455, 64
      %v457 = vpop.permute.xlu0 %456
      %459 = vst.msk [vmem:[#allocation2 + $0x6] sm:$0x1] %vm365, %v457
      %v460 = vld [vmem:[%s440] sm:$0x3]
      %v462 = vshrl.u32 %v460, 16
      %v464 = vrot.slane %v462, 7
      %v465 = vshll.u32 %v460, 16
      %v467 = vor.u32 %v464, %v465
      %468 = vrot.lane.b32.xlu0 %v467, 64
      %v469 = vpop.permute.xlu0 %468
      %471 = vst.msk [vmem:[#allocation2 + $0x6] sm:$0x2] %vm378, %v469
      %v472 = vld [vmem:[%s394] sm:$0x2]
      %v474 = vrot.slane %v472, 7
      %v475 = vrot.slane %v474, 2
      %477 = vst.msk [vmem:[#allocation2 + $0x8] sm:$0x1] %vm343, %v475
      %v478 = vld [vmem:[%s440] sm:$0x2]
      %479 = vst.msk [vmem:[#allocation2 + $0x8] sm:$0x2] %vm350, %v478
      %v480 = vld [vmem:[%s320] sm:$0x1]
      %482 = vrot.lane.b32.xlu0 %v480, 64
      %v483 = vpop.permute.xlu0 %482
      %485 = vst.msk [vmem:[#allocation2 + $0x8] sm:$0x1] %vm365, %v483
      %s486 = scalar_lea.vmem %s320, 2
      %v487 = vld [vmem:[%s486] sm:$0x1]
      %v489 = vrot.slane %v487, 7
      %490 = vrot.lane.b32.xlu0 %v489, 64
      %v491 = vpop.permute.xlu0 %490
      %493 = vst.msk [vmem:[#allocation2 + $0x8] sm:$0x2] %vm378, %v491
      %v494 = vld [vmem:[%s320] sm:$0x3]
      %v496 = vshrl.u32 %v494, 16
      %v498 = vrot.slane %v496, 6
      %v499 = vshll.u32 %v494, 16
      %v501 = vrot.slane %v499, 7
      %v502 = vor.u32 %v498, %v501
      %v503 = vrot.slane %v502, 2
      %505 = vst.msk [vmem:[#allocation2 + $0xa] sm:$0x1] %vm343, %v503
      %v506 = vld [vmem:[%s486] sm:$0x3]
      %v508 = vshrl.u32 %v506, 16
      %v510 = vrot.slane %v508, 7
      %v511 = vshll.u32 %v506, 16
      %v513 = vor.u32 %v510, %v511
      %515 = vst.msk [vmem:[#allocation2 + $0xa] sm:$0x2] %vm350, %v513
      %v516 = vld [vmem:[%s320] sm:$0x2]
      %v518 = vrot.slane %v516, 7
      %v519 = vrot.slane %v518, 2
      %520 = vrot.lane.b32.xlu0 %v519, 64
      %v521 = vpop.permute.xlu0 %520
      %523 = vst.msk [vmem:[#allocation2 + $0xa] sm:$0x1] %vm365, %v521
      %v524 = vld [vmem:[%s486] sm:$0x2]
      %526 = vrot.lane.b32.xlu0 %v524, 64
      %v527 = vpop.permute.xlu0 %526
      %529 = vst.msk [vmem:[#allocation2 + $0xa] sm:$0x2] %vm378, %v527
      %v530 = vld [vmem:[%s486] sm:$0x1]
      %531 = vst.msk [vmem:[#allocation2 + $0xc] sm:$0x1] %vm343, %v530
      %s532 = scalar_lea.vmem %s320, 4
      %v533 = vld [vmem:[%s532] sm:$0x1]
      %v535 = vrot.slane %v533, 7
      %537 = vst.msk [vmem:[#allocation2 + $0xc] sm:$0x2] %vm350, %v535
      %v538 = vld [vmem:[%s486] sm:$0x3]
      %v540 = vshrl.u32 %v538, 16
      %v542 = vrot.slane %v540, 6
      %v543 = vshll.u32 %v538, 16
      %v545 = vrot.slane %v543, 7
      %v546 = vor.u32 %v542, %v545
      %v547 = vrot.slane %v546, 2
      %548 = vrot.lane.b32.xlu0 %v547, 64
      %v549 = vpop.permute.xlu0 %548
      %551 = vst.msk [vmem:[#allocation2 + $0xc] sm:$0x1] %vm365, %v549
      %v552 = vld [vmem:[%s532] sm:$0x3]
      %v554 = vshrl.u32 %v552, 16
      %v556 = vrot.slane %v554, 7
      %v557 = vshll.u32 %v552, 16
      %v559 = vor.u32 %v556, %v557
      %560 = vrot.lane.b32.xlu0 %v559, 64
      %v561 = vpop.permute.xlu0 %560
      %563 = vst.msk [vmem:[#allocation2 + $0xc] sm:$0x2] %vm378, %v561
      %v564 = vld [vmem:[%s486] sm:$0x2]
      %v566 = vrot.slane %v564, 7
      %v567 = vrot.slane %v566, 2
      %569 = vst.msk [vmem:[#allocation2 + $0xe] sm:$0x1] %vm343, %v567
      %v570 = vld [vmem:[%s532] sm:$0x2]
      %571 = vst.msk [vmem:[#allocation2 + $0xe] sm:$0x2] %vm350, %v570
      %v572 = vld [vmem:[%s532] sm:$0x1]
      %574 = vrot.lane.b32.xlu0 %v572, 64
      %v575 = vpop.permute.xlu0 %574
      %577 = vst.msk [vmem:[#allocation2 + $0xe] sm:$0x1] %vm365, %v575
      %s578 = scalar_lea.vmem %s320, 6
      %v579 = vld [vmem:[%s578] sm:$0x1]
      %v581 = vrot.slane %v579, 7
      %582 = vrot.lane.b32.xlu0 %v581, 64
      %v583 = vpop.permute.xlu0 %582
      %585 = vst.msk [vmem:[#allocation2 + $0xe] sm:$0x2] %vm378, %v583
      %v586 = vld [vmem:[%s532] sm:$0x3]
      %v588 = vshrl.u32 %v586, 16
      %v590 = vrot.slane %v588, 6
      %v591 = vshll.u32 %v586, 16
      %v593 = vrot.slane %v591, 7
      %v594 = vor.u32 %v590, %v593
      %v595 = vrot.slane %v594, 2
      %597 = vst.msk [vmem:[#allocation2 + $0x10] sm:$0x1] %vm343, %v595
      %v598 = vld [vmem:[%s578] sm:$0x3]
      %v600 = vshrl.u32 %v598, 16
      %v602 = vrot.slane %v600, 7
      %v603 = vshll.u32 %v598, 16
      %v605 = vor.u32 %v602, %v603
      %607 = vst.msk [vmem:[#allocation2 + $0x10] sm:$0x2] %vm350, %v605
      %v608 = vld [vmem:[%s532] sm:$0x2]
      %v610 = vrot.slane %v608, 7
      %v611 = vrot.slane %v610, 2
      %612 = vrot.lane.b32.xlu0 %v611, 64
      %v613 = vpop.permute.xlu0 %612
      %615 = vst.msk [vmem:[#allocation2 + $0x10] sm:$0x1] %vm365, %v613
      %v616 = vld [vmem:[%s578] sm:$0x2]
      %618 = vrot.lane.b32.xlu0 %v616, 64
      %v619 = vpop.permute.xlu0 %618
      %621 = vst.msk [vmem:[#allocation2 + $0x10] sm:$0x2] %vm378, %v619
      %v622 = vld [vmem:[%s331] sm:$0x1]
      %623 = vst.msk [vmem:[#allocation2 + $0x12] sm:$0x1] %vm343, %v622
      %s624 = scalar_lea.vmem %s331, 2
      %v625 = vld [vmem:[%s624] sm:$0x1]
      %v627 = vrot.slane %v625, 7
      %629 = vst.msk [vmem:[#allocation2 + $0x12] sm:$0x2] %vm350, %v627
      %v630 = vld [vmem:[%s331] sm:$0x3]
      %v632 = vshrl.u32 %v630, 16
      %v634 = vrot.slane %v632, 6
      %v635 = vshll.u32 %v630, 16
      %v637 = vrot.slane %v635, 7
      %v638 = vor.u32 %v634, %v637
      %v639 = vrot.slane %v638, 2
      %640 = vrot.lane.b32.xlu0 %v639, 64
      %v641 = vpop.permute.xlu0 %640
      %643 = vst.msk [vmem:[#allocation2 + $0x12] sm:$0x1] %vm365, %v641
      %v644 = vld [vmem:[%s624] sm:$0x3]
      %v646 = vshrl.u32 %v644, 16
      %v648 = vrot.slane %v646, 7
      %v649 = vshll.u32 %v644, 16
      %v651 = vor.u32 %v648, %v649
      %652 = vrot.lane.b32.xlu0 %v651, 64
      %v653 = vpop.permute.xlu0 %652
      %655 = vst.msk [vmem:[#allocation2 + $0x12] sm:$0x2] %vm378, %v653
      %v656 = vld [vmem:[%s331] sm:$0x2]
      %v658 = vrot.slane %v656, 7
      %v659 = vrot.slane %v658, 2
      %661 = vst.msk [vmem:[#allocation2 + $0x14] sm:$0x1] %vm343, %v659
      %v662 = vld [vmem:[%s624] sm:$0x2]
      %663 = vst.msk [vmem:[#allocation2 + $0x14] sm:$0x2] %vm350, %v662
      %v664 = vld [vmem:[%s624] sm:$0x1]
      %666 = vrot.lane.b32.xlu0 %v664, 64
      %v667 = vpop.permute.xlu0 %666
      %669 = vst.msk [vmem:[#allocation2 + $0x14] sm:$0x1] %vm365, %v667
      %s670 = scalar_lea.vmem %s331, 4
      %v671 = vld [vmem:[%s670] sm:$0x1]
      %v673 = vrot.slane %v671, 7
      %674 = vrot.lane.b32.xlu0 %v673, 64
      %v675 = vpop.permute.xlu0 %674
      %677 = vst.msk [vmem:[#allocation2 + $0x14] sm:$0x2] %vm378, %v675
      %v678 = vld [vmem:[%s624] sm:$0x3]
      %v680 = vshrl.u32 %v678, 16
      %v682 = vrot.slane %v680, 6
      %v683 = vshll.u32 %v678, 16
      %v685 = vrot.slane %v683, 7
      %v686 = vor.u32 %v682, %v685
      %v687 = vrot.slane %v686, 2
      %689 = vst.msk [vmem:[#allocation2 + $0x16] sm:$0x1] %vm343, %v687
      %v690 = vld [vmem:[%s670] sm:$0x3]
      %v692 = vshrl.u32 %v690, 16
      %v694 = vrot.slane %v692, 7
      %v695 = vshll.u32 %v690, 16
      %v697 = vor.u32 %v694, %v695
      %699 = vst.msk [vmem:[#allocation2 + $0x16] sm:$0x2] %vm350, %v697
      %v700 = vld [vmem:[%s624] sm:$0x2]
      %v702 = vrot.slane %v700, 7
      %v703 = vrot.slane %v702, 2
      %704 = vrot.lane.b32.xlu0 %v703, 64
      %v705 = vpop.permute.xlu0 %704
      %707 = vst.msk [vmem:[#allocation2 + $0x16] sm:$0x1] %vm365, %v705
      %v708 = vld [vmem:[%s670] sm:$0x2]
      %710 = vrot.lane.b32.xlu0 %v708, 64
      %v711 = vpop.permute.xlu0 %710
      %713 = vst.msk [vmem:[#allocation2 + $0x16] sm:$0x2] %vm378, %v711
      %v714 = vld [vmem:[%s670] sm:$0x1]
      %715 = vst.msk [vmem:[#allocation2 + $0x18] sm:$0x1] %vm343, %v714
      %s716 = scalar_lea.vmem %s331, 6
      %v717 = vld [vmem:[%s716] sm:$0x1]
      %v719 = vrot.slane %v717, 7
      %721 = vst.msk [vmem:[#allocation2 + $0x18] sm:$0x2] %vm350, %v719
      %v722 = vld [vmem:[%s670] sm:$0x3]
      %v724 = vshrl.u32 %v722, 16
      %v726 = vrot.slane %v724, 6
      %v727 = vshll.u32 %v722, 16
      %v729 = vrot.slane %v727, 7
      %v730 = vor.u32 %v726, %v729
      %v731 = vrot.slane %v730, 2
      %732 = vrot.lane.b32.xlu0 %v731, 64
      %v733 = vpop.permute.xlu0 %732
      %735 = vst.msk [vmem:[#allocation2 + $0x18] sm:$0x1] %vm365, %v733
      %v736 = vld [vmem:[%s716] sm:$0x3]
      %v738 = vshrl.u32 %v736, 16
      %v740 = vrot.slane %v738, 7
      %v741 = vshll.u32 %v736, 16
      %v743 = vor.u32 %v740, %v741
      %744 = vrot.lane.b32.xlu0 %v743, 64
      %v745 = vpop.permute.xlu0 %744
      %747 = vst.msk [vmem:[#allocation2 + $0x18] sm:$0x2] %vm378, %v745
      %v748 = vld [vmem:[%s670] sm:$0x2]
      %v750 = vrot.slane %v748, 7
      %v751 = vrot.slane %v750, 2
      %753 = vst.msk [vmem:[#allocation2 + $0x1a] sm:$0x1] %vm343, %v751
      %v754 = vld [vmem:[%s716] sm:$0x2]
      %755 = vst.msk [vmem:[#allocation2 + $0x1a] sm:$0x2] %vm350, %v754
      %v756 = vld [vmem:[#allocation2] sm:$0xff]
      %v757 = vld [vmem:[#allocation2 + $0x8] sm:$0xff]
      %v758 = vld [vmem:[#allocation2 + $0x10] sm:$0xff]
      %v759 = vld [vmem:[#allocation2 + $0x18] sm:$0xf]
      %v760 = vld [vmem:[%s3] sm:$0xf]
      %v761 = vld [vmem:[%s3 + $0x4] sm:$0xf]
      %v762 = vld [vmem:[%s3 + $0x8] sm:$0xf]
      %v763 = vld [vmem:[%s3 + $0xc] sm:$0xf]
      %v764 = vld [vmem:[%s3 + $0x10] sm:$0xf]
      %v765 = vld [vmem:[%s3 + $0x14] sm:$0xf]
      %v766 = vld [vmem:[%s3 + $0x18] sm:$0xf]
      %v767 = vld [vmem:[%s3 + $0x1c] sm:$0xf]
      %v768 = vld [vmem:[%s3 + $0x20] sm:$0xf]
      %v769 = vld [vmem:[%s3 + $0x24] sm:$0xf]
      %v770 = vld [vmem:[%s3 + $0x28] sm:$0xf]
      %v771 = vld [vmem:[%s3 + $0x2c] sm:$0xf]
      %v772 = vld [vmem:[%s3 + $0x30] sm:$0xf]
      %v773 = vld [vmem:[%s3 + $0x34] sm:$0xf]
      %v774 = vld [vmem:[%s3 + $0x38] sm:$0xf]
      %v775 = vld [vmem:[%s3 + $0x3c] sm:$0xf]
      %v776 = vld [vmem:[%s3 + $0x40] sm:$0xf]
      %v777 = vld [vmem:[%s3 + $0x44] sm:$0xf]
      %v778 = vld [vmem:[%s3 + $0x48] sm:$0xf]
      %v779 = vld [vmem:[%s3 + $0x4c] sm:$0xf]
      %v780 = vld [vmem:[%s3 + $0x50] sm:$0xf]
      %v781 = vld [vmem:[%s3 + $0x54] sm:$0xf]
      %v782 = vld [vmem:[%s3 + $0x58] sm:$0xf]
      %v783 = vld [vmem:[%s3 + $0x5c] sm:$0xf]
      %v784 = vld [vmem:[%s3 + $0x60] sm:$0xf]
      %v785 = vld [vmem:[%s3 + $0x64] sm:$0xf]
      %v786 = vld [vmem:[%s3 + $0x68] sm:$0xf]
      %v787 = vld [vmem:[%s3 + $0x6c] sm:$0xf]
      %v788 = vld [vmem:[%s3 + $0x70] sm:$0xf]
      %v789 = vld [vmem:[%s3 + $0x74] sm:$0xf]
      %v790 = vld [vmem:[%s3 + $0x78] sm:$0xf]
      %v791 = vld [vmem:[%s3 + $0x7c] sm:$0xf]
      %v792 = vld [vmem:[%s3 + $0x80] sm:$0xf]
      %v793 = vld [vmem:[%s3 + $0x84] sm:$0xf]
      %v794 = vld [vmem:[%s3 + $0x88] sm:$0xf]
      %v795 = vld [vmem:[%s3 + $0x8c] sm:$0xf]
      %v796 = vld [vmem:[%s3 + $0x90] sm:$0xf]
      %v797 = vld [vmem:[%s3 + $0x94] sm:$0xf]
      %v798 = vld [vmem:[%s3 + $0x98] sm:$0xf]
      %v799 = vld [vmem:[%s3 + $0x9c] sm:$0xf]
      %v800 = vld [vmem:[%s3 + $0xa0] sm:$0xf]
      %v801 = vld [vmem:[%s3 + $0xa4] sm:$0xf]
      %v802 = vld [vmem:[%s3 + $0xa8] sm:$0xf]
      %v803 = vld [vmem:[%s3 + $0xac] sm:$0xf]
      %v804 = vld [vmem:[%s3 + $0xb0] sm:$0xf]
      %v805 = vld [vmem:[%s3 + $0xb4] sm:$0xf]
      %v806 = vld [vmem:[%s3 + $0xb8] sm:$0xf]
      %v807 = vld [vmem:[%s3 + $0xbc] sm:$0xf]
      %v808 = vld [vmem:[%s3 + $0xc0] sm:$0xf]
      %v809 = vld [vmem:[%s3 + $0xc4] sm:$0xf]
      %v810 = vld [vmem:[%s3 + $0xc8] sm:$0xf]
      %v811 = vld [vmem:[%s3 + $0xcc] sm:$0xf]
      %v812 = vld [vmem:[%s3 + $0xd0] sm:$0xf]
      %v813 = vld [vmem:[%s3 + $0xd4] sm:$0xf]
      %v814 = vld [vmem:[%s3 + $0xd8] sm:$0xf]
      %v815 = vld [vmem:[%s3 + $0xdc] sm:$0xf]
      %v816 = vld [vmem:[%s3 + $0xe0] sm:$0xf]
      %v817 = vld [vmem:[%s3 + $0xe4] sm:$0xf]
      %v818 = vld [vmem:[%s3 + $0xe8] sm:$0xf]
      %v819 = vld [vmem:[%s3 + $0xec] sm:$0xf]
      %v820 = vld [vmem:[%s3 + $0xf0] sm:$0xf]
      %v821 = vld [vmem:[%s3 + $0xf4] sm:$0xf]
      %v822 = vld [vmem:[%s3 + $0xf8] sm:$0xf]
      %v823 = vld [vmem:[%s3 + $0xfc] sm:$0xf]
      %v824 = vld [vmem:[%s3 + $0x100] sm:$0xf]
      %v825 = vld [vmem:[%s3 + $0x104] sm:$0xf]
      %v826 = vld [vmem:[%s3 + $0x108] sm:$0xf]
      %v827 = vld [vmem:[%s3 + $0x10c] sm:$0xf]
      %v828 = vld [vmem:[%s3 + $0x110] sm:$0xf]
      %v829 = vld [vmem:[%s3 + $0x114] sm:$0xf]
      %v830 = vld [vmem:[%s3 + $0x118] sm:$0xf]
      %v831 = vld [vmem:[%s3 + $0x11c] sm:$0xf]
      %v832 = vld [vmem:[%s3 + $0x120] sm:$0xf]
      %v833 = vld [vmem:[%s3 + $0x124] sm:$0xf]
      %v834 = vld [vmem:[%s3 + $0x128] sm:$0xf]
      %v835 = vld [vmem:[%s3 + $0x12c] sm:$0xf]
      %v836 = vld [vmem:[%s3 + $0x130] sm:$0xf]
      %v837 = vld [vmem:[%s3 + $0x134] sm:$0xf]
      %v838 = vld [vmem:[%s3 + $0x138] sm:$0xf]
      %v839 = vld [vmem:[%s3 + $0x13c] sm:$0xf]
      %v840 = vld [vmem:[%s3 + $0x140] sm:$0xf]
      %v841 = vld [vmem:[%s3 + $0x144] sm:$0xf]
      %v842 = vld [vmem:[%s3 + $0x148] sm:$0xf]
      %v843 = vld [vmem:[%s3 + $0x14c] sm:$0xf]
      %v844 = vld [vmem:[%s3 + $0x150] sm:$0xf]
      %v845 = vld [vmem:[%s3 + $0x154] sm:$0xf]
      %v846 = vld [vmem:[%s3 + $0x158] sm:$0xf]
      %v847 = vld [vmem:[%s3 + $0x15c] sm:$0xf]
      %v848 = vld [vmem:[%s3 + $0x160] sm:$0xf]
      %v849 = vld [vmem:[%s3 + $0x164] sm:$0xf]
      %v850 = vld [vmem:[%s3 + $0x168] sm:$0xf]
      %v851 = vld [vmem:[%s3 + $0x16c] sm:$0xf]
      %v852 = vld [vmem:[%s3 + $0x170] sm:$0xf]
      %v853 = vld [vmem:[%s3 + $0x174] sm:$0xf]
      %v854 = vld [vmem:[%s3 + $0x178] sm:$0xf]
      %v855 = vld [vmem:[%s3 + $0x17c] sm:$0xf]
      %v856 = vld [vmem:[%s3 + $0x180] sm:$0xf]
      %v857 = vld [vmem:[%s3 + $0x184] sm:$0xf]
      %v858 = vld [vmem:[%s3 + $0x188] sm:$0xf]
      %v859 = vld [vmem:[%s3 + $0x18c] sm:$0xf]
      %v860 = vld [vmem:[%s3 + $0x190] sm:$0xf]
      %v861 = vld [vmem:[%s3 + $0x194] sm:$0xf]
      %v862 = vld [vmem:[%s3 + $0x198] sm:$0xf]
      %v863 = vld [vmem:[%s3 + $0x19c] sm:$0xf]
      %v864 = vld [vmem:[%s3 + $0x1a0] sm:$0xf]
      %v865 = vld [vmem:[%s3 + $0x1a4] sm:$0xf]
      %v866 = vld [vmem:[%s3 + $0x1a8] sm:$0xf]
      %v867 = vld [vmem:[%s3 + $0x1ac] sm:$0xf]
      %v868 = vld [vmem:[%s3 + $0x1b0] sm:$0xf]
      %v869 = vld [vmem:[%s3 + $0x1b4] sm:$0xf]
      %v870 = vld [vmem:[%s3 + $0x1b8] sm:$0xf]
      %v871 = vld [vmem:[%s3 + $0x1bc] sm:$0xf]
      %v872 = vld [vmem:[%s3 + $0x1c0] sm:$0xf]
      %v873 = vld [vmem:[%s3 + $0x1c4] sm:$0xf]
      %v874 = vld [vmem:[%s3 + $0x1c8] sm:$0xf]
      %v875 = vld [vmem:[%s3 + $0x1cc] sm:$0xf]
      %v876 = vld [vmem:[%s3 + $0x1d0] sm:$0xf]
      %v877 = vld [vmem:[%s3 + $0x1d4] sm:$0xf]
      %v878 = vld [vmem:[%s3 + $0x1d8] sm:$0xf]
      %v879 = vld [vmem:[%s3 + $0x1dc] sm:$0xf]
      %v880 = vld [vmem:[%s3 + $0x1e0] sm:$0xf]
      %v881 = vld [vmem:[%s3 + $0x1e4] sm:$0xf]
      %v882 = vld [vmem:[%s3 + $0x1e8] sm:$0xf]
      %v883 = vld [vmem:[%s3 + $0x1ec] sm:$0xf]
      %v884 = vld [vmem:[%s3 + $0x1f0] sm:$0xf]
      %v885 = vld [vmem:[%s3 + $0x1f4] sm:$0xf]
      %v886 = vld [vmem:[%s3 + $0x1f8] sm:$0xf]
      %v887 = vld [vmem:[%s3 + $0x1fc] sm:$0xf]
      %v888 = vld [vmem:[%s3 + $0x200] sm:$0xf]
      %v889 = vld [vmem:[%s3 + $0x204] sm:$0xf]
      %v890 = vld [vmem:[%s3 + $0x208] sm:$0xf]
      %v891 = vld [vmem:[%s3 + $0x20c] sm:$0xf]
      %v892 = vld [vmem:[%s3 + $0x210] sm:$0xf]
      %v893 = vld [vmem:[%s3 + $0x214] sm:$0xf]
      %v894 = vld [vmem:[%s3 + $0x218] sm:$0xf]
      %v895 = vld [vmem:[%s3 + $0x21c] sm:$0xf]
      %v896 = vld [vmem:[%s3 + $0x220] sm:$0xf]
      %v897 = vld [vmem:[%s3 + $0x224] sm:$0xf]
      %v898 = vld [vmem:[%s3 + $0x228] sm:$0xf]
      %v899 = vld [vmem:[%s3 + $0x22c] sm:$0xf]
      %v900 = vld [vmem:[%s3 + $0x230] sm:$0xf]
      %v901 = vld [vmem:[%s3 + $0x234] sm:$0xf]
      %v902 = vld [vmem:[%s3 + $0x238] sm:$0xf]
      %v903 = vld [vmem:[%s3 + $0x23c] sm:$0xf]
      %v904 = vld [vmem:[%s3 + $0x240] sm:$0xf]
      %v905 = vld [vmem:[%s3 + $0x244] sm:$0xf]
      %v906 = vld [vmem:[%s3 + $0x248] sm:$0xf]
      %v907 = vld [vmem:[%s3 + $0x24c] sm:$0xf]
      %v908 = vld [vmem:[%s3 + $0x250] sm:$0xf]
      %v909 = vld [vmem:[%s3 + $0x254] sm:$0xf]
      %v910 = vld [vmem:[%s3 + $0x258] sm:$0xf]
      %v911 = vld [vmem:[%s3 + $0x25c] sm:$0xf]
      %v912 = vld [vmem:[%s3 + $0x260] sm:$0xf]
      %v913 = vld [vmem:[%s3 + $0x264] sm:$0xf]
      %v914 = vld [vmem:[%s3 + $0x268] sm:$0xf]
      %v915 = vld [vmem:[%s3 + $0x26c] sm:$0xf]
      %v916 = vld [vmem:[%s3 + $0x270] sm:$0xf]
      %v917 = vld [vmem:[%s3 + $0x274] sm:$0xf]
      %v918 = vld [vmem:[%s3 + $0x278] sm:$0xf]
      %v919 = vld [vmem:[%s3 + $0x27c] sm:$0xf]
      %v920 = vld [vmem:[%s3 + $0x280] sm:$0xf]
      %v921 = vld [vmem:[%s3 + $0x284] sm:$0xf]
      %v922 = vld [vmem:[%s3 + $0x288] sm:$0xf]
      %v923 = vld [vmem:[%s3 + $0x28c] sm:$0xf]
      %v924 = vld [vmem:[%s3 + $0x290] sm:$0xf]
      %v925 = vld [vmem:[%s3 + $0x294] sm:$0xf]
      %v926 = vld [vmem:[%s3 + $0x298] sm:$0xf]
      %v927 = vld [vmem:[%s3 + $0x29c] sm:$0xf]
      %v928 = vld [vmem:[%s3 + $0x2a0] sm:$0xf]
      %v929 = vld [vmem:[%s3 + $0x2a4] sm:$0xf]
      %v930 = vld [vmem:[%s3 + $0x2a8] sm:$0xf]
      %v931 = vld [vmem:[%s3 + $0x2ac] sm:$0xf]
      %v932 = vld [vmem:[%s3 + $0x2b0] sm:$0xf]
      %v933 = vld [vmem:[%s3 + $0x2b4] sm:$0xf]
      %v934 = vld [vmem:[%s3 + $0x2b8] sm:$0xf]
      %v935 = vld [vmem:[%s3 + $0x2bc] sm:$0xf]
      %v936 = vld [vmem:[%s3 + $0x2c0] sm:$0xf]
      %v937 = vld [vmem:[%s3 + $0x2c4] sm:$0xf]
      %v938 = vld [vmem:[%s3 + $0x2c8] sm:$0xf]
      %v939 = vld [vmem:[%s3 + $0x2cc] sm:$0xf]
      %v940 = vld [vmem:[%s3 + $0x2d0] sm:$0xf]
      %v941 = vld [vmem:[%s3 + $0x2d4] sm:$0xf]
      %v942 = vld [vmem:[%s3 + $0x2d8] sm:$0xf]
      %v943 = vld [vmem:[%s3 + $0x2dc] sm:$0xf]
      %v944 = vld [vmem:[%s3 + $0x2e0] sm:$0xf]
      %v945 = vld [vmem:[%s3 + $0x2e4] sm:$0xf]
      %v946 = vld [vmem:[%s3 + $0x2e8] sm:$0xf]
      %v947 = vld [vmem:[%s3 + $0x2ec] sm:$0xf]
      %v948 = vld [vmem:[%s3 + $0x2f0] sm:$0xf]
      %v949 = vld [vmem:[%s3 + $0x2f4] sm:$0xf]
      %v950 = vld [vmem:[%s3 + $0x2f8] sm:$0xf]
      %v951 = vld [vmem:[%s3 + $0x2fc] sm:$0xf]
      %v952 = vld [vmem:[%s3 + $0x300] sm:$0xf]
      %v953 = vld [vmem:[%s3 + $0x304] sm:$0xf]
      %v954 = vld [vmem:[%s3 + $0x308] sm:$0xf]
      %v955 = vld [vmem:[%s3 + $0x30c] sm:$0xf]
      %v956 = vld [vmem:[%s3 + $0x310] sm:$0xf]
      %v957 = vld [vmem:[%s3 + $0x314] sm:$0xf]
      %v958 = vld [vmem:[%s3 + $0x318] sm:$0xf]
      %v959 = vld [vmem:[%s3 + $0x31c] sm:$0xf]
      %v960 = vld [vmem:[%s3 + $0x320] sm:$0xf]
      %v961 = vld [vmem:[%s3 + $0x324] sm:$0xf]
      %v962 = vld [vmem:[%s3 + $0x328] sm:$0xf]
      %v963 = vld [vmem:[%s3 + $0x32c] sm:$0xf]
      %v964 = vld [vmem:[%s3 + $0x330] sm:$0xf]
      %v965 = vld [vmem:[%s3 + $0x334] sm:$0xf]
      %v966 = vld [vmem:[%s3 + $0x338] sm:$0xf]
      %v967 = vld [vmem:[%s3 + $0x33c] sm:$0xf]
      %v968 = vld [vmem:[%s3 + $0x340] sm:$0xf]
      %v969 = vld [vmem:[%s3 + $0x344] sm:$0xf]
      %v970 = vld [vmem:[%s3 + $0x348] sm:$0xf]
      %v971 = vld [vmem:[%s3 + $0x34c] sm:$0xf]
      %v972 = vld [vmem:[%s3 + $0x350] sm:$0xf]
      %v973 = vld [vmem:[%s3 + $0x354] sm:$0xf]
      %v974 = vld [vmem:[%s3 + $0x358] sm:$0xf]
      %v975 = vld [vmem:[%s3 + $0x35c] sm:$0xf]
      %v976 = vld [vmem:[%s4] sm:$0x1]
      %v978 = vlaneseq
      %v979 = vshrl.u32 %v978, 7
      %v980 = vsub.s32 0, %v979
      %v981 = vrot.slane %v976, %v980
      %v987 = vcombine.high %v756, %v756
      %v989 = vunpack.c.l.s4 1983009808
      %v990 = vunpack.c.0.s8 %v989
      %v991 = vlaneseq
      %v992 = vshrl.u32 %v991, 7
      %v993 = vsub.s32 %v990, %v992
      %v994 = vrot.slane %v756, %v993
      %v996 = vunpack.c.l.s4 1983009808
      %v997 = vunpack.c.0.s8 %v996
      %v998 = vlaneseq
      %v999 = vshrl.u32 %v998, 7
      %v1000 = vsub.s32 %v997, %v999
      %v1001 = vrot.slane %v987, %v1000
      %v1002 = vcombine.high %v994, %v994
      %v1003 = vcombine.high %v1001, %v1001
      %v1004 = vcombine.high %v757, %v757
      %v1006 = vunpack.c.l.s4 1983009808
      %v1007 = vunpack.c.0.s8 %v1006
      %v1008 = vlaneseq
      %v1009 = vshrl.u32 %v1008, 7
      %v1010 = vsub.s32 %v1007, %v1009
      %v1011 = vrot.slane %v757, %v1010
      %v1013 = vunpack.c.l.s4 1983009808
      %v1014 = vunpack.c.0.s8 %v1013
      %v1015 = vlaneseq
      %v1016 = vshrl.u32 %v1015, 7
      %v1017 = vsub.s32 %v1014, %v1016
      %v1018 = vrot.slane %v1004, %v1017
      %v1019 = vcombine.high %v1011, %v1011
      %v1020 = vcombine.high %v1018, %v1018
      %v1021 = vcombine.high %v758, %v758
      %v1023 = vunpack.c.l.s4 1983009808
      %v1024 = vunpack.c.0.s8 %v1023
      %v1025 = vlaneseq
      %v1026 = vshrl.u32 %v1025, 7
      %v1027 = vsub.s32 %v1024, %v1026
      %v1028 = vrot.slane %v758, %v1027
      %v1030 = vunpack.c.l.s4 1983009808
      %v1031 = vunpack.c.0.s8 %v1030
      %v1032 = vlaneseq
      %v1033 = vshrl.u32 %v1032, 7
      %v1034 = vsub.s32 %v1031, %v1033
      %v1035 = vrot.slane %v1021, %v1034
      %v1036 = vcombine.high %v1028, %v1028
      %v1037 = vcombine.high %v1035, %v1035
      %v1039 = vunpack.c.l.s4 1983009808
      %v1040 = vunpack.c.0.s8 %v1039
      %v1041 = vlaneseq
      %v1042 = vshrl.u32 %v1041, 7
      %v1043 = vsub.s32 %v1040, %v1042
      %v1044 = vrot.slane %v759, %v1043
      %v1045 = vcombine.high %v1044, %v1044
      %v1275 = vunpack.c.l.b16 %v760
      %v1276 = vunpack.c.l.b16 %v761
      %v1277 = vunpack.c.l.b16 %v762
      %v1278 = vunpack.c.l.b16 %v763
      %v1279 = vunpack.c.l.b16 %v764
      %v1280 = vunpack.c.l.b16 %v765
      %v1281 = vunpack.c.l.b16 %v766
      %v1282 = vunpack.c.l.b16 %v767
      %v1283 = vunpack.c.l.b16 %v768
      %v1284 = vunpack.c.l.b16 %v769
      %v1285 = vunpack.c.l.b16 %v770
      %v1286 = vunpack.c.l.b16 %v771
      %v1287 = vunpack.c.l.b16 %v772
      %v1288 = vunpack.c.l.b16 %v773
      %v1289 = vunpack.c.l.b16 %v774
      %v1290 = vunpack.c.l.b16 %v775
      %v1291 = vunpack.c.l.b16 %v776
      %v1292 = vunpack.c.l.b16 %v777
      %v1293 = vunpack.c.l.b16 %v778
      %v1294 = vunpack.c.l.b16 %v779
      %v1295 = vunpack.c.l.b16 %v780
      %v1296 = vunpack.c.l.b16 %v781
      %v1297 = vunpack.c.l.b16 %v782
      %v1298 = vunpack.c.l.b16 %v783
      %v1299 = vunpack.c.l.b16 %v784
      %v1300 = vunpack.c.l.b16 %v785
      %v1301 = vunpack.c.l.b16 %v786
      %v1302 = vunpack.c.l.b16 %v787
      %v1303 = vunpack.c.l.b16 %v788
      %v1304 = vunpack.c.l.b16 %v789
      %v1305 = vunpack.c.l.b16 %v790
      %v1306 = vunpack.c.l.b16 %v791
      %v1307 = vunpack.c.l.b16 %v792
      %v1308 = vunpack.c.l.b16 %v793
      %v1309 = vunpack.c.l.b16 %v794
      %v1310 = vunpack.c.l.b16 %v795
      %v1311 = vunpack.c.l.b16 %v796
      %v1312 = vunpack.c.l.b16 %v797
      %v1313 = vunpack.c.l.b16 %v798
      %v1314 = vunpack.c.l.b16 %v799
      %v1315 = vunpack.c.l.b16 %v800
      %v1316 = vunpack.c.l.b16 %v801
      %v1317 = vunpack.c.l.b16 %v802
      %v1318 = vunpack.c.l.b16 %v803
      %v1319 = vunpack.c.l.b16 %v804
      %v1320 = vunpack.c.l.b16 %v805
      %v1321 = vunpack.c.l.b16 %v806
      %v1322 = vunpack.c.l.b16 %v807
      %v1323 = vunpack.c.l.b16 %v808
      %v1324 = vunpack.c.l.b16 %v809
      %v1325 = vunpack.c.l.b16 %v810
      %v1326 = vunpack.c.l.b16 %v811
      %v1327 = vunpack.c.l.b16 %v812
      %v1328 = vunpack.c.l.b16 %v813
      %v1329 = vunpack.c.l.b16 %v814
      %v1330 = vunpack.c.l.b16 %v815
      %v1331 = vunpack.c.l.b16 %v816
      %v1332 = vunpack.c.l.b16 %v817
      %v1333 = vunpack.c.l.b16 %v818
      %v1334 = vunpack.c.l.b16 %v819
      %v1335 = vunpack.c.l.b16 %v820
      %v1336 = vunpack.c.l.b16 %v821
      %v1337 = vunpack.c.l.b16 %v822
      %v1338 = vunpack.c.l.b16 %v823
      %v1339 = vunpack.c.l.b16 %v824
      %v1340 = vunpack.c.l.b16 %v825
      %v1341 = vunpack.c.l.b16 %v826
      %v1342 = vunpack.c.l.b16 %v827
      %v1343 = vunpack.c.l.b16 %v828
      %v1344 = vunpack.c.l.b16 %v829
      %v1345 = vunpack.c.l.b16 %v830
      %v1346 = vunpack.c.l.b16 %v831
      %v1347 = vunpack.c.l.b16 %v832
      %v1348 = vunpack.c.l.b16 %v833
      %v1349 = vunpack.c.l.b16 %v834
      %v1350 = vunpack.c.l.b16 %v835
      %v1351 = vunpack.c.l.b16 %v836
      %v1352 = vunpack.c.l.b16 %v837
      %v1353 = vunpack.c.l.b16 %v838
      %v1354 = vunpack.c.l.b16 %v839
      %v1355 = vunpack.c.l.b16 %v840
      %v1356 = vunpack.c.l.b16 %v841
      %v1357 = vunpack.c.l.b16 %v842
      %v1358 = vunpack.c.l.b16 %v843
      %v1359 = vunpack.c.l.b16 %v844
      %v1360 = vunpack.c.l.b16 %v845
      %v1361 = vunpack.c.l.b16 %v846
      %v1362 = vunpack.c.l.b16 %v847
      %v1363 = vunpack.c.l.b16 %v848
      %v1364 = vunpack.c.l.b16 %v849
      %v1365 = vunpack.c.l.b16 %v850
      %v1366 = vunpack.c.l.b16 %v851
      %v1367 = vunpack.c.l.b16 %v852
      %v1368 = vunpack.c.l.b16 %v853
      %v1369 = vunpack.c.l.b16 %v854
      %v1370 = vunpack.c.l.b16 %v855
      %v1371 = vunpack.c.l.b16 %v856
      %v1372 = vunpack.c.l.b16 %v857
      %v1373 = vunpack.c.l.b16 %v858
      %v1374 = vunpack.c.l.b16 %v859
      %v1375 = vunpack.c.l.b16 %v860
      %v1376 = vunpack.c.l.b16 %v861
      %v1377 = vunpack.c.l.b16 %v862
      %v1378 = vunpack.c.l.b16 %v863
      %v1379 = vunpack.c.l.b16 %v864
      %v1380 = vunpack.c.l.b16 %v865
      %v1381 = vunpack.c.l.b16 %v866
      %v1382 = vunpack.c.l.b16 %v867
      %v1383 = vunpack.c.l.b16 %v868
      %v1384 = vunpack.c.l.b16 %v869
      %v1385 = vunpack.c.l.b16 %v870
      %v1386 = vunpack.c.l.b16 %v871
      %v1387 = vunpack.c.l.b16 %v872
      %v1388 = vunpack.c.l.b16 %v873
      %v1389 = vunpack.c.l.b16 %v874
      %v1390 = vunpack.c.l.b16 %v875
      %v1391 = vunpack.c.l.b16 %v876
      %v1392 = vunpack.c.l.b16 %v877
      %v1393 = vunpack.c.l.b16 %v878
      %v1394 = vunpack.c.l.b16 %v879
      %v1395 = vunpack.c.l.b16 %v880
      %v1396 = vunpack.c.l.b16 %v881
      %v1397 = vunpack.c.l.b16 %v882
      %v1398 = vunpack.c.l.b16 %v883
      %v1399 = vunpack.c.l.b16 %v884
      %v1400 = vunpack.c.l.b16 %v885
      %v1401 = vunpack.c.l.b16 %v886
      %v1402 = vunpack.c.l.b16 %v887
      %v1403 = vunpack.c.l.b16 %v888
      %v1404 = vunpack.c.l.b16 %v889
      %v1405 = vunpack.c.l.b16 %v890
      %v1406 = vunpack.c.l.b16 %v891
      %v1407 = vunpack.c.l.b16 %v892
      %v1408 = vunpack.c.l.b16 %v893
      %v1409 = vunpack.c.l.b16 %v894
      %v1410 = vunpack.c.l.b16 %v895
      %v1411 = vunpack.c.l.b16 %v896
      %v1412 = vunpack.c.l.b16 %v897
      %v1413 = vunpack.c.l.b16 %v898
      %v1414 = vunpack.c.l.b16 %v899
      %v1415 = vunpack.c.l.b16 %v900
      %v1416 = vunpack.c.l.b16 %v901
      %v1417 = vunpack.c.l.b16 %v902
      %v1418 = vunpack.c.l.b16 %v903
      %v1419 = vunpack.c.l.b16 %v904
      %v1420 = vunpack.c.l.b16 %v905
      %v1421 = vunpack.c.l.b16 %v906
      %v1422 = vunpack.c.l.b16 %v907
      %v1423 = vunpack.c.l.b16 %v908
      %v1424 = vunpack.c.l.b16 %v909
      %v1425 = vunpack.c.l.b16 %v910
      %v1426 = vunpack.c.l.b16 %v911
      %v1427 = vunpack.c.l.b16 %v912
      %v1428 = vunpack.c.l.b16 %v913
      %v1429 = vunpack.c.l.b16 %v914
      %v1430 = vunpack.c.l.b16 %v915
      %v1431 = vunpack.c.l.b16 %v916
      %v1432 = vunpack.c.l.b16 %v917
      %v1433 = vunpack.c.l.b16 %v918
      %v1434 = vunpack.c.l.b16 %v919
      %v1435 = vunpack.c.l.b16 %v920
      %v1436 = vunpack.c.l.b16 %v921
      %v1437 = vunpack.c.l.b16 %v922
      %v1438 = vunpack.c.l.b16 %v923
      %v1439 = vunpack.c.l.b16 %v924
      %v1440 = vunpack.c.l.b16 %v925
      %v1441 = vunpack.c.l.b16 %v926
      %v1442 = vunpack.c.l.b16 %v927
      %v1443 = vunpack.c.l.b16 %v928
      %v1444 = vunpack.c.l.b16 %v929
      %v1445 = vunpack.c.l.b16 %v930
      %v1446 = vunpack.c.l.b16 %v931
      %v1447 = vunpack.c.l.b16 %v932
      %v1448 = vunpack.c.l.b16 %v933
      %v1449 = vunpack.c.l.b16 %v934
      %v1450 = vunpack.c.l.b16 %v935
      %v1451 = vunpack.c.l.b16 %v936
      %v1452 = vunpack.c.l.b16 %v937
      %v1453 = vunpack.c.l.b16 %v938
      %v1454 = vunpack.c.l.b16 %v939
      %v1455 = vunpack.c.l.b16 %v940
      %v1456 = vunpack.c.l.b16 %v941
      %v1457 = vunpack.c.l.b16 %v942
      %v1458 = vunpack.c.l.b16 %v943
      %v1459 = vunpack.c.l.b16 %v944
      %v1460 = vunpack.c.l.b16 %v945
      %v1461 = vunpack.c.l.b16 %v946
      %v1462 = vunpack.c.l.b16 %v947
      %v1463 = vunpack.c.l.b16 %v948
      %v1464 = vunpack.c.l.b16 %v949
      %v1465 = vunpack.c.l.b16 %v950
      %v1466 = vunpack.c.l.b16 %v951
      %v1467 = vunpack.c.l.b16 %v952
      %v1468 = vunpack.c.l.b16 %v953
      %v1469 = vunpack.c.l.b16 %v954
      %v1470 = vunpack.c.l.b16 %v955
      %v1471 = vunpack.c.l.b16 %v956
      %v1472 = vunpack.c.l.b16 %v957
      %v1473 = vunpack.c.l.b16 %v958
      %v1474 = vunpack.c.l.b16 %v959
      %v1475 = vunpack.c.l.b16 %v960
      %v1476 = vunpack.c.l.b16 %v961
      %v1477 = vunpack.c.l.b16 %v962
      %v1478 = vunpack.c.l.b16 %v963
      %v1479 = vunpack.c.l.b16 %v964
      %v1480 = vunpack.c.l.b16 %v965
      %v1481 = vunpack.c.l.b16 %v966
      %v1482 = vunpack.c.l.b16 %v967
      %v1483 = vunpack.c.l.b16 %v968
      %v1484 = vunpack.c.l.b16 %v969
      %v1485 = vunpack.c.l.b16 %v970
      %v1486 = vunpack.c.l.b16 %v971
      %v1487 = vunpack.c.l.b16 %v972
      %v1488 = vunpack.c.l.b16 %v973
      %v1489 = vunpack.c.l.b16 %v974
      %v1490 = vunpack.c.l.b16 %v975
      %v1491 = vpack.c.b16 %v1276, %v1275
      %v1492 = vpack.c.b16 %v1278, %v1277
      %v1493 = vpack.c.b16 %v1280, %v1279
      %v1494 = vpack.c.b16 %v1282, %v1281
      %v1495 = vpack.c.b16 %v1284, %v1283
      %v1496 = vpack.c.b16 %v1286, %v1285
      %v1497 = vpack.c.b16 %v1288, %v1287
      %v1498 = vpack.c.b16 %v1290, %v1289
      %v1499 = vpack.c.b16 %v1292, %v1291
      %v1500 = vpack.c.b16 %v1294, %v1293
      %v1501 = vpack.c.b16 %v1296, %v1295
      %v1502 = vpack.c.b16 %v1298, %v1297
      %v1503 = vpack.c.b16 %v1300, %v1299
      %v1504 = vpack.c.b16 %v1302, %v1301
      %v1505 = vpack.c.b16 %v1304, %v1303
      %v1506 = vpack.c.b16 %v1306, %v1305
      %v1507 = vpack.c.b16 %v1308, %v1307
      %v1508 = vpack.c.b16 %v1310, %v1309
      %v1509 = vpack.c.b16 %v1312, %v1311
      %v1510 = vpack.c.b16 %v1314, %v1313
      %v1511 = vpack.c.b16 %v1316, %v1315
      %v1512 = vpack.c.b16 %v1318, %v1317
      %v1513 = vpack.c.b16 %v1320, %v1319
      %v1514 = vpack.c.b16 %v1322, %v1321
      %v1515 = vpack.c.b16 %v1324, %v1323
      %v1516 = vpack.c.b16 %v1326, %v1325
      %v1517 = vpack.c.b16 %v1328, %v1327
      %v1518 = vpack.c.b16 %v1330, %v1329
      %v1519 = vpack.c.b16 %v1332, %v1331
      %v1520 = vpack.c.b16 %v1334, %v1333
      %v1521 = vpack.c.b16 %v1336, %v1335
      %v1522 = vpack.c.b16 %v1338, %v1337
      %v1523 = vpack.c.b16 %v1340, %v1339
      %v1524 = vpack.c.b16 %v1342, %v1341
      %v1525 = vpack.c.b16 %v1344, %v1343
      %v1526 = vpack.c.b16 %v1346, %v1345
      %v1527 = vpack.c.b16 %v1348, %v1347
      %v1528 = vpack.c.b16 %v1350, %v1349
      %v1529 = vpack.c.b16 %v1352, %v1351
      %v1530 = vpack.c.b16 %v1354, %v1353
      %v1531 = vpack.c.b16 %v1356, %v1355
      %v1532 = vpack.c.b16 %v1358, %v1357
      %v1533 = vpack.c.b16 %v1360, %v1359
      %v1534 = vpack.c.b16 %v1362, %v1361
      %v1535 = vpack.c.b16 %v1364, %v1363
      %v1536 = vpack.c.b16 %v1366, %v1365
      %v1537 = vpack.c.b16 %v1368, %v1367
      %v1538 = vpack.c.b16 %v1370, %v1369
      %v1539 = vpack.c.b16 %v1372, %v1371
      %v1540 = vpack.c.b16 %v1374, %v1373
      %v1541 = vpack.c.b16 %v1376, %v1375
      %v1542 = vpack.c.b16 %v1378, %v1377
      %v1543 = vpack.c.b16 %v1380, %v1379
      %v1544 = vpack.c.b16 %v1382, %v1381
      %v1545 = vpack.c.b16 %v1384, %v1383
      %v1546 = vpack.c.b16 %v1386, %v1385
      %v1547 = vpack.c.b16 %v1388, %v1387
      %v1548 = vpack.c.b16 %v1390, %v1389
      %v1549 = vpack.c.b16 %v1392, %v1391
      %v1550 = vpack.c.b16 %v1394, %v1393
      %v1551 = vpack.c.b16 %v1396, %v1395
      %v1552 = vpack.c.b16 %v1398, %v1397
      %v1553 = vpack.c.b16 %v1400, %v1399
      %v1554 = vpack.c.b16 %v1402, %v1401
      %v1555 = vpack.c.b16 %v1404, %v1403
      %v1556 = vpack.c.b16 %v1406, %v1405
      %v1557 = vpack.c.b16 %v1408, %v1407
      %v1558 = vpack.c.b16 %v1410, %v1409
      %v1559 = vpack.c.b16 %v1412, %v1411
      %v1560 = vpack.c.b16 %v1414, %v1413
      %v1561 = vpack.c.b16 %v1416, %v1415
      %v1562 = vpack.c.b16 %v1418, %v1417
      %v1563 = vpack.c.b16 %v1420, %v1419
      %v1564 = vpack.c.b16 %v1422, %v1421
      %v1565 = vpack.c.b16 %v1424, %v1423
      %v1566 = vpack.c.b16 %v1426, %v1425
      %v1567 = vpack.c.b16 %v1428, %v1427
      %v1568 = vpack.c.b16 %v1430, %v1429
      %v1569 = vpack.c.b16 %v1432, %v1431
      %v1570 = vpack.c.b16 %v1434, %v1433
      %v1571 = vpack.c.b16 %v1436, %v1435
      %v1572 = vpack.c.b16 %v1438, %v1437
      %v1573 = vpack.c.b16 %v1440, %v1439
      %v1574 = vpack.c.b16 %v1442, %v1441
      %v1575 = vpack.c.b16 %v1444, %v1443
      %v1576 = vpack.c.b16 %v1446, %v1445
      %v1577 = vpack.c.b16 %v1448, %v1447
      %v1578 = vpack.c.b16 %v1450, %v1449
      %v1579 = vpack.c.b16 %v1452, %v1451
      %v1580 = vpack.c.b16 %v1454, %v1453
      %v1581 = vpack.c.b16 %v1456, %v1455
      %v1582 = vpack.c.b16 %v1458, %v1457
      %v1583 = vpack.c.b16 %v1460, %v1459
      %v1584 = vpack.c.b16 %v1462, %v1461
      %v1585 = vpack.c.b16 %v1464, %v1463
      %v1586 = vpack.c.b16 %v1466, %v1465
      %v1587 = vpack.c.b16 %v1468, %v1467
      %v1588 = vpack.c.b16 %v1470, %v1469
      %v1589 = vpack.c.b16 %v1472, %v1471
      %v1590 = vpack.c.b16 %v1474, %v1473
      %v1591 = vpack.c.b16 %v1476, %v1475
      %v1592 = vpack.c.b16 %v1478, %v1477
      %v1593 = vpack.c.b16 %v1480, %v1479
      %v1594 = vpack.c.b16 %v1482, %v1481
      %v1595 = vpack.c.b16 %v1484, %v1483
      %v1596 = vpack.c.b16 %v1486, %v1485
      %v1597 = vpack.c.b16 %v1488, %v1487
      %v1598 = vpack.c.b16 %v1490, %v1489
      %vm1707 = vcmask 523264
      %v1709 = vsel %vm1707, %v1045, 0
      %1711 = vmatprep.subr.bf16.mxu0 0
      %1712 = vmatpush1.bf16.msra.mxu0 %v1491
      %1713 = vmatprep.subr.bf16.mxu0 0
      %1714 = vmatpush1.bf16.msra.mxu0 %v1492
      %1715 = vmatprep.subr.bf16.mxu0 0
      %1716 = vmatpush1.bf16.msra.mxu0 %v1493
      %1717 = vmatprep.subr.bf16.mxu0 0
      %1718 = vmatpush1.bf16.msra.mxu0 %v1494
      %1719 = vmatprep.subr.bf16.mxu0 0
      %1720 = vmatpush1.bf16.msra.mxu0 %v1495
      %1721 = vmatprep.subr.bf16.mxu0 0
      %1722 = vmatpush1.bf16.msra.mxu0 %v1496
      %1723 = vmatprep.subr.bf16.mxu0 0
      %1724 = vmatpush1.bf16.msra.mxu0 %v1497
      %1725 = vmatprep.subr.bf16.mxu0 0
      %1726 = vmatpush1.bf16.msra.mxu0 %v1498
      %1727 = vmatprep.subr.bf16.mxu0 0
      %1728 = vmatpush1.bf16.msra.mxu0 %v1499
      %1729 = vmatprep.subr.bf16.mxu0 0
      %1730 = vmatpush1.bf16.msra.mxu0 %v1500
      %1731 = vmatprep.subr.bf16.mxu0 0
      %1732 = vmatpush1.bf16.msra.mxu0 %v1501
      %1733 = vmatprep.subr.bf16.mxu0 0
      %1734 = vmatpush1.bf16.msra.mxu0 %v1502
      %1735 = vmatprep.subr.bf16.mxu0 0
      %1736 = vmatpush1.bf16.msra.mxu0 %v1503
      %1737 = vmatprep.subr.bf16.mxu0 0
      %1738 = vmatpush1.bf16.msra.mxu0 %v1504
      %1739 = vmatprep.subr.bf16.mxu0 0
      %1740 = vmatpush1.bf16.msra.mxu0 %v1505
      %1741 = vmatprep.subr.bf16.mxu0 0
      %1742 = vmatpush1.bf16.msra.mxu0 %v1506
      %1743 = vmatprep.mubr.bf16.mxu0 %v1002
      %1744 = vmatmul.mubr.bf16.gmra.mrb[0].mxu0 %v994
      %v1745 = vpop.f32.mrb[0].mxu0
      %v1746 = vadd.f32 %v981, %v1745
      %v1747 = vpop.f32.mrb[0].mxu0
      %v1748 = vpop.f32.mrb[0].mxu0
      %v1749 = vpop.f32.mrb[0].mxu0
      %1750 = vdwg.mxu0
      %1751 = vmatprep.subr.bf16.mxu0 0
      %1752 = vmatpush1.bf16.msra.mxu0 %v1507
      %1753 = vmatprep.subr.bf16.mxu0 0
      %1754 = vmatpush1.bf16.msra.mxu0 %v1508
      %1755 = vmatprep.subr.bf16.mxu0 0
      %1756 = vmatpush1.bf16.msra.mxu0 %v1509
      %1757 = vmatprep.subr.bf16.mxu0 0
      %1758 = vmatpush1.bf16.msra.mxu0 %v1510
      %1759 = vmatprep.subr.bf16.mxu0 0
      %1760 = vmatpush1.bf16.msra.mxu0 %v1511
      %1761 = vmatprep.subr.bf16.mxu0 0
      %1762 = vmatpush1.bf16.msra.mxu0 %v1512
      %1763 = vmatprep.subr.bf16.mxu0 0
      %1764 = vmatpush1.bf16.msra.mxu0 %v1513
      %1765 = vmatprep.subr.bf16.mxu0 0
      %1766 = vmatpush1.bf16.msra.mxu0 %v1514
      %1767 = vmatprep.subr.bf16.mxu0 0
      %1768 = vmatpush1.bf16.msra.mxu0 %v1515
      %1769 = vmatprep.subr.bf16.mxu0 0
      %1770 = vmatpush1.bf16.msra.mxu0 %v1516
      %1771 = vmatprep.subr.bf16.mxu0 0
      %1772 = vmatpush1.bf16.msra.mxu0 %v1517
      %1773 = vmatprep.subr.bf16.mxu0 0
      %1774 = vmatpush1.bf16.msra.mxu0 %v1518
      %1775 = vmatprep.subr.bf16.mxu0 0
      %1776 = vmatpush1.bf16.msra.mxu0 %v1519
      %1777 = vmatprep.subr.bf16.mxu0 0
      %1778 = vmatpush1.bf16.msra.mxu0 %v1520
      %1779 = vmatprep.subr.bf16.mxu0 0
      %1780 = vmatpush1.bf16.msra.mxu0 %v1521
      %1781 = vmatprep.subr.bf16.mxu0 0
      %1782 = vmatpush1.bf16.msra.mxu0 %v1522
      %1783 = vmatprep.mubr.bf16.mxu0 %v1003
      %1784 = vmatmul.mubr.bf16.gmra.mrb[0].mxu0 %v1001
      %v1785 = vpop.f32.mrb[0].mxu0
      %v1786 = vadd.f32 %v1746, %v1785
      %v1787 = vpop.f32.mrb[0].mxu0
      %v1788 = vpop.f32.mrb[0].mxu0
      %v1789 = vpop.f32.mrb[0].mxu0
      %1790 = vdwg.mxu0
      %1791 = vmatprep.subr.bf16.mxu0 0
      %1792 = vmatpush1.bf16.msra.mxu0 %v1523
      %1793 = vmatprep.subr.bf16.mxu0 0
      %1794 = vmatpush1.bf16.msra.mxu0 %v1524
      %1795 = vmatprep.subr.bf16.mxu0 0
      %1796 = vmatpush1.bf16.msra.mxu0 %v1525
      %1797 = vmatprep.subr.bf16.mxu0 0
      %1798 = vmatpush1.bf16.msra.mxu0 %v1526
      %1799 = vmatprep.subr.bf16.mxu0 0
      %1800 = vmatpush1.bf16.msra.mxu0 %v1527
      %1801 = vmatprep.subr.bf16.mxu0 0
      %1802 = vmatpush1.bf16.msra.mxu0 %v1528
      %1803 = vmatprep.subr.bf16.mxu0 0
      %1804 = vmatpush1.bf16.msra.mxu0 %v1529
      %1805 = vmatprep.subr.bf16.mxu0 0
      %1806 = vmatpush1.bf16.msra.mxu0 %v1530
      %1807 = vmatprep.subr.bf16.mxu0 0
      %1808 = vmatpush1.bf16.msra.mxu0 %v1531
      %1809 = vmatprep.subr.bf16.mxu0 0
      %1810 = vmatpush1.bf16.msra.mxu0 %v1532
      %1811 = vmatprep.subr.bf16.mxu0 0
      %1812 = vmatpush1.bf16.msra.mxu0 %v1533
      %1813 = vmatprep.subr.bf16.mxu0 0
      %1814 = vmatpush1.bf16.msra.mxu0 %v1534
      %1815 = vmatprep.subr.bf16.mxu0 0
      %1816 = vmatpush1.bf16.msra.mxu0 %v1535
      %1817 = vmatprep.subr.bf16.mxu0 0
      %1818 = vmatpush1.bf16.msra.mxu0 %v1536
      %1819 = vmatprep.subr.bf16.mxu0 0
      %1820 = vmatpush1.bf16.msra.mxu0 %v1537
      %1821 = vmatprep.subr.bf16.mxu0 0
      %1822 = vmatpush1.bf16.msra.mxu0 %v1538
      %1823 = vmatprep.mubr.bf16.mxu0 %v1019
      %1824 = vmatmul.mubr.bf16.gmra.mrb[0].mxu0 %v1011
      %v1825 = vpop.f32.mrb[0].mxu0
      %v1826 = vadd.f32 %v1786, %v1825
      %v1827 = vpop.f32.mrb[0].mxu0
      %v1828 = vpop.f32.mrb[0].mxu0
      %v1829 = vpop.f32.mrb[0].mxu0
      %1830 = vdwg.mxu0
      %1831 = vmatprep.subr.bf16.mxu0 0
      %1832 = vmatpush1.bf16.msra.mxu0 %v1539
      %1833 = vmatprep.subr.bf16.mxu0 0
      %1834 = vmatpush1.bf16.msra.mxu0 %v1540
      %1835 = vmatprep.subr.bf16.mxu0 0
      %1836 = vmatpush1.bf16.msra.mxu0 %v1541
      %1837 = vmatprep.subr.bf16.mxu0 0
      %1838 = vmatpush1.bf16.msra.mxu0 %v1542
      %1839 = vmatprep.subr.bf16.mxu0 0
      %1840 = vmatpush1.bf16.msra.mxu0 %v1543
      %1841 = vmatprep.subr.bf16.mxu0 0
      %1842 = vmatpush1.bf16.msra.mxu0 %v1544
      %1843 = vmatprep.subr.bf16.mxu0 0
      %1844 = vmatpush1.bf16.msra.mxu0 %v1545
      %1845 = vmatprep.subr.bf16.mxu0 0
      %1846 = vmatpush1.bf16.msra.mxu0 %v1546
      %1847 = vmatprep.subr.bf16.mxu0 0
      %1848 = vmatpush1.bf16.msra.mxu0 %v1547
      %1849 = vmatprep.subr.bf16.mxu0 0
      %1850 = vmatpush1.bf16.msra.mxu0 %v1548
      %1851 = vmatprep.subr.bf16.mxu0 0
      %1852 = vmatpush1.bf16.msra.mxu0 %v1549
      %1853 = vmatprep.subr.bf16.mxu0 0
      %1854 = vmatpush1.bf16.msra.mxu0 %v1550
      %1855 = vmatprep.subr.bf16.mxu0 0
      %1856 = vmatpush1.bf16.msra.mxu0 %v1551
      %1857 = vmatprep.subr.bf16.mxu0 0
      %1858 = vmatpush1.bf16.msra.mxu0 %v1552
      %1859 = vmatprep.subr.bf16.mxu0 0
      %1860 = vmatpush1.bf16.msra.mxu0 %v1553
      %1861 = vmatprep.subr.bf16.mxu0 0
      %1862 = vmatpush1.bf16.msra.mxu0 %v1554
      %1863 = vmatprep.mubr.bf16.mxu0 %v1020
      %1864 = vmatmul.mubr.bf16.gmra.mrb[0].mxu0 %v1018
      %v1865 = vpop.f32.mrb[0].mxu0
      %v1866 = vadd.f32 %v1826, %v1865
      %v1867 = vpop.f32.mrb[0].mxu0
      %v1868 = vpop.f32.mrb[0].mxu0
      %v1869 = vpop.f32.mrb[0].mxu0
      %1870 = vdwg.mxu0
      %1871 = vmatprep.subr.bf16.mxu0 0
      %1872 = vmatpush1.bf16.msra.mxu0 %v1555
      %1873 = vmatprep.subr.bf16.mxu0 0
      %1874 = vmatpush1.bf16.msra.mxu0 %v1556
      %1875 = vmatprep.subr.bf16.mxu0 0
      %1876 = vmatpush1.bf16.msra.mxu0 %v1557
      %1877 = vmatprep.subr.bf16.mxu0 0
      %1878 = vmatpush1.bf16.msra.mxu0 %v1558
      %1879 = vmatprep.subr.bf16.mxu0 0
      %1880 = vmatpush1.bf16.msra.mxu0 %v1559
      %1881 = vmatprep.subr.bf16.mxu0 0
      %1882 = vmatpush1.bf16.msra.mxu0 %v1560
      %1883 = vmatprep.subr.bf16.mxu0 0
      %1884 = vmatpush1.bf16.msra.mxu0 %v1561
      %1885 = vmatprep.subr.bf16.mxu0 0
      %1886 = vmatpush1.bf16.msra.mxu0 %v1562
      %1887 = vmatprep.subr.bf16.mxu0 0
      %1888 = vmatpush1.bf16.msra.mxu0 %v1563
      %1889 = vmatprep.subr.bf16.mxu0 0
      %1890 = vmatpush1.bf16.msra.mxu0 %v1564
      %1891 = vmatprep.subr.bf16.mxu0 0
      %1892 = vmatpush1.bf16.msra.mxu0 %v1565
      %1893 = vmatprep.subr.bf16.mxu0 0
      %1894 = vmatpush1.bf16.msra.mxu0 %v1566
      %1895 = vmatprep.subr.bf16.mxu0 0
      %1896 = vmatpush1.bf16.msra.mxu0 %v1567
      %1897 = vmatprep.subr.bf16.mxu0 0
      %1898 = vmatpush1.bf16.msra.mxu0 %v1568
      %1899 = vmatprep.subr.bf16.mxu0 0
      %1900 = vmatpush1.bf16.msra.mxu0 %v1569
      %1901 = vmatprep.subr.bf16.mxu0 0
      %1902 = vmatpush1.bf16.msra.mxu0 %v1570
      %1903 = vmatprep.mubr.bf16.mxu0 %v1036
      %1904 = vmatmul.mubr.bf16.gmra.mrb[0].mxu0 %v1028
      %v1905 = vpop.f32.mrb[0].mxu0
      %v1906 = vadd.f32 %v1866, %v1905
      %v1907 = vpop.f32.mrb[0].mxu0
      %v1908 = vpop.f32.mrb[0].mxu0
      %v1909 = vpop.f32.mrb[0].mxu0
      %1910 = vdwg.mxu0
      %1911 = vmatprep.subr.bf16.mxu0 0
      %1912 = vmatpush1.bf16.msra.mxu0 %v1571
      %1913 = vmatprep.subr.bf16.mxu0 0
      %1914 = vmatpush1.bf16.msra.mxu0 %v1572
      %1915 = vmatprep.subr.bf16.mxu0 0
      %1916 = vmatpush1.bf16.msra.mxu0 %v1573
      %1917 = vmatprep.subr.bf16.mxu0 0
      %1918 = vmatpush1.bf16.msra.mxu0 %v1574
      %1919 = vmatprep.subr.bf16.mxu0 0
      %1920 = vmatpush1.bf16.msra.mxu0 %v1575
      %1921 = vmatprep.subr.bf16.mxu0 0
      %1922 = vmatpush1.bf16.msra.mxu0 %v1576
      %1923 = vmatprep.subr.bf16.mxu0 0
      %1924 = vmatpush1.bf16.msra.mxu0 %v1577
      %1925 = vmatprep.subr.bf16.mxu0 0
      %1926 = vmatpush1.bf16.msra.mxu0 %v1578
      %1927 = vmatprep.subr.bf16.mxu0 0
      %1928 = vmatpush1.bf16.msra.mxu0 %v1579
      %1929 = vmatprep.subr.bf16.mxu0 0
      %1930 = vmatpush1.bf16.msra.mxu0 %v1580
      %1931 = vmatprep.subr.bf16.mxu0 0
      %1932 = vmatpush1.bf16.msra.mxu0 %v1581
      %1933 = vmatprep.subr.bf16.mxu0 0
      %1934 = vmatpush1.bf16.msra.mxu0 %v1582
      %1935 = vmatprep.subr.bf16.mxu0 0
      %1936 = vmatpush1.bf16.msra.mxu0 %v1583
      %1937 = vmatprep.subr.bf16.mxu0 0
      %1938 = vmatpush1.bf16.msra.mxu0 %v1584
      %1939 = vmatprep.subr.bf16.mxu0 0
      %1940 = vmatpush1.bf16.msra.mxu0 %v1585
      %1941 = vmatprep.subr.bf16.mxu0 0
      %1942 = vmatpush1.bf16.msra.mxu0 %v1586
      %1943 = vmatprep.mubr.bf16.mxu0 %v1037
      %1944 = vmatmul.mubr.bf16.gmra.mrb[0].mxu0 %v1035
      %v1945 = vpop.f32.mrb[0].mxu0
      %v1946 = vadd.f32 %v1906, %v1945
      %v1947 = vpop.f32.mrb[0].mxu0
      %v1948 = vpop.f32.mrb[0].mxu0
      %v1949 = vpop.f32.mrb[0].mxu0
      %1950 = vdwg.mxu0
      %1951 = vmatprep.subr.bf16.mxu0 0
      %1952 = vmatpush1.bf16.msra.mxu0 %v1587
      %1953 = vmatprep.subr.bf16.mxu0 0
      %1954 = vmatpush1.bf16.msra.mxu0 %v1588
      %1955 = vmatprep.subr.bf16.mxu0 0
      %1956 = vmatpush1.bf16.msra.mxu0 %v1589
      %1957 = vmatprep.subr.bf16.mxu0 0
      %1958 = vmatpush1.bf16.msra.mxu0 %v1590
      %1959 = vmatprep.subr.bf16.mxu0 0
      %1960 = vmatpush1.bf16.msra.mxu0 %v1591
      %1961 = vmatprep.subr.bf16.mxu0 0
      %1962 = vmatpush1.bf16.msra.mxu0 %v1592
      %1963 = vmatprep.subr.bf16.mxu0 0
      %1964 = vmatpush1.bf16.msra.mxu0 %v1593
      %1965 = vmatprep.subr.bf16.mxu0 0
      %1966 = vmatpush1.bf16.msra.mxu0 %v1594
      %1967 = vmatprep.subr.bf16.mxu0 0
      %1968 = vmatpush1.bf16.msra.mxu0 %v1595
      %1969 = vmatprep.subr.bf16.mxu0 0
      %1970 = vmatpush1.bf16.msra.mxu0 %v1596
      %1971 = vmatprep.subr.bf16.mxu0 0
      %1972 = vmatpush1.bf16.msra.mxu0 %v1597
      %1973 = vmatprep.subr.bf16.mxu0 0
      %1974 = vmatpush1.bf16.msra.mxu0 %v1598
      %1975 = vmatprep.subr.bf16.mxu0 0
      %1976 = vmatpush1.bf16.msra.mxu0 0
      %1977 = vmatprep.subr.bf16.mxu0 0
      %1978 = vmatpush1.bf16.msra.mxu0 0
      %1979 = vmatprep.subr.bf16.mxu0 0
      %1980 = vmatpush1.bf16.msra.mxu0 0
      %1981 = vmatprep.subr.bf16.mxu0 0
      %1982 = vmatpush1.bf16.msra.mxu0 0
      %1983 = vmatprep.mubr.bf16.mxu0 %v1709
      %1984 = vmatmul.mubr.bf16.gmra.mrb[0].mxu0 %v1044
      %v1985 = vpop.f32.mrb[0].mxu0
      %v1986 = vadd.f32 %v1946, %v1985
      %v1987 = vpop.f32.mrb[0].mxu0
      %v1988 = vpop.f32.mrb[0].mxu0
      %v1989 = vpop.f32.mrb[0].mxu0
      %1990 = vdwg.mxu0
      %v1991 = vmax.f32 %v1986, 0.0
      %1992 = vst [vmem:[%s340] sm:$0xf] %v1991
      %p1993 = scmp.lt.s32.totalorder %s20, 1
      %s1994 = scalar_select %p1993, %s20, 1
      %p1995 = scmp.lt.s32.totalorder %s21, 1
      %s1996 = scalar_select %p1995, %s21, 1
      %s1997 = smul.addr %s1994, 2
      %s1998 = sadd.s32 %s1996, %s1997
      %s1999 = smul.addr %s1998, 4
      %s2000 = scalar_lea.vmem %s5, %s1999
      // Predicated region
      $region41: #{conv3d_model_forward.12} parent=39 // pred_check
        %p2001 = pneg %p178
      $region42: #{conv3d_model_forward.12} parent=39 // pred_check_branch
        %2003 = sbr.rel (%p2001) target = $region44
      $region43: #{conv3d_model_forward.12} parent=39 // pred_region
        _
      $region44: #{conv3d_model_forward.12} parent=39 // pred_fallthru
        _
    $region40: #{conv3d_model_forward.12} parent=5 // pred_fallthru
      _
    %p2004 = scmp.le.s32.totalorder 2, %s11
    // Predicated region
    $region45: #{conv3d_model_forward.12} parent=5 // pred_check
      %p2005 = pneg %p2004
    $region46: #{conv3d_model_forward.12} parent=5 // pred_check_branch
      %2007 = sbr.rel (%p2005) target = $region48
    $region47: #{conv3d_model_forward.12} parent=5 // pred_region
      %s2008 = ssub.s32 %s11, 2
      // Predicated region
      $region49: #{conv3d_model_forward.12} parent=47 // pred_check
        %p2009 = pneg %p184
      $region50: #{conv3d_model_forward.12} parent=47 // pred_check_branch
        %2011 = sbr.rel (%p2009) target = $region52
      $region51: #{conv3d_model_forward.12} parent=47 // pred_region
        %p2012 = scmp.lt.s32.totalorder %s22, 1
        %s2013 = scalar_select %p2012, %s22, 1
        %p2014 = scmp.lt.s32.totalorder %s23, 1
        %s2015 = scalar_select %p2014, %s23, 1
        %s2016 = smul.addr %s2013, 2
        %s2017 = sadd.s32 %s2015, %s2016
        %s2018 = smul.addr %s2017, 4
        %s2019 = scalar_lea.vmem %s5, %s2018
      $region52: #{conv3d_model_forward.12} parent=47 // pred_fallthru
        _
    $region48: #{conv3d_model_forward.12} parent=5 // pred_fallthru
      _
  $region6: #{conv3d_model_forward.12} parent=0 // loop_footer
    %s15 = sadd.s32 1, %s11
  $region7: #{conv3d_model_forward.12} parent=0 // loop_footer_branch
    %10 = sbr.rel target = $region3
  $region8: #{conv3d_model_forward.12} parent=0 // loop_exit
    _

// kernel: conv3d_model_forward.10
$region0: #{conv3d_model_forward.10}
  #allocation0 [shape = 'u32[]', space=smem, size = 0x4, offset = 0x4, fixed_abs, tag = 'smem constant byte address 0x4 - core index']
  #allocation1 [shape = 'u32[144,128]{1,0:T(1,128)}', space=vmem, size = 0x12000, scoped, tag = 'internal scratch']
  #allocation2 [shape = 'bf16[16,864]{1,0:T(16,128)(2,1)}', space=vmem, size = 0x7000, scoped, tag = 'scratch operand']
  %s0 = inlined_call_operand.vmem [shape: bf16[2,6,6,6,32], index: 0, kind: input, shape index: {}, may-alias: {0,1,2}]
  %s1 = inlined_call_operand.vmem [shape: bf16[2,6,6,6,32], index: 1, kind: input, shape index: {}, may-alias: {0,1,2}]
  %s2 = inlined_call_operand.vmem [shape: bf16[2,6,6,6,32], index: 2, kind: input, shape index: {}, may-alias: {0,1,2}]
  %s3 = inlined_call_operand.vmem [shape: bf16[864,64], index: 3, kind: input, shape index: {}]
  %s4 = inlined_call_operand.vmem [shape: f32[1,64], index: 4, kind: input, shape index: {}]
  %s5 = inlined_call_operand.vmem [shape: f32[2,4,16,64], index: 5, kind: output, shape index: {}]
  %s6 = sld [smem:[#allocation0]]
  $region53: #{conv3d_model_forward.10} parent=0
    _
  %s8 = ssub.s32 1, %s6
  %s9 = scalar_select 0, %s8, %s6
  loop: start=0, step=1, limit=10
  $region2: #{conv3d_model_forward.10} parent=0 // loop_pre_header
    _
  $region3: #{conv3d_model_forward.10} parent=0 // loop_header
    %s11 = sphi 0, %s15
    %p12 = scmp.ge.s32.totalorder %s11, 10
    %s18 = sphi 0, %s30
    %s19 = sphi 0, %s26
    %s20 = sphi 0, %s18
    %s21 = sphi 0, %s19
    %s22 = sphi 0, %s20
    %s23 = sphi 0, %s21
    %s35 = sphi 0, %s37
    %s38 = sphi 0, %s35
    %s39 = sphi 0, %s38
    %s55 = sphi 0, %s39
    %s65 = sphi 0, %s67
    %s68 = sphi 0, %s65
    %s69 = sphi 0, %s68
    %s85 = sphi 0, %s69
    %s95 = sphi 0, %s97
    %s98 = sphi 0, %s95
    %s99 = sphi 0, %s98
    %s115 = sphi 0, %s99
    %s119 = sphi 0, %s119
    %s121 = sphi 0, %s119
    %s122 = sphi 0, %s121
    %s136 = sphi 0, %s122
    %s140 = sphi 0, %s140
    %s142 = sphi 0, %s140
    %s143 = sphi 0, %s142
    %s157 = sphi 0, %s143
    %s165 = sphi 0, %s167
    %s168 = sphi 0, %s165
    %s169 = sphi 0, %s168
    %s185 = sphi 0, %s169
  $region4: #{conv3d_model_forward.10} parent=0 // loop_header_branch
    %14 = sbr.rel (%p12) target = $region8
  $region5: #{conv3d_model_forward.10} parent=0 // loop_body
    %s16 = ssub.s32 %s11, 1
    %s17 = ssub.s32 %s11, 2
    %s24 = sadd.s32 1, %s19
    %p25 = scmp.ge.s32.totalorder %s24, 4
    %s26 = scalar_select %p25, 0, %s24
    %s27 = sadd.s32 1, %s18
    %s28 = scalar_select %p25, %s27, %s18
    %p29 = scmp.ge.s32.totalorder %s28, 2
    %s30 = scalar_select %p29, 0, %s28
    %s31 = ssub.s32 %s18, %s30
    %s32 = ssub.s32 %s19, %s26
    %s33 = sor.u32 %s31, %s32
    %p34 = scmp.eq.s32.totalorder %s33, 0
    %s36 = sadd.s32 %s35, 1
    %s37 = scalar_select %p34, %s35, %s36
    %p40 = pneg %p34
    %p41 = scmp.eq.s32.totalorder %s11, 7
    %p42 = por %p40, %p41
    %p43 = scmp.ne.s32.totalorder %s35, %s38
    %p44 = scmp.eq.s32.totalorder %s11, 0
    %p45 = por %p43, %p44
    %p46 = scmp.ne.s32.totalorder %s35, %s38
    %p47 = scmp.eq.s32.totalorder %s16, 7
    %p48 = por %p46, %p47
    %p49 = scmp.ne.s32.totalorder %s38, %s39
    %p50 = scmp.eq.s32.totalorder %s16, 0
    %p51 = por %p49, %p50
    %p52 = scmp.ne.s32.totalorder %s38, %s39
    %p53 = scmp.eq.s32.totalorder %s17, 7
    %p54 = por %p52, %p53
    %p56 = scmp.ne.s32.totalorder %s39, %s55
    %p57 = scmp.eq.s32.totalorder %s17, 0
    %p58 = por %p56, %p57
    %s59 = sadd.s32 %s19, 1
    %s60 = sadd.s32 %s26, 1
    %s61 = ssub.s32 %s18, %s30
    %s62 = ssub.s32 %s59, %s60
    %s63 = sor.u32 %s61, %s62
    %p64 = scmp.eq.s32.totalorder %s63, 0
    %s66 = sadd.s32 %s65, 1
    %s67 = scalar_select %p64, %s65, %s66
    %p70 = pneg %p64
    %p71 = scmp.eq.s32.totalorder %s11, 7
    %p72 = por %p70, %p71
    %p73 = scmp.ne.s32.totalorder %s65, %s68
    %p74 = scmp.eq.s32.totalorder %s11, 0
    %p75 = por %p73, %p74
    %p76 = scmp.ne.s32.totalorder %s65, %s68
    %p77 = scmp.eq.s32.totalorder %s16, 7
    %p78 = por %p76, %p77
    %p79 = scmp.ne.s32.totalorder %s68, %s69
    %p80 = scmp.eq.s32.totalorder %s16, 0
    %p81 = por %p79, %p80
    %p82 = scmp.ne.s32.totalorder %s68, %s69
    %p83 = scmp.eq.s32.totalorder %s17, 7
    %p84 = por %p82, %p83
    %p86 = scmp.ne.s32.totalorder %s69, %s85
    %p87 = scmp.eq.s32.totalorder %s17, 0
    %p88 = por %p86, %p87
    %s89 = sadd.s32 %s19, 2
    %s90 = sadd.s32 %s26, 2
    %s91 = ssub.s32 %s18, %s30
    %s92 = ssub.s32 %s89, %s90
    %s93 = sor.u32 %s91, %s92
    %p94 = scmp.eq.s32.totalorder %s93, 0
    %s96 = sadd.s32 %s95, 1
    %s97 = scalar_select %p94, %s95, %s96
    %p100 = pneg %p94
    %p101 = scmp.eq.s32.totalorder %s11, 7
    %p102 = por %p100, %p101
    %p103 = scmp.ne.s32.totalorder %s95, %s98
    %p104 = scmp.eq.s32.totalorder %s11, 0
    %p105 = por %p103, %p104
    %p106 = scmp.ne.s32.totalorder %s95, %s98
    %p107 = scmp.eq.s32.totalorder %s16, 7
    %p108 = por %p106, %p107
    %p109 = scmp.ne.s32.totalorder %s98, %s99
    %p110 = scmp.eq.s32.totalorder %s16, 0
    %p111 = por %p109, %p110
    %p112 = scmp.ne.s32.totalorder %s98, %s99
    %p113 = scmp.eq.s32.totalorder %s17, 7
    %p114 = por %p112, %p113
    %p116 = scmp.ne.s32.totalorder %s99, %s115
    %p117 = scmp.eq.s32.totalorder %s17, 0
    %p118 = por %p116, %p117
    %s120 = sadd.s32 %s119, 1
    %p123 = scmp.eq.s32.totalorder %s11, 7
    %p124 = scmp.ne.s32.totalorder %s119, %s121
    %p125 = scmp.eq.s32.totalorder %s11, 0
    %p126 = por %p124, %p125
    %p127 = scmp.ne.s32.totalorder %s119, %s121
    %p128 = scmp.eq.s32.totalorder %s16, 7
    %p129 = por %p127, %p128
    %p130 = scmp.ne.s32.totalorder %s121, %s122
    %p131 = scmp.eq.s32.totalorder %s16, 0
    %p132 = por %p130, %p131
    %p133 = scmp.ne.s32.totalorder %s121, %s122
    %p134 = scmp.eq.s32.totalorder %s17, 7
    %p135 = por %p133, %p134
    %p137 = scmp.ne.s32.totalorder %s122, %s136
    %p138 = scmp.eq.s32.totalorder %s17, 0
    %p139 = por %p137, %p138
    %s141 = sadd.s32 %s140, 1
    %p144 = scmp.eq.s32.totalorder %s11, 7
    %p145 = scmp.ne.s32.totalorder %s140, %s142
    %p146 = scmp.eq.s32.totalorder %s11, 0
    %p147 = por %p145, %p146
    %p148 = scmp.ne.s32.totalorder %s140, %s142
    %p149 = scmp.eq.s32.totalorder %s16, 7
    %p150 = por %p148, %p149
    %p151 = scmp.ne.s32.totalorder %s142, %s143
    %p152 = scmp.eq.s32.totalorder %s16, 0
    %p153 = por %p151, %p152
    %p154 = scmp.ne.s32.totalorder %s142, %s143
    %p155 = scmp.eq.s32.totalorder %s17, 7
    %p156 = por %p154, %p155
    %p158 = scmp.ne.s32.totalorder %s143, %s157
    %p159 = scmp.eq.s32.totalorder %s17, 0
    %p160 = por %p158, %p159
    %s161 = ssub.s32 %s18, %s30
    %s162 = ssub.s32 %s19, %s26
    %s163 = sor.u32 %s161, %s162
    %p164 = scmp.eq.s32.totalorder %s163, 0
    %s166 = sadd.s32 %s165, 1
    %s167 = scalar_select %p164, %s165, %s166
    %p170 = pneg %p164
    %p171 = scmp.eq.s32.totalorder %s11, 7
    %p172 = por %p170, %p171
    %p173 = scmp.ne.s32.totalorder %s165, %s168
    %p174 = scmp.eq.s32.totalorder %s11, 0
    %p175 = por %p173, %p174
    %p176 = scmp.ne.s32.totalorder %s165, %s168
    %p177 = scmp.eq.s32.totalorder %s16, 7
    %p178 = por %p176, %p177
    %p179 = scmp.ne.s32.totalorder %s168, %s169
    %p180 = scmp.eq.s32.totalorder %s16, 0
    %p181 = por %p179, %p180
    %p182 = scmp.ne.s32.totalorder %s168, %s169
    %p183 = scmp.eq.s32.totalorder %s17, 7
    %p184 = por %p182, %p183
    %p186 = scmp.ne.s32.totalorder %s169, %s185
    %p187 = scmp.eq.s32.totalorder %s17, 0
    %p188 = por %p186, %p187
    %p189 = scmp.le.s32.totalorder 1, %s11
    %p190 = scmp.lt.s32.totalorder %s11, 9
    %p191 = pnand %p189, %p190
    %p192 = pneg %p191
    // Predicated region
    $region9: #{conv3d_model_forward.10} parent=5 // pred_check
      _
    $region10: #{conv3d_model_forward.10} parent=5 // pred_check_branch
      %194 = sbr.rel (%p191) target = $region12
    $region11: #{conv3d_model_forward.10} parent=5 // pred_region
      %s195 = ssub.s32 %s11, 1
      // Predicated region
      $region13: #{conv3d_model_forward.10} parent=11 // pred_check
        %p196 = pneg %p132
      $region14: #{conv3d_model_forward.10} parent=11 // pred_check_branch
        %198 = sbr.rel (%p196) target = $region16
      $region15: #{conv3d_model_forward.10} parent=11 // pred_region
        _
      $region16: #{conv3d_model_forward.10} parent=11 // pred_fallthru
        _
      // Predicated region
      $region17: #{conv3d_model_forward.10} parent=11 // pred_check
        %p199 = pneg %p153
      $region18: #{conv3d_model_forward.10} parent=11 // pred_check_branch
        %201 = sbr.rel (%p199) target = $region20
      $region19: #{conv3d_model_forward.10} parent=11 // pred_region
        _
      $region20: #{conv3d_model_forward.10} parent=11 // pred_fallthru
        _
    $region12: #{conv3d_model_forward.10} parent=5 // pred_fallthru
      _
    %p202 = scmp.lt.s32.totalorder %s11, 8
    // Predicated region
    $region21: #{conv3d_model_forward.10} parent=5 // pred_check
      %p203 = pneg %p202
    $region22: #{conv3d_model_forward.10} parent=5 // pred_check_branch
      %205 = sbr.rel (%p203) target = $region24
    $region23: #{conv3d_model_forward.10} parent=5 // pred_region
      // Predicated region
      $region25: #{conv3d_model_forward.10} parent=23 // pred_check
        %p206 = pneg %p45
      $region26: #{conv3d_model_forward.10} parent=23 // pred_check_branch
        %208 = sbr.rel (%p206) target = $region28
      $region27: #{conv3d_model_forward.10} parent=23 // pred_region
        %p209 = scmp.lt.s32.totalorder %s18, 1
        %s210 = scalar_select %p209, %s18, 1
        %p211 = scmp.lt.s32.totalorder %s19, 5
        %s212 = scalar_select %p211, %s19, 5
        %s213 = smul.addr %s212, 6
        %s214 = smul.addr %s210, 36
        %s215 = sadd.s32 %s213, %s214
        %s216 = smul.addr %s215, 4
        %s217 = scalar_lea.vmem %s0, %s216
      $region28: #{conv3d_model_forward.10} parent=23 // pred_fallthru
        _
      // Predicated region
      $region29: #{conv3d_model_forward.10} parent=23 // pred_check
        %p218 = pneg %p75
      $region30: #{conv3d_model_forward.10} parent=23 // pred_check_branch
        %220 = sbr.rel (%p218) target = $region32
      $region31: #{conv3d_model_forward.10} parent=23 // pred_region
        %s221 = sadd.s32 %s19, 1
        %p222 = scmp.lt.s32.totalorder %s18, 1
        %s223 = scalar_select %p222, %s18, 1
        %p224 = scmp.lt.s32.totalorder %s221, 5
        %s225 = scalar_select %p224, %s221, 5
        %s226 = smul.addr %s225, 6
        %s227 = smul.addr %s223, 36
        %s228 = sadd.s32 %s226, %s227
        %s229 = smul.addr %s228, 4
        %s230 = scalar_lea.vmem %s1, %s229
        %s231 = sadd.s32 %s19, 1
      $region32: #{conv3d_model_forward.10} parent=23 // pred_fallthru
        _
      // Predicated region
      $region33: #{conv3d_model_forward.10} parent=23 // pred_check
        %p232 = pneg %p105
      $region34: #{conv3d_model_forward.10} parent=23 // pred_check_branch
        %234 = sbr.rel (%p232) target = $region36
      $region35: #{conv3d_model_forward.10} parent=23 // pred_region
        %s235 = sadd.s32 %s19, 2
        %p236 = scmp.lt.s32.totalorder %s18, 1
        %s237 = scalar_select %p236, %s18, 1
        %p238 = scmp.lt.s32.totalorder %s235, 5
        %s239 = scalar_select %p238, %s235, 5
        %s240 = smul.addr %s239, 6
        %s241 = smul.addr %s237, 36
        %s242 = sadd.s32 %s240, %s241
        %s243 = smul.addr %s242, 4
        %s244 = scalar_lea.vmem %s2, %s243
        %s245 = sadd.s32 %s19, 2
      $region36: #{conv3d_model_forward.10} parent=23 // pred_fallthru
        _
    $region24: #{conv3d_model_forward.10} parent=5 // pred_fallthru
      _
    %p246 = scmp.le.s32.totalorder 1, %s11
    %p247 = scmp.lt.s32.totalorder %s11, 9
    %p248 = pnand %p246, %p247
    %p249 = pneg %p248
    // Predicated region
    $region37: #{conv3d_model_forward.10} parent=5 // pred_check
      _
    $region38: #{conv3d_model_forward.10} parent=5 // pred_check_branch
      %251 = sbr.rel (%p248) target = $region40
    $region39: #{conv3d_model_forward.10} parent=5 // pred_region
      %s252 = ssub.s32 %s11, 1
      %p253 = scmp.lt.s32.totalorder %s20, 1
      %s254 = scalar_select %p253, %s20, 1
      %p255 = scmp.lt.s32.totalorder %s21, 5
      %s256 = scalar_select %p255, %s21, 5
      %s257 = smul.addr %s256, 6
      %s258 = smul.addr %s254, 36
      %s259 = sadd.s32 %s257, %s258
      %s260 = smul.addr %s259, 4
      %s261 = scalar_lea.vmem %s0, %s260
      %p262 = pneg %p51
      %p263 = pneg %p48
      %s264 = sadd.s32 %s21, 1
      %p265 = scmp.lt.s32.totalorder %s20, 1
      %s266 = scalar_select %p265, %s20, 1
      %p267 = scmp.lt.s32.totalorder %s264, 5
      %s268 = scalar_select %p267, %s264, 5
      %s269 = smul.addr %s268, 6
      %s270 = smul.addr %s266, 36
      %s271 = sadd.s32 %s269, %s270
      %s272 = smul.addr %s271, 4
      %s273 = scalar_lea.vmem %s1, %s272
      %p274 = pneg %p81
      %p275 = pneg %p78
      %s276 = sadd.s32 %s21, 2
      %p277 = scmp.lt.s32.totalorder %s20, 1
      %s278 = scalar_select %p277, %s20, 1
      %p279 = scmp.lt.s32.totalorder %s276, 5
      %s280 = scalar_select %p279, %s276, 5
      %s281 = smul.addr %s280, 6
      %s282 = smul.addr %s278, 36
      %s283 = sadd.s32 %s281, %s282
      %s284 = smul.addr %s283, 4
      %s285 = scalar_lea.vmem %s2, %s284
      %p286 = pneg %p111
      %p287 = pneg %p108
      %p288 = pneg %p132
      %p289 = pneg %p129
      %p290 = pneg %p153
      %p291 = pneg %p150
      %p292 = pneg %p181
      %p293 = pneg %p178
      %p294 = scmp.lt.s32.totalorder %s20, 1
      %s295 = scalar_select %p294, %s20, 1
      %p296 = scmp.lt.s32.totalorder %s21, 3
      %s297 = scalar_select %p296, %s21, 3
      %s298 = smul.addr %s297, 2
      %s299 = smul.addr %s295, 8
      %s300 = sadd.s32 %s298, %s299
      %s301 = smul.addr %s300, 8
      %s302 = scalar_lea.vmem %s5, %s301
      %p303 = scmp.lt.s32.totalorder %s20, 1
      %s304 = scalar_select %p303, %s20, 1
      %p305 = scmp.lt.s32.totalorder %s21, 5
      %s306 = scalar_select %p305, %s21, 5
      %s307 = smul.addr %s306, 6
      %s308 = smul.addr %s304, 36
      %s309 = sadd.s32 %s307, %s308
      %s310 = smul.addr %s309, 4
      %s311 = scalar_lea.vmem %s0, %s310
      %s312 = sadd.s32 %s21, 1
      %p313 = scmp.lt.s32.totalorder %s20, 1
      %s314 = scalar_select %p313, %s20, 1
      %p315 = scmp.lt.s32.totalorder %s312, 5
      %s316 = scalar_select %p315, %s312, 5
      %s317 = smul.addr %s316, 6
      %s318 = smul.addr %s314, 36
      %s319 = sadd.s32 %s317, %s318
      %s320 = smul.addr %s319, 4
      %s321 = scalar_lea.vmem %s1, %s320
      %s322 = sadd.s32 %s21, 1
      %s323 = sadd.s32 %s21, 2
      %p324 = scmp.lt.s32.totalorder %s20, 1
      %s325 = scalar_select %p324, %s20, 1
      %p326 = scmp.lt.s32.totalorder %s323, 5
      %s327 = scalar_select %p326, %s323, 5
      %s328 = smul.addr %s327, 6
      %s329 = smul.addr %s325, 36
      %s330 = sadd.s32 %s328, %s329
      %s331 = smul.addr %s330, 4
      %s332 = scalar_lea.vmem %s2, %s331
      %s333 = sadd.s32 %s21, 2
      %p334 = scmp.lt.s32.totalorder %s20, 1
      %s335 = scalar_select %p334, %s20, 1
      %p336 = scmp.lt.s32.totalorder %s21, 3
      %s337 = scalar_select %p336, %s21, 3
      %s338 = smul.addr %s337, 2
      %s339 = smul.addr %s335, 8
      %s340 = sadd.s32 %s338, %s339
      %s341 = smul.addr %s340, 8
      %s342 = scalar_lea.vmem %s5, %s341
      %v344 = vld [vmem:[%s311] sm:$0x3]
      %vm345 = vcmask 254976
      %346 = vst.msk [vmem:[#allocation2] sm:$0x3] %vm345, %v344
      %s347 = scalar_lea.vmem %s311, 4
      %v348 = vld [vmem:[%s347] sm:$0x3]
      %v350 = vunpack.c.l.b16 %v348
      %v351 = vpack.c.b16 %v350, %v350
      %v352 = vrot.slane %v351, 6
      %vm354 = vcmask 257026
      %355 = vst.msk [vmem:[#allocation2] sm:$0xc] %vm354, %v352
      %s356 = scalar_lea.vmem %s311, 8
      %v357 = vld [vmem:[%s356] sm:$0x3]
      %v359 = vunpack.c.l.b16 %v357
      %v360 = vpack.c.b16 %v359, %v359
      %vm362 = vcmask 259076
      %363 = vst.msk [vmem:[#allocation2] sm:$0x30] %vm362, %v360
      %s364 = scalar_lea.vmem %s311, 12
      %v365 = vld [vmem:[%s364] sm:$0x3]
      %v367 = vunpack.c.l.b16 %v365
      %v368 = vpack.c.b16 %v367, %v367
      %v369 = vrot.slane %v368, 2
      %vm371 = vcmask 261126
      %372 = vst.msk [vmem:[#allocation2] sm:$0xc0] %vm371, %v369
      %v373 = vld [vmem:[%s311] sm:$0x7]
      %v375 = vunpack.c.l.b16 %v373
      %v376 = vpack.c.b16 %v375, %v375
      %v378 = vshrl.u32 %v376, 16
      %v380 = vshll.u32 %v376, 16
      %v382 = vrot.slane %v380, 1
      %v383 = vor.u32 %v378, %v382
      %384 = vrot.lane.b32.xlu0 %v383, 32
      %v385 = vpop.permute.xlu0 %384
      %vm387 = vcmask 517376
      %388 = vst.msk [vmem:[#allocation2] sm:$0x3] %vm387, %v385
      %v389 = vld [vmem:[%s347] sm:$0x7]
      %v391 = vunpack.c.l.b16 %v389
      %v392 = vpack.c.b16 %v391, %v391
      %v394 = vshrl.u32 %v392, 16
      %v396 = vrot.slane %v394, 6
      %v397 = vshll.u32 %v392, 16
      %v399 = vrot.slane %v397, 7
      %v400 = vor.u32 %v396, %v399
      %401 = vrot.lane.b32.xlu0 %v400, 32
      %v402 = vpop.permute.xlu0 %401
      %vm404 = vcmask 519426
      %405 = vst.msk [vmem:[#allocation2] sm:$0xc] %vm404, %v402
      %v406 = vld [vmem:[%s356] sm:$0x7]
      %v408 = vunpack.c.l.b16 %v406
      %v409 = vpack.c.b16 %v408, %v408
      %v411 = vshrl.u32 %v409, 16
      %v413 = vrot.slane %v411, 4
      %v414 = vshll.u32 %v409, 16
      %v416 = vrot.slane %v414, 5
      %v417 = vor.u32 %v413, %v416
      %418 = vrot.lane.b32.xlu0 %v417, 32
      %v419 = vpop.permute.xlu0 %418
      %vm421 = vcmask 521476
      %422 = vst.msk [vmem:[#allocation2] sm:$0x30] %vm421, %v419
      %v423 = vld [vmem:[%s364] sm:$0x7]
      %v425 = vunpack.c.l.b16 %v423
      %v426 = vpack.c.b16 %v425, %v425
      %v428 = vshrl.u32 %v426, 16
      %v430 = vrot.slane %v428, 2
      %v431 = vshll.u32 %v426, 16
      %v433 = vrot.slane %v431, 3
      %v434 = vor.u32 %v430, %v433
      %435 = vrot.lane.b32.xlu0 %v434, 32
      %v436 = vpop.permute.xlu0 %435
      %vm438 = vcmask 523526
      %439 = vst.msk [vmem:[#allocation2] sm:$0xc0] %vm438, %v436
      %v440 = vld [vmem:[%s311] sm:$0x6]
      %v442 = vunpack.c.l.b16 %v440
      %v443 = vpack.c.b16 %v442, %v442
      %v444 = vrot.slane %v443, 1
      %445 = vrot.lane.b32.xlu0 %v444, 64
      %v446 = vpop.permute.xlu0 %445
      %vm448 = vcmask 779776
      %449 = vst.msk [vmem:[#allocation2] sm:$0x3] %vm448, %v446
      %v450 = vld [vmem:[%s347] sm:$0x6]
      %v452 = vunpack.c.l.b16 %v450
      %v453 = vpack.c.b16 %v452, %v452
      %v454 = vrot.slane %v453, 7
      %455 = vrot.lane.b32.xlu0 %v454, 64
      %v456 = vpop.permute.xlu0 %455
      %vm458 = vcmask 781826
      %459 = vst.msk [vmem:[#allocation2] sm:$0xc] %vm458, %v456
      %v460 = vld [vmem:[%s356] sm:$0x6]
      %v462 = vunpack.c.l.b16 %v460
      %v463 = vpack.c.b16 %v462, %v462
      %v464 = vrot.slane %v463, 5
      %465 = vrot.lane.b32.xlu0 %v464, 64
      %v466 = vpop.permute.xlu0 %465
      %vm468 = vcmask 783876
      %469 = vst.msk [vmem:[#allocation2] sm:$0x30] %vm468, %v466
      %v470 = vld [vmem:[%s364] sm:$0x6]
      %v472 = vunpack.c.l.b16 %v470
      %v473 = vpack.c.b16 %v472, %v472
      %v474 = vrot.slane %v473, 3
      %475 = vrot.lane.b32.xlu0 %v474, 64
      %v476 = vpop.permute.xlu0 %475
      %vm478 = vcmask 785926
      %479 = vst.msk [vmem:[#allocation2] sm:$0xc0] %vm478, %v476
      %v480 = vld [vmem:[%s347] sm:$0x3]
      %v482 = vunpack.c.l.b16 %v480
      %v483 = vpack.c.b16 %v482, %v482
      %484 = vrot.lane.b32.xlu0 %v483, 96
      %v485 = vpop.permute.xlu0 %484
      %vm487 = vcmask 1042176
      %488 = vst.msk [vmem:[#allocation2] sm:$0x3] %vm487, %v485
      %v489 = vld [vmem:[%s356] sm:$0x3]
      %v491 = vunpack.c.l.b16 %v489
      %v492 = vpack.c.b16 %v491, %v491
      %v493 = vrot.slane %v492, 6
      %494 = vrot.lane.b32.xlu0 %v493, 96
      %v495 = vpop.permute.xlu0 %494
      %vm497 = vcmask 1044226
      %498 = vst.msk [vmem:[#allocation2] sm:$0xc] %vm497, %v495
      %v499 = vld [vmem:[%s364] sm:$0x3]
      %v501 = vunpack.c.l.b16 %v499
      %v502 = vpack.c.b16 %v501, %v501
      %503 = vrot.lane.b32.xlu0 %v502, 96
      %v504 = vpop.permute.xlu0 %503
      %vm506 = vcmask 1046276
      %507 = vst.msk [vmem:[#allocation2] sm:$0x30] %vm506, %v504
      %s508 = scalar_lea.vmem %s311, 16
      %v509 = vld [vmem:[%s508] sm:$0x3]
      %v511 = vunpack.c.l.b16 %v509
      %v512 = vpack.c.b16 %v511, %v511
      %v513 = vrot.slane %v512, 2
      %514 = vrot.lane.b32.xlu0 %v513, 96
      %v515 = vpop.permute.xlu0 %514
      %vm517 = vcmask 1048326
      %518 = vst.msk [vmem:[#allocation2] sm:$0xc0] %vm517, %v515
      %v519 = vld [vmem:[%s347] sm:$0x7]
      %v521 = vunpack.c.l.b16 %v519
      %v522 = vpack.c.b16 %v521, %v521
      %v524 = vshrl.u32 %v522, 16
      %v526 = vshll.u32 %v522, 16
      %v528 = vrot.slane %v526, 1
      %v529 = vor.u32 %v524, %v528
      %531 = vst.msk [vmem:[#allocation2 + $0x8] sm:$0x3] %vm345, %v529
      %v532 = vld [vmem:[%s356] sm:$0x7]
      %v534 = vunpack.c.l.b16 %v532
      %v535 = vpack.c.b16 %v534, %v534
      %v537 = vshrl.u32 %v535, 16
      %v539 = vrot.slane %v537, 6
      %v540 = vshll.u32 %v535, 16
      %v542 = vrot.slane %v540, 7
      %v543 = vor.u32 %v539, %v542
      %545 = vst.msk [vmem:[#allocation2 + $0x8] sm:$0xc] %vm354, %v543
      %v546 = vld [vmem:[%s364] sm:$0x7]
      %v548 = vunpack.c.l.b16 %v546
      %v549 = vpack.c.b16 %v548, %v548
      %v551 = vshrl.u32 %v549, 16
      %v553 = vrot.slane %v551, 4
      %v554 = vshll.u32 %v549, 16
      %v556 = vrot.slane %v554, 5
      %v557 = vor.u32 %v553, %v556
      %559 = vst.msk [vmem:[#allocation2 + $0x8] sm:$0x30] %vm362, %v557
      %v560 = vld [vmem:[%s508] sm:$0x7]
      %v562 = vunpack.c.l.b16 %v560
      %v563 = vpack.c.b16 %v562, %v562
      %v565 = vshrl.u32 %v563, 16
      %v567 = vrot.slane %v565, 2
      %v568 = vshll.u32 %v563, 16
      %v570 = vrot.slane %v568, 3
      %v571 = vor.u32 %v567, %v570
      %573 = vst.msk [vmem:[#allocation2 + $0x8] sm:$0xc0] %vm371, %v571
      %v574 = vld [vmem:[%s347] sm:$0x6]
      %v576 = vunpack.c.l.b16 %v574
      %v577 = vpack.c.b16 %v576, %v576
      %v578 = vrot.slane %v577, 1
      %579 = vrot.lane.b32.xlu0 %v578, 32
      %v580 = vpop.permute.xlu0 %579
      %582 = vst.msk [vmem:[#allocation2 + $0x8] sm:$0x3] %vm387, %v580
      %v583 = vld [vmem:[%s356] sm:$0x6]
      %v585 = vunpack.c.l.b16 %v583
      %v586 = vpack.c.b16 %v585, %v585
      %v587 = vrot.slane %v586, 7
      %588 = vrot.lane.b32.xlu0 %v587, 32
      %v589 = vpop.permute.xlu0 %588
      %591 = vst.msk [vmem:[#allocation2 + $0x8] sm:$0xc] %vm404, %v589
      %v592 = vld [vmem:[%s364] sm:$0x6]
      %v594 = vunpack.c.l.b16 %v592
      %v595 = vpack.c.b16 %v594, %v594
      %v596 = vrot.slane %v595, 5
      %597 = vrot.lane.b32.xlu0 %v596, 32
      %v598 = vpop.permute.xlu0 %597
      %600 = vst.msk [vmem:[#allocation2 + $0x8] sm:$0x30] %vm421, %v598
      %v601 = vld [vmem:[%s508] sm:$0x6]
      %v603 = vunpack.c.l.b16 %v601
      %v604 = vpack.c.b16 %v603, %v603
      %v605 = vrot.slane %v604, 3
      %606 = vrot.lane.b32.xlu0 %v605, 32
      %v607 = vpop.permute.xlu0 %606
      %609 = vst.msk [vmem:[#allocation2 + $0x8] sm:$0xc0] %vm438, %v607
      %v610 = vld [vmem:[%s356] sm:$0x3]
      %v612 = vunpack.c.l.b16 %v610
      %v613 = vpack.c.b16 %v612, %v612
      %614 = vrot.lane.b32.xlu0 %v613, 64
      %v615 = vpop.permute.xlu0 %614
      %617 = vst.msk [vmem:[#allocation2 + $0x8] sm:$0x3] %vm448, %v615
      %v618 = vld [vmem:[%s364] sm:$0x3]
      %v620 = vunpack.c.l.b16 %v618
      %v621 = vpack.c.b16 %v620, %v620
      %v622 = vrot.slane %v621, 6
      %623 = vrot.lane.b32.xlu0 %v622, 64
      %v624 = vpop.permute.xlu0 %623
      %626 = vst.msk [vmem:[#allocation2 + $0x8] sm:$0xc] %vm458, %v624
      %v627 = vld [vmem:[%s508] sm:$0x3]
      %v629 = vunpack.c.l.b16 %v627
      %v630 = vpack.c.b16 %v629, %v629
      %631 = vrot.lane.b32.xlu0 %v630, 64
      %v632 = vpop.permute.xlu0 %631
      %634 = vst.msk [vmem:[#allocation2 + $0x8] sm:$0x30] %vm468, %v632
      %s635 = scalar_lea.vmem %s311, 20
      %v636 = vld [vmem:[%s635] sm:$0x3]
      %v638 = vunpack.c.l.b16 %v636
      %v639 = vpack.c.b16 %v638, %v638
      %v640 = vrot.slane %v639, 2
      %641 = vrot.lane.b32.xlu0 %v640, 64
      %v642 = vpop.permute.xlu0 %641
      %644 = vst.msk [vmem:[#allocation2 + $0x8] sm:$0xc0] %vm478, %v642
      %v645 = vld [vmem:[%s356] sm:$0x7]
      %v647 = vunpack.c.l.b16 %v645
      %v648 = vpack.c.b16 %v647, %v647
      %v650 = vshrl.u32 %v648, 16
      %v652 = vshll.u32 %v648, 16
      %v654 = vrot.slane %v652, 1
      %v655 = vor.u32 %v650, %v654
      %656 = vrot.lane.b32.xlu0 %v655, 96
      %v657 = vpop.permute.xlu0 %656
      %659 = vst.msk [vmem:[#allocation2 + $0x8] sm:$0x3] %vm487, %v657
      %v660 = vld [vmem:[%s364] sm:$0x7]
      %v662 = vunpack.c.l.b16 %v660
      %v663 = vpack.c.b16 %v662, %v662
      %v665 = vshrl.u32 %v663, 16
      %v667 = vrot.slane %v665, 6
      %v668 = vshll.u32 %v663, 16
      %v670 = vrot.slane %v668, 7
      %v671 = vor.u32 %v667, %v670
      %672 = vrot.lane.b32.xlu0 %v671, 96
      %v673 = vpop.permute.xlu0 %672
      %675 = vst.msk [vmem:[#allocation2 + $0x8] sm:$0xc] %vm497, %v673
      %v676 = vld [vmem:[%s508] sm:$0x7]
      %v678 = vunpack.c.l.b16 %v676
      %v679 = vpack.c.b16 %v678, %v678
      %v681 = vshrl.u32 %v679, 16
      %v683 = vrot.slane %v681, 4
      %v684 = vshll.u32 %v679, 16
      %v686 = vrot.slane %v684, 5
      %v687 = vor.u32 %v683, %v686
      %688 = vrot.lane.b32.xlu0 %v687, 96
      %v689 = vpop.permute.xlu0 %688
      %691 = vst.msk [vmem:[#allocation2 + $0x8] sm:$0x30] %vm506, %v689
      %v692 = vld [vmem:[%s635] sm:$0x7]
      %v694 = vunpack.c.l.b16 %v692
      %v695 = vpack.c.b16 %v694, %v694
      %v697 = vshrl.u32 %v695, 16
      %v699 = vrot.slane %v697, 2
      %v700 = vshll.u32 %v695, 16
      %v702 = vrot.slane %v700, 3
      %v703 = vor.u32 %v699, %v702
      %704 = vrot.lane.b32.xlu0 %v703, 96
      %v705 = vpop.permute.xlu0 %704
      %707 = vst.msk [vmem:[#allocation2 + $0x8] sm:$0xc0] %vm517, %v705
      %v708 = vld [vmem:[%s356] sm:$0x6]
      %v710 = vunpack.c.l.b16 %v708
      %v711 = vpack.c.b16 %v710, %v710
      %v712 = vrot.slane %v711, 1
      %714 = vst.msk [vmem:[#allocation2 + $0x10] sm:$0x3] %vm345, %v712
      %v715 = vld [vmem:[%s364] sm:$0x6]
      %v717 = vunpack.c.l.b16 %v715
      %v718 = vpack.c.b16 %v717, %v717
      %v719 = vrot.slane %v718, 7
      %721 = vst.msk [vmem:[#allocation2 + $0x10] sm:$0xc] %vm354, %v719
      %v722 = vld [vmem:[%s508] sm:$0x6]
      %v724 = vunpack.c.l.b16 %v722
      %v725 = vpack.c.b16 %v724, %v724
      %v726 = vrot.slane %v725, 5
      %728 = vst.msk [vmem:[#allocation2 + $0x10] sm:$0x30] %vm362, %v726
      %v729 = vld [vmem:[%s635] sm:$0x6]
      %v731 = vunpack.c.l.b16 %v729
      %v732 = vpack.c.b16 %v731, %v731
      %v733 = vrot.slane %v732, 3
      %735 = vst.msk [vmem:[#allocation2 + $0x10] sm:$0xc0] %vm371, %v733
      %v736 = vld [vmem:[%s321] sm:$0x3]
      %v738 = vunpack.c.l.b16 %v736
      %v739 = vpack.c.b16 %v738, %v738
      %740 = vrot.lane.b32.xlu0 %v739, 32
      %v741 = vpop.permute.xlu0 %740
      %743 = vst.msk [vmem:[#allocation2 + $0x10] sm:$0x3] %vm387, %v741
      %s744 = scalar_lea.vmem %s321, 4
      %v745 = vld [vmem:[%s744] sm:$0x3]
      %v747 = vunpack.c.l.b16 %v745
      %v748 = vpack.c.b16 %v747, %v747
      %v749 = vrot.slane %v748, 6
      %750 = vrot.lane.b32.xlu0 %v749, 32
      %v751 = vpop.permute.xlu0 %750
      %753 = vst.msk [vmem:[#allocation2 + $0x10] sm:$0xc] %vm404, %v751
      %s754 = scalar_lea.vmem %s321, 8
      %v755 = vld [vmem:[%s754] sm:$0x3]
      %v757 = vunpack.c.l.b16 %v755
      %v758 = vpack.c.b16 %v757, %v757
      %759 = vrot.lane.b32.xlu0 %v758, 32
      %v760 = vpop.permute.xlu0 %759
      %762 = vst.msk [vmem:[#allocation2 + $0x10] sm:$0x30] %vm421, %v760
      %s763 = scalar_lea.vmem %s321, 12
      %v764 = vld [vmem:[%s763] sm:$0x3]
      %v766 = vunpack.c.l.b16 %v764
      %v767 = vpack.c.b16 %v766, %v766
      %v768 = vrot.slane %v767, 2
      %769 = vrot.lane.b32.xlu0 %v768, 32
      %v770 = vpop.permute.xlu0 %769
      %772 = vst.msk [vmem:[#allocation2 + $0x10] sm:$0xc0] %vm438, %v770
      %v773 = vld [vmem:[%s321] sm:$0x7]
      %v775 = vunpack.c.l.b16 %v773
      %v776 = vpack.c.b16 %v775, %v775
      %v778 = vshrl.u32 %v776, 16
      %v780 = vshll.u32 %v776, 16
      %v782 = vrot.slane %v780, 1
      %v783 = vor.u32 %v778, %v782
      %784 = vrot.lane.b32.xlu0 %v783, 64
      %v785 = vpop.permute.xlu0 %784
      %787 = vst.msk [vmem:[#allocation2 + $0x10] sm:$0x3] %vm448, %v785
      %v788 = vld [vmem:[%s744] sm:$0x7]
      %v790 = vunpack.c.l.b16 %v788
      %v791 = vpack.c.b16 %v790, %v790
      %v793 = vshrl.u32 %v791, 16
      %v795 = vrot.slane %v793, 6
      %v796 = vshll.u32 %v791, 16
      %v798 = vrot.slane %v796, 7
      %v799 = vor.u32 %v795, %v798
      %800 = vrot.lane.b32.xlu0 %v799, 64
      %v801 = vpop.permute.xlu0 %800
      %803 = vst.msk [vmem:[#allocation2 + $0x10] sm:$0xc] %vm458, %v801
      %v804 = vld [vmem:[%s754] sm:$0x7]
      %v806 = vunpack.c.l.b16 %v804
      %v807 = vpack.c.b16 %v806, %v806
      %v809 = vshrl.u32 %v807, 16
      %v811 = vrot.slane %v809, 4
      %v812 = vshll.u32 %v807, 16
      %v814 = vrot.slane %v812, 5
      %v815 = vor.u32 %v811, %v814
      %816 = vrot.lane.b32.xlu0 %v815, 64
      %v817 = vpop.permute.xlu0 %816
      %819 = vst.msk [vmem:[#allocation2 + $0x10] sm:$0x30] %vm468, %v817
      %v820 = vld [vmem:[%s763] sm:$0x7]
      %v822 = vunpack.c.l.b16 %v820
      %v823 = vpack.c.b16 %v822, %v822
      %v825 = vshrl.u32 %v823, 16
      %v827 = vrot.slane %v825, 2
      %v828 = vshll.u32 %v823, 16
      %v830 = vrot.slane %v828, 3
      %v831 = vor.u32 %v827, %v830
      %832 = vrot.lane.b32.xlu0 %v831, 64
      %v833 = vpop.permute.xlu0 %832
      %835 = vst.msk [vmem:[#allocation2 + $0x10] sm:$0xc0] %vm478, %v833
      %v836 = vld [vmem:[%s321] sm:$0x6]
      %v838 = vunpack.c.l.b16 %v836
      %v839 = vpack.c.b16 %v838, %v838
      %v840 = vrot.slane %v839, 1
      %841 = vrot.lane.b32.xlu0 %v840, 96
      %v842 = vpop.permute.xlu0 %841
      %844 = vst.msk [vmem:[#allocation2 + $0x10] sm:$0x3] %vm487, %v842
      %v845 = vld [vmem:[%s744] sm:$0x6]
      %v847 = vunpack.c.l.b16 %v845
      %v848 = vpack.c.b16 %v847, %v847
      %v849 = vrot.slane %v848, 7
      %850 = vrot.lane.b32.xlu0 %v849, 96
      %v851 = vpop.permute.xlu0 %850
      %853 = vst.msk [vmem:[#allocation2 + $0x10] sm:$0xc] %vm497, %v851
      %v854 = vld [vmem:[%s754] sm:$0x6]
      %v856 = vunpack.c.l.b16 %v854
      %v857 = vpack.c.b16 %v856, %v856
      %v858 = vrot.slane %v857, 5
      %859 = vrot.lane.b32.xlu0 %v858, 96
      %v860 = vpop.permute.xlu0 %859
      %862 = vst.msk [vmem:[#allocation2 + $0x10] sm:$0x30] %vm506, %v860
      %v863 = vld [vmem:[%s763] sm:$0x6]
      %v865 = vunpack.c.l.b16 %v863
      %v866 = vpack.c.b16 %v865, %v865
      %v867 = vrot.slane %v866, 3
      %868 = vrot.lane.b32.xlu0 %v867, 96
      %v869 = vpop.permute.xlu0 %868
      %871 = vst.msk [vmem:[#allocation2 + $0x10] sm:$0xc0] %vm517, %v869
      %v872 = vld [vmem:[%s744] sm:$0x3]
      %873 = vst.msk [vmem:[#allocation2 + $0x18] sm:$0x3] %vm345, %v872
      %v874 = vld [vmem:[%s754] sm:$0x3]
      %v876 = vunpack.c.l.b16 %v874
      %v877 = vpack.c.b16 %v876, %v876
      %v878 = vrot.slane %v877, 6
      %880 = vst.msk [vmem:[#allocation2 + $0x18] sm:$0xc] %vm354, %v878
      %v881 = vld [vmem:[%s763] sm:$0x3]
      %v883 = vunpack.c.l.b16 %v881
      %v884 = vpack.c.b16 %v883, %v883
      %886 = vst.msk [vmem:[#allocation2 + $0x18] sm:$0x30] %vm362, %v884
      %s887 = scalar_lea.vmem %s321, 16
      %v888 = vld [vmem:[%s887] sm:$0x3]
      %v890 = vunpack.c.l.b16 %v888
      %v891 = vpack.c.b16 %v890, %v890
      %v892 = vrot.slane %v891, 2
      %894 = vst.msk [vmem:[#allocation2 + $0x18] sm:$0xc0] %vm371, %v892
      %v895 = vld [vmem:[%s744] sm:$0x7]
      %v897 = vunpack.c.l.b16 %v895
      %v898 = vpack.c.b16 %v897, %v897
      %v900 = vshrl.u32 %v898, 16
      %v902 = vshll.u32 %v898, 16
      %v904 = vrot.slane %v902, 1
      %v905 = vor.u32 %v900, %v904
      %906 = vrot.lane.b32.xlu0 %v905, 32
      %v907 = vpop.permute.xlu0 %906
      %909 = vst.msk [vmem:[#allocation2 + $0x18] sm:$0x3] %vm387, %v907
      %v910 = vld [vmem:[%s754] sm:$0x7]
      %v912 = vunpack.c.l.b16 %v910
      %v913 = vpack.c.b16 %v912, %v912
      %v915 = vshrl.u32 %v913, 16
      %v917 = vrot.slane %v915, 6
      %v918 = vshll.u32 %v913, 16
      %v920 = vrot.slane %v918, 7
      %v921 = vor.u32 %v917, %v920
      %922 = vrot.lane.b32.xlu0 %v921, 32
      %v923 = vpop.permute.xlu0 %922
      %925 = vst.msk [vmem:[#allocation2 + $0x18] sm:$0xc] %vm404, %v923
      %v926 = vld [vmem:[%s763] sm:$0x7]
      %v928 = vunpack.c.l.b16 %v926
      %v929 = vpack.c.b16 %v928, %v928
      %v931 = vshrl.u32 %v929, 16
      %v933 = vrot.slane %v931, 4
      %v934 = vshll.u32 %v929, 16
      %v936 = vrot.slane %v934, 5
      %v937 = vor.u32 %v933, %v936
      %938 = vrot.lane.b32.xlu0 %v937, 32
      %v939 = vpop.permute.xlu0 %938
      %941 = vst.msk [vmem:[#allocation2 + $0x18] sm:$0x30] %vm421, %v939
      %v942 = vld [vmem:[%s887] sm:$0x7]
      %v944 = vunpack.c.l.b16 %v942
      %v945 = vpack.c.b16 %v944, %v944
      %v947 = vshrl.u32 %v945, 16
      %v949 = vrot.slane %v947, 2
      %v950 = vshll.u32 %v945, 16
      %v952 = vrot.slane %v950, 3
      %v953 = vor.u32 %v949, %v952
      %954 = vrot.lane.b32.xlu0 %v953, 32
      %v955 = vpop.permute.xlu0 %954
      %957 = vst.msk [vmem:[#allocation2 + $0x18] sm:$0xc0] %vm438, %v955
      %v958 = vld [vmem:[%s744] sm:$0x6]
      %v960 = vunpack.c.l.b16 %v958
      %v961 = vpack.c.b16 %v960, %v960
      %v962 = vrot.slane %v961, 1
      %963 = vrot.lane.b32.xlu0 %v962, 64
      %v964 = vpop.permute.xlu0 %963
      %966 = vst.msk [vmem:[#allocation2 + $0x18] sm:$0x3] %vm448, %v964
      %v967 = vld [vmem:[%s754] sm:$0x6]
      %v969 = vunpack.c.l.b16 %v967
      %v970 = vpack.c.b16 %v969, %v969
      %v971 = vrot.slane %v970, 7
      %972 = vrot.lane.b32.xlu0 %v971, 64
      %v973 = vpop.permute.xlu0 %972
      %975 = vst.msk [vmem:[#allocation2 + $0x18] sm:$0xc] %vm458, %v973
      %v976 = vld [vmem:[%s763] sm:$0x6]
      %v978 = vunpack.c.l.b16 %v976
      %v979 = vpack.c.b16 %v978, %v978
      %v980 = vrot.slane %v979, 5
      %981 = vrot.lane.b32.xlu0 %v980, 64
      %v982 = vpop.permute.xlu0 %981
      %984 = vst.msk [vmem:[#allocation2 + $0x18] sm:$0x30] %vm468, %v982
      %v985 = vld [vmem:[%s887] sm:$0x6]
      %v987 = vunpack.c.l.b16 %v985
      %v988 = vpack.c.b16 %v987, %v987
      %v989 = vrot.slane %v988, 3
      %990 = vrot.lane.b32.xlu0 %v989, 64
      %v991 = vpop.permute.xlu0 %990
      %993 = vst.msk [vmem:[#allocation2 + $0x18] sm:$0xc0] %vm478, %v991
      %v994 = vld [vmem:[%s754] sm:$0x3]
      %v996 = vunpack.c.l.b16 %v994
      %v997 = vpack.c.b16 %v996, %v996
      %998 = vrot.lane.b32.xlu0 %v997, 96
      %v999 = vpop.permute.xlu0 %998
      %1001 = vst.msk [vmem:[#allocation2 + $0x18] sm:$0x3] %vm487, %v999
      %v1002 = vld [vmem:[%s763] sm:$0x3]
      %v1004 = vunpack.c.l.b16 %v1002
      %v1005 = vpack.c.b16 %v1004, %v1004
      %v1006 = vrot.slane %v1005, 6
      %1007 = vrot.lane.b32.xlu0 %v1006, 96
      %v1008 = vpop.permute.xlu0 %1007
      %1010 = vst.msk [vmem:[#allocation2 + $0x18] sm:$0xc] %vm497, %v1008
      %v1011 = vld [vmem:[%s887] sm:$0x3]
      %v1013 = vunpack.c.l.b16 %v1011
      %v1014 = vpack.c.b16 %v1013, %v1013
      %1015 = vrot.lane.b32.xlu0 %v1014, 96
      %v1016 = vpop.permute.xlu0 %1015
      %1018 = vst.msk [vmem:[#allocation2 + $0x18] sm:$0x30] %vm506, %v1016
      %s1019 = scalar_lea.vmem %s321, 20
      %v1020 = vld [vmem:[%s1019] sm:$0x3]
      %v1022 = vunpack.c.l.b16 %v1020
      %v1023 = vpack.c.b16 %v1022, %v1022
      %v1024 = vrot.slane %v1023, 2
      %1025 = vrot.lane.b32.xlu0 %v1024, 96
      %v1026 = vpop.permute.xlu0 %1025
      %1028 = vst.msk [vmem:[#allocation2 + $0x18] sm:$0xc0] %vm517, %v1026
      %v1029 = vld [vmem:[%s754] sm:$0x7]
      %v1031 = vunpack.c.l.b16 %v1029
      %v1032 = vpack.c.b16 %v1031, %v1031
      %v1034 = vshrl.u32 %v1032, 16
      %v1036 = vshll.u32 %v1032, 16
      %v1038 = vrot.slane %v1036, 1
      %v1039 = vor.u32 %v1034, %v1038
      %1041 = vst.msk [vmem:[#allocation2 + $0x20] sm:$0x3] %vm345, %v1039
      %v1042 = vld [vmem:[%s763] sm:$0x7]
      %v1044 = vunpack.c.l.b16 %v1042
      %v1045 = vpack.c.b16 %v1044, %v1044
      %v1047 = vshrl.u32 %v1045, 16
      %v1049 = vrot.slane %v1047, 6
      %v1050 = vshll.u32 %v1045, 16
      %v1052 = vrot.slane %v1050, 7
      %v1053 = vor.u32 %v1049, %v1052
      %1055 = vst.msk [vmem:[#allocation2 + $0x20] sm:$0xc] %vm354, %v1053
      %v1056 = vld [vmem:[%s887] sm:$0x7]
      %v1058 = vunpack.c.l.b16 %v1056
      %v1059 = vpack.c.b16 %v1058, %v1058
      %v1061 = vshrl.u32 %v1059, 16
      %v1063 = vrot.slane %v1061, 4
      %v1064 = vshll.u32 %v1059, 16
      %v1066 = vrot.slane %v1064, 5
      %v1067 = vor.u32 %v1063, %v1066
      %1069 = vst.msk [vmem:[#allocation2 + $0x20] sm:$0x30] %vm362, %v1067
      %v1070 = vld [vmem:[%s1019] sm:$0x7]
      %v1072 = vunpack.c.l.b16 %v1070
      %v1073 = vpack.c.b16 %v1072, %v1072
      %v1075 = vshrl.u32 %v1073, 16
      %v1077 = vrot.slane %v1075, 2
      %v1078 = vshll.u32 %v1073, 16
      %v1080 = vrot.slane %v1078, 3
      %v1081 = vor.u32 %v1077, %v1080
      %1083 = vst.msk [vmem:[#allocation2 + $0x20] sm:$0xc0] %vm371, %v1081
      %v1084 = vld [vmem:[%s754] sm:$0x6]
      %v1086 = vunpack.c.l.b16 %v1084
      %v1087 = vpack.c.b16 %v1086, %v1086
      %v1088 = vrot.slane %v1087, 1
      %1089 = vrot.lane.b32.xlu0 %v1088, 32
      %v1090 = vpop.permute.xlu0 %1089
      %1092 = vst.msk [vmem:[#allocation2 + $0x20] sm:$0x3] %vm387, %v1090
      %v1093 = vld [vmem:[%s763] sm:$0x6]
      %v1095 = vunpack.c.l.b16 %v1093
      %v1096 = vpack.c.b16 %v1095, %v1095
      %v1097 = vrot.slane %v1096, 7
      %1098 = vrot.lane.b32.xlu0 %v1097, 32
      %v1099 = vpop.permute.xlu0 %1098
      %1101 = vst.msk [vmem:[#allocation2 + $0x20] sm:$0xc] %vm404, %v1099
      %v1102 = vld [vmem:[%s887] sm:$0x6]
      %v1104 = vunpack.c.l.b16 %v1102
      %v1105 = vpack.c.b16 %v1104, %v1104
      %v1106 = vrot.slane %v1105, 5
      %1107 = vrot.lane.b32.xlu0 %v1106, 32
      %v1108 = vpop.permute.xlu0 %1107
      %1110 = vst.msk [vmem:[#allocation2 + $0x20] sm:$0x30] %vm421, %v1108
      %v1111 = vld [vmem:[%s1019] sm:$0x6]
      %v1113 = vunpack.c.l.b16 %v1111
      %v1114 = vpack.c.b16 %v1113, %v1113
      %v1115 = vrot.slane %v1114, 3
      %1116 = vrot.lane.b32.xlu0 %v1115, 32
      %v1117 = vpop.permute.xlu0 %1116
      %1119 = vst.msk [vmem:[#allocation2 + $0x20] sm:$0xc0] %vm438, %v1117
      %v1120 = vld [vmem:[%s332] sm:$0x3]
      %v1122 = vunpack.c.l.b16 %v1120
      %v1123 = vpack.c.b16 %v1122, %v1122
      %1124 = vrot.lane.b32.xlu0 %v1123, 64
      %v1125 = vpop.permute.xlu0 %1124
      %1127 = vst.msk [vmem:[#allocation2 + $0x20] sm:$0x3] %vm448, %v1125
      %s1128 = scalar_lea.vmem %s332, 4
      %v1129 = vld [vmem:[%s1128] sm:$0x3]
      %v1131 = vunpack.c.l.b16 %v1129
      %v1132 = vpack.c.b16 %v1131, %v1131
      %v1133 = vrot.slane %v1132, 6
      %1134 = vrot.lane.b32.xlu0 %v1133, 64
      %v1135 = vpop.permute.xlu0 %1134
      %1137 = vst.msk [vmem:[#allocation2 + $0x20] sm:$0xc] %vm458, %v1135
      %s1138 = scalar_lea.vmem %s332, 8
      %v1139 = vld [vmem:[%s1138] sm:$0x3]
      %v1141 = vunpack.c.l.b16 %v1139
      %v1142 = vpack.c.b16 %v1141, %v1141
      %1143 = vrot.lane.b32.xlu0 %v1142, 64
      %v1144 = vpop.permute.xlu0 %1143
      %1146 = vst.msk [vmem:[#allocation2 + $0x20] sm:$0x30] %vm468, %v1144
      %s1147 = scalar_lea.vmem %s332, 12
      %v1148 = vld [vmem:[%s1147] sm:$0x3]
      %v1150 = vunpack.c.l.b16 %v1148
      %v1151 = vpack.c.b16 %v1150, %v1150
      %v1152 = vrot.slane %v1151, 2
      %1153 = vrot.lane.b32.xlu0 %v1152, 64
      %v1154 = vpop.permute.xlu0 %1153
      %1156 = vst.msk [vmem:[#allocation2 + $0x20] sm:$0xc0] %vm478, %v1154
      %v1157 = vld [vmem:[%s332] sm:$0x7]
      %v1159 = vunpack.c.l.b16 %v1157
      %v1160 = vpack.c.b16 %v1159, %v1159
      %v1162 = vshrl.u32 %v1160, 16
      %v1164 = vshll.u32 %v1160, 16
      %v1166 = vrot.slane %v1164, 1
      %v1167 = vor.u32 %v1162, %v1166
      %1168 = vrot.lane.b32.xlu0 %v1167, 96
      %v1169 = vpop.permute.xlu0 %1168
      %1171 = vst.msk [vmem:[#allocation2 + $0x20] sm:$0x3] %vm487, %v1169
      %v1172 = vld [vmem:[%s1128] sm:$0x7]
      %v1174 = vunpack.c.l.b16 %v1172
      %v1175 = vpack.c.b16 %v1174, %v1174
      %v1177 = vshrl.u32 %v1175, 16
      %v1179 = vrot.slane %v1177, 6
      %v1180 = vshll.u32 %v1175, 16
      %v1182 = vrot.slane %v1180, 7
      %v1183 = vor.u32 %v1179, %v1182
      %1184 = vrot.lane.b32.xlu0 %v1183, 96
      %v1185 = vpop.permute.xlu0 %1184
      %1187 = vst.msk [vmem:[#allocation2 + $0x20] sm:$0xc] %vm497, %v1185
      %v1188 = vld [vmem:[%s1138] sm:$0x7]
      %v1190 = vunpack.c.l.b16 %v1188
      %v1191 = vpack.c.b16 %v1190, %v1190
      %v1193 = vshrl.u32 %v1191, 16
      %v1195 = vrot.slane %v1193, 4
      %v1196 = vshll.u32 %v1191, 16
      %v1198 = vrot.slane %v1196, 5
      %v1199 = vor.u32 %v1195, %v1198
      %1200 = vrot.lane.b32.xlu0 %v1199, 96
      %v1201 = vpop.permute.xlu0 %1200
      %1203 = vst.msk [vmem:[#allocation2 + $0x20] sm:$0x30] %vm506, %v1201
      %v1204 = vld [vmem:[%s1147] sm:$0x7]
      %v1206 = vunpack.c.l.b16 %v1204
      %v1207 = vpack.c.b16 %v1206, %v1206
      %v1209 = vshrl.u32 %v1207, 16
      %v1211 = vrot.slane %v1209, 2
      %v1212 = vshll.u32 %v1207, 16
      %v1214 = vrot.slane %v1212, 3
      %v1215 = vor.u32 %v1211, %v1214
      %1216 = vrot.lane.b32.xlu0 %v1215, 96
      %v1217 = vpop.permute.xlu0 %1216
      %1219 = vst.msk [vmem:[#allocation2 + $0x20] sm:$0xc0] %vm517, %v1217
      %v1220 = vld [vmem:[%s332] sm:$0x6]
      %v1222 = vunpack.c.l.b16 %v1220
      %v1223 = vpack.c.b16 %v1222, %v1222
      %v1224 = vrot.slane %v1223, 1
      %1226 = vst.msk [vmem:[#allocation2 + $0x28] sm:$0x3] %vm345, %v1224
      %v1227 = vld [vmem:[%s1128] sm:$0x6]
      %v1229 = vunpack.c.l.b16 %v1227
      %v1230 = vpack.c.b16 %v1229, %v1229
      %v1231 = vrot.slane %v1230, 7
      %1233 = vst.msk [vmem:[#allocation2 + $0x28] sm:$0xc] %vm354, %v1231
      %v1234 = vld [vmem:[%s1138] sm:$0x6]
      %v1236 = vunpack.c.l.b16 %v1234
      %v1237 = vpack.c.b16 %v1236, %v1236
      %v1238 = vrot.slane %v1237, 5
      %1240 = vst.msk [vmem:[#allocation2 + $0x28] sm:$0x30] %vm362, %v1238
      %v1241 = vld [vmem:[%s1147] sm:$0x6]
      %v1243 = vunpack.c.l.b16 %v1241
      %v1244 = vpack.c.b16 %v1243, %v1243
      %v1245 = vrot.slane %v1244, 3
      %1247 = vst.msk [vmem:[#allocation2 + $0x28] sm:$0xc0] %vm371, %v1245
      %v1248 = vld [vmem:[%s1128] sm:$0x3]
      %v1250 = vunpack.c.l.b16 %v1248
      %v1251 = vpack.c.b16 %v1250, %v1250
      %1252 = vrot.lane.b32.xlu0 %v1251, 32
      %v1253 = vpop.permute.xlu0 %1252
      %1255 = vst.msk [vmem:[#allocation2 + $0x28] sm:$0x3] %vm387, %v1253
      %v1256 = vld [vmem:[%s1138] sm:$0x3]
      %v1258 = vunpack.c.l.b16 %v1256
      %v1259 = vpack.c.b16 %v1258, %v1258
      %v1260 = vrot.slane %v1259, 6
      %1261 = vrot.lane.b32.xlu0 %v1260, 32
      %v1262 = vpop.permute.xlu0 %1261
      %1264 = vst.msk [vmem:[#allocation2 + $0x28] sm:$0xc] %vm404, %v1262
      %v1265 = vld [vmem:[%s1147] sm:$0x3]
      %v1267 = vunpack.c.l.b16 %v1265
      %v1268 = vpack.c.b16 %v1267, %v1267
      %1269 = vrot.lane.b32.xlu0 %v1268, 32
      %v1270 = vpop.permute.xlu0 %1269
      %1272 = vst.msk [vmem:[#allocation2 + $0x28] sm:$0x30] %vm421, %v1270
      %s1273 = scalar_lea.vmem %s332, 16
      %v1274 = vld [vmem:[%s1273] sm:$0x3]
      %v1276 = vunpack.c.l.b16 %v1274
      %v1277 = vpack.c.b16 %v1276, %v1276
      %v1278 = vrot.slane %v1277, 2
      %1279 = vrot.lane.b32.xlu0 %v1278, 32
      %v1280 = vpop.permute.xlu0 %1279
      %1282 = vst.msk [vmem:[#allocation2 + $0x28] sm:$0xc0] %vm438, %v1280
      %v1283 = vld [vmem:[%s1128] sm:$0x7]
      %v1285 = vunpack.c.l.b16 %v1283
      %v1286 = vpack.c.b16 %v1285, %v1285
      %v1288 = vshrl.u32 %v1286, 16
      %v1290 = vshll.u32 %v1286, 16
      %v1292 = vrot.slane %v1290, 1
      %v1293 = vor.u32 %v1288, %v1292
      %1294 = vrot.lane.b32.xlu0 %v1293, 64
      %v1295 = vpop.permute.xlu0 %1294
      %1297 = vst.msk [vmem:[#allocation2 + $0x28] sm:$0x3] %vm448, %v1295
      %v1298 = vld [vmem:[%s1138] sm:$0x7]
      %v1300 = vunpack.c.l.b16 %v1298
      %v1301 = vpack.c.b16 %v1300, %v1300
      %v1303 = vshrl.u32 %v1301, 16
      %v1305 = vrot.slane %v1303, 6
      %v1306 = vshll.u32 %v1301, 16
      %v1308 = vrot.slane %v1306, 7
      %v1309 = vor.u32 %v1305, %v1308
      %1310 = vrot.lane.b32.xlu0 %v1309, 64
      %v1311 = vpop.permute.xlu0 %1310
      %1313 = vst.msk [vmem:[#allocation2 + $0x28] sm:$0xc] %vm458, %v1311
      %v1314 = vld [vmem:[%s1147] sm:$0x7]
      %v1316 = vunpack.c.l.b16 %v1314
      %v1317 = vpack.c.b16 %v1316, %v1316
      %v1319 = vshrl.u32 %v1317, 16
      %v1321 = vrot.slane %v1319, 4
      %v1322 = vshll.u32 %v1317, 16
      %v1324 = vrot.slane %v1322, 5
      %v1325 = vor.u32 %v1321, %v1324
      %1326 = vrot.lane.b32.xlu0 %v1325, 64
      %v1327 = vpop.permute.xlu0 %1326
      %1329 = vst.msk [vmem:[#allocation2 + $0x28] sm:$0x30] %vm468, %v1327
      %v1330 = vld [vmem:[%s1273] sm:$0x7]
      %v1332 = vunpack.c.l.b16 %v1330
      %v1333 = vpack.c.b16 %v1332, %v1332
      %v1335 = vshrl.u32 %v1333, 16
      %v1337 = vrot.slane %v1335, 2
      %v1338 = vshll.u32 %v1333, 16
      %v1340 = vrot.slane %v1338, 3
      %v1341 = vor.u32 %v1337, %v1340
      %1342 = vrot.lane.b32.xlu0 %v1341, 64
      %v1343 = vpop.permute.xlu0 %1342
      %1345 = vst.msk [vmem:[#allocation2 + $0x28] sm:$0xc0] %vm478, %v1343
      %v1346 = vld [vmem:[%s1128] sm:$0x6]
      %v1348 = vunpack.c.l.b16 %v1346
      %v1349 = vpack.c.b16 %v1348, %v1348
      %v1350 = vrot.slane %v1349, 1
      %1351 = vrot.lane.b32.xlu0 %v1350, 96
      %v1352 = vpop.permute.xlu0 %1351
      %1354 = vst.msk [vmem:[#allocation2 + $0x28] sm:$0x3] %vm487, %v1352
      %v1355 = vld [vmem:[%s1138] sm:$0x6]
      %v1357 = vunpack.c.l.b16 %v1355
      %v1358 = vpack.c.b16 %v1357, %v1357
      %v1359 = vrot.slane %v1358, 7
      %1360 = vrot.lane.b32.xlu0 %v1359, 96
      %v1361 = vpop.permute.xlu0 %1360
      %1363 = vst.msk [vmem:[#allocation2 + $0x28] sm:$0xc] %vm497, %v1361
      %v1364 = vld [vmem:[%s1147] sm:$0x6]
      %v1366 = vunpack.c.l.b16 %v1364
      %v1367 = vpack.c.b16 %v1366, %v1366
      %v1368 = vrot.slane %v1367, 5
      %1369 = vrot.lane.b32.xlu0 %v1368, 96
      %v1370 = vpop.permute.xlu0 %1369
      %1372 = vst.msk [vmem:[#allocation2 + $0x28] sm:$0x30] %vm506, %v1370
      %v1373 = vld [vmem:[%s1273] sm:$0x6]
      %v1375 = vunpack.c.l.b16 %v1373
      %v1376 = vpack.c.b16 %v1375, %v1375
      %v1377 = vrot.slane %v1376, 3
      %1378 = vrot.lane.b32.xlu0 %v1377, 96
      %v1379 = vpop.permute.xlu0 %1378
      %1381 = vst.msk [vmem:[#allocation2 + $0x28] sm:$0xc0] %vm517, %v1379
      %v1382 = vld [vmem:[%s1138] sm:$0x3]
      %1383 = vst.msk [vmem:[#allocation2 + $0x30] sm:$0x3] %vm345, %v1382
      %v1384 = vld [vmem:[%s1147] sm:$0x3]
      %v1386 = vunpack.c.l.b16 %v1384
      %v1387 = vpack.c.b16 %v1386, %v1386
      %v1388 = vrot.slane %v1387, 6
      %1390 = vst.msk [vmem:[#allocation2 + $0x30] sm:$0xc] %vm354, %v1388
      %v1391 = vld [vmem:[%s1273] sm:$0x3]
      %v1393 = vunpack.c.l.b16 %v1391
      %v1394 = vpack.c.b16 %v1393, %v1393
      %1396 = vst.msk [vmem:[#allocation2 + $0x30] sm:$0x30] %vm362, %v1394
      %s1397 = scalar_lea.vmem %s332, 20
      %v1398 = vld [vmem:[%s1397] sm:$0x3]
      %v1400 = vunpack.c.l.b16 %v1398
      %v1401 = vpack.c.b16 %v1400, %v1400
      %v1402 = vrot.slane %v1401, 2
      %1404 = vst.msk [vmem:[#allocation2 + $0x30] sm:$0xc0] %vm371, %v1402
      %v1405 = vld [vmem:[%s1138] sm:$0x7]
      %v1407 = vunpack.c.l.b16 %v1405
      %v1408 = vpack.c.b16 %v1407, %v1407
      %v1410 = vshrl.u32 %v1408, 16
      %v1412 = vshll.u32 %v1408, 16
      %v1414 = vrot.slane %v1412, 1
      %v1415 = vor.u32 %v1410, %v1414
      %1416 = vrot.lane.b32.xlu0 %v1415, 32
      %v1417 = vpop.permute.xlu0 %1416
      %1419 = vst.msk [vmem:[#allocation2 + $0x30] sm:$0x3] %vm387, %v1417
      %v1420 = vld [vmem:[%s1147] sm:$0x7]
      %v1422 = vunpack.c.l.b16 %v1420
      %v1423 = vpack.c.b16 %v1422, %v1422
      %v1425 = vshrl.u32 %v1423, 16
      %v1427 = vrot.slane %v1425, 6
      %v1428 = vshll.u32 %v1423, 16
      %v1430 = vrot.slane %v1428, 7
      %v1431 = vor.u32 %v1427, %v1430
      %1432 = vrot.lane.b32.xlu0 %v1431, 32
      %v1433 = vpop.permute.xlu0 %1432
      %1435 = vst.msk [vmem:[#allocation2 + $0x30] sm:$0xc] %vm404, %v1433
      %v1436 = vld [vmem:[%s1273] sm:$0x7]
      %v1438 = vunpack.c.l.b16 %v1436
      %v1439 = vpack.c.b16 %v1438, %v1438
      %v1441 = vshrl.u32 %v1439, 16
      %v1443 = vrot.slane %v1441, 4
      %v1444 = vshll.u32 %v1439, 16
      %v1446 = vrot.slane %v1444, 5
      %v1447 = vor.u32 %v1443, %v1446
      %1448 = vrot.lane.b32.xlu0 %v1447, 32
      %v1449 = vpop.permute.xlu0 %1448
      %1451 = vst.msk [vmem:[#allocation2 + $0x30] sm:$0x30] %vm421, %v1449
      %v1452 = vld [vmem:[%s1397] sm:$0x7]
      %v1454 = vunpack.c.l.b16 %v1452
      %v1455 = vpack.c.b16 %v1454, %v1454
      %v1457 = vshrl.u32 %v1455, 16
      %v1459 = vrot.slane %v1457, 2
      %v1460 = vshll.u32 %v1455, 16
      %v1462 = vrot.slane %v1460, 3
      %v1463 = vor.u32 %v1459, %v1462
      %1464 = vrot.lane.b32.xlu0 %v1463, 32
      %v1465 = vpop.permute.xlu0 %1464
      %1467 = vst.msk [vmem:[#allocation2 + $0x30] sm:$0xc0] %vm438, %v1465
      %v1468 = vld [vmem:[%s1138] sm:$0x6]
      %v1470 = vunpack.c.l.b16 %v1468
      %v1471 = vpack.c.b16 %v1470, %v1470
      %v1472 = vrot.slane %v1471, 1
      %1473 = vrot.lane.b32.xlu0 %v1472, 64
      %v1474 = vpop.permute.xlu0 %1473
      %1476 = vst.msk [vmem:[#allocation2 + $0x30] sm:$0x3] %vm448, %v1474
      %v1477 = vld [vmem:[%s1147] sm:$0x6]
      %v1479 = vunpack.c.l.b16 %v1477
      %v1480 = vpack.c.b16 %v1479, %v1479
      %v1481 = vrot.slane %v1480, 7
      %1482 = vrot.lane.b32.xlu0 %v1481, 64
      %v1483 = vpop.permute.xlu0 %1482
      %1485 = vst.msk [vmem:[#allocation2 + $0x30] sm:$0xc] %vm458, %v1483
      %v1486 = vld [vmem:[%s1273] sm:$0x6]
      %v1488 = vunpack.c.l.b16 %v1486
      %v1489 = vpack.c.b16 %v1488, %v1488
      %v1490 = vrot.slane %v1489, 5
      %1491 = vrot.lane.b32.xlu0 %v1490, 64
      %v1492 = vpop.permute.xlu0 %1491
      %1494 = vst.msk [vmem:[#allocation2 + $0x30] sm:$0x30] %vm468, %v1492
      %v1495 = vld [vmem:[%s1397] sm:$0x6]
      %v1497 = vunpack.c.l.b16 %v1495
      %v1498 = vpack.c.b16 %v1497, %v1497
      %v1499 = vrot.slane %v1498, 3
      %1500 = vrot.lane.b32.xlu0 %v1499, 64
      %v1501 = vpop.permute.xlu0 %1500
      %1503 = vst.msk [vmem:[#allocation2 + $0x30] sm:$0xc0] %vm478, %v1501
      %v1504 = vld [vmem:[#allocation2] sm:$0xff]
      %v1505 = vld [vmem:[#allocation2 + $0x8] sm:$0xff]
      %v1506 = vld [vmem:[#allocation2 + $0x10] sm:$0xff]
      %v1507 = vld [vmem:[#allocation2 + $0x18] sm:$0xff]
      %v1508 = vld [vmem:[#allocation2 + $0x20] sm:$0xff]
      %v1509 = vld [vmem:[#allocation2 + $0x28] sm:$0xff]
      %v1510 = vld [vmem:[#allocation2 + $0x30] sm:$0xff]
      %v1511 = vld [vmem:[%s3] sm:$0xf]
      %v1512 = vld [vmem:[%s3 + $0x4] sm:$0xf]
      %v1513 = vld [vmem:[%s3 + $0x8] sm:$0xf]
      %v1514 = vld [vmem:[%s3 + $0xc] sm:$0xf]
      %v1515 = vld [vmem:[%s3 + $0x10] sm:$0xf]
      %v1516 = vld [vmem:[%s3 + $0x14] sm:$0xf]
      %v1517 = vld [vmem:[%s3 + $0x18] sm:$0xf]
      %v1518 = vld [vmem:[%s3 + $0x1c] sm:$0xf]
      %v1519 = vld [vmem:[%s3 + $0x20] sm:$0xf]
      %v1520 = vld [vmem:[%s3 + $0x24] sm:$0xf]
      %v1521 = vld [vmem:[%s3 + $0x28] sm:$0xf]
      %v1522 = vld [vmem:[%s3 + $0x2c] sm:$0xf]
      %v1523 = vld [vmem:[%s3 + $0x30] sm:$0xf]
      %v1524 = vld [vmem:[%s3 + $0x34] sm:$0xf]
      %v1525 = vld [vmem:[%s3 + $0x38] sm:$0xf]
      %v1526 = vld [vmem:[%s3 + $0x3c] sm:$0xf]
      %v1527 = vld [vmem:[%s3 + $0x40] sm:$0xf]
      %v1528 = vld [vmem:[%s3 + $0x44] sm:$0xf]
      %v1529 = vld [vmem:[%s3 + $0x48] sm:$0xf]
      %v1530 = vld [vmem:[%s3 + $0x4c] sm:$0xf]
      %v1531 = vld [vmem:[%s3 + $0x50] sm:$0xf]
      %v1532 = vld [vmem:[%s3 + $0x54] sm:$0xf]
      %v1533 = vld [vmem:[%s3 + $0x58] sm:$0xf]
      %v1534 = vld [vmem:[%s3 + $0x5c] sm:$0xf]
      %v1535 = vld [vmem:[%s3 + $0x60] sm:$0xf]
      %v1536 = vld [vmem:[%s3 + $0x64] sm:$0xf]
      %v1537 = vld [vmem:[%s3 + $0x68] sm:$0xf]
      %v1538 = vld [vmem:[%s3 + $0x6c] sm:$0xf]
      %v1539 = vld [vmem:[%s3 + $0x70] sm:$0xf]
      %v1540 = vld [vmem:[%s3 + $0x74] sm:$0xf]
      %v1541 = vld [vmem:[%s3 + $0x78] sm:$0xf]
      %v1542 = vld [vmem:[%s3 + $0x7c] sm:$0xf]
      %v1543 = vld [vmem:[%s3 + $0x80] sm:$0xf]
      %v1544 = vld [vmem:[%s3 + $0x84] sm:$0xf]
      %v1545 = vld [vmem:[%s3 + $0x88] sm:$0xf]
      %v1546 = vld [vmem:[%s3 + $0x8c] sm:$0xf]
      %v1547 = vld [vmem:[%s3 + $0x90] sm:$0xf]
      %v1548 = vld [vmem:[%s3 + $0x94] sm:$0xf]
      %v1549 = vld [vmem:[%s3 + $0x98] sm:$0xf]
      %v1550 = vld [vmem:[%s3 + $0x9c] sm:$0xf]
      %v1551 = vld [vmem:[%s3 + $0xa0] sm:$0xf]
      %v1552 = vld [vmem:[%s3 + $0xa4] sm:$0xf]
      %v1553 = vld [vmem:[%s3 + $0xa8] sm:$0xf]
      %v1554 = vld [vmem:[%s3 + $0xac] sm:$0xf]
      %v1555 = vld [vmem:[%s3 + $0xb0] sm:$0xf]
      %v1556 = vld [vmem:[%s3 + $0xb4] sm:$0xf]
      %v1557 = vld [vmem:[%s3 + $0xb8] sm:$0xf]
      %v1558 = vld [vmem:[%s3 + $0xbc] sm:$0xf]
      %v1559 = vld [vmem:[%s3 + $0xc0] sm:$0xf]
      %v1560 = vld [vmem:[%s3 + $0xc4] sm:$0xf]
      %v1561 = vld [vmem:[%s3 + $0xc8] sm:$0xf]
      %v1562 = vld [vmem:[%s3 + $0xcc] sm:$0xf]
      %v1563 = vld [vmem:[%s3 + $0xd0] sm:$0xf]
      %v1564 = vld [vmem:[%s3 + $0xd4] sm:$0xf]
      %v1565 = vld [vmem:[%s3 + $0xd8] sm:$0xf]
      %v1566 = vld [vmem:[%s3 + $0xdc] sm:$0xf]
      %v1567 = vld [vmem:[%s3 + $0xe0] sm:$0xf]
      %v1568 = vld [vmem:[%s3 + $0xe4] sm:$0xf]
      %v1569 = vld [vmem:[%s3 + $0xe8] sm:$0xf]
      %v1570 = vld [vmem:[%s3 + $0xec] sm:$0xf]
      %v1571 = vld [vmem:[%s3 + $0xf0] sm:$0xf]
      %v1572 = vld [vmem:[%s3 + $0xf4] sm:$0xf]
      %v1573 = vld [vmem:[%s3 + $0xf8] sm:$0xf]
      %v1574 = vld [vmem:[%s3 + $0xfc] sm:$0xf]
      %v1575 = vld [vmem:[%s3 + $0x100] sm:$0xf]
      %v1576 = vld [vmem:[%s3 + $0x104] sm:$0xf]
      %v1577 = vld [vmem:[%s3 + $0x108] sm:$0xf]
      %v1578 = vld [vmem:[%s3 + $0x10c] sm:$0xf]
      %v1579 = vld [vmem:[%s3 + $0x110] sm:$0xf]
      %v1580 = vld [vmem:[%s3 + $0x114] sm:$0xf]
      %v1581 = vld [vmem:[%s3 + $0x118] sm:$0xf]
      %v1582 = vld [vmem:[%s3 + $0x11c] sm:$0xf]
      %v1583 = vld [vmem:[%s3 + $0x120] sm:$0xf]
      %v1584 = vld [vmem:[%s3 + $0x124] sm:$0xf]
      %v1585 = vld [vmem:[%s3 + $0x128] sm:$0xf]
      %v1586 = vld [vmem:[%s3 + $0x12c] sm:$0xf]
      %v1587 = vld [vmem:[%s3 + $0x130] sm:$0xf]
      %v1588 = vld [vmem:[%s3 + $0x134] sm:$0xf]
      %v1589 = vld [vmem:[%s3 + $0x138] sm:$0xf]
      %v1590 = vld [vmem:[%s3 + $0x13c] sm:$0xf]
      %v1591 = vld [vmem:[%s3 + $0x140] sm:$0xf]
      %v1592 = vld [vmem:[%s3 + $0x144] sm:$0xf]
      %v1593 = vld [vmem:[%s3 + $0x148] sm:$0xf]
      %v1594 = vld [vmem:[%s3 + $0x14c] sm:$0xf]
      %v1595 = vld [vmem:[%s3 + $0x150] sm:$0xf]
      %v1596 = vld [vmem:[%s3 + $0x154] sm:$0xf]
      %v1597 = vld [vmem:[%s3 + $0x158] sm:$0xf]
      %v1598 = vld [vmem:[%s3 + $0x15c] sm:$0xf]
      %v1599 = vld [vmem:[%s3 + $0x160] sm:$0xf]
      %v1600 = vld [vmem:[%s3 + $0x164] sm:$0xf]
      %v1601 = vld [vmem:[%s3 + $0x168] sm:$0xf]
      %v1602 = vld [vmem:[%s3 + $0x16c] sm:$0xf]
      %v1603 = vld [vmem:[%s3 + $0x170] sm:$0xf]
      %v1604 = vld [vmem:[%s3 + $0x174] sm:$0xf]
      %v1605 = vld [vmem:[%s3 + $0x178] sm:$0xf]
      %v1606 = vld [vmem:[%s3 + $0x17c] sm:$0xf]
      %v1607 = vld [vmem:[%s3 + $0x180] sm:$0xf]
      %v1608 = vld [vmem:[%s3 + $0x184] sm:$0xf]
      %v1609 = vld [vmem:[%s3 + $0x188] sm:$0xf]
      %v1610 = vld [vmem:[%s3 + $0x18c] sm:$0xf]
      %v1611 = vld [vmem:[%s3 + $0x190] sm:$0xf]
      %v1612 = vld [vmem:[%s3 + $0x194] sm:$0xf]
      %v1613 = vld [vmem:[%s3 + $0x198] sm:$0xf]
      %v1614 = vld [vmem:[%s3 + $0x19c] sm:$0xf]
      %v1615 = vld [vmem:[%s3 + $0x1a0] sm:$0xf]
      %v1616 = vld [vmem:[%s3 + $0x1a4] sm:$0xf]
      %v1617 = vld [vmem:[%s3 + $0x1a8] sm:$0xf]
      %v1618 = vld [vmem:[%s3 + $0x1ac] sm:$0xf]
      %v1619 = vld [vmem:[%s4] sm:$0x1]
      %v1621 = vlaneseq
      %v1622 = vshrl.u32 %v1621, 7
      %v1623 = vsub.s32 0, %v1622
      %v1624 = vrot.slane %v1619, %v1623
      %v1734 = vunpack.c.l.b16 %v1511
      %v1735 = vunpack.c.l.b16 %v1512
      %v1736 = vunpack.c.l.b16 %v1513
      %v1737 = vunpack.c.l.b16 %v1514
      %v1738 = vunpack.c.l.b16 %v1515
      %v1739 = vunpack.c.l.b16 %v1516
      %v1740 = vunpack.c.l.b16 %v1517
      %v1741 = vunpack.c.l.b16 %v1518
      %v1742 = vunpack.c.l.b16 %v1519
      %v1743 = vunpack.c.l.b16 %v1520
      %v1744 = vunpack.c.l.b16 %v1521
      %v1745 = vunpack.c.l.b16 %v1522
      %v1746 = vunpack.c.l.b16 %v1523
      %v1747 = vunpack.c.l.b16 %v1524
      %v1748 = vunpack.c.l.b16 %v1525
      %v1749 = vunpack.c.l.b16 %v1526
      %v1750 = vunpack.c.l.b16 %v1527
      %v1751 = vunpack.c.l.b16 %v1528
      %v1752 = vunpack.c.l.b16 %v1529
      %v1753 = vunpack.c.l.b16 %v1530
      %v1754 = vunpack.c.l.b16 %v1531
      %v1755 = vunpack.c.l.b16 %v1532
      %v1756 = vunpack.c.l.b16 %v1533
      %v1757 = vunpack.c.l.b16 %v1534
      %v1758 = vunpack.c.l.b16 %v1535
      %v1759 = vunpack.c.l.b16 %v1536
      %v1760 = vunpack.c.l.b16 %v1537
      %v1761 = vunpack.c.l.b16 %v1538
      %v1762 = vunpack.c.l.b16 %v1539
      %v1763 = vunpack.c.l.b16 %v1540
      %v1764 = vunpack.c.l.b16 %v1541
      %v1765 = vunpack.c.l.b16 %v1542
      %v1766 = vunpack.c.l.b16 %v1543
      %v1767 = vunpack.c.l.b16 %v1544
      %v1768 = vunpack.c.l.b16 %v1545
      %v1769 = vunpack.c.l.b16 %v1546
      %v1770 = vunpack.c.l.b16 %v1547
      %v1771 = vunpack.c.l.b16 %v1548
      %v1772 = vunpack.c.l.b16 %v1549
      %v1773 = vunpack.c.l.b16 %v1550
      %v1774 = vunpack.c.l.b16 %v1551
      %v1775 = vunpack.c.l.b16 %v1552
      %v1776 = vunpack.c.l.b16 %v1553
      %v1777 = vunpack.c.l.b16 %v1554
      %v1778 = vunpack.c.l.b16 %v1555
      %v1779 = vunpack.c.l.b16 %v1556
      %v1780 = vunpack.c.l.b16 %v1557
      %v1781 = vunpack.c.l.b16 %v1558
      %v1782 = vunpack.c.l.b16 %v1559
      %v1783 = vunpack.c.l.b16 %v1560
      %v1784 = vunpack.c.l.b16 %v1561
      %v1785 = vunpack.c.l.b16 %v1562
      %v1786 = vunpack.c.l.b16 %v1563
      %v1787 = vunpack.c.l.b16 %v1564
      %v1788 = vunpack.c.l.b16 %v1565
      %v1789 = vunpack.c.l.b16 %v1566
      %v1790 = vunpack.c.l.b16 %v1567
      %v1791 = vunpack.c.l.b16 %v1568
      %v1792 = vunpack.c.l.b16 %v1569
      %v1793 = vunpack.c.l.b16 %v1570
      %v1794 = vunpack.c.l.b16 %v1571
      %v1795 = vunpack.c.l.b16 %v1572
      %v1796 = vunpack.c.l.b16 %v1573
      %v1797 = vunpack.c.l.b16 %v1574
      %v1798 = vunpack.c.l.b16 %v1575
      %v1799 = vunpack.c.l.b16 %v1576
      %v1800 = vunpack.c.l.b16 %v1577
      %v1801 = vunpack.c.l.b16 %v1578
      %v1802 = vunpack.c.l.b16 %v1579
      %v1803 = vunpack.c.l.b16 %v1580
      %v1804 = vunpack.c.l.b16 %v1581
      %v1805 = vunpack.c.l.b16 %v1582
      %v1806 = vunpack.c.l.b16 %v1583
      %v1807 = vunpack.c.l.b16 %v1584
      %v1808 = vunpack.c.l.b16 %v1585
      %v1809 = vunpack.c.l.b16 %v1586
      %v1810 = vunpack.c.l.b16 %v1587
      %v1811 = vunpack.c.l.b16 %v1588
      %v1812 = vunpack.c.l.b16 %v1589
      %v1813 = vunpack.c.l.b16 %v1590
      %v1814 = vunpack.c.l.b16 %v1591
      %v1815 = vunpack.c.l.b16 %v1592
      %v1816 = vunpack.c.l.b16 %v1593
      %v1817 = vunpack.c.l.b16 %v1594
      %v1818 = vunpack.c.l.b16 %v1595
      %v1819 = vunpack.c.l.b16 %v1596
      %v1820 = vunpack.c.l.b16 %v1597
      %v1821 = vunpack.c.l.b16 %v1598
      %v1822 = vunpack.c.l.b16 %v1599
      %v1823 = vunpack.c.l.b16 %v1600
      %v1824 = vunpack.c.l.b16 %v1601
      %v1825 = vunpack.c.l.b16 %v1602
      %v1826 = vunpack.c.l.b16 %v1603
      %v1827 = vunpack.c.l.b16 %v1604
      %v1828 = vunpack.c.l.b16 %v1605
      %v1829 = vunpack.c.l.b16 %v1606
      %v1830 = vunpack.c.l.b16 %v1607
      %v1831 = vunpack.c.l.b16 %v1608
      %v1832 = vunpack.c.l.b16 %v1609
      %v1833 = vunpack.c.l.b16 %v1610
      %v1834 = vunpack.c.l.b16 %v1611
      %v1835 = vunpack.c.l.b16 %v1612
      %v1836 = vunpack.c.l.b16 %v1613
      %v1837 = vunpack.c.l.b16 %v1614
      %v1838 = vunpack.c.l.b16 %v1615
      %v1839 = vunpack.c.l.b16 %v1616
      %v1840 = vunpack.c.l.b16 %v1617
      %v1841 = vunpack.c.l.b16 %v1618
      %v1842 = vpack.c.b16 %v1735, %v1734
      %v1843 = vpack.c.b16 %v1737, %v1736
      %v1844 = vpack.c.b16 %v1739, %v1738
      %v1845 = vpack.c.b16 %v1741, %v1740
      %v1846 = vpack.c.b16 %v1743, %v1742
      %v1847 = vpack.c.b16 %v1745, %v1744
      %v1848 = vpack.c.b16 %v1747, %v1746
      %v1849 = vpack.c.b16 %v1749, %v1748
      %v1850 = vpack.c.b16 %v1751, %v1750
      %v1851 = vpack.c.b16 %v1753, %v1752
      %v1852 = vpack.c.b16 %v1755, %v1754
      %v1853 = vpack.c.b16 %v1757, %v1756
      %v1854 = vpack.c.b16 %v1759, %v1758
      %v1855 = vpack.c.b16 %v1761, %v1760
      %v1856 = vpack.c.b16 %v1763, %v1762
      %v1857 = vpack.c.b16 %v1765, %v1764
      %v1858 = vpack.c.b16 %v1767, %v1766
      %v1859 = vpack.c.b16 %v1769, %v1768
      %v1860 = vpack.c.b16 %v1771, %v1770
      %v1861 = vpack.c.b16 %v1773, %v1772
      %v1862 = vpack.c.b16 %v1775, %v1774
      %v1863 = vpack.c.b16 %v1777, %v1776
      %v1864 = vpack.c.b16 %v1779, %v1778
      %v1865 = vpack.c.b16 %v1781, %v1780
      %v1866 = vpack.c.b16 %v1783, %v1782
      %v1867 = vpack.c.b16 %v1785, %v1784
      %v1868 = vpack.c.b16 %v1787, %v1786
      %v1869 = vpack.c.b16 %v1789, %v1788
      %v1870 = vpack.c.b16 %v1791, %v1790
      %v1871 = vpack.c.b16 %v1793, %v1792
      %v1872 = vpack.c.b16 %v1795, %v1794
      %v1873 = vpack.c.b16 %v1797, %v1796
      %v1874 = vpack.c.b16 %v1799, %v1798
      %v1875 = vpack.c.b16 %v1801, %v1800
      %v1876 = vpack.c.b16 %v1803, %v1802
      %v1877 = vpack.c.b16 %v1805, %v1804
      %v1878 = vpack.c.b16 %v1807, %v1806
      %v1879 = vpack.c.b16 %v1809, %v1808
      %v1880 = vpack.c.b16 %v1811, %v1810
      %v1881 = vpack.c.b16 %v1813, %v1812
      %v1882 = vpack.c.b16 %v1815, %v1814
      %v1883 = vpack.c.b16 %v1817, %v1816
      %v1884 = vpack.c.b16 %v1819, %v1818
      %v1885 = vpack.c.b16 %v1821, %v1820
      %v1886 = vpack.c.b16 %v1823, %v1822
      %v1887 = vpack.c.b16 %v1825, %v1824
      %v1888 = vpack.c.b16 %v1827, %v1826
      %v1889 = vpack.c.b16 %v1829, %v1828
      %v1890 = vpack.c.b16 %v1831, %v1830
      %v1891 = vpack.c.b16 %v1833, %v1832
      %v1892 = vpack.c.b16 %v1835, %v1834
      %v1893 = vpack.c.b16 %v1837, %v1836
      %v1894 = vpack.c.b16 %v1839, %v1838
      %v1895 = vpack.c.b16 %v1841, %v1840
      %vm1950 = vcmask 785408
      %v1952 = vsel %vm1950, %v1510, 0
      %1954 = vmatprep.subr.bf16.mxu0 0
      %1955 = vmatpush1.bf16.msra.mxu0 %v1842
      %1956 = vmatprep.subr.bf16.mxu0 0
      %1957 = vmatpush1.bf16.msra.mxu0 %v1843
      %1958 = vmatprep.subr.bf16.mxu0 0
      %1959 = vmatpush1.bf16.msra.mxu0 %v1844
      %1960 = vmatprep.subr.bf16.mxu0 0
      %1961 = vmatpush1.bf16.msra.mxu0 %v1845
      %1962 = vmatprep.subr.bf16.mxu0 0
      %1963 = vmatpush1.bf16.msra.mxu0 %v1846
      %1964 = vmatprep.subr.bf16.mxu0 0
      %1965 = vmatpush1.bf16.msra.mxu0 %v1847
      %1966 = vmatprep.subr.bf16.mxu0 0
      %1967 = vmatpush1.bf16.msra.mxu0 %v1848
      %1968 = vmatprep.subr.bf16.mxu0 0
      %1969 = vmatpush1.bf16.msra.mxu0 %v1849
      %1970 = vmatprep.subr.bf16.mxu0 0
      %1971 = vmatpush1.bf16.msra.mxu0 %v1850
      %1972 = vmatprep.subr.bf16.mxu0 0
      %1973 = vmatpush1.bf16.msra.mxu0 %v1851
      %1974 = vmatprep.subr.bf16.mxu0 0
      %1975 = vmatpush1.bf16.msra.mxu0 %v1852
      %1976 = vmatprep.subr.bf16.mxu0 0
      %1977 = vmatpush1.bf16.msra.mxu0 %v1853
      %1978 = vmatprep.subr.bf16.mxu0 0
      %1979 = vmatpush1.bf16.msra.mxu0 %v1854
      %1980 = vmatprep.subr.bf16.mxu0 0
      %1981 = vmatpush1.bf16.msra.mxu0 %v1855
      %1982 = vmatprep.subr.bf16.mxu0 0
      %1983 = vmatpush1.bf16.msra.mxu0 %v1856
      %1984 = vmatprep.subr.bf16.mxu0 0
      %1985 = vmatpush1.bf16.msra.mxu0 %v1857
      %1986 = vmatprep.mubr.bf16.mxu0 %v1505
      %1987 = vmatmul.mubr.bf16.gmra.mrb[0].mxu0 %v1504
      %v1988 = vpop.f32.mrb[0].mxu0
      %v1989 = vadd.f32 %v1624, %v1988
      %v1990 = vpop.f32.mrb[0].mxu0
      %v1991 = vpop.f32.mrb[0].mxu0
      %v1992 = vadd.f32 %v1624, %v1991
      %v1993 = vpop.f32.mrb[0].mxu0
      %1994 = vdwg.mxu0
      %1995 = vmatprep.subr.bf16.mxu0 0
      %1996 = vmatpush1.bf16.msra.mxu0 %v1858
      %1997 = vmatprep.subr.bf16.mxu0 0
      %1998 = vmatpush1.bf16.msra.mxu0 %v1859
      %1999 = vmatprep.subr.bf16.mxu0 0
      %2000 = vmatpush1.bf16.msra.mxu0 %v1860
      %2001 = vmatprep.subr.bf16.mxu0 0
      %2002 = vmatpush1.bf16.msra.mxu0 %v1861
      %2003 = vmatprep.subr.bf16.mxu0 0
      %2004 = vmatpush1.bf16.msra.mxu0 %v1862
      %2005 = vmatprep.subr.bf16.mxu0 0
      %2006 = vmatpush1.bf16.msra.mxu0 %v1863
      %2007 = vmatprep.subr.bf16.mxu0 0
      %2008 = vmatpush1.bf16.msra.mxu0 %v1864
      %2009 = vmatprep.subr.bf16.mxu0 0
      %2010 = vmatpush1.bf16.msra.mxu0 %v1865
      %2011 = vmatprep.subr.bf16.mxu0 0
      %2012 = vmatpush1.bf16.msra.mxu0 %v1866
      %2013 = vmatprep.subr.bf16.mxu0 0
      %2014 = vmatpush1.bf16.msra.mxu0 %v1867
      %2015 = vmatprep.subr.bf16.mxu0 0
      %2016 = vmatpush1.bf16.msra.mxu0 %v1868
      %2017 = vmatprep.subr.bf16.mxu0 0
      %2018 = vmatpush1.bf16.msra.mxu0 %v1869
      %2019 = vmatprep.subr.bf16.mxu0 0
      %2020 = vmatpush1.bf16.msra.mxu0 %v1870
      %2021 = vmatprep.subr.bf16.mxu0 0
      %2022 = vmatpush1.bf16.msra.mxu0 %v1871
      %2023 = vmatprep.subr.bf16.mxu0 0
      %2024 = vmatpush1.bf16.msra.mxu0 %v1872
      %2025 = vmatprep.subr.bf16.mxu0 0
      %2026 = vmatpush1.bf16.msra.mxu0 %v1873
      %2027 = vmatprep.mubr.bf16.mxu0 %v1507
      %2028 = vmatmul.mubr.bf16.gmra.mrb[0].mxu0 %v1506
      %v2029 = vpop.f32.mrb[0].mxu0
      %v2030 = vadd.f32 %v1989, %v2029
      %v2031 = vpop.f32.mrb[0].mxu0
      %v2032 = vpop.f32.mrb[0].mxu0
      %v2033 = vadd.f32 %v1992, %v2032
      %v2034 = vpop.f32.mrb[0].mxu0
      %2035 = vdwg.mxu0
      %2036 = vmatprep.subr.bf16.mxu0 0
      %2037 = vmatpush1.bf16.msra.mxu0 %v1874
      %2038 = vmatprep.subr.bf16.mxu0 0
      %2039 = vmatpush1.bf16.msra.mxu0 %v1875
      %2040 = vmatprep.subr.bf16.mxu0 0
      %2041 = vmatpush1.bf16.msra.mxu0 %v1876
      %2042 = vmatprep.subr.bf16.mxu0 0
      %2043 = vmatpush1.bf16.msra.mxu0 %v1877
      %2044 = vmatprep.subr.bf16.mxu0 0
      %2045 = vmatpush1.bf16.msra.mxu0 %v1878
      %2046 = vmatprep.subr.bf16.mxu0 0
      %2047 = vmatpush1.bf16.msra.mxu0 %v1879
      %2048 = vmatprep.subr.bf16.mxu0 0
      %2049 = vmatpush1.bf16.msra.mxu0 %v1880
      %2050 = vmatprep.subr.bf16.mxu0 0
      %2051 = vmatpush1.bf16.msra.mxu0 %v1881
      %2052 = vmatprep.subr.bf16.mxu0 0
      %2053 = vmatpush1.bf16.msra.mxu0 %v1882
      %2054 = vmatprep.subr.bf16.mxu0 0
      %2055 = vmatpush1.bf16.msra.mxu0 %v1883
      %2056 = vmatprep.subr.bf16.mxu0 0
      %2057 = vmatpush1.bf16.msra.mxu0 %v1884
      %2058 = vmatprep.subr.bf16.mxu0 0
      %2059 = vmatpush1.bf16.msra.mxu0 %v1885
      %2060 = vmatprep.subr.bf16.mxu0 0
      %2061 = vmatpush1.bf16.msra.mxu0 %v1886
      %2062 = vmatprep.subr.bf16.mxu0 0
      %2063 = vmatpush1.bf16.msra.mxu0 %v1887
      %2064 = vmatprep.subr.bf16.mxu0 0
      %2065 = vmatpush1.bf16.msra.mxu0 %v1888
      %2066 = vmatprep.subr.bf16.mxu0 0
      %2067 = vmatpush1.bf16.msra.mxu0 %v1889
      %2068 = vmatprep.mubr.bf16.mxu0 %v1509
      %2069 = vmatmul.mubr.bf16.gmra.mrb[0].mxu0 %v1508
      %v2070 = vpop.f32.mrb[0].mxu0
      %v2071 = vadd.f32 %v2030, %v2070
      %v2072 = vpop.f32.mrb[0].mxu0
      %v2073 = vpop.f32.mrb[0].mxu0
      %v2074 = vadd.f32 %v2033, %v2073
      %v2075 = vpop.f32.mrb[0].mxu0
      %2076 = vdwg.mxu0
      %2077 = vmatprep.subr.bf16.mxu0 0
      %2078 = vmatpush1.bf16.msra.mxu0 %v1890
      %2079 = vmatprep.subr.bf16.mxu0 0
      %2080 = vmatpush1.bf16.msra.mxu0 %v1891
      %2081 = vmatprep.subr.bf16.mxu0 0
      %2082 = vmatpush1.bf16.msra.mxu0 %v1892
      %2083 = vmatprep.subr.bf16.mxu0 0
      %2084 = vmatpush1.bf16.msra.mxu0 %v1893
      %2085 = vmatprep.subr.bf16.mxu0 0
      %2086 = vmatpush1.bf16.msra.mxu0 %v1894
      %2087 = vmatprep.subr.bf16.mxu0 0
      %2088 = vmatpush1.bf16.msra.mxu0 %v1895
      %2089 = vmatprep.subr.bf16.mxu0 0
      %2090 = vmatpush1.bf16.msra.mxu0 0
      %2091 = vmatprep.subr.bf16.mxu0 0
      %2092 = vmatpush1.bf16.msra.mxu0 0
      %2093 = vmatprep.subr.bf16.mxu0 0
      %2094 = vmatpush1.bf16.msra.mxu0 0
      %2095 = vmatprep.subr.bf16.mxu0 0
      %2096 = vmatpush1.bf16.msra.mxu0 0
      %2097 = vmatprep.subr.bf16.mxu0 0
      %2098 = vmatpush1.bf16.msra.mxu0 0
      %2099 = vmatprep.subr.bf16.mxu0 0
      %2100 = vmatpush1.bf16.msra.mxu0 0
      %2101 = vmatprep.subr.bf16.mxu0 0
      %2102 = vmatpush1.bf16.msra.mxu0 0
      %2103 = vmatprep.subr.bf16.mxu0 0
      %2104 = vmatpush1.bf16.msra.mxu0 0
      %2105 = vmatprep.subr.bf16.mxu0 0
      %2106 = vmatpush1.bf16.msra.mxu0 0
      %2107 = vmatprep.subr.bf16.mxu0 0
      %2108 = vmatpush1.bf16.msra.mxu0 0
      %2109 = vmatprep.mubr.bf16.mxu0 0
      %2110 = vmatmul.mubr.bf16.gmra.mrb[0].mxu0 %v1952
      %v2111 = vpop.f32.mrb[0].mxu0
      %v2112 = vadd.f32 %v2071, %v2111
      %v2113 = vpop.f32.mrb[0].mxu0
      %v2114 = vpop.f32.mrb[0].mxu0
      %v2115 = vadd.f32 %v2074, %v2114
      %v2116 = vpop.f32.mrb[0].mxu0
      %2117 = vdwg.mxu0
      %v2118 = vmax.f32 %v2112, 0.0
      %v2119 = vmax.f32 %v2115, 0.0
      %vm2120 = vcmask 523264
      %2121 = vst.msk [vmem:[%s342] sm:$0xff] %vm2120, %v2118
      %2122 = vst.msk [vmem:[%s342 + $0x8] sm:$0xff] %vm2120, %v2119
      %p2123 = scmp.lt.s32.totalorder %s20, 1
      %s2124 = scalar_select %p2123, %s20, 1
      %p2125 = scmp.lt.s32.totalorder %s21, 3
      %s2126 = scalar_select %p2125, %s21, 3
      %s2127 = smul.addr %s2126, 2
      %s2128 = smul.addr %s2124, 8
      %s2129 = sadd.s32 %s2127, %s2128
      %s2130 = smul.addr %s2129, 8
      %s2131 = scalar_lea.vmem %s5, %s2130
      // Predicated region
      $region41: #{conv3d_model_forward.10} parent=39 // pred_check
        %p2132 = pneg %p178
      $region42: #{conv3d_model_forward.10} parent=39 // pred_check_branch
        %2134 = sbr.rel (%p2132) target = $region44
      $region43: #{conv3d_model_forward.10} parent=39 // pred_region
        _
      $region44: #{conv3d_model_forward.10} parent=39 // pred_fallthru
        _
    $region40: #{conv3d_model_forward.10} parent=5 // pred_fallthru
      _
    %p2135 = scmp.le.s32.totalorder 2, %s11
    // Predicated region
    $region45: #{conv3d_model_forward.10} parent=5 // pred_check
      %p2136 = pneg %p2135
    $region46: #{conv3d_model_forward.10} parent=5 // pred_check_branch
      %2138 = sbr.rel (%p2136) target = $region48
    $region47: #{conv3d_model_forward.10} parent=5 // pred_region
      %s2139 = ssub.s32 %s11, 2
      // Predicated region
      $region49: #{conv3d_model_forward.10} parent=47 // pred_check
        %p2140 = pneg %p184
      $region50: #{conv3d_model_forward.10} parent=47 // pred_check_branch
        %2142 = sbr.rel (%p2140) target = $region52
      $region51: #{conv3d_model_forward.10} parent=47 // pred_region
        %p2143 = scmp.lt.s32.totalorder %s22, 1
        %s2144 = scalar_select %p2143, %s22, 1
        %p2145 = scmp.lt.s32.totalorder %s23, 3
        %s2146 = scalar_select %p2145, %s23, 3
        %s2147 = smul.addr %s2146, 2
        %s2148 = smul.addr %s2144, 8
        %s2149 = sadd.s32 %s2147, %s2148
        %s2150 = smul.addr %s2149, 8
        %s2151 = scalar_lea.vmem %s5, %s2150
      $region52: #{conv3d_model_forward.10} parent=47 // pred_fallthru
        _
    $region48: #{conv3d_model_forward.10} parent=5 // pred_fallthru
      _
  $region6: #{conv3d_model_forward.10} parent=0 // loop_footer
    %s15 = sadd.s32 1, %s11
  $region7: #{conv3d_model_forward.10} parent=0 // loop_footer_branch
    %10 = sbr.rel target = $region3
  $region8: #{conv3d_model_forward.10} parent=0 // loop_exit
    _

</llo_original>
